<compile_context>
chip_gen: v5e
topology: v5e:2x2
jax: 0.10.0
libtpu: 0.0.40
codegen_flags: <defaults>
</compile_context>

<pallas_src>
import jax
import jax.numpy as jnp
from jax.experimental import pallas as pl
from jax.experimental.pallas import tpu as pltpu

EPS = 1e-5        # nn.BatchNorm2d default eps
NEG_SLOPE = 0.1   # LeakyReLU negative slope used by the module


# ----------------------------- Pallas kernels ------------------------------

def _matmul_bias_lrelu_kernel(p_ref, w_ref, b_ref, o_ref):
    # [M, K](bf16) @ [K, Cout](bf16) -> f32 accum, + bias, LeakyReLU(0.1).
    y = jnp.dot(p_ref[...], w_ref[...], preferred_element_type=jnp.float32)
    y = y + b_ref[...]
    o_ref[...] = jnp.maximum(y, NEG_SLOPE * y)


def _matmul_bn_lrelu_kernel(p_ref, w_ref, g_ref, b_ref, o_ref):
    # Matmul, then BatchNorm over the row axis (rows enumerate (n, oh, ow),
    # i.e. the (N, H, W) axes), affine, LeakyReLU(0.1).  Requires the whole M
    # in one block so the batch statistics are exact.
    y = jnp.dot(p_ref[...], w_ref[...], preferred_element_type=jnp.float32)
    mean = jnp.mean(y, axis=0, keepdims=True)
    var = jnp.mean(jnp.square(y - mean), axis=0, keepdims=True)
    y = (y - mean) * jax.lax.rsqrt(var + EPS)
    y = y * g_ref[...] + b_ref[...]
    o_ref[...] = jnp.maximum(y, NEG_SLOPE * y)


# --------------------------- conv glue (NHWC layout) ------------------------

def _im2col_s2(xp, K):
    """Stride-2 im2col of a padded NHWC tensor -> [N*Ho*Wo, K*K*C].
    Feature ordering is (kh, kw, c), matching `_weight_matrix`."""
    N, Hp, Wp, C = xp.shape
    Ho = (Hp - K) // 2 + 1
    Wo = (Wp - K) // 2 + 1
    cols = [xp[:, kh:kh + 2 * Ho:2, kw:kw + 2 * Wo:2, :]
            for kh in range(K) for kw in range(K)]
    p = jnp.concatenate(cols, axis=-1)                  # [N, Ho, Wo, K*K*C]
    return p.reshape(N * Ho * Wo, K * K * C), Ho, Wo


def _weight_matrix(w):
    """PyTorch Conv2d weight (Cout, Cin, K, K) -> [K*K*Cin, Cout] with row
    ordering (kh, kw, cin) to match `_im2col_s2`."""
    Cout, Cin, K, _ = w.shape
    return jnp.transpose(w, (2, 3, 1, 0)).reshape(K * K * Cin, Cout)


# ------------------------------ layer wrapper -------------------------------

def conv_block(x, w, pad, *, bias=None, gamma=None, beta=None):
    """Conv2d(K=4, stride=2, pad) -> (bias | BatchNorm(batch stats)) ->
    LeakyReLU(0.1).  Input and output are NHWC."""
    N, H, W, Cin = x.shape
    Cout, _, K, _ = w.shape

    xp = jnp.pad(x, ((0, 0), (pad, pad), (pad, pad), (0, 0)))
    patches, Ho, Wo = _im2col_s2(xp.astype(jnp.bfloat16), K)
    w_mat = _weight_matrix(w).astype(jnp.bfloat16)
    M, Kd = patches.shape

    if gamma is None:
        kernel = _matmul_bias_lrelu_kernel
        aux = (bias.reshape(1, Cout).astype(jnp.float32),)
    else:
        kernel = _matmul_bn_lrelu_kernel
        aux = (gamma.reshape(1, Cout).astype(jnp.float32),
               beta.reshape(1, Cout).astype(jnp.float32))

    # Single full block per layer: exact BatchNorm stats, no ragged-tile
    # padding/slicing, no pipeline-step overhead for this tiny network.
    # TODO(synk): restructure as a two-pass (stats, then normalize) tiled
    # kernel if M * Cout ever outgrows VMEM.
    vmem_bytes = (patches.size * 2 + w_mat.size * 2 + M * Cout * 4
                  + sum(a.size * 4 for a in aux))
    assert vmem_bytes < 24 * 1024 * 1024, vmem_bytes
    vmem_limit = int(min(32 << 20, max(16 << 20, 2 * vmem_bytes + (2 << 20))))

    out = pl.pallas_call(
        kernel,
        out_shape=jax.ShapeDtypeStruct((M, Cout), jnp.float32),
        grid=(1,),
        in_specs=[pl.BlockSpec((M, Kd), lambda i: (0, 0)),
                  pl.BlockSpec((Kd, Cout), lambda i: (0, 0))]
                 + [pl.BlockSpec((1, Cout), lambda i: (0, 0)) for _ in aux],
        out_specs=pl.BlockSpec((M, Cout), lambda i: (0, 0)),
        compiler_params=pltpu.CompilerParams(
            dimension_semantics=("arbitrary",),
            vmem_limit_bytes=vmem_limit),
    )(patches, w_mat, *aux)

    return out.reshape(N, Ho, Wo, Cout)      # stay NHWC between layers


def discriminator_forward(x_nchw, p):
    x = jnp.transpose(x_nchw, (0, 2, 3, 1))                         # NCHW->NHWC once
    x = conv_block(x, p["w1"], 1, bias=p["b1"])                     # (N, H/2, W/2,  64)
    x = conv_block(x, p["w2"], 1, gamma=p["g2"], beta=p["be2"])     # (N, H/4, W/4, 128)
    x = conv_block(x, p["w3"], 1, gamma=p["g3"], beta=p["be3"])     # (N, H/8, W/8, 256)
    return jnp.transpose(x, (0, 3, 1, 2))                           # NHWC->NCHW (module output)


# ----------------------------- pure-JAX reference ----------------------------

def _conv_ref(x, w, stride=2, pad=1):
    return jax.lax.conv_general_dilated(
        x, w, window_strides=(stride, stride), padding=[(pad, pad)] * 2,
        dimension_numbers=("NCHW", "OIHW", "NCHW"))


def _bn_train_ref(y, g, b):
    mean = jnp.mean(y, axis=(0, 2, 3), keepdims=True)
    var = jnp.mean(jnp.square(y - mean), axis=(0, 2, 3), keepdims=True)
    return (y - mean) * jax.lax.rsqrt(var + EPS) * g.reshape(1, -1, 1, 1) \
        + b.reshape(1, -1, 1, 1)


def _lrelu_ref(y):
    return jnp.where(y > 0, y, NEG_SLOPE * y)


def discriminator_ref(x, p):
    y = _lrelu_ref(_conv_ref(x, p["w1"]) + p["b1"].reshape(1, -1, 1, 1))
    y = _lrelu_ref(_bn_train_ref(_conv_ref(y, p["w2"]), p["g2"], p["be2"]))
    y = _lrelu_ref(_bn_train_ref(_conv_ref(y, p["w3"]), p["g3"], p["be3"]))
    return y


# ---------------------------------- params ----------------------------------

def init_params(key):
    ks = jax.random.split(key, 8)

    def w_init(k, cout, cin, ksz):
        return 0.05 * jax.random.normal(k, (cout, cin, ksz, ksz), jnp.float32)

    return {
        "w1": w_init(ks[0], 64, 1, 4),
        "b1": 0.1 * jax.random.normal(ks[1], (64,), jnp.float32),
        "w2": w_init(ks[2], 128, 64, 4),
        "g2": 1.0 + 0.1 * jax.random.normal(ks[3], (128,), jnp.float32),
        "be2": 0.1 * jax.random.normal(ks[4], (128,), jnp.float32),
        "w3": w_init(ks[5], 256, 128, 4),
        "g3": 1.0 + 0.1 * jax.random.normal(ks[6], (256,), jnp.float32),
        "be3": 0.1 * jax.random.normal(ks[7], (256,), jnp.float32),
    }


if __name__ == "__main__":
    key = jax.random.PRNGKey(0)
    kx, kp = jax.random.split(key)
    params = init_params(kp)
    # DCGAN-style discriminator input: batch=2, 1 channel, 64x64 image (NCHW).
    x = jax.random.normal(kx, (2, 1, 64, 64), jnp.float32)

    out = jax.jit(discriminator_forward)(x, params)
    out = jax.block_until_ready(out)
    assert out.shape == (2, 256, 8, 8), out.shape

    ref = discriminator_ref(x, params)
    err = float(jnp.max(jnp.abs(out - ref)))
    # bf16 matmul operands (f32 accumulation/epilogue) vs an all-f32 reference.
    assert err < 1e-1, f"max abs diff vs reference too large: {err}"

    print("KERNEL_OK")
</pallas_src>

<mosaic_0001>
module attributes {stable_mosaic.version = 11 : i64} {
  func.func @_matmul_bias_lrelu_kernel(%arg0: i32, %arg1: memref<2048x16xbf16, #tpu.memory_space<vmem>>, %arg2: memref<16x64xbf16, #tpu.memory_space<vmem>>, %arg3: memref<1x64xf32, #tpu.memory_space<vmem>>, %arg4: memref<2048x64xf32, #tpu.memory_space<vmem>>) attributes {dimension_semantics = [#tpu.dimension_semantics<arbitrary>], iteration_bounds = array<i64: 1>, scalar_prefetch = 0 : i64, scratch_operands = 0 : i64, tpu.core_type = #tpu.core_type<tc>, window_params = [{pipeline_mode = #tpu.pipeline_mode<synchronous>, transform_indices = @transform_0, window_bounds = array<i64: 2048, 16>}, {pipeline_mode = #tpu.pipeline_mode<synchronous>, transform_indices = @transform_1, window_bounds = array<i64: 16, 64>}, {pipeline_mode = #tpu.pipeline_mode<synchronous>, transform_indices = @transform_2, window_bounds = array<i64: 1, 64>}, {pipeline_mode = #tpu.pipeline_mode<synchronous>, transform_indices = @transform_3, window_bounds = array<i64: 2048, 64>}]} {
    %c0 = arith.constant 0 : index
    %c0_0 = arith.constant 0 : index
    %0 = vector.load %arg1[%c0, %c0_0] : memref<2048x16xbf16, #tpu.memory_space<vmem>>, vector<2048x16xbf16>
    %c0_1 = arith.constant 0 : index
    %c0_2 = arith.constant 0 : index
    %1 = vector.load %arg2[%c0_1, %c0_2] : memref<16x64xbf16, #tpu.memory_space<vmem>>, vector<16x64xbf16>
    %cst = arith.constant dense<0.000000e+00> : vector<2048x64xf32>
    %2 = tpu.matmul %0, %1, %cst {dimension_numbers = #tpu.dot_dimension_numbers<[1], [0], [0], [1], [0, 0, 1, 1], [], []>} : vector<2048x16xbf16>, vector<16x64xbf16>, vector<2048x64xf32> -> vector<2048x64xf32>
    %c0_3 = arith.constant 0 : index
    %c0_4 = arith.constant 0 : index
    %3 = vector.load %arg3[%c0_3, %c0_4] : memref<1x64xf32, #tpu.memory_space<vmem>>, vector<1x64xf32>
    %4 = vector.broadcast %3 : vector<1x64xf32> to vector<2048x64xf32>
    %5 = arith.addf %2, %4 : vector<2048x64xf32>
    %cst_5 = arith.constant 1.000000e-01 : f32
    %6 = vector.broadcast %cst_5 : f32 to vector<2048x64xf32>
    %7 = arith.mulf %6, %5 : vector<2048x64xf32>
    %8 = arith.maximumf %5, %7 : vector<2048x64xf32>
    %c0_6 = arith.constant 0 : index
    %c0_7 = arith.constant 0 : index
    %9 = vector.load %arg4[%c0_6, %c0_7] : memref<2048x64xf32, #tpu.memory_space<vmem>>, vector<2048x64xf32>
    tpu.vector_store %arg4[%c0_6, %c0_7], %8 {strides = array<i32>} : memref<2048x64xf32, #tpu.memory_space<vmem>>, vector<2048x64xf32>,
    return
  }
  func.func @transform_0(%arg0: i32) -> (i32, i32) {
    %c0_i32 = arith.constant 0 : i32
    %c0_i32_0 = arith.constant 0 : i32
    %c0_i32_1 = arith.constant 0 : i32
    return %c0_i32, %c0_i32_0 : i32, i32
  }
  func.func @transform_1(%arg0: i32) -> (i32, i32) {
    %c0_i32 = arith.constant 0 : i32
    %c0_i32_0 = arith.constant 0 : i32
    %c0_i32_1 = arith.constant 0 : i32
    return %c0_i32, %c0_i32_0 : i32, i32
  }
  func.func @transform_2(%arg0: i32) -> (i32, i32) {
    %c0_i32 = arith.constant 0 : i32
    %c0_i32_0 = arith.constant 0 : i32
    %c0_i32_1 = arith.constant 0 : i32
    return %c0_i32, %c0_i32_0 : i32, i32
  }
  func.func @transform_3(%arg0: i32) -> (i32, i32) {
    %c0_i32 = arith.constant 0 : i32
    %c0_i32_0 = arith.constant 0 : i32
    %c0_i32_1 = arith.constant 0 : i32
    return %c0_i32, %c0_i32_0 : i32, i32
  }
}

module attributes {stable_mosaic.version = 11 : i64} {
  func.func @_matmul_bn_lrelu_kernel(%arg0: i32, %arg1: memref<512x1024xbf16, #tpu.memory_space<vmem>>, %arg2: memref<1024x128xbf16, #tpu.memory_space<vmem>>, %arg3: memref<1x128xf32, #tpu.memory_space<vmem>>, %arg4: memref<1x128xf32, #tpu.memory_space<vmem>>, %arg5: memref<512x128xf32, #tpu.memory_space<vmem>>) attributes {dimension_semantics = [#tpu.dimension_semantics<arbitrary>], iteration_bounds = array<i64: 1>, scalar_prefetch = 0 : i64, scratch_operands = 0 : i64, tpu.core_type = #tpu.core_type<tc>, window_params = [{pipeline_mode = #tpu.pipeline_mode<synchronous>, transform_indices = @transform_0, window_bounds = array<i64: 512, 1024>}, {pipeline_mode = #tpu.pipeline_mode<synchronous>, transform_indices = @transform_1, window_bounds = array<i64: 1024, 128>}, {pipeline_mode = #tpu.pipeline_mode<synchronous>, transform_indices = @transform_2, window_bounds = array<i64: 1, 128>}, {pipeline_mode = #tpu.pipeline_mode<synchronous>, transform_indices = @transform_3, window_bounds = array<i64: 1, 128>}, {pipeline_mode = #tpu.pipeline_mode<synchronous>, transform_indices = @transform_4, window_bounds = array<i64: 512, 128>}]} {
    %c0 = arith.constant 0 : index
    %c0_0 = arith.constant 0 : index
    %0 = vector.load %arg1[%c0, %c0_0] : memref<512x1024xbf16, #tpu.memory_space<vmem>>, vector<512x1024xbf16>
    %c0_1 = arith.constant 0 : index
    %c0_2 = arith.constant 0 : index
    %1 = vector.load %arg2[%c0_1, %c0_2] : memref<1024x128xbf16, #tpu.memory_space<vmem>>, vector<1024x128xbf16>
    %cst = arith.constant dense<0.000000e+00> : vector<512x128xf32>
    %2 = tpu.matmul %0, %1, %cst {dimension_numbers = #tpu.dot_dimension_numbers<[1], [0], [0], [1], [0, 0, 1, 1], [], []>} : vector<512x1024xbf16>, vector<1024x128xbf16>, vector<512x128xf32> -> vector<512x128xf32>
    %cst_3 = arith.constant dense<0.000000e+00> : vector<128xf32>
    %3 = vector.multi_reduction <add>, %2, %cst_3 [0] : vector<512x128xf32> to vector<128xf32>
    %4 = vector.shape_cast %3 : vector<128xf32> to vector<1x128xf32>
    %cst_4 = arith.constant 5.120000e+02 : f32
    %5 = vector.broadcast %cst_4 : f32 to vector<1x128xf32>
    %6 = arith.divf %4, %5 : vector<1x128xf32>
    %7 = vector.broadcast %6 : vector<1x128xf32> to vector<512x128xf32>
    %8 = arith.subf %2, %7 : vector<512x128xf32>
    %9 = arith.mulf %8, %8 : vector<512x128xf32>
    %cst_5 = arith.constant dense<0.000000e+00> : vector<128xf32>
    %10 = vector.multi_reduction <add>, %9, %cst_5 [0] : vector<512x128xf32> to vector<128xf32>
    %11 = vector.shape_cast %10 : vector<128xf32> to vector<1x128xf32>
    %cst_6 = arith.constant 5.120000e+02 : f32
    %12 = vector.broadcast %cst_6 : f32 to vector<1x128xf32>
    %13 = arith.divf %11, %12 : vector<1x128xf32>
    %14 = vector.broadcast %6 : vector<1x128xf32> to vector<512x128xf32>
    %15 = arith.subf %2, %14 : vector<512x128xf32>
    %cst_7 = arith.constant 9.99999974E-6 : f32
    %16 = vector.broadcast %cst_7 : f32 to vector<1x128xf32>
    %17 = arith.addf %13, %16 : vector<1x128xf32>
    %18 = math.rsqrt %17 : vector<1x128xf32>
    %19 = vector.broadcast %18 : vector<1x128xf32> to vector<512x128xf32>
    %20 = arith.mulf %15, %19 : vector<512x128xf32>
    %c0_8 = arith.constant 0 : index
    %c0_9 = arith.constant 0 : index
    %21 = vector.load %arg3[%c0_8, %c0_9] : memref<1x128xf32, #tpu.memory_space<vmem>>, vector<1x128xf32>
    %22 = vector.broadcast %21 : vector<1x128xf32> to vector<512x128xf32>
    %23 = arith.mulf %20, %22 : vector<512x128xf32>
    %c0_10 = arith.constant 0 : index
    %c0_11 = arith.constant 0 : index
    %24 = vector.load %arg4[%c0_10, %c0_11] : memref<1x128xf32, #tpu.memory_space<vmem>>, vector<1x128xf32>
    %25 = vector.broadcast %24 : vector<1x128xf32> to vector<512x128xf32>
    %26 = arith.addf %23, %25 : vector<512x128xf32>
    %cst_12 = arith.constant 1.000000e-01 : f32
    %27 = vector.broadcast %cst_12 : f32 to vector<512x128xf32>
    %28 = arith.mulf %27, %26 : vector<512x128xf32>
    %29 = arith.maximumf %26, %28 : vector<512x128xf32>
    %c0_13 = arith.constant 0 : index
    %c0_14 = arith.constant 0 : index
    %30 = vector.load %arg5[%c0_13, %c0_14] : memref<512x128xf32, #tpu.memory_space<vmem>>, vector<512x128xf32>
    tpu.vector_store %arg5[%c0_13, %c0_14], %29 {strides = array<i32>} : memref<512x128xf32, #tpu.memory_space<vmem>>, vector<512x128xf32>,
    return
  }
  func.func @transform_0(%arg0: i32) -> (i32, i32) {
    %c0_i32 = arith.constant 0 : i32
    %c0_i32_0 = arith.constant 0 : i32
    %c0_i32_1 = arith.constant 0 : i32
    return %c0_i32, %c0_i32_0 : i32, i32
  }
  func.func @transform_1(%arg0: i32) -> (i32, i32) {
    %c0_i32 = arith.constant 0 : i32
    %c0_i32_0 = arith.constant 0 : i32
    %c0_i32_1 = arith.constant 0 : i32
    return %c0_i32, %c0_i32_0 : i32, i32
  }
  func.func @transform_2(%arg0: i32) -> (i32, i32) {
    %c0_i32 = arith.constant 0 : i32
    %c0_i32_0 = arith.constant 0 : i32
    %c0_i32_1 = arith.constant 0 : i32
    return %c0_i32, %c0_i32_0 : i32, i32
  }
  func.func @transform_3(%arg0: i32) -> (i32, i32) {
    %c0_i32 = arith.constant 0 : i32
    %c0_i32_0 = arith.constant 0 : i32
    %c0_i32_1 = arith.constant 0 : i32
    return %c0_i32, %c0_i32_0 : i32, i32
  }
  func.func @transform_4(%arg0: i32) -> (i32, i32) {
    %c0_i32 = arith.constant 0 : i32
    %c0_i32_0 = arith.constant 0 : i32
    %c0_i32_1 = arith.constant 0 : i32
    return %c0_i32, %c0_i32_0 : i32, i32
  }
}

module attributes {stable_mosaic.version = 11 : i64} {
  func.func @_matmul_bn_lrelu_kernel(%arg0: i32, %arg1: memref<128x2048xbf16, #tpu.memory_space<vmem>>, %arg2: memref<2048x256xbf16, #tpu.memory_space<vmem>>, %arg3: memref<1x256xf32, #tpu.memory_space<vmem>>, %arg4: memref<1x256xf32, #tpu.memory_space<vmem>>, %arg5: memref<128x256xf32, #tpu.memory_space<vmem>>) attributes {dimension_semantics = [#tpu.dimension_semantics<arbitrary>], iteration_bounds = array<i64: 1>, scalar_prefetch = 0 : i64, scratch_operands = 0 : i64, tpu.core_type = #tpu.core_type<tc>, window_params = [{pipeline_mode = #tpu.pipeline_mode<synchronous>, transform_indices = @transform_0, window_bounds = array<i64: 128, 2048>}, {pipeline_mode = #tpu.pipeline_mode<synchronous>, transform_indices = @transform_1, window_bounds = array<i64: 2048, 256>}, {pipeline_mode = #tpu.pipeline_mode<synchronous>, transform_indices = @transform_2, window_bounds = array<i64: 1, 256>}, {pipeline_mode = #tpu.pipeline_mode<synchronous>, transform_indices = @transform_3, window_bounds = array<i64: 1, 256>}, {pipeline_mode = #tpu.pipeline_mode<synchronous>, transform_indices = @transform_4, window_bounds = array<i64: 128, 256>}]} {
    %c0 = arith.constant 0 : index
    %c0_0 = arith.constant 0 : index
    %0 = vector.load %arg1[%c0, %c0_0] : memref<128x2048xbf16, #tpu.memory_space<vmem>>, vector<128x2048xbf16>
    %c0_1 = arith.constant 0 : index
    %c0_2 = arith.constant 0 : index
    %1 = vector.load %arg2[%c0_1, %c0_2] : memref<2048x256xbf16, #tpu.memory_space<vmem>>, vector<2048x256xbf16>
    %cst = arith.constant dense<0.000000e+00> : vector<128x256xf32>
    %2 = tpu.matmul %0, %1, %cst {dimension_numbers = #tpu.dot_dimension_numbers<[1], [0], [0], [1], [0, 0, 1, 1], [], []>} : vector<128x2048xbf16>, vector<2048x256xbf16>, vector<128x256xf32> -> vector<128x256xf32>
    %cst_3 = arith.constant dense<0.000000e+00> : vector<256xf32>
    %3 = vector.multi_reduction <add>, %2, %cst_3 [0] : vector<128x256xf32> to vector<256xf32>
    %4 = vector.shape_cast %3 : vector<256xf32> to vector<1x256xf32>
    %cst_4 = arith.constant 1.280000e+02 : f32
    %5 = vector.broadcast %cst_4 : f32 to vector<1x256xf32>
    %6 = arith.divf %4, %5 : vector<1x256xf32>
    %7 = vector.broadcast %6 : vector<1x256xf32> to vector<128x256xf32>
    %8 = arith.subf %2, %7 : vector<128x256xf32>
    %9 = arith.mulf %8, %8 : vector<128x256xf32>
    %cst_5 = arith.constant dense<0.000000e+00> : vector<256xf32>
    %10 = vector.multi_reduction <add>, %9, %cst_5 [0] : vector<128x256xf32> to vector<256xf32>
    %11 = vector.shape_cast %10 : vector<256xf32> to vector<1x256xf32>
    %cst_6 = arith.constant 1.280000e+02 : f32
    %12 = vector.broadcast %cst_6 : f32 to vector<1x256xf32>
    %13 = arith.divf %11, %12 : vector<1x256xf32>
    %14 = vector.broadcast %6 : vector<1x256xf32> to vector<128x256xf32>
    %15 = arith.subf %2, %14 : vector<128x256xf32>
    %cst_7 = arith.constant 9.99999974E-6 : f32
    %16 = vector.broadcast %cst_7 : f32 to vector<1x256xf32>
    %17 = arith.addf %13, %16 : vector<1x256xf32>
    %18 = math.rsqrt %17 : vector<1x256xf32>
    %19 = vector.broadcast %18 : vector<1x256xf32> to vector<128x256xf32>
    %20 = arith.mulf %15, %19 : vector<128x256xf32>
    %c0_8 = arith.constant 0 : index
    %c0_9 = arith.constant 0 : index
    %21 = vector.load %arg3[%c0_8, %c0_9] : memref<1x256xf32, #tpu.memory_space<vmem>>, vector<1x256xf32>
    %22 = vector.broadcast %21 : vector<1x256xf32> to vector<128x256xf32>
    %23 = arith.mulf %20, %22 : vector<128x256xf32>
    %c0_10 = arith.constant 0 : index
    %c0_11 = arith.constant 0 : index
    %24 = vector.load %arg4[%c0_10, %c0_11] : memref<1x256xf32, #tpu.memory_space<vmem>>, vector<1x256xf32>
    %25 = vector.broadcast %24 : vector<1x256xf32> to vector<128x256xf32>
    %26 = arith.addf %23, %25 : vector<128x256xf32>
    %cst_12 = arith.constant 1.000000e-01 : f32
    %27 = vector.broadcast %cst_12 : f32 to vector<128x256xf32>
    %28 = arith.mulf %27, %26 : vector<128x256xf32>
    %29 = arith.maximumf %26, %28 : vector<128x256xf32>
    %c0_13 = arith.constant 0 : index
    %c0_14 = arith.constant 0 : index
    %30 = vector.load %arg5[%c0_13, %c0_14] : memref<128x256xf32, #tpu.memory_space<vmem>>, vector<128x256xf32>
    tpu.vector_store %arg5[%c0_13, %c0_14], %29 {strides = array<i32>} : memref<128x256xf32, #tpu.memory_space<vmem>>, vector<128x256xf32>,
    return
  }
  func.func @transform_0(%arg0: i32) -> (i32, i32) {
    %c0_i32 = arith.constant 0 : i32
    %c0_i32_0 = arith.constant 0 : i32
    %c0_i32_1 = arith.constant 0 : i32
    return %c0_i32, %c0_i32_0 : i32, i32
  }
  func.func @transform_1(%arg0: i32) -> (i32, i32) {
    %c0_i32 = arith.constant 0 : i32
    %c0_i32_0 = arith.constant 0 : i32
    %c0_i32_1 = arith.constant 0 : i32
    return %c0_i32, %c0_i32_0 : i32, i32
  }
  func.func @transform_2(%arg0: i32) -> (i32, i32) {
    %c0_i32 = arith.constant 0 : i32
    %c0_i32_0 = arith.constant 0 : i32
    %c0_i32_1 = arith.constant 0 : i32
    return %c0_i32, %c0_i32_0 : i32, i32
  }
  func.func @transform_3(%arg0: i32) -> (i32, i32) {
    %c0_i32 = arith.constant 0 : i32
    %c0_i32_0 = arith.constant 0 : i32
    %c0_i32_1 = arith.constant 0 : i32
    return %c0_i32, %c0_i32_0 : i32, i32
  }
  func.func @transform_4(%arg0: i32) -> (i32, i32) {
    %c0_i32 = arith.constant 0 : i32
    %c0_i32_0 = arith.constant 0 : i32
    %c0_i32_1 = arith.constant 0 : i32
    return %c0_i32, %c0_i32_0 : i32, i32
  }
}

</mosaic_0001>

<llo_original>
// kernel: discriminator_forward.3
$region0: #{discriminator_forward.3}
  #allocation0 [shape = 'u32[]', space=smem, size = 0x4, offset = 0x4, fixed_abs, tag = 'smem constant byte address 0x4 - core index']
  #allocation1 [shape = 'u32[72,128]{1,0:T(1,128)}', space=vmem, size = 0x9000, scoped, tag = 'internal scratch']
  %s0 = inlined_call_operand.vmem [shape: bf16[2048,16], index: 0, kind: input, shape index: {}]
  %s1 = inlined_call_operand.vmem [shape: bf16[16,64], index: 1, kind: input, shape index: {}]
  %s2 = inlined_call_operand.hbm [shape: f32[1,64], index: 2, kind: input, shape index: {}]
  %s3 = inlined_call_operand.vmem [shape: f32[2048,64], index: 3, kind: output, shape index: {}]
  %s4 = sld [smem:[#allocation0]]
  $region26: #{discriminator_forward.3} parent=0
    _
  %s6 = ssub.s32 1, %s4
  %s7 = scalar_select 0, %s6, %s4
  $region1: #{discriminator_forward.3} parent=0
    #allocation2 [shape = 'u8[512]{0}', space=vmem, size = 0x400, scoped, tag = 'input window, operand 2, single buffered']
    #allocation3 [shape = 's32[1]{0}', space=sflag, size = 0x4, scoped, tag = 'scoped memory for discriminator_forward.3']
    %8 = vsyncpa [#allocation3], 0
    // Predicated region
    $region2: #{discriminator_forward.3} parent=1 // pred_check
      _
    $region3: #{discriminator_forward.3} parent=1 // pred_check_branch
      %10 = sbr.rel (0) target = $region5
    $region4: #{discriminator_forward.3} parent=1 // pred_region
      _
    $region5: #{discriminator_forward.3} parent=1 // pred_fallthru
      _
    // Predicated region
    $region6: #{discriminator_forward.3} parent=1 // pred_check
      _
    $region7: #{discriminator_forward.3} parent=1 // pred_check_branch
      %12 = sbr.rel (0) target = $region9
    $region8: #{discriminator_forward.3} parent=1 // pred_region
      _
    $region9: #{discriminator_forward.3} parent=1 // pred_fallthru
      _
    // Predicated region
    $region10: #{discriminator_forward.3} parent=1 // pred_check
      _
    $region11: #{discriminator_forward.3} parent=1 // pred_check_branch
      %14 = sbr.rel (0) target = $region13
    $region12: #{discriminator_forward.3} parent=1 // pred_region
      %16 = vsyncadd [#allocation3], 0
      %s18 = sshll.u32 %s2, 4
      %s19 = int_to_ptr.hbm [resolvable:$true] %s18
      %s20 = sshll.u32 [#allocation2], 4
      %s21 = int_to_ptr.vmem [resolvable:$true] %s20
      %23 = dma.hbm_to_vmem [thread:$0]  %s19, 16, %s21, [#allocation3]
    $region13: #{discriminator_forward.3} parent=1 // pred_fallthru
      _
    // Predicated region
    $region14: #{discriminator_forward.3} parent=1 // pred_check
      _
    $region15: #{discriminator_forward.3} parent=1 // pred_check_branch
      %25 = sbr.rel (0) target = $region17
    $region16: #{discriminator_forward.3} parent=1 // pred_region
      %27 = dma.done [#allocation3], 16
    $region17: #{discriminator_forward.3} parent=1 // pred_fallthru
      _
    %v29 = vld [vmem:[%s0] sm:$0xf]
    %v30 = vld [vmem:[%s0 + $0x4] sm:$0xf]
    %v31 = vld [vmem:[%s0 + $0x8] sm:$0xf]
    %v32 = vld [vmem:[%s0 + $0xc] sm:$0xf]
    %v33 = vld [vmem:[%s0 + $0x10] sm:$0xf]
    %v34 = vld [vmem:[%s0 + $0x14] sm:$0xf]
    %v35 = vld [vmem:[%s0 + $0x18] sm:$0xf]
    %v36 = vld [vmem:[%s0 + $0x1c] sm:$0xf]
    %v37 = vld [vmem:[%s0 + $0x20] sm:$0xf]
    %v38 = vld [vmem:[%s0 + $0x24] sm:$0xf]
    %v39 = vld [vmem:[%s0 + $0x28] sm:$0xf]
    %v40 = vld [vmem:[%s0 + $0x2c] sm:$0xf]
    %v41 = vld [vmem:[%s0 + $0x30] sm:$0xf]
    %v42 = vld [vmem:[%s0 + $0x34] sm:$0xf]
    %v43 = vld [vmem:[%s0 + $0x38] sm:$0xf]
    %v44 = vld [vmem:[%s0 + $0x3c] sm:$0xf]
    %v45 = vld [vmem:[%s0 + $0x40] sm:$0xf]
    %v46 = vld [vmem:[%s0 + $0x44] sm:$0xf]
    %v47 = vld [vmem:[%s0 + $0x48] sm:$0xf]
    %v48 = vld [vmem:[%s0 + $0x4c] sm:$0xf]
    %v49 = vld [vmem:[%s0 + $0x50] sm:$0xf]
    %v50 = vld [vmem:[%s0 + $0x54] sm:$0xf]
    %v51 = vld [vmem:[%s0 + $0x58] sm:$0xf]
    %v52 = vld [vmem:[%s0 + $0x5c] sm:$0xf]
    %v53 = vld [vmem:[%s0 + $0x60] sm:$0xf]
    %v54 = vld [vmem:[%s0 + $0x64] sm:$0xf]
    %v55 = vld [vmem:[%s0 + $0x68] sm:$0xf]
    %v56 = vld [vmem:[%s0 + $0x6c] sm:$0xf]
    %v57 = vld [vmem:[%s0 + $0x70] sm:$0xf]
    %v58 = vld [vmem:[%s0 + $0x74] sm:$0xf]
    %v59 = vld [vmem:[%s0 + $0x78] sm:$0xf]
    %v60 = vld [vmem:[%s0 + $0x7c] sm:$0xf]
    %v61 = vld [vmem:[%s0 + $0x80] sm:$0xf]
    %v62 = vld [vmem:[%s0 + $0x84] sm:$0xf]
    %v63 = vld [vmem:[%s0 + $0x88] sm:$0xf]
    %v64 = vld [vmem:[%s0 + $0x8c] sm:$0xf]
    %v65 = vld [vmem:[%s0 + $0x90] sm:$0xf]
    %v66 = vld [vmem:[%s0 + $0x94] sm:$0xf]
    %v67 = vld [vmem:[%s0 + $0x98] sm:$0xf]
    %v68 = vld [vmem:[%s0 + $0x9c] sm:$0xf]
    %v69 = vld [vmem:[%s0 + $0xa0] sm:$0xf]
    %v70 = vld [vmem:[%s0 + $0xa4] sm:$0xf]
    %v71 = vld [vmem:[%s0 + $0xa8] sm:$0xf]
    %v72 = vld [vmem:[%s0 + $0xac] sm:$0xf]
    %v73 = vld [vmem:[%s0 + $0xb0] sm:$0xf]
    %v74 = vld [vmem:[%s0 + $0xb4] sm:$0xf]
    %v75 = vld [vmem:[%s0 + $0xb8] sm:$0xf]
    %v76 = vld [vmem:[%s0 + $0xbc] sm:$0xf]
    %v77 = vld [vmem:[%s0 + $0xc0] sm:$0xf]
    %v78 = vld [vmem:[%s0 + $0xc4] sm:$0xf]
    %v79 = vld [vmem:[%s0 + $0xc8] sm:$0xf]
    %v80 = vld [vmem:[%s0 + $0xcc] sm:$0xf]
    %v81 = vld [vmem:[%s0 + $0xd0] sm:$0xf]
    %v82 = vld [vmem:[%s0 + $0xd4] sm:$0xf]
    %v83 = vld [vmem:[%s0 + $0xd8] sm:$0xf]
    %v84 = vld [vmem:[%s0 + $0xdc] sm:$0xf]
    %v85 = vld [vmem:[%s0 + $0xe0] sm:$0xf]
    %v86 = vld [vmem:[%s0 + $0xe4] sm:$0xf]
    %v87 = vld [vmem:[%s0 + $0xe8] sm:$0xf]
    %v88 = vld [vmem:[%s0 + $0xec] sm:$0xf]
    %v89 = vld [vmem:[%s0 + $0xf0] sm:$0xf]
    %v90 = vld [vmem:[%s0 + $0xf4] sm:$0xf]
    %v91 = vld [vmem:[%s0 + $0xf8] sm:$0xf]
    %v92 = vld [vmem:[%s0 + $0xfc] sm:$0xf]
    %v93 = vld [vmem:[%s0 + $0x100] sm:$0xf]
    %v94 = vld [vmem:[%s0 + $0x104] sm:$0xf]
    %v95 = vld [vmem:[%s0 + $0x108] sm:$0xf]
    %v96 = vld [vmem:[%s0 + $0x10c] sm:$0xf]
    %v97 = vld [vmem:[%s0 + $0x110] sm:$0xf]
    %v98 = vld [vmem:[%s0 + $0x114] sm:$0xf]
    %v99 = vld [vmem:[%s0 + $0x118] sm:$0xf]
    %v100 = vld [vmem:[%s0 + $0x11c] sm:$0xf]
    %v101 = vld [vmem:[%s0 + $0x120] sm:$0xf]
    %v102 = vld [vmem:[%s0 + $0x124] sm:$0xf]
    %v103 = vld [vmem:[%s0 + $0x128] sm:$0xf]
    %v104 = vld [vmem:[%s0 + $0x12c] sm:$0xf]
    %v105 = vld [vmem:[%s0 + $0x130] sm:$0xf]
    %v106 = vld [vmem:[%s0 + $0x134] sm:$0xf]
    %v107 = vld [vmem:[%s0 + $0x138] sm:$0xf]
    %v108 = vld [vmem:[%s0 + $0x13c] sm:$0xf]
    %v109 = vld [vmem:[%s0 + $0x140] sm:$0xf]
    %v110 = vld [vmem:[%s0 + $0x144] sm:$0xf]
    %v111 = vld [vmem:[%s0 + $0x148] sm:$0xf]
    %v112 = vld [vmem:[%s0 + $0x14c] sm:$0xf]
    %v113 = vld [vmem:[%s0 + $0x150] sm:$0xf]
    %v114 = vld [vmem:[%s0 + $0x154] sm:$0xf]
    %v115 = vld [vmem:[%s0 + $0x158] sm:$0xf]
    %v116 = vld [vmem:[%s0 + $0x15c] sm:$0xf]
    %v117 = vld [vmem:[%s0 + $0x160] sm:$0xf]
    %v118 = vld [vmem:[%s0 + $0x164] sm:$0xf]
    %v119 = vld [vmem:[%s0 + $0x168] sm:$0xf]
    %v120 = vld [vmem:[%s0 + $0x16c] sm:$0xf]
    %v121 = vld [vmem:[%s0 + $0x170] sm:$0xf]
    %v122 = vld [vmem:[%s0 + $0x174] sm:$0xf]
    %v123 = vld [vmem:[%s0 + $0x178] sm:$0xf]
    %v124 = vld [vmem:[%s0 + $0x17c] sm:$0xf]
    %v125 = vld [vmem:[%s0 + $0x180] sm:$0xf]
    %v126 = vld [vmem:[%s0 + $0x184] sm:$0xf]
    %v127 = vld [vmem:[%s0 + $0x188] sm:$0xf]
    %v128 = vld [vmem:[%s0 + $0x18c] sm:$0xf]
    %v129 = vld [vmem:[%s0 + $0x190] sm:$0xf]
    %v130 = vld [vmem:[%s0 + $0x194] sm:$0xf]
    %v131 = vld [vmem:[%s0 + $0x198] sm:$0xf]
    %v132 = vld [vmem:[%s0 + $0x19c] sm:$0xf]
    %v133 = vld [vmem:[%s0 + $0x1a0] sm:$0xf]
    %v134 = vld [vmem:[%s0 + $0x1a4] sm:$0xf]
    %v135 = vld [vmem:[%s0 + $0x1a8] sm:$0xf]
    %v136 = vld [vmem:[%s0 + $0x1ac] sm:$0xf]
    %v137 = vld [vmem:[%s0 + $0x1b0] sm:$0xf]
    %v138 = vld [vmem:[%s0 + $0x1b4] sm:$0xf]
    %v139 = vld [vmem:[%s0 + $0x1b8] sm:$0xf]
    %v140 = vld [vmem:[%s0 + $0x1bc] sm:$0xf]
    %v141 = vld [vmem:[%s0 + $0x1c0] sm:$0xf]
    %v142 = vld [vmem:[%s0 + $0x1c4] sm:$0xf]
    %v143 = vld [vmem:[%s0 + $0x1c8] sm:$0xf]
    %v144 = vld [vmem:[%s0 + $0x1cc] sm:$0xf]
    %v145 = vld [vmem:[%s0 + $0x1d0] sm:$0xf]
    %v146 = vld [vmem:[%s0 + $0x1d4] sm:$0xf]
    %v147 = vld [vmem:[%s0 + $0x1d8] sm:$0xf]
    %v148 = vld [vmem:[%s0 + $0x1dc] sm:$0xf]
    %v149 = vld [vmem:[%s0 + $0x1e0] sm:$0xf]
    %v150 = vld [vmem:[%s0 + $0x1e4] sm:$0xf]
    %v151 = vld [vmem:[%s0 + $0x1e8] sm:$0xf]
    %v152 = vld [vmem:[%s0 + $0x1ec] sm:$0xf]
    %v153 = vld [vmem:[%s0 + $0x1f0] sm:$0xf]
    %v154 = vld [vmem:[%s0 + $0x1f4] sm:$0xf]
    %v155 = vld [vmem:[%s0 + $0x1f8] sm:$0xf]
    %v156 = vld [vmem:[%s0 + $0x1fc] sm:$0xf]
    %v157 = vld [vmem:[%s0 + $0x200] sm:$0xf]
    %v158 = vld [vmem:[%s0 + $0x204] sm:$0xf]
    %v159 = vld [vmem:[%s0 + $0x208] sm:$0xf]
    %v160 = vld [vmem:[%s0 + $0x20c] sm:$0xf]
    %v161 = vld [vmem:[%s0 + $0x210] sm:$0xf]
    %v162 = vld [vmem:[%s0 + $0x214] sm:$0xf]
    %v163 = vld [vmem:[%s0 + $0x218] sm:$0xf]
    %v164 = vld [vmem:[%s0 + $0x21c] sm:$0xf]
    %v165 = vld [vmem:[%s0 + $0x220] sm:$0xf]
    %v166 = vld [vmem:[%s0 + $0x224] sm:$0xf]
    %v167 = vld [vmem:[%s0 + $0x228] sm:$0xf]
    %v168 = vld [vmem:[%s0 + $0x22c] sm:$0xf]
    %v169 = vld [vmem:[%s0 + $0x230] sm:$0xf]
    %v170 = vld [vmem:[%s0 + $0x234] sm:$0xf]
    %v171 = vld [vmem:[%s0 + $0x238] sm:$0xf]
    %v172 = vld [vmem:[%s0 + $0x23c] sm:$0xf]
    %v173 = vld [vmem:[%s0 + $0x240] sm:$0xf]
    %v174 = vld [vmem:[%s0 + $0x244] sm:$0xf]
    %v175 = vld [vmem:[%s0 + $0x248] sm:$0xf]
    %v176 = vld [vmem:[%s0 + $0x24c] sm:$0xf]
    %v177 = vld [vmem:[%s0 + $0x250] sm:$0xf]
    %v178 = vld [vmem:[%s0 + $0x254] sm:$0xf]
    %v179 = vld [vmem:[%s0 + $0x258] sm:$0xf]
    %v180 = vld [vmem:[%s0 + $0x25c] sm:$0xf]
    %v181 = vld [vmem:[%s0 + $0x260] sm:$0xf]
    %v182 = vld [vmem:[%s0 + $0x264] sm:$0xf]
    %v183 = vld [vmem:[%s0 + $0x268] sm:$0xf]
    %v184 = vld [vmem:[%s0 + $0x26c] sm:$0xf]
    %v185 = vld [vmem:[%s0 + $0x270] sm:$0xf]
    %v186 = vld [vmem:[%s0 + $0x274] sm:$0xf]
    %v187 = vld [vmem:[%s0 + $0x278] sm:$0xf]
    %v188 = vld [vmem:[%s0 + $0x27c] sm:$0xf]
    %v189 = vld [vmem:[%s0 + $0x280] sm:$0xf]
    %v190 = vld [vmem:[%s0 + $0x284] sm:$0xf]
    %v191 = vld [vmem:[%s0 + $0x288] sm:$0xf]
    %v192 = vld [vmem:[%s0 + $0x28c] sm:$0xf]
    %v193 = vld [vmem:[%s0 + $0x290] sm:$0xf]
    %v194 = vld [vmem:[%s0 + $0x294] sm:$0xf]
    %v195 = vld [vmem:[%s0 + $0x298] sm:$0xf]
    %v196 = vld [vmem:[%s0 + $0x29c] sm:$0xf]
    %v197 = vld [vmem:[%s0 + $0x2a0] sm:$0xf]
    %v198 = vld [vmem:[%s0 + $0x2a4] sm:$0xf]
    %v199 = vld [vmem:[%s0 + $0x2a8] sm:$0xf]
    %v200 = vld [vmem:[%s0 + $0x2ac] sm:$0xf]
    %v201 = vld [vmem:[%s0 + $0x2b0] sm:$0xf]
    %v202 = vld [vmem:[%s0 + $0x2b4] sm:$0xf]
    %v203 = vld [vmem:[%s0 + $0x2b8] sm:$0xf]
    %v204 = vld [vmem:[%s0 + $0x2bc] sm:$0xf]
    %v205 = vld [vmem:[%s0 + $0x2c0] sm:$0xf]
    %v206 = vld [vmem:[%s0 + $0x2c4] sm:$0xf]
    %v207 = vld [vmem:[%s0 + $0x2c8] sm:$0xf]
    %v208 = vld [vmem:[%s0 + $0x2cc] sm:$0xf]
    %v209 = vld [vmem:[%s0 + $0x2d0] sm:$0xf]
    %v210 = vld [vmem:[%s0 + $0x2d4] sm:$0xf]
    %v211 = vld [vmem:[%s0 + $0x2d8] sm:$0xf]
    %v212 = vld [vmem:[%s0 + $0x2dc] sm:$0xf]
    %v213 = vld [vmem:[%s0 + $0x2e0] sm:$0xf]
    %v214 = vld [vmem:[%s0 + $0x2e4] sm:$0xf]
    %v215 = vld [vmem:[%s0 + $0x2e8] sm:$0xf]
    %v216 = vld [vmem:[%s0 + $0x2ec] sm:$0xf]
    %v217 = vld [vmem:[%s0 + $0x2f0] sm:$0xf]
    %v218 = vld [vmem:[%s0 + $0x2f4] sm:$0xf]
    %v219 = vld [vmem:[%s0 + $0x2f8] sm:$0xf]
    %v220 = vld [vmem:[%s0 + $0x2fc] sm:$0xf]
    %v221 = vld [vmem:[%s0 + $0x300] sm:$0xf]
    %v222 = vld [vmem:[%s0 + $0x304] sm:$0xf]
    %v223 = vld [vmem:[%s0 + $0x308] sm:$0xf]
    %v224 = vld [vmem:[%s0 + $0x30c] sm:$0xf]
    %v225 = vld [vmem:[%s0 + $0x310] sm:$0xf]
    %v226 = vld [vmem:[%s0 + $0x314] sm:$0xf]
    %v227 = vld [vmem:[%s0 + $0x318] sm:$0xf]
    %v228 = vld [vmem:[%s0 + $0x31c] sm:$0xf]
    %v229 = vld [vmem:[%s0 + $0x320] sm:$0xf]
    %v230 = vld [vmem:[%s0 + $0x324] sm:$0xf]
    %v231 = vld [vmem:[%s0 + $0x328] sm:$0xf]
    %v232 = vld [vmem:[%s0 + $0x32c] sm:$0xf]
    %v233 = vld [vmem:[%s0 + $0x330] sm:$0xf]
    %v234 = vld [vmem:[%s0 + $0x334] sm:$0xf]
    %v235 = vld [vmem:[%s0 + $0x338] sm:$0xf]
    %v236 = vld [vmem:[%s0 + $0x33c] sm:$0xf]
    %v237 = vld [vmem:[%s0 + $0x340] sm:$0xf]
    %v238 = vld [vmem:[%s0 + $0x344] sm:$0xf]
    %v239 = vld [vmem:[%s0 + $0x348] sm:$0xf]
    %v240 = vld [vmem:[%s0 + $0x34c] sm:$0xf]
    %v241 = vld [vmem:[%s0 + $0x350] sm:$0xf]
    %v242 = vld [vmem:[%s0 + $0x354] sm:$0xf]
    %v243 = vld [vmem:[%s0 + $0x358] sm:$0xf]
    %v244 = vld [vmem:[%s0 + $0x35c] sm:$0xf]
    %v245 = vld [vmem:[%s0 + $0x360] sm:$0xf]
    %v246 = vld [vmem:[%s0 + $0x364] sm:$0xf]
    %v247 = vld [vmem:[%s0 + $0x368] sm:$0xf]
    %v248 = vld [vmem:[%s0 + $0x36c] sm:$0xf]
    %v249 = vld [vmem:[%s0 + $0x370] sm:$0xf]
    %v250 = vld [vmem:[%s0 + $0x374] sm:$0xf]
    %v251 = vld [vmem:[%s0 + $0x378] sm:$0xf]
    %v252 = vld [vmem:[%s0 + $0x37c] sm:$0xf]
    %v253 = vld [vmem:[%s0 + $0x380] sm:$0xf]
    %v254 = vld [vmem:[%s0 + $0x384] sm:$0xf]
    %v255 = vld [vmem:[%s0 + $0x388] sm:$0xf]
    %v256 = vld [vmem:[%s0 + $0x38c] sm:$0xf]
    %v257 = vld [vmem:[%s0 + $0x390] sm:$0xf]
    %v258 = vld [vmem:[%s0 + $0x394] sm:$0xf]
    %v259 = vld [vmem:[%s0 + $0x398] sm:$0xf]
    %v260 = vld [vmem:[%s0 + $0x39c] sm:$0xf]
    %v261 = vld [vmem:[%s0 + $0x3a0] sm:$0xf]
    %v262 = vld [vmem:[%s0 + $0x3a4] sm:$0xf]
    %v263 = vld [vmem:[%s0 + $0x3a8] sm:$0xf]
    %v264 = vld [vmem:[%s0 + $0x3ac] sm:$0xf]
    %v265 = vld [vmem:[%s0 + $0x3b0] sm:$0xf]
    %v266 = vld [vmem:[%s0 + $0x3b4] sm:$0xf]
    %v267 = vld [vmem:[%s0 + $0x3b8] sm:$0xf]
    %v268 = vld [vmem:[%s0 + $0x3bc] sm:$0xf]
    %v269 = vld [vmem:[%s0 + $0x3c0] sm:$0xf]
    %v270 = vld [vmem:[%s0 + $0x3c4] sm:$0xf]
    %v271 = vld [vmem:[%s0 + $0x3c8] sm:$0xf]
    %v272 = vld [vmem:[%s0 + $0x3cc] sm:$0xf]
    %v273 = vld [vmem:[%s0 + $0x3d0] sm:$0xf]
    %v274 = vld [vmem:[%s0 + $0x3d4] sm:$0xf]
    %v275 = vld [vmem:[%s0 + $0x3d8] sm:$0xf]
    %v276 = vld [vmem:[%s0 + $0x3dc] sm:$0xf]
    %v277 = vld [vmem:[%s0 + $0x3e0] sm:$0xf]
    %v278 = vld [vmem:[%s0 + $0x3e4] sm:$0xf]
    %v279 = vld [vmem:[%s0 + $0x3e8] sm:$0xf]
    %v280 = vld [vmem:[%s0 + $0x3ec] sm:$0xf]
    %v281 = vld [vmem:[%s0 + $0x3f0] sm:$0xf]
    %v282 = vld [vmem:[%s0 + $0x3f4] sm:$0xf]
    %v283 = vld [vmem:[%s0 + $0x3f8] sm:$0xf]
    %v284 = vld [vmem:[%s0 + $0x3fc] sm:$0xf]
    %v285 = vld [vmem:[%s1] sm:$0xf]
    %v286 = vld [vmem:[%s1 + $0x4] sm:$0xf]
    %v287 = vld [vmem:[#allocation2] sm:$0x1]
    %v289 = vperm.slane %v287, 0
    %v547 = vunpack.c.l.b16 %v29
    %v548 = vunpack.c.l.b16 %v30
    %v549 = vunpack.c.l.b16 %v31
    %v550 = vunpack.c.l.b16 %v32
    %v551 = vunpack.c.l.b16 %v33
    %v552 = vunpack.c.l.b16 %v34
    %v553 = vunpack.c.l.b16 %v35
    %v554 = vunpack.c.l.b16 %v36
    %v555 = vunpack.c.l.b16 %v37
    %v556 = vunpack.c.l.b16 %v38
    %v557 = vunpack.c.l.b16 %v39
    %v558 = vunpack.c.l.b16 %v40
    %v559 = vunpack.c.l.b16 %v41
    %v560 = vunpack.c.l.b16 %v42
    %v561 = vunpack.c.l.b16 %v43
    %v562 = vunpack.c.l.b16 %v44
    %v563 = vunpack.c.l.b16 %v45
    %v564 = vunpack.c.l.b16 %v46
    %v565 = vunpack.c.l.b16 %v47
    %v566 = vunpack.c.l.b16 %v48
    %v567 = vunpack.c.l.b16 %v49
    %v568 = vunpack.c.l.b16 %v50
    %v569 = vunpack.c.l.b16 %v51
    %v570 = vunpack.c.l.b16 %v52
    %v571 = vunpack.c.l.b16 %v53
    %v572 = vunpack.c.l.b16 %v54
    %v573 = vunpack.c.l.b16 %v55
    %v574 = vunpack.c.l.b16 %v56
    %v575 = vunpack.c.l.b16 %v57
    %v576 = vunpack.c.l.b16 %v58
    %v577 = vunpack.c.l.b16 %v59
    %v578 = vunpack.c.l.b16 %v60
    %v579 = vunpack.c.l.b16 %v61
    %v580 = vunpack.c.l.b16 %v62
    %v581 = vunpack.c.l.b16 %v63
    %v582 = vunpack.c.l.b16 %v64
    %v583 = vunpack.c.l.b16 %v65
    %v584 = vunpack.c.l.b16 %v66
    %v585 = vunpack.c.l.b16 %v67
    %v586 = vunpack.c.l.b16 %v68
    %v587 = vunpack.c.l.b16 %v69
    %v588 = vunpack.c.l.b16 %v70
    %v589 = vunpack.c.l.b16 %v71
    %v590 = vunpack.c.l.b16 %v72
    %v591 = vunpack.c.l.b16 %v73
    %v592 = vunpack.c.l.b16 %v74
    %v593 = vunpack.c.l.b16 %v75
    %v594 = vunpack.c.l.b16 %v76
    %v595 = vunpack.c.l.b16 %v77
    %v596 = vunpack.c.l.b16 %v78
    %v597 = vunpack.c.l.b16 %v79
    %v598 = vunpack.c.l.b16 %v80
    %v599 = vunpack.c.l.b16 %v81
    %v600 = vunpack.c.l.b16 %v82
    %v601 = vunpack.c.l.b16 %v83
    %v602 = vunpack.c.l.b16 %v84
    %v603 = vunpack.c.l.b16 %v85
    %v604 = vunpack.c.l.b16 %v86
    %v605 = vunpack.c.l.b16 %v87
    %v606 = vunpack.c.l.b16 %v88
    %v607 = vunpack.c.l.b16 %v89
    %v608 = vunpack.c.l.b16 %v90
    %v609 = vunpack.c.l.b16 %v91
    %v610 = vunpack.c.l.b16 %v92
    %v611 = vunpack.c.l.b16 %v93
    %v612 = vunpack.c.l.b16 %v94
    %v613 = vunpack.c.l.b16 %v95
    %v614 = vunpack.c.l.b16 %v96
    %v615 = vunpack.c.l.b16 %v97
    %v616 = vunpack.c.l.b16 %v98
    %v617 = vunpack.c.l.b16 %v99
    %v618 = vunpack.c.l.b16 %v100
    %v619 = vunpack.c.l.b16 %v101
    %v620 = vunpack.c.l.b16 %v102
    %v621 = vunpack.c.l.b16 %v103
    %v622 = vunpack.c.l.b16 %v104
    %v623 = vunpack.c.l.b16 %v105
    %v624 = vunpack.c.l.b16 %v106
    %v625 = vunpack.c.l.b16 %v107
    %v626 = vunpack.c.l.b16 %v108
    %v627 = vunpack.c.l.b16 %v109
    %v628 = vunpack.c.l.b16 %v110
    %v629 = vunpack.c.l.b16 %v111
    %v630 = vunpack.c.l.b16 %v112
    %v631 = vunpack.c.l.b16 %v113
    %v632 = vunpack.c.l.b16 %v114
    %v633 = vunpack.c.l.b16 %v115
    %v634 = vunpack.c.l.b16 %v116
    %v635 = vunpack.c.l.b16 %v117
    %v636 = vunpack.c.l.b16 %v118
    %v637 = vunpack.c.l.b16 %v119
    %v638 = vunpack.c.l.b16 %v120
    %v639 = vunpack.c.l.b16 %v121
    %v640 = vunpack.c.l.b16 %v122
    %v641 = vunpack.c.l.b16 %v123
    %v642 = vunpack.c.l.b16 %v124
    %v643 = vunpack.c.l.b16 %v125
    %v644 = vunpack.c.l.b16 %v126
    %v645 = vunpack.c.l.b16 %v127
    %v646 = vunpack.c.l.b16 %v128
    %v647 = vunpack.c.l.b16 %v129
    %v648 = vunpack.c.l.b16 %v130
    %v649 = vunpack.c.l.b16 %v131
    %v650 = vunpack.c.l.b16 %v132
    %v651 = vunpack.c.l.b16 %v133
    %v652 = vunpack.c.l.b16 %v134
    %v653 = vunpack.c.l.b16 %v135
    %v654 = vunpack.c.l.b16 %v136
    %v655 = vunpack.c.l.b16 %v137
    %v656 = vunpack.c.l.b16 %v138
    %v657 = vunpack.c.l.b16 %v139
    %v658 = vunpack.c.l.b16 %v140
    %v659 = vunpack.c.l.b16 %v141
    %v660 = vunpack.c.l.b16 %v142
    %v661 = vunpack.c.l.b16 %v143
    %v662 = vunpack.c.l.b16 %v144
    %v663 = vunpack.c.l.b16 %v145
    %v664 = vunpack.c.l.b16 %v146
    %v665 = vunpack.c.l.b16 %v147
    %v666 = vunpack.c.l.b16 %v148
    %v667 = vunpack.c.l.b16 %v149
    %v668 = vunpack.c.l.b16 %v150
    %v669 = vunpack.c.l.b16 %v151
    %v670 = vunpack.c.l.b16 %v152
    %v671 = vunpack.c.l.b16 %v153
    %v672 = vunpack.c.l.b16 %v154
    %v673 = vunpack.c.l.b16 %v155
    %v674 = vunpack.c.l.b16 %v156
    %v675 = vunpack.c.l.b16 %v157
    %v676 = vunpack.c.l.b16 %v158
    %v677 = vunpack.c.l.b16 %v159
    %v678 = vunpack.c.l.b16 %v160
    %v679 = vunpack.c.l.b16 %v161
    %v680 = vunpack.c.l.b16 %v162
    %v681 = vunpack.c.l.b16 %v163
    %v682 = vunpack.c.l.b16 %v164
    %v683 = vunpack.c.l.b16 %v165
    %v684 = vunpack.c.l.b16 %v166
    %v685 = vunpack.c.l.b16 %v167
    %v686 = vunpack.c.l.b16 %v168
    %v687 = vunpack.c.l.b16 %v169
    %v688 = vunpack.c.l.b16 %v170
    %v689 = vunpack.c.l.b16 %v171
    %v690 = vunpack.c.l.b16 %v172
    %v691 = vunpack.c.l.b16 %v173
    %v692 = vunpack.c.l.b16 %v174
    %v693 = vunpack.c.l.b16 %v175
    %v694 = vunpack.c.l.b16 %v176
    %v695 = vunpack.c.l.b16 %v177
    %v696 = vunpack.c.l.b16 %v178
    %v697 = vunpack.c.l.b16 %v179
    %v698 = vunpack.c.l.b16 %v180
    %v699 = vunpack.c.l.b16 %v181
    %v700 = vunpack.c.l.b16 %v182
    %v701 = vunpack.c.l.b16 %v183
    %v702 = vunpack.c.l.b16 %v184
    %v703 = vunpack.c.l.b16 %v185
    %v704 = vunpack.c.l.b16 %v186
    %v705 = vunpack.c.l.b16 %v187
    %v706 = vunpack.c.l.b16 %v188
    %v707 = vunpack.c.l.b16 %v189
    %v708 = vunpack.c.l.b16 %v190
    %v709 = vunpack.c.l.b16 %v191
    %v710 = vunpack.c.l.b16 %v192
    %v711 = vunpack.c.l.b16 %v193
    %v712 = vunpack.c.l.b16 %v194
    %v713 = vunpack.c.l.b16 %v195
    %v714 = vunpack.c.l.b16 %v196
    %v715 = vunpack.c.l.b16 %v197
    %v716 = vunpack.c.l.b16 %v198
    %v717 = vunpack.c.l.b16 %v199
    %v718 = vunpack.c.l.b16 %v200
    %v719 = vunpack.c.l.b16 %v201
    %v720 = vunpack.c.l.b16 %v202
    %v721 = vunpack.c.l.b16 %v203
    %v722 = vunpack.c.l.b16 %v204
    %v723 = vunpack.c.l.b16 %v205
    %v724 = vunpack.c.l.b16 %v206
    %v725 = vunpack.c.l.b16 %v207
    %v726 = vunpack.c.l.b16 %v208
    %v727 = vunpack.c.l.b16 %v209
    %v728 = vunpack.c.l.b16 %v210
    %v729 = vunpack.c.l.b16 %v211
    %v730 = vunpack.c.l.b16 %v212
    %v731 = vunpack.c.l.b16 %v213
    %v732 = vunpack.c.l.b16 %v214
    %v733 = vunpack.c.l.b16 %v215
    %v734 = vunpack.c.l.b16 %v216
    %v735 = vunpack.c.l.b16 %v217
    %v736 = vunpack.c.l.b16 %v218
    %v737 = vunpack.c.l.b16 %v219
    %v738 = vunpack.c.l.b16 %v220
    %v739 = vunpack.c.l.b16 %v221
    %v740 = vunpack.c.l.b16 %v222
    %v741 = vunpack.c.l.b16 %v223
    %v742 = vunpack.c.l.b16 %v224
    %v743 = vunpack.c.l.b16 %v225
    %v744 = vunpack.c.l.b16 %v226
    %v745 = vunpack.c.l.b16 %v227
    %v746 = vunpack.c.l.b16 %v228
    %v747 = vunpack.c.l.b16 %v229
    %v748 = vunpack.c.l.b16 %v230
    %v749 = vunpack.c.l.b16 %v231
    %v750 = vunpack.c.l.b16 %v232
    %v751 = vunpack.c.l.b16 %v233
    %v752 = vunpack.c.l.b16 %v234
    %v753 = vunpack.c.l.b16 %v235
    %v754 = vunpack.c.l.b16 %v236
    %v755 = vunpack.c.l.b16 %v237
    %v756 = vunpack.c.l.b16 %v238
    %v757 = vunpack.c.l.b16 %v239
    %v758 = vunpack.c.l.b16 %v240
    %v759 = vunpack.c.l.b16 %v241
    %v760 = vunpack.c.l.b16 %v242
    %v761 = vunpack.c.l.b16 %v243
    %v762 = vunpack.c.l.b16 %v244
    %v763 = vunpack.c.l.b16 %v245
    %v764 = vunpack.c.l.b16 %v246
    %v765 = vunpack.c.l.b16 %v247
    %v766 = vunpack.c.l.b16 %v248
    %v767 = vunpack.c.l.b16 %v249
    %v768 = vunpack.c.l.b16 %v250
    %v769 = vunpack.c.l.b16 %v251
    %v770 = vunpack.c.l.b16 %v252
    %v771 = vunpack.c.l.b16 %v253
    %v772 = vunpack.c.l.b16 %v254
    %v773 = vunpack.c.l.b16 %v255
    %v774 = vunpack.c.l.b16 %v256
    %v775 = vunpack.c.l.b16 %v257
    %v776 = vunpack.c.l.b16 %v258
    %v777 = vunpack.c.l.b16 %v259
    %v778 = vunpack.c.l.b16 %v260
    %v779 = vunpack.c.l.b16 %v261
    %v780 = vunpack.c.l.b16 %v262
    %v781 = vunpack.c.l.b16 %v263
    %v782 = vunpack.c.l.b16 %v264
    %v783 = vunpack.c.l.b16 %v265
    %v784 = vunpack.c.l.b16 %v266
    %v785 = vunpack.c.l.b16 %v267
    %v786 = vunpack.c.l.b16 %v268
    %v787 = vunpack.c.l.b16 %v269
    %v788 = vunpack.c.l.b16 %v270
    %v789 = vunpack.c.l.b16 %v271
    %v790 = vunpack.c.l.b16 %v272
    %v791 = vunpack.c.l.b16 %v273
    %v792 = vunpack.c.l.b16 %v274
    %v793 = vunpack.c.l.b16 %v275
    %v794 = vunpack.c.l.b16 %v276
    %v795 = vunpack.c.l.b16 %v277
    %v796 = vunpack.c.l.b16 %v278
    %v797 = vunpack.c.l.b16 %v279
    %v798 = vunpack.c.l.b16 %v280
    %v799 = vunpack.c.l.b16 %v281
    %v800 = vunpack.c.l.b16 %v282
    %v801 = vunpack.c.l.b16 %v283
    %v802 = vunpack.c.l.b16 %v284
    %v803 = vpack.c.b16 %v548, %v547
    %v804 = vpack.c.b16 %v550, %v549
    %v805 = vpack.c.b16 %v552, %v551
    %v806 = vpack.c.b16 %v554, %v553
    %v807 = vpack.c.b16 %v556, %v555
    %v808 = vpack.c.b16 %v558, %v557
    %v809 = vpack.c.b16 %v560, %v559
    %v810 = vpack.c.b16 %v562, %v561
    %v811 = vpack.c.b16 %v564, %v563
    %v812 = vpack.c.b16 %v566, %v565
    %v813 = vpack.c.b16 %v568, %v567
    %v814 = vpack.c.b16 %v570, %v569
    %v815 = vpack.c.b16 %v572, %v571
    %v816 = vpack.c.b16 %v574, %v573
    %v817 = vpack.c.b16 %v576, %v575
    %v818 = vpack.c.b16 %v578, %v577
    %v819 = vpack.c.b16 %v580, %v579
    %v820 = vpack.c.b16 %v582, %v581
    %v821 = vpack.c.b16 %v584, %v583
    %v822 = vpack.c.b16 %v586, %v585
    %v823 = vpack.c.b16 %v588, %v587
    %v824 = vpack.c.b16 %v590, %v589
    %v825 = vpack.c.b16 %v592, %v591
    %v826 = vpack.c.b16 %v594, %v593
    %v827 = vpack.c.b16 %v596, %v595
    %v828 = vpack.c.b16 %v598, %v597
    %v829 = vpack.c.b16 %v600, %v599
    %v830 = vpack.c.b16 %v602, %v601
    %v831 = vpack.c.b16 %v604, %v603
    %v832 = vpack.c.b16 %v606, %v605
    %v833 = vpack.c.b16 %v608, %v607
    %v834 = vpack.c.b16 %v610, %v609
    %v835 = vpack.c.b16 %v612, %v611
    %v836 = vpack.c.b16 %v614, %v613
    %v837 = vpack.c.b16 %v616, %v615
    %v838 = vpack.c.b16 %v618, %v617
    %v839 = vpack.c.b16 %v620, %v619
    %v840 = vpack.c.b16 %v622, %v621
    %v841 = vpack.c.b16 %v624, %v623
    %v842 = vpack.c.b16 %v626, %v625
    %v843 = vpack.c.b16 %v628, %v627
    %v844 = vpack.c.b16 %v630, %v629
    %v845 = vpack.c.b16 %v632, %v631
    %v846 = vpack.c.b16 %v634, %v633
    %v847 = vpack.c.b16 %v636, %v635
    %v848 = vpack.c.b16 %v638, %v637
    %v849 = vpack.c.b16 %v640, %v639
    %v850 = vpack.c.b16 %v642, %v641
    %v851 = vpack.c.b16 %v644, %v643
    %v852 = vpack.c.b16 %v646, %v645
    %v853 = vpack.c.b16 %v648, %v647
    %v854 = vpack.c.b16 %v650, %v649
    %v855 = vpack.c.b16 %v652, %v651
    %v856 = vpack.c.b16 %v654, %v653
    %v857 = vpack.c.b16 %v656, %v655
    %v858 = vpack.c.b16 %v658, %v657
    %v859 = vpack.c.b16 %v660, %v659
    %v860 = vpack.c.b16 %v662, %v661
    %v861 = vpack.c.b16 %v664, %v663
    %v862 = vpack.c.b16 %v666, %v665
    %v863 = vpack.c.b16 %v668, %v667
    %v864 = vpack.c.b16 %v670, %v669
    %v865 = vpack.c.b16 %v672, %v671
    %v866 = vpack.c.b16 %v674, %v673
    %v867 = vpack.c.b16 %v676, %v675
    %v868 = vpack.c.b16 %v678, %v677
    %v869 = vpack.c.b16 %v680, %v679
    %v870 = vpack.c.b16 %v682, %v681
    %v871 = vpack.c.b16 %v684, %v683
    %v872 = vpack.c.b16 %v686, %v685
    %v873 = vpack.c.b16 %v688, %v687
    %v874 = vpack.c.b16 %v690, %v689
    %v875 = vpack.c.b16 %v692, %v691
    %v876 = vpack.c.b16 %v694, %v693
    %v877 = vpack.c.b16 %v696, %v695
    %v878 = vpack.c.b16 %v698, %v697
    %v879 = vpack.c.b16 %v700, %v699
    %v880 = vpack.c.b16 %v702, %v701
    %v881 = vpack.c.b16 %v704, %v703
    %v882 = vpack.c.b16 %v706, %v705
    %v883 = vpack.c.b16 %v708, %v707
    %v884 = vpack.c.b16 %v710, %v709
    %v885 = vpack.c.b16 %v712, %v711
    %v886 = vpack.c.b16 %v714, %v713
    %v887 = vpack.c.b16 %v716, %v715
    %v888 = vpack.c.b16 %v718, %v717
    %v889 = vpack.c.b16 %v720, %v719
    %v890 = vpack.c.b16 %v722, %v721
    %v891 = vpack.c.b16 %v724, %v723
    %v892 = vpack.c.b16 %v726, %v725
    %v893 = vpack.c.b16 %v728, %v727
    %v894 = vpack.c.b16 %v730, %v729
    %v895 = vpack.c.b16 %v732, %v731
    %v896 = vpack.c.b16 %v734, %v733
    %v897 = vpack.c.b16 %v736, %v735
    %v898 = vpack.c.b16 %v738, %v737
    %v899 = vpack.c.b16 %v740, %v739
    %v900 = vpack.c.b16 %v742, %v741
    %v901 = vpack.c.b16 %v744, %v743
    %v902 = vpack.c.b16 %v746, %v745
    %v903 = vpack.c.b16 %v748, %v747
    %v904 = vpack.c.b16 %v750, %v749
    %v905 = vpack.c.b16 %v752, %v751
    %v906 = vpack.c.b16 %v754, %v753
    %v907 = vpack.c.b16 %v756, %v755
    %v908 = vpack.c.b16 %v758, %v757
    %v909 = vpack.c.b16 %v760, %v759
    %v910 = vpack.c.b16 %v762, %v761
    %v911 = vpack.c.b16 %v764, %v763
    %v912 = vpack.c.b16 %v766, %v765
    %v913 = vpack.c.b16 %v768, %v767
    %v914 = vpack.c.b16 %v770, %v769
    %v915 = vpack.c.b16 %v772, %v771
    %v916 = vpack.c.b16 %v774, %v773
    %v917 = vpack.c.b16 %v776, %v775
    %v918 = vpack.c.b16 %v778, %v777
    %v919 = vpack.c.b16 %v780, %v779
    %v920 = vpack.c.b16 %v782, %v781
    %v921 = vpack.c.b16 %v784, %v783
    %v922 = vpack.c.b16 %v786, %v785
    %v923 = vpack.c.b16 %v788, %v787
    %v924 = vpack.c.b16 %v790, %v789
    %v925 = vpack.c.b16 %v792, %v791
    %v926 = vpack.c.b16 %v794, %v793
    %v927 = vpack.c.b16 %v796, %v795
    %v928 = vpack.c.b16 %v798, %v797
    %v929 = vpack.c.b16 %v800, %v799
    %v930 = vpack.c.b16 %v802, %v801
    %v933 = vunpack.c.l.b16 %v285
    %v934 = vunpack.c.l.b16 %v286
    %v935 = vpack.c.b16 %v934, %v933
    %vm937 = vcmask 130048
    %v939 = vsel %vm937, %v803, 0
    %v942 = vsel %vm937, %v804, 0
    %v945 = vsel %vm937, %v805, 0
    %v948 = vsel %vm937, %v806, 0
    %v951 = vsel %vm937, %v807, 0
    %v954 = vsel %vm937, %v808, 0
    %v957 = vsel %vm937, %v809, 0
    %v960 = vsel %vm937, %v810, 0
    %v963 = vsel %vm937, %v811, 0
    %v966 = vsel %vm937, %v812, 0
    %v969 = vsel %vm937, %v813, 0
    %v972 = vsel %vm937, %v814, 0
    %v975 = vsel %vm937, %v815, 0
    %v978 = vsel %vm937, %v816, 0
    %v981 = vsel %vm937, %v817, 0
    %v984 = vsel %vm937, %v818, 0
    %v987 = vsel %vm937, %v819, 0
    %v990 = vsel %vm937, %v820, 0
    %v993 = vsel %vm937, %v821, 0
    %v996 = vsel %vm937, %v822, 0
    %v999 = vsel %vm937, %v823, 0
    %v1002 = vsel %vm937, %v824, 0
    %v1005 = vsel %vm937, %v825, 0
    %v1008 = vsel %vm937, %v826, 0
    %v1011 = vsel %vm937, %v827, 0
    %v1014 = vsel %vm937, %v828, 0
    %v1017 = vsel %vm937, %v829, 0
    %v1020 = vsel %vm937, %v830, 0
    %v1023 = vsel %vm937, %v831, 0
    %v1026 = vsel %vm937, %v832, 0
    %v1029 = vsel %vm937, %v833, 0
    %v1032 = vsel %vm937, %v834, 0
    %v1035 = vsel %vm937, %v835, 0
    %v1038 = vsel %vm937, %v836, 0
    %v1041 = vsel %vm937, %v837, 0
    %v1044 = vsel %vm937, %v838, 0
    %v1047 = vsel %vm937, %v839, 0
    %v1050 = vsel %vm937, %v840, 0
    %v1053 = vsel %vm937, %v841, 0
    %v1056 = vsel %vm937, %v842, 0
    %v1059 = vsel %vm937, %v843, 0
    %v1062 = vsel %vm937, %v844, 0
    %v1065 = vsel %vm937, %v845, 0
    %v1068 = vsel %vm937, %v846, 0
    %v1071 = vsel %vm937, %v847, 0
    %v1074 = vsel %vm937, %v848, 0
    %v1077 = vsel %vm937, %v849, 0
    %v1080 = vsel %vm937, %v850, 0
    %v1083 = vsel %vm937, %v851, 0
    %v1086 = vsel %vm937, %v852, 0
    %v1089 = vsel %vm937, %v853, 0
    %v1092 = vsel %vm937, %v854, 0
    %v1095 = vsel %vm937, %v855, 0
    %v1098 = vsel %vm937, %v856, 0
    %v1101 = vsel %vm937, %v857, 0
    %v1104 = vsel %vm937, %v858, 0
    %v1107 = vsel %vm937, %v859, 0
    %v1110 = vsel %vm937, %v860, 0
    %v1113 = vsel %vm937, %v861, 0
    %v1116 = vsel %vm937, %v862, 0
    %v1119 = vsel %vm937, %v863, 0
    %v1122 = vsel %vm937, %v864, 0
    %v1125 = vsel %vm937, %v865, 0
    %v1128 = vsel %vm937, %v866, 0
    %v1131 = vsel %vm937, %v867, 0
    %v1134 = vsel %vm937, %v868, 0
    %v1137 = vsel %vm937, %v869, 0
    %v1140 = vsel %vm937, %v870, 0
    %v1143 = vsel %vm937, %v871, 0
    %v1146 = vsel %vm937, %v872, 0
    %v1149 = vsel %vm937, %v873, 0
    %v1152 = vsel %vm937, %v874, 0
    %v1155 = vsel %vm937, %v875, 0
    %v1158 = vsel %vm937, %v876, 0
    %v1161 = vsel %vm937, %v877, 0
    %v1164 = vsel %vm937, %v878, 0
    %v1167 = vsel %vm937, %v879, 0
    %v1170 = vsel %vm937, %v880, 0
    %v1173 = vsel %vm937, %v881, 0
    %v1176 = vsel %vm937, %v882, 0
    %v1179 = vsel %vm937, %v883, 0
    %v1182 = vsel %vm937, %v884, 0
    %v1185 = vsel %vm937, %v885, 0
    %v1188 = vsel %vm937, %v886, 0
    %v1191 = vsel %vm937, %v887, 0
    %v1194 = vsel %vm937, %v888, 0
    %v1197 = vsel %vm937, %v889, 0
    %v1200 = vsel %vm937, %v890, 0
    %v1203 = vsel %vm937, %v891, 0
    %v1206 = vsel %vm937, %v892, 0
    %v1209 = vsel %vm937, %v893, 0
    %v1212 = vsel %vm937, %v894, 0
    %v1215 = vsel %vm937, %v895, 0
    %v1218 = vsel %vm937, %v896, 0
    %v1221 = vsel %vm937, %v897, 0
    %v1224 = vsel %vm937, %v898, 0
    %v1227 = vsel %vm937, %v899, 0
    %v1230 = vsel %vm937, %v900, 0
    %v1233 = vsel %vm937, %v901, 0
    %v1236 = vsel %vm937, %v902, 0
    %v1239 = vsel %vm937, %v903, 0
    %v1242 = vsel %vm937, %v904, 0
    %v1245 = vsel %vm937, %v905, 0
    %v1248 = vsel %vm937, %v906, 0
    %v1251 = vsel %vm937, %v907, 0
    %v1254 = vsel %vm937, %v908, 0
    %v1257 = vsel %vm937, %v909, 0
    %v1260 = vsel %vm937, %v910, 0
    %v1263 = vsel %vm937, %v911, 0
    %v1266 = vsel %vm937, %v912, 0
    %v1269 = vsel %vm937, %v913, 0
    %v1272 = vsel %vm937, %v914, 0
    %v1275 = vsel %vm937, %v915, 0
    %v1278 = vsel %vm937, %v916, 0
    %v1281 = vsel %vm937, %v917, 0
    %v1284 = vsel %vm937, %v918, 0
    %v1287 = vsel %vm937, %v919, 0
    %v1290 = vsel %vm937, %v920, 0
    %v1293 = vsel %vm937, %v921, 0
    %v1296 = vsel %vm937, %v922, 0
    %v1299 = vsel %vm937, %v923, 0
    %v1302 = vsel %vm937, %v924, 0
    %v1305 = vsel %vm937, %v925, 0
    %v1308 = vsel %vm937, %v926, 0
    %v1311 = vsel %vm937, %v927, 0
    %v1314 = vsel %vm937, %v928, 0
    %v1317 = vsel %vm937, %v929, 0
    %v1320 = vsel %vm937, %v930, 0
    %1322 = vmatpush.bf16.msra.mxu0 0
    %1323 = vmatpush.bf16.msra.mxu0 0
    %1324 = vmatpush.bf16.msra.mxu0 0
    %1325 = vmatpush.bf16.msra.mxu0 0
    %1326 = vmatpush.bf16.msra.mxu0 0
    %1327 = vmatpush.bf16.msra.mxu0 0
    %1328 = vmatpush.bf16.msra.mxu0 0
    %1329 = vmatpush.bf16.msra.mxu0 %v935
    %1330 = vmatmul.bf16.gmra.mxu0 %v939
    %v1331 = vpop.f32.mrf.mxu0
    %v1332 = vadd.f32 %v289, %v1331
    %v1333 = vpop.f32.mrf.mxu0
    %v1334 = vadd.f32 %v289, %v1333
    %1335 = vmatmul.bf16.gmra.mxu0 %v942
    %v1336 = vpop.f32.mrf.mxu0
    %v1337 = vadd.f32 %v289, %v1336
    %v1338 = vpop.f32.mrf.mxu0
    %v1339 = vadd.f32 %v289, %v1338
    %1340 = vmatmul.bf16.gmra.mxu0 %v945
    %v1341 = vpop.f32.mrf.mxu0
    %v1342 = vadd.f32 %v289, %v1341
    %v1343 = vpop.f32.mrf.mxu0
    %v1344 = vadd.f32 %v289, %v1343
    %1345 = vmatmul.bf16.gmra.mxu0 %v948
    %v1346 = vpop.f32.mrf.mxu0
    %v1347 = vadd.f32 %v289, %v1346
    %v1348 = vpop.f32.mrf.mxu0
    %v1349 = vadd.f32 %v289, %v1348
    %1350 = vmatmul.bf16.gmra.mxu0 %v951
    %v1351 = vpop.f32.mrf.mxu0
    %v1352 = vadd.f32 %v289, %v1351
    %v1353 = vpop.f32.mrf.mxu0
    %v1354 = vadd.f32 %v289, %v1353
    %1355 = vmatmul.bf16.gmra.mxu0 %v954
    %v1356 = vpop.f32.mrf.mxu0
    %v1357 = vadd.f32 %v289, %v1356
    %v1358 = vpop.f32.mrf.mxu0
    %v1359 = vadd.f32 %v289, %v1358
    %1360 = vmatmul.bf16.gmra.mxu0 %v957
    %v1361 = vpop.f32.mrf.mxu0
    %v1362 = vadd.f32 %v289, %v1361
    %v1363 = vpop.f32.mrf.mxu0
    %v1364 = vadd.f32 %v289, %v1363
    %1365 = vmatmul.bf16.gmra.mxu0 %v960
    %v1366 = vpop.f32.mrf.mxu0
    %v1367 = vadd.f32 %v289, %v1366
    %v1368 = vpop.f32.mrf.mxu0
    %v1369 = vadd.f32 %v289, %v1368
    %1370 = vmatmul.bf16.gmra.mxu0 %v963
    %v1371 = vpop.f32.mrf.mxu0
    %v1372 = vadd.f32 %v289, %v1371
    %v1373 = vpop.f32.mrf.mxu0
    %v1374 = vadd.f32 %v289, %v1373
    %1375 = vmatmul.bf16.gmra.mxu0 %v966
    %v1376 = vpop.f32.mrf.mxu0
    %v1377 = vadd.f32 %v289, %v1376
    %v1378 = vpop.f32.mrf.mxu0
    %v1379 = vadd.f32 %v289, %v1378
    %1380 = vmatmul.bf16.gmra.mxu0 %v969
    %v1381 = vpop.f32.mrf.mxu0
    %v1382 = vadd.f32 %v289, %v1381
    %v1383 = vpop.f32.mrf.mxu0
    %v1384 = vadd.f32 %v289, %v1383
    %1385 = vmatmul.bf16.gmra.mxu0 %v972
    %v1386 = vpop.f32.mrf.mxu0
    %v1387 = vadd.f32 %v289, %v1386
    %v1388 = vpop.f32.mrf.mxu0
    %v1389 = vadd.f32 %v289, %v1388
    %1390 = vmatmul.bf16.gmra.mxu0 %v975
    %v1391 = vpop.f32.mrf.mxu0
    %v1392 = vadd.f32 %v289, %v1391
    %v1393 = vpop.f32.mrf.mxu0
    %v1394 = vadd.f32 %v289, %v1393
    %1395 = vmatmul.bf16.gmra.mxu0 %v978
    %v1396 = vpop.f32.mrf.mxu0
    %v1397 = vadd.f32 %v289, %v1396
    %v1398 = vpop.f32.mrf.mxu0
    %v1399 = vadd.f32 %v289, %v1398
    %1400 = vmatmul.bf16.gmra.mxu0 %v981
    %v1401 = vpop.f32.mrf.mxu0
    %v1402 = vadd.f32 %v289, %v1401
    %v1403 = vpop.f32.mrf.mxu0
    %v1404 = vadd.f32 %v289, %v1403
    %1405 = vmatmul.bf16.gmra.mxu0 %v984
    %v1406 = vpop.f32.mrf.mxu0
    %v1407 = vadd.f32 %v289, %v1406
    %v1408 = vpop.f32.mrf.mxu0
    %v1409 = vadd.f32 %v289, %v1408
    %1410 = vmatmul.bf16.gmra.mxu0 %v987
    %v1411 = vpop.f32.mrf.mxu0
    %v1412 = vadd.f32 %v289, %v1411
    %v1413 = vpop.f32.mrf.mxu0
    %v1414 = vadd.f32 %v289, %v1413
    %1415 = vmatmul.bf16.gmra.mxu0 %v990
    %v1416 = vpop.f32.mrf.mxu0
    %v1417 = vadd.f32 %v289, %v1416
    %v1418 = vpop.f32.mrf.mxu0
    %v1419 = vadd.f32 %v289, %v1418
    %1420 = vmatmul.bf16.gmra.mxu0 %v993
    %v1421 = vpop.f32.mrf.mxu0
    %v1422 = vadd.f32 %v289, %v1421
    %v1423 = vpop.f32.mrf.mxu0
    %v1424 = vadd.f32 %v289, %v1423
    %1425 = vmatmul.bf16.gmra.mxu0 %v996
    %v1426 = vpop.f32.mrf.mxu0
    %v1427 = vadd.f32 %v289, %v1426
    %v1428 = vpop.f32.mrf.mxu0
    %v1429 = vadd.f32 %v289, %v1428
    %1430 = vmatmul.bf16.gmra.mxu0 %v999
    %v1431 = vpop.f32.mrf.mxu0
    %v1432 = vadd.f32 %v289, %v1431
    %v1433 = vpop.f32.mrf.mxu0
    %v1434 = vadd.f32 %v289, %v1433
    %1435 = vmatmul.bf16.gmra.mxu0 %v1002
    %v1436 = vpop.f32.mrf.mxu0
    %v1437 = vadd.f32 %v289, %v1436
    %v1438 = vpop.f32.mrf.mxu0
    %v1439 = vadd.f32 %v289, %v1438
    %1440 = vmatmul.bf16.gmra.mxu0 %v1005
    %v1441 = vpop.f32.mrf.mxu0
    %v1442 = vadd.f32 %v289, %v1441
    %v1443 = vpop.f32.mrf.mxu0
    %v1444 = vadd.f32 %v289, %v1443
    %1445 = vmatmul.bf16.gmra.mxu0 %v1008
    %v1446 = vpop.f32.mrf.mxu0
    %v1447 = vadd.f32 %v289, %v1446
    %v1448 = vpop.f32.mrf.mxu0
    %v1449 = vadd.f32 %v289, %v1448
    %1450 = vmatmul.bf16.gmra.mxu0 %v1011
    %v1451 = vpop.f32.mrf.mxu0
    %v1452 = vadd.f32 %v289, %v1451
    %v1453 = vpop.f32.mrf.mxu0
    %v1454 = vadd.f32 %v289, %v1453
    %1455 = vmatmul.bf16.gmra.mxu0 %v1014
    %v1456 = vpop.f32.mrf.mxu0
    %v1457 = vadd.f32 %v289, %v1456
    %v1458 = vpop.f32.mrf.mxu0
    %v1459 = vadd.f32 %v289, %v1458
    %1460 = vmatmul.bf16.gmra.mxu0 %v1017
    %v1461 = vpop.f32.mrf.mxu0
    %v1462 = vadd.f32 %v289, %v1461
    %v1463 = vpop.f32.mrf.mxu0
    %v1464 = vadd.f32 %v289, %v1463
    %1465 = vmatmul.bf16.gmra.mxu0 %v1020
    %v1466 = vpop.f32.mrf.mxu0
    %v1467 = vadd.f32 %v289, %v1466
    %v1468 = vpop.f32.mrf.mxu0
    %v1469 = vadd.f32 %v289, %v1468
    %1470 = vmatmul.bf16.gmra.mxu0 %v1023
    %v1471 = vpop.f32.mrf.mxu0
    %v1472 = vadd.f32 %v289, %v1471
    %v1473 = vpop.f32.mrf.mxu0
    %v1474 = vadd.f32 %v289, %v1473
    %1475 = vmatmul.bf16.gmra.mxu0 %v1026
    %v1476 = vpop.f32.mrf.mxu0
    %v1477 = vadd.f32 %v289, %v1476
    %v1478 = vpop.f32.mrf.mxu0
    %v1479 = vadd.f32 %v289, %v1478
    %1480 = vmatmul.bf16.gmra.mxu0 %v1029
    %v1481 = vpop.f32.mrf.mxu0
    %v1482 = vadd.f32 %v289, %v1481
    %v1483 = vpop.f32.mrf.mxu0
    %v1484 = vadd.f32 %v289, %v1483
    %1485 = vmatmul.bf16.gmra.mxu0 %v1032
    %v1486 = vpop.f32.mrf.mxu0
    %v1487 = vadd.f32 %v289, %v1486
    %v1488 = vpop.f32.mrf.mxu0
    %v1489 = vadd.f32 %v289, %v1488
    %1490 = vmatmul.bf16.gmra.mxu0 %v1035
    %v1491 = vpop.f32.mrf.mxu0
    %v1492 = vadd.f32 %v289, %v1491
    %v1493 = vpop.f32.mrf.mxu0
    %v1494 = vadd.f32 %v289, %v1493
    %1495 = vmatmul.bf16.gmra.mxu0 %v1038
    %v1496 = vpop.f32.mrf.mxu0
    %v1497 = vadd.f32 %v289, %v1496
    %v1498 = vpop.f32.mrf.mxu0
    %v1499 = vadd.f32 %v289, %v1498
    %1500 = vmatmul.bf16.gmra.mxu0 %v1041
    %v1501 = vpop.f32.mrf.mxu0
    %v1502 = vadd.f32 %v289, %v1501
    %v1503 = vpop.f32.mrf.mxu0
    %v1504 = vadd.f32 %v289, %v1503
    %1505 = vmatmul.bf16.gmra.mxu0 %v1044
    %v1506 = vpop.f32.mrf.mxu0
    %v1507 = vadd.f32 %v289, %v1506
    %v1508 = vpop.f32.mrf.mxu0
    %v1509 = vadd.f32 %v289, %v1508
    %1510 = vmatmul.bf16.gmra.mxu0 %v1047
    %v1511 = vpop.f32.mrf.mxu0
    %v1512 = vadd.f32 %v289, %v1511
    %v1513 = vpop.f32.mrf.mxu0
    %v1514 = vadd.f32 %v289, %v1513
    %1515 = vmatmul.bf16.gmra.mxu0 %v1050
    %v1516 = vpop.f32.mrf.mxu0
    %v1517 = vadd.f32 %v289, %v1516
    %v1518 = vpop.f32.mrf.mxu0
    %v1519 = vadd.f32 %v289, %v1518
    %1520 = vmatmul.bf16.gmra.mxu0 %v1053
    %v1521 = vpop.f32.mrf.mxu0
    %v1522 = vadd.f32 %v289, %v1521
    %v1523 = vpop.f32.mrf.mxu0
    %v1524 = vadd.f32 %v289, %v1523
    %1525 = vmatmul.bf16.gmra.mxu0 %v1056
    %v1526 = vpop.f32.mrf.mxu0
    %v1527 = vadd.f32 %v289, %v1526
    %v1528 = vpop.f32.mrf.mxu0
    %v1529 = vadd.f32 %v289, %v1528
    %1530 = vmatmul.bf16.gmra.mxu0 %v1059
    %v1531 = vpop.f32.mrf.mxu0
    %v1532 = vadd.f32 %v289, %v1531
    %v1533 = vpop.f32.mrf.mxu0
    %v1534 = vadd.f32 %v289, %v1533
    %1535 = vmatmul.bf16.gmra.mxu0 %v1062
    %v1536 = vpop.f32.mrf.mxu0
    %v1537 = vadd.f32 %v289, %v1536
    %v1538 = vpop.f32.mrf.mxu0
    %v1539 = vadd.f32 %v289, %v1538
    %1540 = vmatmul.bf16.gmra.mxu0 %v1065
    %v1541 = vpop.f32.mrf.mxu0
    %v1542 = vadd.f32 %v289, %v1541
    %v1543 = vpop.f32.mrf.mxu0
    %v1544 = vadd.f32 %v289, %v1543
    %1545 = vmatmul.bf16.gmra.mxu0 %v1068
    %v1546 = vpop.f32.mrf.mxu0
    %v1547 = vadd.f32 %v289, %v1546
    %v1548 = vpop.f32.mrf.mxu0
    %v1549 = vadd.f32 %v289, %v1548
    %1550 = vmatmul.bf16.gmra.mxu0 %v1071
    %v1551 = vpop.f32.mrf.mxu0
    %v1552 = vadd.f32 %v289, %v1551
    %v1553 = vpop.f32.mrf.mxu0
    %v1554 = vadd.f32 %v289, %v1553
    %1555 = vmatmul.bf16.gmra.mxu0 %v1074
    %v1556 = vpop.f32.mrf.mxu0
    %v1557 = vadd.f32 %v289, %v1556
    %v1558 = vpop.f32.mrf.mxu0
    %v1559 = vadd.f32 %v289, %v1558
    %1560 = vmatmul.bf16.gmra.mxu0 %v1077
    %v1561 = vpop.f32.mrf.mxu0
    %v1562 = vadd.f32 %v289, %v1561
    %v1563 = vpop.f32.mrf.mxu0
    %v1564 = vadd.f32 %v289, %v1563
    %1565 = vmatmul.bf16.gmra.mxu0 %v1080
    %v1566 = vpop.f32.mrf.mxu0
    %v1567 = vadd.f32 %v289, %v1566
    %v1568 = vpop.f32.mrf.mxu0
    %v1569 = vadd.f32 %v289, %v1568
    %1570 = vmatmul.bf16.gmra.mxu0 %v1083
    %v1571 = vpop.f32.mrf.mxu0
    %v1572 = vadd.f32 %v289, %v1571
    %v1573 = vpop.f32.mrf.mxu0
    %v1574 = vadd.f32 %v289, %v1573
    %1575 = vmatmul.bf16.gmra.mxu0 %v1086
    %v1576 = vpop.f32.mrf.mxu0
    %v1577 = vadd.f32 %v289, %v1576
    %v1578 = vpop.f32.mrf.mxu0
    %v1579 = vadd.f32 %v289, %v1578
    %1580 = vmatmul.bf16.gmra.mxu0 %v1089
    %v1581 = vpop.f32.mrf.mxu0
    %v1582 = vadd.f32 %v289, %v1581
    %v1583 = vpop.f32.mrf.mxu0
    %v1584 = vadd.f32 %v289, %v1583
    %1585 = vmatmul.bf16.gmra.mxu0 %v1092
    %v1586 = vpop.f32.mrf.mxu0
    %v1587 = vadd.f32 %v289, %v1586
    %v1588 = vpop.f32.mrf.mxu0
    %v1589 = vadd.f32 %v289, %v1588
    %1590 = vmatmul.bf16.gmra.mxu0 %v1095
    %v1591 = vpop.f32.mrf.mxu0
    %v1592 = vadd.f32 %v289, %v1591
    %v1593 = vpop.f32.mrf.mxu0
    %v1594 = vadd.f32 %v289, %v1593
    %1595 = vmatmul.bf16.gmra.mxu0 %v1098
    %v1596 = vpop.f32.mrf.mxu0
    %v1597 = vadd.f32 %v289, %v1596
    %v1598 = vpop.f32.mrf.mxu0
    %v1599 = vadd.f32 %v289, %v1598
    %1600 = vmatmul.bf16.gmra.mxu0 %v1101
    %v1601 = vpop.f32.mrf.mxu0
    %v1602 = vadd.f32 %v289, %v1601
    %v1603 = vpop.f32.mrf.mxu0
    %v1604 = vadd.f32 %v289, %v1603
    %1605 = vmatmul.bf16.gmra.mxu0 %v1104
    %v1606 = vpop.f32.mrf.mxu0
    %v1607 = vadd.f32 %v289, %v1606
    %v1608 = vpop.f32.mrf.mxu0
    %v1609 = vadd.f32 %v289, %v1608
    %1610 = vmatmul.bf16.gmra.mxu0 %v1107
    %v1611 = vpop.f32.mrf.mxu0
    %v1612 = vadd.f32 %v289, %v1611
    %v1613 = vpop.f32.mrf.mxu0
    %v1614 = vadd.f32 %v289, %v1613
    %1615 = vmatmul.bf16.gmra.mxu0 %v1110
    %v1616 = vpop.f32.mrf.mxu0
    %v1617 = vadd.f32 %v289, %v1616
    %v1618 = vpop.f32.mrf.mxu0
    %v1619 = vadd.f32 %v289, %v1618
    %1620 = vmatmul.bf16.gmra.mxu0 %v1113
    %v1621 = vpop.f32.mrf.mxu0
    %v1622 = vadd.f32 %v289, %v1621
    %v1623 = vpop.f32.mrf.mxu0
    %v1624 = vadd.f32 %v289, %v1623
    %1625 = vmatmul.bf16.gmra.mxu0 %v1116
    %v1626 = vpop.f32.mrf.mxu0
    %v1627 = vadd.f32 %v289, %v1626
    %v1628 = vpop.f32.mrf.mxu0
    %v1629 = vadd.f32 %v289, %v1628
    %1630 = vmatmul.bf16.gmra.mxu0 %v1119
    %v1631 = vpop.f32.mrf.mxu0
    %v1632 = vadd.f32 %v289, %v1631
    %v1633 = vpop.f32.mrf.mxu0
    %v1634 = vadd.f32 %v289, %v1633
    %1635 = vmatmul.bf16.gmra.mxu0 %v1122
    %v1636 = vpop.f32.mrf.mxu0
    %v1637 = vadd.f32 %v289, %v1636
    %v1638 = vpop.f32.mrf.mxu0
    %v1639 = vadd.f32 %v289, %v1638
    %1640 = vmatmul.bf16.gmra.mxu0 %v1125
    %v1641 = vpop.f32.mrf.mxu0
    %v1642 = vadd.f32 %v289, %v1641
    %v1643 = vpop.f32.mrf.mxu0
    %v1644 = vadd.f32 %v289, %v1643
    %1645 = vmatmul.bf16.gmra.mxu0 %v1128
    %v1646 = vpop.f32.mrf.mxu0
    %v1647 = vadd.f32 %v289, %v1646
    %v1648 = vpop.f32.mrf.mxu0
    %v1649 = vadd.f32 %v289, %v1648
    %1650 = vmatmul.bf16.gmra.mxu0 %v1131
    %v1651 = vpop.f32.mrf.mxu0
    %v1652 = vadd.f32 %v289, %v1651
    %v1653 = vpop.f32.mrf.mxu0
    %v1654 = vadd.f32 %v289, %v1653
    %1655 = vmatmul.bf16.gmra.mxu0 %v1134
    %v1656 = vpop.f32.mrf.mxu0
    %v1657 = vadd.f32 %v289, %v1656
    %v1658 = vpop.f32.mrf.mxu0
    %v1659 = vadd.f32 %v289, %v1658
    %1660 = vmatmul.bf16.gmra.mxu0 %v1137
    %v1661 = vpop.f32.mrf.mxu0
    %v1662 = vadd.f32 %v289, %v1661
    %v1663 = vpop.f32.mrf.mxu0
    %v1664 = vadd.f32 %v289, %v1663
    %1665 = vmatmul.bf16.gmra.mxu0 %v1140
    %v1666 = vpop.f32.mrf.mxu0
    %v1667 = vadd.f32 %v289, %v1666
    %v1668 = vpop.f32.mrf.mxu0
    %v1669 = vadd.f32 %v289, %v1668
    %1670 = vmatmul.bf16.gmra.mxu0 %v1143
    %v1671 = vpop.f32.mrf.mxu0
    %v1672 = vadd.f32 %v289, %v1671
    %v1673 = vpop.f32.mrf.mxu0
    %v1674 = vadd.f32 %v289, %v1673
    %1675 = vmatmul.bf16.gmra.mxu0 %v1146
    %v1676 = vpop.f32.mrf.mxu0
    %v1677 = vadd.f32 %v289, %v1676
    %v1678 = vpop.f32.mrf.mxu0
    %v1679 = vadd.f32 %v289, %v1678
    %1680 = vmatmul.bf16.gmra.mxu0 %v1149
    %v1681 = vpop.f32.mrf.mxu0
    %v1682 = vadd.f32 %v289, %v1681
    %v1683 = vpop.f32.mrf.mxu0
    %v1684 = vadd.f32 %v289, %v1683
    %1685 = vmatmul.bf16.gmra.mxu0 %v1152
    %v1686 = vpop.f32.mrf.mxu0
    %v1687 = vadd.f32 %v289, %v1686
    %v1688 = vpop.f32.mrf.mxu0
    %v1689 = vadd.f32 %v289, %v1688
    %1690 = vmatmul.bf16.gmra.mxu0 %v1155
    %v1691 = vpop.f32.mrf.mxu0
    %v1692 = vadd.f32 %v289, %v1691
    %v1693 = vpop.f32.mrf.mxu0
    %v1694 = vadd.f32 %v289, %v1693
    %1695 = vmatmul.bf16.gmra.mxu0 %v1158
    %v1696 = vpop.f32.mrf.mxu0
    %v1697 = vadd.f32 %v289, %v1696
    %v1698 = vpop.f32.mrf.mxu0
    %v1699 = vadd.f32 %v289, %v1698
    %1700 = vmatmul.bf16.gmra.mxu0 %v1161
    %v1701 = vpop.f32.mrf.mxu0
    %v1702 = vadd.f32 %v289, %v1701
    %v1703 = vpop.f32.mrf.mxu0
    %v1704 = vadd.f32 %v289, %v1703
    %1705 = vmatmul.bf16.gmra.mxu0 %v1164
    %v1706 = vpop.f32.mrf.mxu0
    %v1707 = vadd.f32 %v289, %v1706
    %v1708 = vpop.f32.mrf.mxu0
    %v1709 = vadd.f32 %v289, %v1708
    %1710 = vmatmul.bf16.gmra.mxu0 %v1167
    %v1711 = vpop.f32.mrf.mxu0
    %v1712 = vadd.f32 %v289, %v1711
    %v1713 = vpop.f32.mrf.mxu0
    %v1714 = vadd.f32 %v289, %v1713
    %1715 = vmatmul.bf16.gmra.mxu0 %v1170
    %v1716 = vpop.f32.mrf.mxu0
    %v1717 = vadd.f32 %v289, %v1716
    %v1718 = vpop.f32.mrf.mxu0
    %v1719 = vadd.f32 %v289, %v1718
    %1720 = vmatmul.bf16.gmra.mxu0 %v1173
    %v1721 = vpop.f32.mrf.mxu0
    %v1722 = vadd.f32 %v289, %v1721
    %v1723 = vpop.f32.mrf.mxu0
    %v1724 = vadd.f32 %v289, %v1723
    %1725 = vmatmul.bf16.gmra.mxu0 %v1176
    %v1726 = vpop.f32.mrf.mxu0
    %v1727 = vadd.f32 %v289, %v1726
    %v1728 = vpop.f32.mrf.mxu0
    %v1729 = vadd.f32 %v289, %v1728
    %1730 = vmatmul.bf16.gmra.mxu0 %v1179
    %v1731 = vpop.f32.mrf.mxu0
    %v1732 = vadd.f32 %v289, %v1731
    %v1733 = vpop.f32.mrf.mxu0
    %v1734 = vadd.f32 %v289, %v1733
    %1735 = vmatmul.bf16.gmra.mxu0 %v1182
    %v1736 = vpop.f32.mrf.mxu0
    %v1737 = vadd.f32 %v289, %v1736
    %v1738 = vpop.f32.mrf.mxu0
    %v1739 = vadd.f32 %v289, %v1738
    %1740 = vmatmul.bf16.gmra.mxu0 %v1185
    %v1741 = vpop.f32.mrf.mxu0
    %v1742 = vadd.f32 %v289, %v1741
    %v1743 = vpop.f32.mrf.mxu0
    %v1744 = vadd.f32 %v289, %v1743
    %1745 = vmatmul.bf16.gmra.mxu0 %v1188
    %v1746 = vpop.f32.mrf.mxu0
    %v1747 = vadd.f32 %v289, %v1746
    %v1748 = vpop.f32.mrf.mxu0
    %v1749 = vadd.f32 %v289, %v1748
    %1750 = vmatmul.bf16.gmra.mxu0 %v1191
    %v1751 = vpop.f32.mrf.mxu0
    %v1752 = vadd.f32 %v289, %v1751
    %v1753 = vpop.f32.mrf.mxu0
    %v1754 = vadd.f32 %v289, %v1753
    %1755 = vmatmul.bf16.gmra.mxu0 %v1194
    %v1756 = vpop.f32.mrf.mxu0
    %v1757 = vadd.f32 %v289, %v1756
    %v1758 = vpop.f32.mrf.mxu0
    %v1759 = vadd.f32 %v289, %v1758
    %1760 = vmatmul.bf16.gmra.mxu0 %v1197
    %v1761 = vpop.f32.mrf.mxu0
    %v1762 = vadd.f32 %v289, %v1761
    %v1763 = vpop.f32.mrf.mxu0
    %v1764 = vadd.f32 %v289, %v1763
    %1765 = vmatmul.bf16.gmra.mxu0 %v1200
    %v1766 = vpop.f32.mrf.mxu0
    %v1767 = vadd.f32 %v289, %v1766
    %v1768 = vpop.f32.mrf.mxu0
    %v1769 = vadd.f32 %v289, %v1768
    %1770 = vmatmul.bf16.gmra.mxu0 %v1203
    %v1771 = vpop.f32.mrf.mxu0
    %v1772 = vadd.f32 %v289, %v1771
    %v1773 = vpop.f32.mrf.mxu0
    %v1774 = vadd.f32 %v289, %v1773
    %1775 = vmatmul.bf16.gmra.mxu0 %v1206
    %v1776 = vpop.f32.mrf.mxu0
    %v1777 = vadd.f32 %v289, %v1776
    %v1778 = vpop.f32.mrf.mxu0
    %v1779 = vadd.f32 %v289, %v1778
    %1780 = vmatmul.bf16.gmra.mxu0 %v1209
    %v1781 = vpop.f32.mrf.mxu0
    %v1782 = vadd.f32 %v289, %v1781
    %v1783 = vpop.f32.mrf.mxu0
    %v1784 = vadd.f32 %v289, %v1783
    %1785 = vmatmul.bf16.gmra.mxu0 %v1212
    %v1786 = vpop.f32.mrf.mxu0
    %v1787 = vadd.f32 %v289, %v1786
    %v1788 = vpop.f32.mrf.mxu0
    %v1789 = vadd.f32 %v289, %v1788
    %1790 = vmatmul.bf16.gmra.mxu0 %v1215
    %v1791 = vpop.f32.mrf.mxu0
    %v1792 = vadd.f32 %v289, %v1791
    %v1793 = vpop.f32.mrf.mxu0
    %v1794 = vadd.f32 %v289, %v1793
    %1795 = vmatmul.bf16.gmra.mxu0 %v1218
    %v1796 = vpop.f32.mrf.mxu0
    %v1797 = vadd.f32 %v289, %v1796
    %v1798 = vpop.f32.mrf.mxu0
    %v1799 = vadd.f32 %v289, %v1798
    %1800 = vmatmul.bf16.gmra.mxu0 %v1221
    %v1801 = vpop.f32.mrf.mxu0
    %v1802 = vadd.f32 %v289, %v1801
    %v1803 = vpop.f32.mrf.mxu0
    %v1804 = vadd.f32 %v289, %v1803
    %1805 = vmatmul.bf16.gmra.mxu0 %v1224
    %v1806 = vpop.f32.mrf.mxu0
    %v1807 = vadd.f32 %v289, %v1806
    %v1808 = vpop.f32.mrf.mxu0
    %v1809 = vadd.f32 %v289, %v1808
    %1810 = vmatmul.bf16.gmra.mxu0 %v1227
    %v1811 = vpop.f32.mrf.mxu0
    %v1812 = vadd.f32 %v289, %v1811
    %v1813 = vpop.f32.mrf.mxu0
    %v1814 = vadd.f32 %v289, %v1813
    %1815 = vmatmul.bf16.gmra.mxu0 %v1230
    %v1816 = vpop.f32.mrf.mxu0
    %v1817 = vadd.f32 %v289, %v1816
    %v1818 = vpop.f32.mrf.mxu0
    %v1819 = vadd.f32 %v289, %v1818
    %1820 = vmatmul.bf16.gmra.mxu0 %v1233
    %v1821 = vpop.f32.mrf.mxu0
    %v1822 = vadd.f32 %v289, %v1821
    %v1823 = vpop.f32.mrf.mxu0
    %v1824 = vadd.f32 %v289, %v1823
    %1825 = vmatmul.bf16.gmra.mxu0 %v1236
    %v1826 = vpop.f32.mrf.mxu0
    %v1827 = vadd.f32 %v289, %v1826
    %v1828 = vpop.f32.mrf.mxu0
    %v1829 = vadd.f32 %v289, %v1828
    %1830 = vmatmul.bf16.gmra.mxu0 %v1239
    %v1831 = vpop.f32.mrf.mxu0
    %v1832 = vadd.f32 %v289, %v1831
    %v1833 = vpop.f32.mrf.mxu0
    %v1834 = vadd.f32 %v289, %v1833
    %1835 = vmatmul.bf16.gmra.mxu0 %v1242
    %v1836 = vpop.f32.mrf.mxu0
    %v1837 = vadd.f32 %v289, %v1836
    %v1838 = vpop.f32.mrf.mxu0
    %v1839 = vadd.f32 %v289, %v1838
    %1840 = vmatmul.bf16.gmra.mxu0 %v1245
    %v1841 = vpop.f32.mrf.mxu0
    %v1842 = vadd.f32 %v289, %v1841
    %v1843 = vpop.f32.mrf.mxu0
    %v1844 = vadd.f32 %v289, %v1843
    %1845 = vmatmul.bf16.gmra.mxu0 %v1248
    %v1846 = vpop.f32.mrf.mxu0
    %v1847 = vadd.f32 %v289, %v1846
    %v1848 = vpop.f32.mrf.mxu0
    %v1849 = vadd.f32 %v289, %v1848
    %1850 = vmatmul.bf16.gmra.mxu0 %v1251
    %v1851 = vpop.f32.mrf.mxu0
    %v1852 = vadd.f32 %v289, %v1851
    %v1853 = vpop.f32.mrf.mxu0
    %v1854 = vadd.f32 %v289, %v1853
    %1855 = vmatmul.bf16.gmra.mxu0 %v1254
    %v1856 = vpop.f32.mrf.mxu0
    %v1857 = vadd.f32 %v289, %v1856
    %v1858 = vpop.f32.mrf.mxu0
    %v1859 = vadd.f32 %v289, %v1858
    %1860 = vmatmul.bf16.gmra.mxu0 %v1257
    %v1861 = vpop.f32.mrf.mxu0
    %v1862 = vadd.f32 %v289, %v1861
    %v1863 = vpop.f32.mrf.mxu0
    %v1864 = vadd.f32 %v289, %v1863
    %1865 = vmatmul.bf16.gmra.mxu0 %v1260
    %v1866 = vpop.f32.mrf.mxu0
    %v1867 = vadd.f32 %v289, %v1866
    %v1868 = vpop.f32.mrf.mxu0
    %v1869 = vadd.f32 %v289, %v1868
    %1870 = vmatmul.bf16.gmra.mxu0 %v1263
    %v1871 = vpop.f32.mrf.mxu0
    %v1872 = vadd.f32 %v289, %v1871
    %v1873 = vpop.f32.mrf.mxu0
    %v1874 = vadd.f32 %v289, %v1873
    %1875 = vmatmul.bf16.gmra.mxu0 %v1266
    %v1876 = vpop.f32.mrf.mxu0
    %v1877 = vadd.f32 %v289, %v1876
    %v1878 = vpop.f32.mrf.mxu0
    %v1879 = vadd.f32 %v289, %v1878
    %1880 = vmatmul.bf16.gmra.mxu0 %v1269
    %v1881 = vpop.f32.mrf.mxu0
    %v1882 = vadd.f32 %v289, %v1881
    %v1883 = vpop.f32.mrf.mxu0
    %v1884 = vadd.f32 %v289, %v1883
    %1885 = vmatmul.bf16.gmra.mxu0 %v1272
    %v1886 = vpop.f32.mrf.mxu0
    %v1887 = vadd.f32 %v289, %v1886
    %v1888 = vpop.f32.mrf.mxu0
    %v1889 = vadd.f32 %v289, %v1888
    %1890 = vmatmul.bf16.gmra.mxu0 %v1275
    %v1891 = vpop.f32.mrf.mxu0
    %v1892 = vadd.f32 %v289, %v1891
    %v1893 = vpop.f32.mrf.mxu0
    %v1894 = vadd.f32 %v289, %v1893
    %1895 = vmatmul.bf16.gmra.mxu0 %v1278
    %v1896 = vpop.f32.mrf.mxu0
    %v1897 = vadd.f32 %v289, %v1896
    %v1898 = vpop.f32.mrf.mxu0
    %v1899 = vadd.f32 %v289, %v1898
    %1900 = vmatmul.bf16.gmra.mxu0 %v1281
    %v1901 = vpop.f32.mrf.mxu0
    %v1902 = vadd.f32 %v289, %v1901
    %v1903 = vpop.f32.mrf.mxu0
    %v1904 = vadd.f32 %v289, %v1903
    %1905 = vmatmul.bf16.gmra.mxu0 %v1284
    %v1906 = vpop.f32.mrf.mxu0
    %v1907 = vadd.f32 %v289, %v1906
    %v1908 = vpop.f32.mrf.mxu0
    %v1909 = vadd.f32 %v289, %v1908
    %1910 = vmatmul.bf16.gmra.mxu0 %v1287
    %v1911 = vpop.f32.mrf.mxu0
    %v1912 = vadd.f32 %v289, %v1911
    %v1913 = vpop.f32.mrf.mxu0
    %v1914 = vadd.f32 %v289, %v1913
    %1915 = vmatmul.bf16.gmra.mxu0 %v1290
    %v1916 = vpop.f32.mrf.mxu0
    %v1917 = vadd.f32 %v289, %v1916
    %v1918 = vpop.f32.mrf.mxu0
    %v1919 = vadd.f32 %v289, %v1918
    %1920 = vmatmul.bf16.gmra.mxu0 %v1293
    %v1921 = vpop.f32.mrf.mxu0
    %v1922 = vadd.f32 %v289, %v1921
    %v1923 = vpop.f32.mrf.mxu0
    %v1924 = vadd.f32 %v289, %v1923
    %1925 = vmatmul.bf16.gmra.mxu0 %v1296
    %v1926 = vpop.f32.mrf.mxu0
    %v1927 = vadd.f32 %v289, %v1926
    %v1928 = vpop.f32.mrf.mxu0
    %v1929 = vadd.f32 %v289, %v1928
    %1930 = vmatmul.bf16.gmra.mxu0 %v1299
    %v1931 = vpop.f32.mrf.mxu0
    %v1932 = vadd.f32 %v289, %v1931
    %v1933 = vpop.f32.mrf.mxu0
    %v1934 = vadd.f32 %v289, %v1933
    %1935 = vmatmul.bf16.gmra.mxu0 %v1302
    %v1936 = vpop.f32.mrf.mxu0
    %v1937 = vadd.f32 %v289, %v1936
    %v1938 = vpop.f32.mrf.mxu0
    %v1939 = vadd.f32 %v289, %v1938
    %1940 = vmatmul.bf16.gmra.mxu0 %v1305
    %v1941 = vpop.f32.mrf.mxu0
    %v1942 = vadd.f32 %v289, %v1941
    %v1943 = vpop.f32.mrf.mxu0
    %v1944 = vadd.f32 %v289, %v1943
    %1945 = vmatmul.bf16.gmra.mxu0 %v1308
    %v1946 = vpop.f32.mrf.mxu0
    %v1947 = vadd.f32 %v289, %v1946
    %v1948 = vpop.f32.mrf.mxu0
    %v1949 = vadd.f32 %v289, %v1948
    %1950 = vmatmul.bf16.gmra.mxu0 %v1311
    %v1951 = vpop.f32.mrf.mxu0
    %v1952 = vadd.f32 %v289, %v1951
    %v1953 = vpop.f32.mrf.mxu0
    %v1954 = vadd.f32 %v289, %v1953
    %1955 = vmatmul.bf16.gmra.mxu0 %v1314
    %v1956 = vpop.f32.mrf.mxu0
    %v1957 = vadd.f32 %v289, %v1956
    %v1958 = vpop.f32.mrf.mxu0
    %v1959 = vadd.f32 %v289, %v1958
    %1960 = vmatmul.bf16.gmra.mxu0 %v1317
    %v1961 = vpop.f32.mrf.mxu0
    %v1962 = vadd.f32 %v289, %v1961
    %v1963 = vpop.f32.mrf.mxu0
    %v1964 = vadd.f32 %v289, %v1963
    %1965 = vmatmul.bf16.gmra.mxu0 %v1320
    %v1966 = vpop.f32.mrf.mxu0
    %v1967 = vadd.f32 %v289, %v1966
    %v1968 = vpop.f32.mrf.mxu0
    %v1969 = vadd.f32 %v289, %v1968
    %1970 = vdwg.mxu0
    %v1971 = vmul.f32 %v1332, 0.1
    %v1972 = vmul.f32 %v1334, 0.1
    %v1973 = vmul.f32 %v1337, 0.1
    %v1974 = vmul.f32 %v1339, 0.1
    %v1975 = vmul.f32 %v1342, 0.1
    %v1976 = vmul.f32 %v1344, 0.1
    %v1977 = vmul.f32 %v1347, 0.1
    %v1978 = vmul.f32 %v1349, 0.1
    %v1979 = vmul.f32 %v1352, 0.1
    %v1980 = vmul.f32 %v1354, 0.1
    %v1981 = vmul.f32 %v1357, 0.1
    %v1982 = vmul.f32 %v1359, 0.1
    %v1983 = vmul.f32 %v1362, 0.1
    %v1984 = vmul.f32 %v1364, 0.1
    %v1985 = vmul.f32 %v1367, 0.1
    %v1986 = vmul.f32 %v1369, 0.1
    %v1987 = vmul.f32 %v1372, 0.1
    %v1988 = vmul.f32 %v1374, 0.1
    %v1989 = vmul.f32 %v1377, 0.1
    %v1990 = vmul.f32 %v1379, 0.1
    %v1991 = vmul.f32 %v1382, 0.1
    %v1992 = vmul.f32 %v1384, 0.1
    %v1993 = vmul.f32 %v1387, 0.1
    %v1994 = vmul.f32 %v1389, 0.1
    %v1995 = vmul.f32 %v1392, 0.1
    %v1996 = vmul.f32 %v1394, 0.1
    %v1997 = vmul.f32 %v1397, 0.1
    %v1998 = vmul.f32 %v1399, 0.1
    %v1999 = vmul.f32 %v1402, 0.1
    %v2000 = vmul.f32 %v1404, 0.1
    %v2001 = vmul.f32 %v1407, 0.1
    %v2002 = vmul.f32 %v1409, 0.1
    %v2003 = vmul.f32 %v1412, 0.1
    %v2004 = vmul.f32 %v1414, 0.1
    %v2005 = vmul.f32 %v1417, 0.1
    %v2006 = vmul.f32 %v1419, 0.1
    %v2007 = vmul.f32 %v1422, 0.1
    %v2008 = vmul.f32 %v1424, 0.1
    %v2009 = vmul.f32 %v1427, 0.1
    %v2010 = vmul.f32 %v1429, 0.1
    %v2011 = vmul.f32 %v1432, 0.1
    %v2012 = vmul.f32 %v1434, 0.1
    %v2013 = vmul.f32 %v1437, 0.1
    %v2014 = vmul.f32 %v1439, 0.1
    %v2015 = vmul.f32 %v1442, 0.1
    %v2016 = vmul.f32 %v1444, 0.1
    %v2017 = vmul.f32 %v1447, 0.1
    %v2018 = vmul.f32 %v1449, 0.1
    %v2019 = vmul.f32 %v1452, 0.1
    %v2020 = vmul.f32 %v1454, 0.1
    %v2021 = vmul.f32 %v1457, 0.1
    %v2022 = vmul.f32 %v1459, 0.1
    %v2023 = vmul.f32 %v1462, 0.1
    %v2024 = vmul.f32 %v1464, 0.1
    %v2025 = vmul.f32 %v1467, 0.1
    %v2026 = vmul.f32 %v1469, 0.1
    %v2027 = vmul.f32 %v1472, 0.1
    %v2028 = vmul.f32 %v1474, 0.1
    %v2029 = vmul.f32 %v1477, 0.1
    %v2030 = vmul.f32 %v1479, 0.1
    %v2031 = vmul.f32 %v1482, 0.1
    %v2032 = vmul.f32 %v1484, 0.1
    %v2033 = vmul.f32 %v1487, 0.1
    %v2034 = vmul.f32 %v1489, 0.1
    %v2035 = vmul.f32 %v1492, 0.1
    %v2036 = vmul.f32 %v1494, 0.1
    %v2037 = vmul.f32 %v1497, 0.1
    %v2038 = vmul.f32 %v1499, 0.1
    %v2039 = vmul.f32 %v1502, 0.1
    %v2040 = vmul.f32 %v1504, 0.1
    %v2041 = vmul.f32 %v1507, 0.1
    %v2042 = vmul.f32 %v1509, 0.1
    %v2043 = vmul.f32 %v1512, 0.1
    %v2044 = vmul.f32 %v1514, 0.1
    %v2045 = vmul.f32 %v1517, 0.1
    %v2046 = vmul.f32 %v1519, 0.1
    %v2047 = vmul.f32 %v1522, 0.1
    %v2048 = vmul.f32 %v1524, 0.1
    %v2049 = vmul.f32 %v1527, 0.1
    %v2050 = vmul.f32 %v1529, 0.1
    %v2051 = vmul.f32 %v1532, 0.1
    %v2052 = vmul.f32 %v1534, 0.1
    %v2053 = vmul.f32 %v1537, 0.1
    %v2054 = vmul.f32 %v1539, 0.1
    %v2055 = vmul.f32 %v1542, 0.1
    %v2056 = vmul.f32 %v1544, 0.1
    %v2057 = vmul.f32 %v1547, 0.1
    %v2058 = vmul.f32 %v1549, 0.1
    %v2059 = vmul.f32 %v1552, 0.1
    %v2060 = vmul.f32 %v1554, 0.1
    %v2061 = vmul.f32 %v1557, 0.1
    %v2062 = vmul.f32 %v1559, 0.1
    %v2063 = vmul.f32 %v1562, 0.1
    %v2064 = vmul.f32 %v1564, 0.1
    %v2065 = vmul.f32 %v1567, 0.1
    %v2066 = vmul.f32 %v1569, 0.1
    %v2067 = vmul.f32 %v1572, 0.1
    %v2068 = vmul.f32 %v1574, 0.1
    %v2069 = vmul.f32 %v1577, 0.1
    %v2070 = vmul.f32 %v1579, 0.1
    %v2071 = vmul.f32 %v1582, 0.1
    %v2072 = vmul.f32 %v1584, 0.1
    %v2073 = vmul.f32 %v1587, 0.1
    %v2074 = vmul.f32 %v1589, 0.1
    %v2075 = vmul.f32 %v1592, 0.1
    %v2076 = vmul.f32 %v1594, 0.1
    %v2077 = vmul.f32 %v1597, 0.1
    %v2078 = vmul.f32 %v1599, 0.1
    %v2079 = vmul.f32 %v1602, 0.1
    %v2080 = vmul.f32 %v1604, 0.1
    %v2081 = vmul.f32 %v1607, 0.1
    %v2082 = vmul.f32 %v1609, 0.1
    %v2083 = vmul.f32 %v1612, 0.1
    %v2084 = vmul.f32 %v1614, 0.1
    %v2085 = vmul.f32 %v1617, 0.1
    %v2086 = vmul.f32 %v1619, 0.1
    %v2087 = vmul.f32 %v1622, 0.1
    %v2088 = vmul.f32 %v1624, 0.1
    %v2089 = vmul.f32 %v1627, 0.1
    %v2090 = vmul.f32 %v1629, 0.1
    %v2091 = vmul.f32 %v1632, 0.1
    %v2092 = vmul.f32 %v1634, 0.1
    %v2093 = vmul.f32 %v1637, 0.1
    %v2094 = vmul.f32 %v1639, 0.1
    %v2095 = vmul.f32 %v1642, 0.1
    %v2096 = vmul.f32 %v1644, 0.1
    %v2097 = vmul.f32 %v1647, 0.1
    %v2098 = vmul.f32 %v1649, 0.1
    %v2099 = vmul.f32 %v1652, 0.1
    %v2100 = vmul.f32 %v1654, 0.1
    %v2101 = vmul.f32 %v1657, 0.1
    %v2102 = vmul.f32 %v1659, 0.1
    %v2103 = vmul.f32 %v1662, 0.1
    %v2104 = vmul.f32 %v1664, 0.1
    %v2105 = vmul.f32 %v1667, 0.1
    %v2106 = vmul.f32 %v1669, 0.1
    %v2107 = vmul.f32 %v1672, 0.1
    %v2108 = vmul.f32 %v1674, 0.1
    %v2109 = vmul.f32 %v1677, 0.1
    %v2110 = vmul.f32 %v1679, 0.1
    %v2111 = vmul.f32 %v1682, 0.1
    %v2112 = vmul.f32 %v1684, 0.1
    %v2113 = vmul.f32 %v1687, 0.1
    %v2114 = vmul.f32 %v1689, 0.1
    %v2115 = vmul.f32 %v1692, 0.1
    %v2116 = vmul.f32 %v1694, 0.1
    %v2117 = vmul.f32 %v1697, 0.1
    %v2118 = vmul.f32 %v1699, 0.1
    %v2119 = vmul.f32 %v1702, 0.1
    %v2120 = vmul.f32 %v1704, 0.1
    %v2121 = vmul.f32 %v1707, 0.1
    %v2122 = vmul.f32 %v1709, 0.1
    %v2123 = vmul.f32 %v1712, 0.1
    %v2124 = vmul.f32 %v1714, 0.1
    %v2125 = vmul.f32 %v1717, 0.1
    %v2126 = vmul.f32 %v1719, 0.1
    %v2127 = vmul.f32 %v1722, 0.1
    %v2128 = vmul.f32 %v1724, 0.1
    %v2129 = vmul.f32 %v1727, 0.1
    %v2130 = vmul.f32 %v1729, 0.1
    %v2131 = vmul.f32 %v1732, 0.1
    %v2132 = vmul.f32 %v1734, 0.1
    %v2133 = vmul.f32 %v1737, 0.1
    %v2134 = vmul.f32 %v1739, 0.1
    %v2135 = vmul.f32 %v1742, 0.1
    %v2136 = vmul.f32 %v1744, 0.1
    %v2137 = vmul.f32 %v1747, 0.1
    %v2138 = vmul.f32 %v1749, 0.1
    %v2139 = vmul.f32 %v1752, 0.1
    %v2140 = vmul.f32 %v1754, 0.1
    %v2141 = vmul.f32 %v1757, 0.1
    %v2142 = vmul.f32 %v1759, 0.1
    %v2143 = vmul.f32 %v1762, 0.1
    %v2144 = vmul.f32 %v1764, 0.1
    %v2145 = vmul.f32 %v1767, 0.1
    %v2146 = vmul.f32 %v1769, 0.1
    %v2147 = vmul.f32 %v1772, 0.1
    %v2148 = vmul.f32 %v1774, 0.1
    %v2149 = vmul.f32 %v1777, 0.1
    %v2150 = vmul.f32 %v1779, 0.1
    %v2151 = vmul.f32 %v1782, 0.1
    %v2152 = vmul.f32 %v1784, 0.1
    %v2153 = vmul.f32 %v1787, 0.1
    %v2154 = vmul.f32 %v1789, 0.1
    %v2155 = vmul.f32 %v1792, 0.1
    %v2156 = vmul.f32 %v1794, 0.1
    %v2157 = vmul.f32 %v1797, 0.1
    %v2158 = vmul.f32 %v1799, 0.1
    %v2159 = vmul.f32 %v1802, 0.1
    %v2160 = vmul.f32 %v1804, 0.1
    %v2161 = vmul.f32 %v1807, 0.1
    %v2162 = vmul.f32 %v1809, 0.1
    %v2163 = vmul.f32 %v1812, 0.1
    %v2164 = vmul.f32 %v1814, 0.1
    %v2165 = vmul.f32 %v1817, 0.1
    %v2166 = vmul.f32 %v1819, 0.1
    %v2167 = vmul.f32 %v1822, 0.1
    %v2168 = vmul.f32 %v1824, 0.1
    %v2169 = vmul.f32 %v1827, 0.1
    %v2170 = vmul.f32 %v1829, 0.1
    %v2171 = vmul.f32 %v1832, 0.1
    %v2172 = vmul.f32 %v1834, 0.1
    %v2173 = vmul.f32 %v1837, 0.1
    %v2174 = vmul.f32 %v1839, 0.1
    %v2175 = vmul.f32 %v1842, 0.1
    %v2176 = vmul.f32 %v1844, 0.1
    %v2177 = vmul.f32 %v1847, 0.1
    %v2178 = vmul.f32 %v1849, 0.1
    %v2179 = vmul.f32 %v1852, 0.1
    %v2180 = vmul.f32 %v1854, 0.1
    %v2181 = vmul.f32 %v1857, 0.1
    %v2182 = vmul.f32 %v1859, 0.1
    %v2183 = vmul.f32 %v1862, 0.1
    %v2184 = vmul.f32 %v1864, 0.1
    %v2185 = vmul.f32 %v1867, 0.1
    %v2186 = vmul.f32 %v1869, 0.1
    %v2187 = vmul.f32 %v1872, 0.1
    %v2188 = vmul.f32 %v1874, 0.1
    %v2189 = vmul.f32 %v1877, 0.1
    %v2190 = vmul.f32 %v1879, 0.1
    %v2191 = vmul.f32 %v1882, 0.1
    %v2192 = vmul.f32 %v1884, 0.1
    %v2193 = vmul.f32 %v1887, 0.1
    %v2194 = vmul.f32 %v1889, 0.1
    %v2195 = vmul.f32 %v1892, 0.1
    %v2196 = vmul.f32 %v1894, 0.1
    %v2197 = vmul.f32 %v1897, 0.1
    %v2198 = vmul.f32 %v1899, 0.1
    %v2199 = vmul.f32 %v1902, 0.1
    %v2200 = vmul.f32 %v1904, 0.1
    %v2201 = vmul.f32 %v1907, 0.1
    %v2202 = vmul.f32 %v1909, 0.1
    %v2203 = vmul.f32 %v1912, 0.1
    %v2204 = vmul.f32 %v1914, 0.1
    %v2205 = vmul.f32 %v1917, 0.1
    %v2206 = vmul.f32 %v1919, 0.1
    %v2207 = vmul.f32 %v1922, 0.1
    %v2208 = vmul.f32 %v1924, 0.1
    %v2209 = vmul.f32 %v1927, 0.1
    %v2210 = vmul.f32 %v1929, 0.1
    %v2211 = vmul.f32 %v1932, 0.1
    %v2212 = vmul.f32 %v1934, 0.1
    %v2213 = vmul.f32 %v1937, 0.1
    %v2214 = vmul.f32 %v1939, 0.1
    %v2215 = vmul.f32 %v1942, 0.1
    %v2216 = vmul.f32 %v1944, 0.1
    %v2217 = vmul.f32 %v1947, 0.1
    %v2218 = vmul.f32 %v1949, 0.1
    %v2219 = vmul.f32 %v1952, 0.1
    %v2220 = vmul.f32 %v1954, 0.1
    %v2221 = vmul.f32 %v1957, 0.1
    %v2222 = vmul.f32 %v1959, 0.1
    %v2223 = vmul.f32 %v1962, 0.1
    %v2224 = vmul.f32 %v1964, 0.1
    %v2225 = vmul.f32 %v1967, 0.1
    %v2226 = vmul.f32 %v1969, 0.1
    %v2227 = vmax.f32 %v1332, %v1971
    %v2228 = vmax.f32 %v1334, %v1972
    %v2229 = vmax.f32 %v1337, %v1973
    %v2230 = vmax.f32 %v1339, %v1974
    %v2231 = vmax.f32 %v1342, %v1975
    %v2232 = vmax.f32 %v1344, %v1976
    %v2233 = vmax.f32 %v1347, %v1977
    %v2234 = vmax.f32 %v1349, %v1978
    %v2235 = vmax.f32 %v1352, %v1979
    %v2236 = vmax.f32 %v1354, %v1980
    %v2237 = vmax.f32 %v1357, %v1981
    %v2238 = vmax.f32 %v1359, %v1982
    %v2239 = vmax.f32 %v1362, %v1983
    %v2240 = vmax.f32 %v1364, %v1984
    %v2241 = vmax.f32 %v1367, %v1985
    %v2242 = vmax.f32 %v1369, %v1986
    %v2243 = vmax.f32 %v1372, %v1987
    %v2244 = vmax.f32 %v1374, %v1988
    %v2245 = vmax.f32 %v1377, %v1989
    %v2246 = vmax.f32 %v1379, %v1990
    %v2247 = vmax.f32 %v1382, %v1991
    %v2248 = vmax.f32 %v1384, %v1992
    %v2249 = vmax.f32 %v1387, %v1993
    %v2250 = vmax.f32 %v1389, %v1994
    %v2251 = vmax.f32 %v1392, %v1995
    %v2252 = vmax.f32 %v1394, %v1996
    %v2253 = vmax.f32 %v1397, %v1997
    %v2254 = vmax.f32 %v1399, %v1998
    %v2255 = vmax.f32 %v1402, %v1999
    %v2256 = vmax.f32 %v1404, %v2000
    %v2257 = vmax.f32 %v1407, %v2001
    %v2258 = vmax.f32 %v1409, %v2002
    %v2259 = vmax.f32 %v1412, %v2003
    %v2260 = vmax.f32 %v1414, %v2004
    %v2261 = vmax.f32 %v1417, %v2005
    %v2262 = vmax.f32 %v1419, %v2006
    %v2263 = vmax.f32 %v1422, %v2007
    %v2264 = vmax.f32 %v1424, %v2008
    %v2265 = vmax.f32 %v1427, %v2009
    %v2266 = vmax.f32 %v1429, %v2010
    %v2267 = vmax.f32 %v1432, %v2011
    %v2268 = vmax.f32 %v1434, %v2012
    %v2269 = vmax.f32 %v1437, %v2013
    %v2270 = vmax.f32 %v1439, %v2014
    %v2271 = vmax.f32 %v1442, %v2015
    %v2272 = vmax.f32 %v1444, %v2016
    %v2273 = vmax.f32 %v1447, %v2017
    %v2274 = vmax.f32 %v1449, %v2018
    %v2275 = vmax.f32 %v1452, %v2019
    %v2276 = vmax.f32 %v1454, %v2020
    %v2277 = vmax.f32 %v1457, %v2021
    %v2278 = vmax.f32 %v1459, %v2022
    %v2279 = vmax.f32 %v1462, %v2023
    %v2280 = vmax.f32 %v1464, %v2024
    %v2281 = vmax.f32 %v1467, %v2025
    %v2282 = vmax.f32 %v1469, %v2026
    %v2283 = vmax.f32 %v1472, %v2027
    %v2284 = vmax.f32 %v1474, %v2028
    %v2285 = vmax.f32 %v1477, %v2029
    %v2286 = vmax.f32 %v1479, %v2030
    %v2287 = vmax.f32 %v1482, %v2031
    %v2288 = vmax.f32 %v1484, %v2032
    %v2289 = vmax.f32 %v1487, %v2033
    %v2290 = vmax.f32 %v1489, %v2034
    %v2291 = vmax.f32 %v1492, %v2035
    %v2292 = vmax.f32 %v1494, %v2036
    %v2293 = vmax.f32 %v1497, %v2037
    %v2294 = vmax.f32 %v1499, %v2038
    %v2295 = vmax.f32 %v1502, %v2039
    %v2296 = vmax.f32 %v1504, %v2040
    %v2297 = vmax.f32 %v1507, %v2041
    %v2298 = vmax.f32 %v1509, %v2042
    %v2299 = vmax.f32 %v1512, %v2043
    %v2300 = vmax.f32 %v1514, %v2044
    %v2301 = vmax.f32 %v1517, %v2045
    %v2302 = vmax.f32 %v1519, %v2046
    %v2303 = vmax.f32 %v1522, %v2047
    %v2304 = vmax.f32 %v1524, %v2048
    %v2305 = vmax.f32 %v1527, %v2049
    %v2306 = vmax.f32 %v1529, %v2050
    %v2307 = vmax.f32 %v1532, %v2051
    %v2308 = vmax.f32 %v1534, %v2052
    %v2309 = vmax.f32 %v1537, %v2053
    %v2310 = vmax.f32 %v1539, %v2054
    %v2311 = vmax.f32 %v1542, %v2055
    %v2312 = vmax.f32 %v1544, %v2056
    %v2313 = vmax.f32 %v1547, %v2057
    %v2314 = vmax.f32 %v1549, %v2058
    %v2315 = vmax.f32 %v1552, %v2059
    %v2316 = vmax.f32 %v1554, %v2060
    %v2317 = vmax.f32 %v1557, %v2061
    %v2318 = vmax.f32 %v1559, %v2062
    %v2319 = vmax.f32 %v1562, %v2063
    %v2320 = vmax.f32 %v1564, %v2064
    %v2321 = vmax.f32 %v1567, %v2065
    %v2322 = vmax.f32 %v1569, %v2066
    %v2323 = vmax.f32 %v1572, %v2067
    %v2324 = vmax.f32 %v1574, %v2068
    %v2325 = vmax.f32 %v1577, %v2069
    %v2326 = vmax.f32 %v1579, %v2070
    %v2327 = vmax.f32 %v1582, %v2071
    %v2328 = vmax.f32 %v1584, %v2072
    %v2329 = vmax.f32 %v1587, %v2073
    %v2330 = vmax.f32 %v1589, %v2074
    %v2331 = vmax.f32 %v1592, %v2075
    %v2332 = vmax.f32 %v1594, %v2076
    %v2333 = vmax.f32 %v1597, %v2077
    %v2334 = vmax.f32 %v1599, %v2078
    %v2335 = vmax.f32 %v1602, %v2079
    %v2336 = vmax.f32 %v1604, %v2080
    %v2337 = vmax.f32 %v1607, %v2081
    %v2338 = vmax.f32 %v1609, %v2082
    %v2339 = vmax.f32 %v1612, %v2083
    %v2340 = vmax.f32 %v1614, %v2084
    %v2341 = vmax.f32 %v1617, %v2085
    %v2342 = vmax.f32 %v1619, %v2086
    %v2343 = vmax.f32 %v1622, %v2087
    %v2344 = vmax.f32 %v1624, %v2088
    %v2345 = vmax.f32 %v1627, %v2089
    %v2346 = vmax.f32 %v1629, %v2090
    %v2347 = vmax.f32 %v1632, %v2091
    %v2348 = vmax.f32 %v1634, %v2092
    %v2349 = vmax.f32 %v1637, %v2093
    %v2350 = vmax.f32 %v1639, %v2094
    %v2351 = vmax.f32 %v1642, %v2095
    %v2352 = vmax.f32 %v1644, %v2096
    %v2353 = vmax.f32 %v1647, %v2097
    %v2354 = vmax.f32 %v1649, %v2098
    %v2355 = vmax.f32 %v1652, %v2099
    %v2356 = vmax.f32 %v1654, %v2100
    %v2357 = vmax.f32 %v1657, %v2101
    %v2358 = vmax.f32 %v1659, %v2102
    %v2359 = vmax.f32 %v1662, %v2103
    %v2360 = vmax.f32 %v1664, %v2104
    %v2361 = vmax.f32 %v1667, %v2105
    %v2362 = vmax.f32 %v1669, %v2106
    %v2363 = vmax.f32 %v1672, %v2107
    %v2364 = vmax.f32 %v1674, %v2108
    %v2365 = vmax.f32 %v1677, %v2109
    %v2366 = vmax.f32 %v1679, %v2110
    %v2367 = vmax.f32 %v1682, %v2111
    %v2368 = vmax.f32 %v1684, %v2112
    %v2369 = vmax.f32 %v1687, %v2113
    %v2370 = vmax.f32 %v1689, %v2114
    %v2371 = vmax.f32 %v1692, %v2115
    %v2372 = vmax.f32 %v1694, %v2116
    %v2373 = vmax.f32 %v1697, %v2117
    %v2374 = vmax.f32 %v1699, %v2118
    %v2375 = vmax.f32 %v1702, %v2119
    %v2376 = vmax.f32 %v1704, %v2120
    %v2377 = vmax.f32 %v1707, %v2121
    %v2378 = vmax.f32 %v1709, %v2122
    %v2379 = vmax.f32 %v1712, %v2123
    %v2380 = vmax.f32 %v1714, %v2124
    %v2381 = vmax.f32 %v1717, %v2125
    %v2382 = vmax.f32 %v1719, %v2126
    %v2383 = vmax.f32 %v1722, %v2127
    %v2384 = vmax.f32 %v1724, %v2128
    %v2385 = vmax.f32 %v1727, %v2129
    %v2386 = vmax.f32 %v1729, %v2130
    %v2387 = vmax.f32 %v1732, %v2131
    %v2388 = vmax.f32 %v1734, %v2132
    %v2389 = vmax.f32 %v1737, %v2133
    %v2390 = vmax.f32 %v1739, %v2134
    %v2391 = vmax.f32 %v1742, %v2135
    %v2392 = vmax.f32 %v1744, %v2136
    %v2393 = vmax.f32 %v1747, %v2137
    %v2394 = vmax.f32 %v1749, %v2138
    %v2395 = vmax.f32 %v1752, %v2139
    %v2396 = vmax.f32 %v1754, %v2140
    %v2397 = vmax.f32 %v1757, %v2141
    %v2398 = vmax.f32 %v1759, %v2142
    %v2399 = vmax.f32 %v1762, %v2143
    %v2400 = vmax.f32 %v1764, %v2144
    %v2401 = vmax.f32 %v1767, %v2145
    %v2402 = vmax.f32 %v1769, %v2146
    %v2403 = vmax.f32 %v1772, %v2147
    %v2404 = vmax.f32 %v1774, %v2148
    %v2405 = vmax.f32 %v1777, %v2149
    %v2406 = vmax.f32 %v1779, %v2150
    %v2407 = vmax.f32 %v1782, %v2151
    %v2408 = vmax.f32 %v1784, %v2152
    %v2409 = vmax.f32 %v1787, %v2153
    %v2410 = vmax.f32 %v1789, %v2154
    %v2411 = vmax.f32 %v1792, %v2155
    %v2412 = vmax.f32 %v1794, %v2156
    %v2413 = vmax.f32 %v1797, %v2157
    %v2414 = vmax.f32 %v1799, %v2158
    %v2415 = vmax.f32 %v1802, %v2159
    %v2416 = vmax.f32 %v1804, %v2160
    %v2417 = vmax.f32 %v1807, %v2161
    %v2418 = vmax.f32 %v1809, %v2162
    %v2419 = vmax.f32 %v1812, %v2163
    %v2420 = vmax.f32 %v1814, %v2164
    %v2421 = vmax.f32 %v1817, %v2165
    %v2422 = vmax.f32 %v1819, %v2166
    %v2423 = vmax.f32 %v1822, %v2167
    %v2424 = vmax.f32 %v1824, %v2168
    %v2425 = vmax.f32 %v1827, %v2169
    %v2426 = vmax.f32 %v1829, %v2170
    %v2427 = vmax.f32 %v1832, %v2171
    %v2428 = vmax.f32 %v1834, %v2172
    %v2429 = vmax.f32 %v1837, %v2173
    %v2430 = vmax.f32 %v1839, %v2174
    %v2431 = vmax.f32 %v1842, %v2175
    %v2432 = vmax.f32 %v1844, %v2176
    %v2433 = vmax.f32 %v1847, %v2177
    %v2434 = vmax.f32 %v1849, %v2178
    %v2435 = vmax.f32 %v1852, %v2179
    %v2436 = vmax.f32 %v1854, %v2180
    %v2437 = vmax.f32 %v1857, %v2181
    %v2438 = vmax.f32 %v1859, %v2182
    %v2439 = vmax.f32 %v1862, %v2183
    %v2440 = vmax.f32 %v1864, %v2184
    %v2441 = vmax.f32 %v1867, %v2185
    %v2442 = vmax.f32 %v1869, %v2186
    %v2443 = vmax.f32 %v1872, %v2187
    %v2444 = vmax.f32 %v1874, %v2188
    %v2445 = vmax.f32 %v1877, %v2189
    %v2446 = vmax.f32 %v1879, %v2190
    %v2447 = vmax.f32 %v1882, %v2191
    %v2448 = vmax.f32 %v1884, %v2192
    %v2449 = vmax.f32 %v1887, %v2193
    %v2450 = vmax.f32 %v1889, %v2194
    %v2451 = vmax.f32 %v1892, %v2195
    %v2452 = vmax.f32 %v1894, %v2196
    %v2453 = vmax.f32 %v1897, %v2197
    %v2454 = vmax.f32 %v1899, %v2198
    %v2455 = vmax.f32 %v1902, %v2199
    %v2456 = vmax.f32 %v1904, %v2200
    %v2457 = vmax.f32 %v1907, %v2201
    %v2458 = vmax.f32 %v1909, %v2202
    %v2459 = vmax.f32 %v1912, %v2203
    %v2460 = vmax.f32 %v1914, %v2204
    %v2461 = vmax.f32 %v1917, %v2205
    %v2462 = vmax.f32 %v1919, %v2206
    %v2463 = vmax.f32 %v1922, %v2207
    %v2464 = vmax.f32 %v1924, %v2208
    %v2465 = vmax.f32 %v1927, %v2209
    %v2466 = vmax.f32 %v1929, %v2210
    %v2467 = vmax.f32 %v1932, %v2211
    %v2468 = vmax.f32 %v1934, %v2212
    %v2469 = vmax.f32 %v1937, %v2213
    %v2470 = vmax.f32 %v1939, %v2214
    %v2471 = vmax.f32 %v1942, %v2215
    %v2472 = vmax.f32 %v1944, %v2216
    %v2473 = vmax.f32 %v1947, %v2217
    %v2474 = vmax.f32 %v1949, %v2218
    %v2475 = vmax.f32 %v1952, %v2219
    %v2476 = vmax.f32 %v1954, %v2220
    %v2477 = vmax.f32 %v1957, %v2221
    %v2478 = vmax.f32 %v1959, %v2222
    %v2479 = vmax.f32 %v1962, %v2223
    %v2480 = vmax.f32 %v1964, %v2224
    %v2481 = vmax.f32 %v1967, %v2225
    %v2482 = vmax.f32 %v1969, %v2226
    %vm2483 = vcmask 523264
    %2484 = vst.msk [vmem:[%s3] sm:$0xff] %vm2483, %v2227
    %2485 = vst.msk [vmem:[%s3 + $0x8] sm:$0xff] %vm2483, %v2228
    %2486 = vst.msk [vmem:[%s3 + $0x10] sm:$0xff] %vm2483, %v2229
    %2487 = vst.msk [vmem:[%s3 + $0x18] sm:$0xff] %vm2483, %v2230
    %2488 = vst.msk [vmem:[%s3 + $0x20] sm:$0xff] %vm2483, %v2231
    %2489 = vst.msk [vmem:[%s3 + $0x28] sm:$0xff] %vm2483, %v2232
    %2490 = vst.msk [vmem:[%s3 + $0x30] sm:$0xff] %vm2483, %v2233
    %2491 = vst.msk [vmem:[%s3 + $0x38] sm:$0xff] %vm2483, %v2234
    %2492 = vst.msk [vmem:[%s3 + $0x40] sm:$0xff] %vm2483, %v2235
    %2493 = vst.msk [vmem:[%s3 + $0x48] sm:$0xff] %vm2483, %v2236
    %2494 = vst.msk [vmem:[%s3 + $0x50] sm:$0xff] %vm2483, %v2237
    %2495 = vst.msk [vmem:[%s3 + $0x58] sm:$0xff] %vm2483, %v2238
    %2496 = vst.msk [vmem:[%s3 + $0x60] sm:$0xff] %vm2483, %v2239
    %2497 = vst.msk [vmem:[%s3 + $0x68] sm:$0xff] %vm2483, %v2240
    %2498 = vst.msk [vmem:[%s3 + $0x70] sm:$0xff] %vm2483, %v2241
    %2499 = vst.msk [vmem:[%s3 + $0x78] sm:$0xff] %vm2483, %v2242
    %2500 = vst.msk [vmem:[%s3 + $0x80] sm:$0xff] %vm2483, %v2243
    %2501 = vst.msk [vmem:[%s3 + $0x88] sm:$0xff] %vm2483, %v2244
    %2502 = vst.msk [vmem:[%s3 + $0x90] sm:$0xff] %vm2483, %v2245
    %2503 = vst.msk [vmem:[%s3 + $0x98] sm:$0xff] %vm2483, %v2246
    %2504 = vst.msk [vmem:[%s3 + $0xa0] sm:$0xff] %vm2483, %v2247
    %2505 = vst.msk [vmem:[%s3 + $0xa8] sm:$0xff] %vm2483, %v2248
    %2506 = vst.msk [vmem:[%s3 + $0xb0] sm:$0xff] %vm2483, %v2249
    %2507 = vst.msk [vmem:[%s3 + $0xb8] sm:$0xff] %vm2483, %v2250
    %2508 = vst.msk [vmem:[%s3 + $0xc0] sm:$0xff] %vm2483, %v2251
    %2509 = vst.msk [vmem:[%s3 + $0xc8] sm:$0xff] %vm2483, %v2252
    %2510 = vst.msk [vmem:[%s3 + $0xd0] sm:$0xff] %vm2483, %v2253
    %2511 = vst.msk [vmem:[%s3 + $0xd8] sm:$0xff] %vm2483, %v2254
    %2512 = vst.msk [vmem:[%s3 + $0xe0] sm:$0xff] %vm2483, %v2255
    %2513 = vst.msk [vmem:[%s3 + $0xe8] sm:$0xff] %vm2483, %v2256
    %2514 = vst.msk [vmem:[%s3 + $0xf0] sm:$0xff] %vm2483, %v2257
    %2515 = vst.msk [vmem:[%s3 + $0xf8] sm:$0xff] %vm2483, %v2258
    %2516 = vst.msk [vmem:[%s3 + $0x100] sm:$0xff] %vm2483, %v2259
    %2517 = vst.msk [vmem:[%s3 + $0x108] sm:$0xff] %vm2483, %v2260
    %2518 = vst.msk [vmem:[%s3 + $0x110] sm:$0xff] %vm2483, %v2261
    %2519 = vst.msk [vmem:[%s3 + $0x118] sm:$0xff] %vm2483, %v2262
    %2520 = vst.msk [vmem:[%s3 + $0x120] sm:$0xff] %vm2483, %v2263
    %2521 = vst.msk [vmem:[%s3 + $0x128] sm:$0xff] %vm2483, %v2264
    %2522 = vst.msk [vmem:[%s3 + $0x130] sm:$0xff] %vm2483, %v2265
    %2523 = vst.msk [vmem:[%s3 + $0x138] sm:$0xff] %vm2483, %v2266
    %2524 = vst.msk [vmem:[%s3 + $0x140] sm:$0xff] %vm2483, %v2267
    %2525 = vst.msk [vmem:[%s3 + $0x148] sm:$0xff] %vm2483, %v2268
    %2526 = vst.msk [vmem:[%s3 + $0x150] sm:$0xff] %vm2483, %v2269
    %2527 = vst.msk [vmem:[%s3 + $0x158] sm:$0xff] %vm2483, %v2270
    %2528 = vst.msk [vmem:[%s3 + $0x160] sm:$0xff] %vm2483, %v2271
    %2529 = vst.msk [vmem:[%s3 + $0x168] sm:$0xff] %vm2483, %v2272
    %2530 = vst.msk [vmem:[%s3 + $0x170] sm:$0xff] %vm2483, %v2273
    %2531 = vst.msk [vmem:[%s3 + $0x178] sm:$0xff] %vm2483, %v2274
    %2532 = vst.msk [vmem:[%s3 + $0x180] sm:$0xff] %vm2483, %v2275
    %2533 = vst.msk [vmem:[%s3 + $0x188] sm:$0xff] %vm2483, %v2276
    %2534 = vst.msk [vmem:[%s3 + $0x190] sm:$0xff] %vm2483, %v2277
    %2535 = vst.msk [vmem:[%s3 + $0x198] sm:$0xff] %vm2483, %v2278
    %2536 = vst.msk [vmem:[%s3 + $0x1a0] sm:$0xff] %vm2483, %v2279
    %2537 = vst.msk [vmem:[%s3 + $0x1a8] sm:$0xff] %vm2483, %v2280
    %2538 = vst.msk [vmem:[%s3 + $0x1b0] sm:$0xff] %vm2483, %v2281
    %2539 = vst.msk [vmem:[%s3 + $0x1b8] sm:$0xff] %vm2483, %v2282
    %2540 = vst.msk [vmem:[%s3 + $0x1c0] sm:$0xff] %vm2483, %v2283
    %2541 = vst.msk [vmem:[%s3 + $0x1c8] sm:$0xff] %vm2483, %v2284
    %2542 = vst.msk [vmem:[%s3 + $0x1d0] sm:$0xff] %vm2483, %v2285
    %2543 = vst.msk [vmem:[%s3 + $0x1d8] sm:$0xff] %vm2483, %v2286
    %2544 = vst.msk [vmem:[%s3 + $0x1e0] sm:$0xff] %vm2483, %v2287
    %2545 = vst.msk [vmem:[%s3 + $0x1e8] sm:$0xff] %vm2483, %v2288
    %2546 = vst.msk [vmem:[%s3 + $0x1f0] sm:$0xff] %vm2483, %v2289
    %2547 = vst.msk [vmem:[%s3 + $0x1f8] sm:$0xff] %vm2483, %v2290
    %2548 = vst.msk [vmem:[%s3 + $0x200] sm:$0xff] %vm2483, %v2291
    %2549 = vst.msk [vmem:[%s3 + $0x208] sm:$0xff] %vm2483, %v2292
    %2550 = vst.msk [vmem:[%s3 + $0x210] sm:$0xff] %vm2483, %v2293
    %2551 = vst.msk [vmem:[%s3 + $0x218] sm:$0xff] %vm2483, %v2294
    %2552 = vst.msk [vmem:[%s3 + $0x220] sm:$0xff] %vm2483, %v2295
    %2553 = vst.msk [vmem:[%s3 + $0x228] sm:$0xff] %vm2483, %v2296
    %2554 = vst.msk [vmem:[%s3 + $0x230] sm:$0xff] %vm2483, %v2297
    %2555 = vst.msk [vmem:[%s3 + $0x238] sm:$0xff] %vm2483, %v2298
    %2556 = vst.msk [vmem:[%s3 + $0x240] sm:$0xff] %vm2483, %v2299
    %2557 = vst.msk [vmem:[%s3 + $0x248] sm:$0xff] %vm2483, %v2300
    %2558 = vst.msk [vmem:[%s3 + $0x250] sm:$0xff] %vm2483, %v2301
    %2559 = vst.msk [vmem:[%s3 + $0x258] sm:$0xff] %vm2483, %v2302
    %2560 = vst.msk [vmem:[%s3 + $0x260] sm:$0xff] %vm2483, %v2303
    %2561 = vst.msk [vmem:[%s3 + $0x268] sm:$0xff] %vm2483, %v2304
    %2562 = vst.msk [vmem:[%s3 + $0x270] sm:$0xff] %vm2483, %v2305
    %2563 = vst.msk [vmem:[%s3 + $0x278] sm:$0xff] %vm2483, %v2306
    %2564 = vst.msk [vmem:[%s3 + $0x280] sm:$0xff] %vm2483, %v2307
    %2565 = vst.msk [vmem:[%s3 + $0x288] sm:$0xff] %vm2483, %v2308
    %2566 = vst.msk [vmem:[%s3 + $0x290] sm:$0xff] %vm2483, %v2309
    %2567 = vst.msk [vmem:[%s3 + $0x298] sm:$0xff] %vm2483, %v2310
    %2568 = vst.msk [vmem:[%s3 + $0x2a0] sm:$0xff] %vm2483, %v2311
    %2569 = vst.msk [vmem:[%s3 + $0x2a8] sm:$0xff] %vm2483, %v2312
    %2570 = vst.msk [vmem:[%s3 + $0x2b0] sm:$0xff] %vm2483, %v2313
    %2571 = vst.msk [vmem:[%s3 + $0x2b8] sm:$0xff] %vm2483, %v2314
    %2572 = vst.msk [vmem:[%s3 + $0x2c0] sm:$0xff] %vm2483, %v2315
    %2573 = vst.msk [vmem:[%s3 + $0x2c8] sm:$0xff] %vm2483, %v2316
    %2574 = vst.msk [vmem:[%s3 + $0x2d0] sm:$0xff] %vm2483, %v2317
    %2575 = vst.msk [vmem:[%s3 + $0x2d8] sm:$0xff] %vm2483, %v2318
    %2576 = vst.msk [vmem:[%s3 + $0x2e0] sm:$0xff] %vm2483, %v2319
    %2577 = vst.msk [vmem:[%s3 + $0x2e8] sm:$0xff] %vm2483, %v2320
    %2578 = vst.msk [vmem:[%s3 + $0x2f0] sm:$0xff] %vm2483, %v2321
    %2579 = vst.msk [vmem:[%s3 + $0x2f8] sm:$0xff] %vm2483, %v2322
    %2580 = vst.msk [vmem:[%s3 + $0x300] sm:$0xff] %vm2483, %v2323
    %2581 = vst.msk [vmem:[%s3 + $0x308] sm:$0xff] %vm2483, %v2324
    %2582 = vst.msk [vmem:[%s3 + $0x310] sm:$0xff] %vm2483, %v2325
    %2583 = vst.msk [vmem:[%s3 + $0x318] sm:$0xff] %vm2483, %v2326
    %2584 = vst.msk [vmem:[%s3 + $0x320] sm:$0xff] %vm2483, %v2327
    %2585 = vst.msk [vmem:[%s3 + $0x328] sm:$0xff] %vm2483, %v2328
    %2586 = vst.msk [vmem:[%s3 + $0x330] sm:$0xff] %vm2483, %v2329
    %2587 = vst.msk [vmem:[%s3 + $0x338] sm:$0xff] %vm2483, %v2330
    %2588 = vst.msk [vmem:[%s3 + $0x340] sm:$0xff] %vm2483, %v2331
    %2589 = vst.msk [vmem:[%s3 + $0x348] sm:$0xff] %vm2483, %v2332
    %2590 = vst.msk [vmem:[%s3 + $0x350] sm:$0xff] %vm2483, %v2333
    %2591 = vst.msk [vmem:[%s3 + $0x358] sm:$0xff] %vm2483, %v2334
    %2592 = vst.msk [vmem:[%s3 + $0x360] sm:$0xff] %vm2483, %v2335
    %2593 = vst.msk [vmem:[%s3 + $0x368] sm:$0xff] %vm2483, %v2336
    %2594 = vst.msk [vmem:[%s3 + $0x370] sm:$0xff] %vm2483, %v2337
    %2595 = vst.msk [vmem:[%s3 + $0x378] sm:$0xff] %vm2483, %v2338
    %2596 = vst.msk [vmem:[%s3 + $0x380] sm:$0xff] %vm2483, %v2339
    %2597 = vst.msk [vmem:[%s3 + $0x388] sm:$0xff] %vm2483, %v2340
    %2598 = vst.msk [vmem:[%s3 + $0x390] sm:$0xff] %vm2483, %v2341
    %2599 = vst.msk [vmem:[%s3 + $0x398] sm:$0xff] %vm2483, %v2342
    %2600 = vst.msk [vmem:[%s3 + $0x3a0] sm:$0xff] %vm2483, %v2343
    %2601 = vst.msk [vmem:[%s3 + $0x3a8] sm:$0xff] %vm2483, %v2344
    %2602 = vst.msk [vmem:[%s3 + $0x3b0] sm:$0xff] %vm2483, %v2345
    %2603 = vst.msk [vmem:[%s3 + $0x3b8] sm:$0xff] %vm2483, %v2346
    %2604 = vst.msk [vmem:[%s3 + $0x3c0] sm:$0xff] %vm2483, %v2347
    %2605 = vst.msk [vmem:[%s3 + $0x3c8] sm:$0xff] %vm2483, %v2348
    %2606 = vst.msk [vmem:[%s3 + $0x3d0] sm:$0xff] %vm2483, %v2349
    %2607 = vst.msk [vmem:[%s3 + $0x3d8] sm:$0xff] %vm2483, %v2350
    %2608 = vst.msk [vmem:[%s3 + $0x3e0] sm:$0xff] %vm2483, %v2351
    %2609 = vst.msk [vmem:[%s3 + $0x3e8] sm:$0xff] %vm2483, %v2352
    %2610 = vst.msk [vmem:[%s3 + $0x3f0] sm:$0xff] %vm2483, %v2353
    %2611 = vst.msk [vmem:[%s3 + $0x3f8] sm:$0xff] %vm2483, %v2354
    %2612 = vst.msk [vmem:[%s3 + $0x400] sm:$0xff] %vm2483, %v2355
    %2613 = vst.msk [vmem:[%s3 + $0x408] sm:$0xff] %vm2483, %v2356
    %2614 = vst.msk [vmem:[%s3 + $0x410] sm:$0xff] %vm2483, %v2357
    %2615 = vst.msk [vmem:[%s3 + $0x418] sm:$0xff] %vm2483, %v2358
    %2616 = vst.msk [vmem:[%s3 + $0x420] sm:$0xff] %vm2483, %v2359
    %2617 = vst.msk [vmem:[%s3 + $0x428] sm:$0xff] %vm2483, %v2360
    %2618 = vst.msk [vmem:[%s3 + $0x430] sm:$0xff] %vm2483, %v2361
    %2619 = vst.msk [vmem:[%s3 + $0x438] sm:$0xff] %vm2483, %v2362
    %2620 = vst.msk [vmem:[%s3 + $0x440] sm:$0xff] %vm2483, %v2363
    %2621 = vst.msk [vmem:[%s3 + $0x448] sm:$0xff] %vm2483, %v2364
    %2622 = vst.msk [vmem:[%s3 + $0x450] sm:$0xff] %vm2483, %v2365
    %2623 = vst.msk [vmem:[%s3 + $0x458] sm:$0xff] %vm2483, %v2366
    %2624 = vst.msk [vmem:[%s3 + $0x460] sm:$0xff] %vm2483, %v2367
    %2625 = vst.msk [vmem:[%s3 + $0x468] sm:$0xff] %vm2483, %v2368
    %2626 = vst.msk [vmem:[%s3 + $0x470] sm:$0xff] %vm2483, %v2369
    %2627 = vst.msk [vmem:[%s3 + $0x478] sm:$0xff] %vm2483, %v2370
    %2628 = vst.msk [vmem:[%s3 + $0x480] sm:$0xff] %vm2483, %v2371
    %2629 = vst.msk [vmem:[%s3 + $0x488] sm:$0xff] %vm2483, %v2372
    %2630 = vst.msk [vmem:[%s3 + $0x490] sm:$0xff] %vm2483, %v2373
    %2631 = vst.msk [vmem:[%s3 + $0x498] sm:$0xff] %vm2483, %v2374
    %2632 = vst.msk [vmem:[%s3 + $0x4a0] sm:$0xff] %vm2483, %v2375
    %2633 = vst.msk [vmem:[%s3 + $0x4a8] sm:$0xff] %vm2483, %v2376
    %2634 = vst.msk [vmem:[%s3 + $0x4b0] sm:$0xff] %vm2483, %v2377
    %2635 = vst.msk [vmem:[%s3 + $0x4b8] sm:$0xff] %vm2483, %v2378
    %2636 = vst.msk [vmem:[%s3 + $0x4c0] sm:$0xff] %vm2483, %v2379
    %2637 = vst.msk [vmem:[%s3 + $0x4c8] sm:$0xff] %vm2483, %v2380
    %2638 = vst.msk [vmem:[%s3 + $0x4d0] sm:$0xff] %vm2483, %v2381
    %2639 = vst.msk [vmem:[%s3 + $0x4d8] sm:$0xff] %vm2483, %v2382
    %2640 = vst.msk [vmem:[%s3 + $0x4e0] sm:$0xff] %vm2483, %v2383
    %2641 = vst.msk [vmem:[%s3 + $0x4e8] sm:$0xff] %vm2483, %v2384
    %2642 = vst.msk [vmem:[%s3 + $0x4f0] sm:$0xff] %vm2483, %v2385
    %2643 = vst.msk [vmem:[%s3 + $0x4f8] sm:$0xff] %vm2483, %v2386
    %2644 = vst.msk [vmem:[%s3 + $0x500] sm:$0xff] %vm2483, %v2387
    %2645 = vst.msk [vmem:[%s3 + $0x508] sm:$0xff] %vm2483, %v2388
    %2646 = vst.msk [vmem:[%s3 + $0x510] sm:$0xff] %vm2483, %v2389
    %2647 = vst.msk [vmem:[%s3 + $0x518] sm:$0xff] %vm2483, %v2390
    %2648 = vst.msk [vmem:[%s3 + $0x520] sm:$0xff] %vm2483, %v2391
    %2649 = vst.msk [vmem:[%s3 + $0x528] sm:$0xff] %vm2483, %v2392
    %2650 = vst.msk [vmem:[%s3 + $0x530] sm:$0xff] %vm2483, %v2393
    %2651 = vst.msk [vmem:[%s3 + $0x538] sm:$0xff] %vm2483, %v2394
    %2652 = vst.msk [vmem:[%s3 + $0x540] sm:$0xff] %vm2483, %v2395
    %2653 = vst.msk [vmem:[%s3 + $0x548] sm:$0xff] %vm2483, %v2396
    %2654 = vst.msk [vmem:[%s3 + $0x550] sm:$0xff] %vm2483, %v2397
    %2655 = vst.msk [vmem:[%s3 + $0x558] sm:$0xff] %vm2483, %v2398
    %2656 = vst.msk [vmem:[%s3 + $0x560] sm:$0xff] %vm2483, %v2399
    %2657 = vst.msk [vmem:[%s3 + $0x568] sm:$0xff] %vm2483, %v2400
    %2658 = vst.msk [vmem:[%s3 + $0x570] sm:$0xff] %vm2483, %v2401
    %2659 = vst.msk [vmem:[%s3 + $0x578] sm:$0xff] %vm2483, %v2402
    %2660 = vst.msk [vmem:[%s3 + $0x580] sm:$0xff] %vm2483, %v2403
    %2661 = vst.msk [vmem:[%s3 + $0x588] sm:$0xff] %vm2483, %v2404
    %2662 = vst.msk [vmem:[%s3 + $0x590] sm:$0xff] %vm2483, %v2405
    %2663 = vst.msk [vmem:[%s3 + $0x598] sm:$0xff] %vm2483, %v2406
    %2664 = vst.msk [vmem:[%s3 + $0x5a0] sm:$0xff] %vm2483, %v2407
    %2665 = vst.msk [vmem:[%s3 + $0x5a8] sm:$0xff] %vm2483, %v2408
    %2666 = vst.msk [vmem:[%s3 + $0x5b0] sm:$0xff] %vm2483, %v2409
    %2667 = vst.msk [vmem:[%s3 + $0x5b8] sm:$0xff] %vm2483, %v2410
    %2668 = vst.msk [vmem:[%s3 + $0x5c0] sm:$0xff] %vm2483, %v2411
    %2669 = vst.msk [vmem:[%s3 + $0x5c8] sm:$0xff] %vm2483, %v2412
    %2670 = vst.msk [vmem:[%s3 + $0x5d0] sm:$0xff] %vm2483, %v2413
    %2671 = vst.msk [vmem:[%s3 + $0x5d8] sm:$0xff] %vm2483, %v2414
    %2672 = vst.msk [vmem:[%s3 + $0x5e0] sm:$0xff] %vm2483, %v2415
    %2673 = vst.msk [vmem:[%s3 + $0x5e8] sm:$0xff] %vm2483, %v2416
    %2674 = vst.msk [vmem:[%s3 + $0x5f0] sm:$0xff] %vm2483, %v2417
    %2675 = vst.msk [vmem:[%s3 + $0x5f8] sm:$0xff] %vm2483, %v2418
    %2676 = vst.msk [vmem:[%s3 + $0x600] sm:$0xff] %vm2483, %v2419
    %2677 = vst.msk [vmem:[%s3 + $0x608] sm:$0xff] %vm2483, %v2420
    %2678 = vst.msk [vmem:[%s3 + $0x610] sm:$0xff] %vm2483, %v2421
    %2679 = vst.msk [vmem:[%s3 + $0x618] sm:$0xff] %vm2483, %v2422
    %2680 = vst.msk [vmem:[%s3 + $0x620] sm:$0xff] %vm2483, %v2423
    %2681 = vst.msk [vmem:[%s3 + $0x628] sm:$0xff] %vm2483, %v2424
    %2682 = vst.msk [vmem:[%s3 + $0x630] sm:$0xff] %vm2483, %v2425
    %2683 = vst.msk [vmem:[%s3 + $0x638] sm:$0xff] %vm2483, %v2426
    %2684 = vst.msk [vmem:[%s3 + $0x640] sm:$0xff] %vm2483, %v2427
    %2685 = vst.msk [vmem:[%s3 + $0x648] sm:$0xff] %vm2483, %v2428
    %2686 = vst.msk [vmem:[%s3 + $0x650] sm:$0xff] %vm2483, %v2429
    %2687 = vst.msk [vmem:[%s3 + $0x658] sm:$0xff] %vm2483, %v2430
    %2688 = vst.msk [vmem:[%s3 + $0x660] sm:$0xff] %vm2483, %v2431
    %2689 = vst.msk [vmem:[%s3 + $0x668] sm:$0xff] %vm2483, %v2432
    %2690 = vst.msk [vmem:[%s3 + $0x670] sm:$0xff] %vm2483, %v2433
    %2691 = vst.msk [vmem:[%s3 + $0x678] sm:$0xff] %vm2483, %v2434
    %2692 = vst.msk [vmem:[%s3 + $0x680] sm:$0xff] %vm2483, %v2435
    %2693 = vst.msk [vmem:[%s3 + $0x688] sm:$0xff] %vm2483, %v2436
    %2694 = vst.msk [vmem:[%s3 + $0x690] sm:$0xff] %vm2483, %v2437
    %2695 = vst.msk [vmem:[%s3 + $0x698] sm:$0xff] %vm2483, %v2438
    %2696 = vst.msk [vmem:[%s3 + $0x6a0] sm:$0xff] %vm2483, %v2439
    %2697 = vst.msk [vmem:[%s3 + $0x6a8] sm:$0xff] %vm2483, %v2440
    %2698 = vst.msk [vmem:[%s3 + $0x6b0] sm:$0xff] %vm2483, %v2441
    %2699 = vst.msk [vmem:[%s3 + $0x6b8] sm:$0xff] %vm2483, %v2442
    %2700 = vst.msk [vmem:[%s3 + $0x6c0] sm:$0xff] %vm2483, %v2443
    %2701 = vst.msk [vmem:[%s3 + $0x6c8] sm:$0xff] %vm2483, %v2444
    %2702 = vst.msk [vmem:[%s3 + $0x6d0] sm:$0xff] %vm2483, %v2445
    %2703 = vst.msk [vmem:[%s3 + $0x6d8] sm:$0xff] %vm2483, %v2446
    %2704 = vst.msk [vmem:[%s3 + $0x6e0] sm:$0xff] %vm2483, %v2447
    %2705 = vst.msk [vmem:[%s3 + $0x6e8] sm:$0xff] %vm2483, %v2448
    %2706 = vst.msk [vmem:[%s3 + $0x6f0] sm:$0xff] %vm2483, %v2449
    %2707 = vst.msk [vmem:[%s3 + $0x6f8] sm:$0xff] %vm2483, %v2450
    %2708 = vst.msk [vmem:[%s3 + $0x700] sm:$0xff] %vm2483, %v2451
    %2709 = vst.msk [vmem:[%s3 + $0x708] sm:$0xff] %vm2483, %v2452
    %2710 = vst.msk [vmem:[%s3 + $0x710] sm:$0xff] %vm2483, %v2453
    %2711 = vst.msk [vmem:[%s3 + $0x718] sm:$0xff] %vm2483, %v2454
    %2712 = vst.msk [vmem:[%s3 + $0x720] sm:$0xff] %vm2483, %v2455
    %2713 = vst.msk [vmem:[%s3 + $0x728] sm:$0xff] %vm2483, %v2456
    %2714 = vst.msk [vmem:[%s3 + $0x730] sm:$0xff] %vm2483, %v2457
    %2715 = vst.msk [vmem:[%s3 + $0x738] sm:$0xff] %vm2483, %v2458
    %2716 = vst.msk [vmem:[%s3 + $0x740] sm:$0xff] %vm2483, %v2459
    %2717 = vst.msk [vmem:[%s3 + $0x748] sm:$0xff] %vm2483, %v2460
    %2718 = vst.msk [vmem:[%s3 + $0x750] sm:$0xff] %vm2483, %v2461
    %2719 = vst.msk [vmem:[%s3 + $0x758] sm:$0xff] %vm2483, %v2462
    %2720 = vst.msk [vmem:[%s3 + $0x760] sm:$0xff] %vm2483, %v2463
    %2721 = vst.msk [vmem:[%s3 + $0x768] sm:$0xff] %vm2483, %v2464
    %2722 = vst.msk [vmem:[%s3 + $0x770] sm:$0xff] %vm2483, %v2465
    %2723 = vst.msk [vmem:[%s3 + $0x778] sm:$0xff] %vm2483, %v2466
    %2724 = vst.msk [vmem:[%s3 + $0x780] sm:$0xff] %vm2483, %v2467
    %2725 = vst.msk [vmem:[%s3 + $0x788] sm:$0xff] %vm2483, %v2468
    %2726 = vst.msk [vmem:[%s3 + $0x790] sm:$0xff] %vm2483, %v2469
    %2727 = vst.msk [vmem:[%s3 + $0x798] sm:$0xff] %vm2483, %v2470
    %2728 = vst.msk [vmem:[%s3 + $0x7a0] sm:$0xff] %vm2483, %v2471
    %2729 = vst.msk [vmem:[%s3 + $0x7a8] sm:$0xff] %vm2483, %v2472
    %2730 = vst.msk [vmem:[%s3 + $0x7b0] sm:$0xff] %vm2483, %v2473
    %2731 = vst.msk [vmem:[%s3 + $0x7b8] sm:$0xff] %vm2483, %v2474
    %2732 = vst.msk [vmem:[%s3 + $0x7c0] sm:$0xff] %vm2483, %v2475
    %2733 = vst.msk [vmem:[%s3 + $0x7c8] sm:$0xff] %vm2483, %v2476
    %2734 = vst.msk [vmem:[%s3 + $0x7d0] sm:$0xff] %vm2483, %v2477
    %2735 = vst.msk [vmem:[%s3 + $0x7d8] sm:$0xff] %vm2483, %v2478
    %2736 = vst.msk [vmem:[%s3 + $0x7e0] sm:$0xff] %vm2483, %v2479
    %2737 = vst.msk [vmem:[%s3 + $0x7e8] sm:$0xff] %vm2483, %v2480
    %2738 = vst.msk [vmem:[%s3 + $0x7f0] sm:$0xff] %vm2483, %v2481
    %2739 = vst.msk [vmem:[%s3 + $0x7f8] sm:$0xff] %vm2483, %v2482
    // Predicated region
    $region18: #{discriminator_forward.3} parent=1 // pred_check
      _
    $region19: #{discriminator_forward.3} parent=1 // pred_check_branch
      %2741 = sbr.rel (0) target = $region21
    $region20: #{discriminator_forward.3} parent=1 // pred_region
      _
    $region21: #{discriminator_forward.3} parent=1 // pred_fallthru
      _
    // Predicated region
    $region22: #{discriminator_forward.3} parent=1 // pred_check
      _
    $region23: #{discriminator_forward.3} parent=1 // pred_check_branch
      %2743 = sbr.rel (0) target = $region25
    $region24: #{discriminator_forward.3} parent=1 // pred_region
      _
    $region25: #{discriminator_forward.3} parent=1 // pred_fallthru
      _
    %2744 = vsyncpa [#allocation3], 1

// kernel: discriminator_forward.4
$region0: #{discriminator_forward.4}
  #allocation0 [shape = 'u32[]', space=smem, size = 0x4, offset = 0x4, fixed_abs, tag = 'smem constant byte address 0x4 - core index']
  #allocation1 [shape = 'u32[72,128]{1,0:T(1,128)}', space=vmem, size = 0x9000, scoped, tag = 'internal scratch']
  %s0 = inlined_call_operand.vmem [shape: bf16[512,1024], index: 0, kind: input, shape index: {}]
  %s1 = inlined_call_operand.vmem [shape: bf16[1024,128], index: 1, kind: input, shape index: {}]
  %s2 = inlined_call_operand.vmem [shape: f32[1,128], index: 2, kind: input, shape index: {}]
  %s3 = inlined_call_operand.vmem [shape: f32[1,128], index: 3, kind: input, shape index: {}]
  %s4 = inlined_call_operand.vmem [shape: f32[512,128], index: 4, kind: output, shape index: {}]
  %s5 = sld [smem:[#allocation0]]
  $region26: #{discriminator_forward.4} parent=0
    _
  %s7 = ssub.s32 1, %s5
  %s8 = scalar_select 0, %s7, %s5
  // Predicated region
  $region2: #{discriminator_forward.4} parent=0 // pred_check
    _
  $region3: #{discriminator_forward.4} parent=0 // pred_check_branch
    %10 = sbr.rel (0) target = $region5
  $region4: #{discriminator_forward.4} parent=0 // pred_region
    _
  $region5: #{discriminator_forward.4} parent=0 // pred_fallthru
    _
  // Predicated region
  $region6: #{discriminator_forward.4} parent=0 // pred_check
    _
  $region7: #{discriminator_forward.4} parent=0 // pred_check_branch
    %12 = sbr.rel (0) target = $region9
  $region8: #{discriminator_forward.4} parent=0 // pred_region
    _
  $region9: #{discriminator_forward.4} parent=0 // pred_fallthru
    _
  // Predicated region
  $region10: #{discriminator_forward.4} parent=0 // pred_check
    _
  $region11: #{discriminator_forward.4} parent=0 // pred_check_branch
    %14 = sbr.rel (0) target = $region13
  $region12: #{discriminator_forward.4} parent=0 // pred_region
    _
  $region13: #{discriminator_forward.4} parent=0 // pred_fallthru
    _
  // Predicated region
  $region14: #{discriminator_forward.4} parent=0 // pred_check
    _
  $region15: #{discriminator_forward.4} parent=0 // pred_check_branch
    %16 = sbr.rel (0) target = $region17
  $region16: #{discriminator_forward.4} parent=0 // pred_region
    _
  $region17: #{discriminator_forward.4} parent=0 // pred_fallthru
    _
  %v17 = vld [vmem:[%s0] sm:$0xff]
  %v18 = vld [vmem:[%s0 + $0x8] sm:$0xff]
  %v19 = vld [vmem:[%s0 + $0x10] sm:$0xff]
  %v20 = vld [vmem:[%s0 + $0x18] sm:$0xff]
  %v21 = vld [vmem:[%s0 + $0x20] sm:$0xff]
  %v22 = vld [vmem:[%s0 + $0x28] sm:$0xff]
  %v23 = vld [vmem:[%s0 + $0x30] sm:$0xff]
  %v24 = vld [vmem:[%s0 + $0x38] sm:$0xff]
  %v25 = vld [vmem:[%s0 + $0x40] sm:$0xff]
  %v26 = vld [vmem:[%s0 + $0x48] sm:$0xff]
  %v27 = vld [vmem:[%s0 + $0x50] sm:$0xff]
  %v28 = vld [vmem:[%s0 + $0x58] sm:$0xff]
  %v29 = vld [vmem:[%s0 + $0x60] sm:$0xff]
  %v30 = vld [vmem:[%s0 + $0x68] sm:$0xff]
  %v31 = vld [vmem:[%s0 + $0x70] sm:$0xff]
  %v32 = vld [vmem:[%s0 + $0x78] sm:$0xff]
  %v33 = vld [vmem:[%s0 + $0x80] sm:$0xff]
  %v34 = vld [vmem:[%s0 + $0x88] sm:$0xff]
  %v35 = vld [vmem:[%s0 + $0x90] sm:$0xff]
  %v36 = vld [vmem:[%s0 + $0x98] sm:$0xff]
  %v37 = vld [vmem:[%s0 + $0xa0] sm:$0xff]
  %v38 = vld [vmem:[%s0 + $0xa8] sm:$0xff]
  %v39 = vld [vmem:[%s0 + $0xb0] sm:$0xff]
  %v40 = vld [vmem:[%s0 + $0xb8] sm:$0xff]
  %v41 = vld [vmem:[%s0 + $0xc0] sm:$0xff]
  %v42 = vld [vmem:[%s0 + $0xc8] sm:$0xff]
  %v43 = vld [vmem:[%s0 + $0xd0] sm:$0xff]
  %v44 = vld [vmem:[%s0 + $0xd8] sm:$0xff]
  %v45 = vld [vmem:[%s0 + $0xe0] sm:$0xff]
  %v46 = vld [vmem:[%s0 + $0xe8] sm:$0xff]
  %v47 = vld [vmem:[%s0 + $0xf0] sm:$0xff]
  %v48 = vld [vmem:[%s0 + $0xf8] sm:$0xff]
  %v49 = vld [vmem:[%s0 + $0x100] sm:$0xff]
  %v50 = vld [vmem:[%s0 + $0x108] sm:$0xff]
  %v51 = vld [vmem:[%s0 + $0x110] sm:$0xff]
  %v52 = vld [vmem:[%s0 + $0x118] sm:$0xff]
  %v53 = vld [vmem:[%s0 + $0x120] sm:$0xff]
  %v54 = vld [vmem:[%s0 + $0x128] sm:$0xff]
  %v55 = vld [vmem:[%s0 + $0x130] sm:$0xff]
  %v56 = vld [vmem:[%s0 + $0x138] sm:$0xff]
  %v57 = vld [vmem:[%s0 + $0x140] sm:$0xff]
  %v58 = vld [vmem:[%s0 + $0x148] sm:$0xff]
  %v59 = vld [vmem:[%s0 + $0x150] sm:$0xff]
  %v60 = vld [vmem:[%s0 + $0x158] sm:$0xff]
  %v61 = vld [vmem:[%s0 + $0x160] sm:$0xff]
  %v62 = vld [vmem:[%s0 + $0x168] sm:$0xff]
  %v63 = vld [vmem:[%s0 + $0x170] sm:$0xff]
  %v64 = vld [vmem:[%s0 + $0x178] sm:$0xff]
  %v65 = vld [vmem:[%s0 + $0x180] sm:$0xff]
  %v66 = vld [vmem:[%s0 + $0x188] sm:$0xff]
  %v67 = vld [vmem:[%s0 + $0x190] sm:$0xff]
  %v68 = vld [vmem:[%s0 + $0x198] sm:$0xff]
  %v69 = vld [vmem:[%s0 + $0x1a0] sm:$0xff]
  %v70 = vld [vmem:[%s0 + $0x1a8] sm:$0xff]
  %v71 = vld [vmem:[%s0 + $0x1b0] sm:$0xff]
  %v72 = vld [vmem:[%s0 + $0x1b8] sm:$0xff]
  %v73 = vld [vmem:[%s0 + $0x1c0] sm:$0xff]
  %v74 = vld [vmem:[%s0 + $0x1c8] sm:$0xff]
  %v75 = vld [vmem:[%s0 + $0x1d0] sm:$0xff]
  %v76 = vld [vmem:[%s0 + $0x1d8] sm:$0xff]
  %v77 = vld [vmem:[%s0 + $0x1e0] sm:$0xff]
  %v78 = vld [vmem:[%s0 + $0x1e8] sm:$0xff]
  %v79 = vld [vmem:[%s0 + $0x1f0] sm:$0xff]
  %v80 = vld [vmem:[%s0 + $0x1f8] sm:$0xff]
  %v81 = vld [vmem:[%s0 + $0x200] sm:$0xff]
  %v82 = vld [vmem:[%s0 + $0x208] sm:$0xff]
  %v83 = vld [vmem:[%s0 + $0x210] sm:$0xff]
  %v84 = vld [vmem:[%s0 + $0x218] sm:$0xff]
  %v85 = vld [vmem:[%s0 + $0x220] sm:$0xff]
  %v86 = vld [vmem:[%s0 + $0x228] sm:$0xff]
  %v87 = vld [vmem:[%s0 + $0x230] sm:$0xff]
  %v88 = vld [vmem:[%s0 + $0x238] sm:$0xff]
  %v89 = vld [vmem:[%s0 + $0x240] sm:$0xff]
  %v90 = vld [vmem:[%s0 + $0x248] sm:$0xff]
  %v91 = vld [vmem:[%s0 + $0x250] sm:$0xff]
  %v92 = vld [vmem:[%s0 + $0x258] sm:$0xff]
  %v93 = vld [vmem:[%s0 + $0x260] sm:$0xff]
  %v94 = vld [vmem:[%s0 + $0x268] sm:$0xff]
  %v95 = vld [vmem:[%s0 + $0x270] sm:$0xff]
  %v96 = vld [vmem:[%s0 + $0x278] sm:$0xff]
  %v97 = vld [vmem:[%s0 + $0x280] sm:$0xff]
  %v98 = vld [vmem:[%s0 + $0x288] sm:$0xff]
  %v99 = vld [vmem:[%s0 + $0x290] sm:$0xff]
  %v100 = vld [vmem:[%s0 + $0x298] sm:$0xff]
  %v101 = vld [vmem:[%s0 + $0x2a0] sm:$0xff]
  %v102 = vld [vmem:[%s0 + $0x2a8] sm:$0xff]
  %v103 = vld [vmem:[%s0 + $0x2b0] sm:$0xff]
  %v104 = vld [vmem:[%s0 + $0x2b8] sm:$0xff]
  %v105 = vld [vmem:[%s0 + $0x2c0] sm:$0xff]
  %v106 = vld [vmem:[%s0 + $0x2c8] sm:$0xff]
  %v107 = vld [vmem:[%s0 + $0x2d0] sm:$0xff]
  %v108 = vld [vmem:[%s0 + $0x2d8] sm:$0xff]
  %v109 = vld [vmem:[%s0 + $0x2e0] sm:$0xff]
  %v110 = vld [vmem:[%s0 + $0x2e8] sm:$0xff]
  %v111 = vld [vmem:[%s0 + $0x2f0] sm:$0xff]
  %v112 = vld [vmem:[%s0 + $0x2f8] sm:$0xff]
  %v113 = vld [vmem:[%s0 + $0x300] sm:$0xff]
  %v114 = vld [vmem:[%s0 + $0x308] sm:$0xff]
  %v115 = vld [vmem:[%s0 + $0x310] sm:$0xff]
  %v116 = vld [vmem:[%s0 + $0x318] sm:$0xff]
  %v117 = vld [vmem:[%s0 + $0x320] sm:$0xff]
  %v118 = vld [vmem:[%s0 + $0x328] sm:$0xff]
  %v119 = vld [vmem:[%s0 + $0x330] sm:$0xff]
  %v120 = vld [vmem:[%s0 + $0x338] sm:$0xff]
  %v121 = vld [vmem:[%s0 + $0x340] sm:$0xff]
  %v122 = vld [vmem:[%s0 + $0x348] sm:$0xff]
  %v123 = vld [vmem:[%s0 + $0x350] sm:$0xff]
  %v124 = vld [vmem:[%s0 + $0x358] sm:$0xff]
  %v125 = vld [vmem:[%s0 + $0x360] sm:$0xff]
  %v126 = vld [vmem:[%s0 + $0x368] sm:$0xff]
  %v127 = vld [vmem:[%s0 + $0x370] sm:$0xff]
  %v128 = vld [vmem:[%s0 + $0x378] sm:$0xff]
  %v129 = vld [vmem:[%s0 + $0x380] sm:$0xff]
  %v130 = vld [vmem:[%s0 + $0x388] sm:$0xff]
  %v131 = vld [vmem:[%s0 + $0x390] sm:$0xff]
  %v132 = vld [vmem:[%s0 + $0x398] sm:$0xff]
  %v133 = vld [vmem:[%s0 + $0x3a0] sm:$0xff]
  %v134 = vld [vmem:[%s0 + $0x3a8] sm:$0xff]
  %v135 = vld [vmem:[%s0 + $0x3b0] sm:$0xff]
  %v136 = vld [vmem:[%s0 + $0x3b8] sm:$0xff]
  %v137 = vld [vmem:[%s0 + $0x3c0] sm:$0xff]
  %v138 = vld [vmem:[%s0 + $0x3c8] sm:$0xff]
  %v139 = vld [vmem:[%s0 + $0x3d0] sm:$0xff]
  %v140 = vld [vmem:[%s0 + $0x3d8] sm:$0xff]
  %v141 = vld [vmem:[%s0 + $0x3e0] sm:$0xff]
  %v142 = vld [vmem:[%s0 + $0x3e8] sm:$0xff]
  %v143 = vld [vmem:[%s0 + $0x3f0] sm:$0xff]
  %v144 = vld [vmem:[%s0 + $0x3f8] sm:$0xff]
  %v145 = vld [vmem:[%s0 + $0x400] sm:$0xff]
  %v146 = vld [vmem:[%s0 + $0x408] sm:$0xff]
  %v147 = vld [vmem:[%s0 + $0x410] sm:$0xff]
  %v148 = vld [vmem:[%s0 + $0x418] sm:$0xff]
  %v149 = vld [vmem:[%s0 + $0x420] sm:$0xff]
  %v150 = vld [vmem:[%s0 + $0x428] sm:$0xff]
  %v151 = vld [vmem:[%s0 + $0x430] sm:$0xff]
  %v152 = vld [vmem:[%s0 + $0x438] sm:$0xff]
  %v153 = vld [vmem:[%s0 + $0x440] sm:$0xff]
  %v154 = vld [vmem:[%s0 + $0x448] sm:$0xff]
  %v155 = vld [vmem:[%s0 + $0x450] sm:$0xff]
  %v156 = vld [vmem:[%s0 + $0x458] sm:$0xff]
  %v157 = vld [vmem:[%s0 + $0x460] sm:$0xff]
  %v158 = vld [vmem:[%s0 + $0x468] sm:$0xff]
  %v159 = vld [vmem:[%s0 + $0x470] sm:$0xff]
  %v160 = vld [vmem:[%s0 + $0x478] sm:$0xff]
  %v161 = vld [vmem:[%s0 + $0x480] sm:$0xff]
  %v162 = vld [vmem:[%s0 + $0x488] sm:$0xff]
  %v163 = vld [vmem:[%s0 + $0x490] sm:$0xff]
  %v164 = vld [vmem:[%s0 + $0x498] sm:$0xff]
  %v165 = vld [vmem:[%s0 + $0x4a0] sm:$0xff]
  %v166 = vld [vmem:[%s0 + $0x4a8] sm:$0xff]
  %v167 = vld [vmem:[%s0 + $0x4b0] sm:$0xff]
  %v168 = vld [vmem:[%s0 + $0x4b8] sm:$0xff]
  %v169 = vld [vmem:[%s0 + $0x4c0] sm:$0xff]
  %v170 = vld [vmem:[%s0 + $0x4c8] sm:$0xff]
  %v171 = vld [vmem:[%s0 + $0x4d0] sm:$0xff]
  %v172 = vld [vmem:[%s0 + $0x4d8] sm:$0xff]
  %v173 = vld [vmem:[%s0 + $0x4e0] sm:$0xff]
  %v174 = vld [vmem:[%s0 + $0x4e8] sm:$0xff]
  %v175 = vld [vmem:[%s0 + $0x4f0] sm:$0xff]
  %v176 = vld [vmem:[%s0 + $0x4f8] sm:$0xff]
  %v177 = vld [vmem:[%s0 + $0x500] sm:$0xff]
  %v178 = vld [vmem:[%s0 + $0x508] sm:$0xff]
  %v179 = vld [vmem:[%s0 + $0x510] sm:$0xff]
  %v180 = vld [vmem:[%s0 + $0x518] sm:$0xff]
  %v181 = vld [vmem:[%s0 + $0x520] sm:$0xff]
  %v182 = vld [vmem:[%s0 + $0x528] sm:$0xff]
  %v183 = vld [vmem:[%s0 + $0x530] sm:$0xff]
  %v184 = vld [vmem:[%s0 + $0x538] sm:$0xff]
  %v185 = vld [vmem:[%s0 + $0x540] sm:$0xff]
  %v186 = vld [vmem:[%s0 + $0x548] sm:$0xff]
  %v187 = vld [vmem:[%s0 + $0x550] sm:$0xff]
  %v188 = vld [vmem:[%s0 + $0x558] sm:$0xff]
  %v189 = vld [vmem:[%s0 + $0x560] sm:$0xff]
  %v190 = vld [vmem:[%s0 + $0x568] sm:$0xff]
  %v191 = vld [vmem:[%s0 + $0x570] sm:$0xff]
  %v192 = vld [vmem:[%s0 + $0x578] sm:$0xff]
  %v193 = vld [vmem:[%s0 + $0x580] sm:$0xff]
  %v194 = vld [vmem:[%s0 + $0x588] sm:$0xff]
  %v195 = vld [vmem:[%s0 + $0x590] sm:$0xff]
  %v196 = vld [vmem:[%s0 + $0x598] sm:$0xff]
  %v197 = vld [vmem:[%s0 + $0x5a0] sm:$0xff]
  %v198 = vld [vmem:[%s0 + $0x5a8] sm:$0xff]
  %v199 = vld [vmem:[%s0 + $0x5b0] sm:$0xff]
  %v200 = vld [vmem:[%s0 + $0x5b8] sm:$0xff]
  %v201 = vld [vmem:[%s0 + $0x5c0] sm:$0xff]
  %v202 = vld [vmem:[%s0 + $0x5c8] sm:$0xff]
  %v203 = vld [vmem:[%s0 + $0x5d0] sm:$0xff]
  %v204 = vld [vmem:[%s0 + $0x5d8] sm:$0xff]
  %v205 = vld [vmem:[%s0 + $0x5e0] sm:$0xff]
  %v206 = vld [vmem:[%s0 + $0x5e8] sm:$0xff]
  %v207 = vld [vmem:[%s0 + $0x5f0] sm:$0xff]
  %v208 = vld [vmem:[%s0 + $0x5f8] sm:$0xff]
  %v209 = vld [vmem:[%s0 + $0x600] sm:$0xff]
  %v210 = vld [vmem:[%s0 + $0x608] sm:$0xff]
  %v211 = vld [vmem:[%s0 + $0x610] sm:$0xff]
  %v212 = vld [vmem:[%s0 + $0x618] sm:$0xff]
  %v213 = vld [vmem:[%s0 + $0x620] sm:$0xff]
  %v214 = vld [vmem:[%s0 + $0x628] sm:$0xff]
  %v215 = vld [vmem:[%s0 + $0x630] sm:$0xff]
  %v216 = vld [vmem:[%s0 + $0x638] sm:$0xff]
  %v217 = vld [vmem:[%s0 + $0x640] sm:$0xff]
  %v218 = vld [vmem:[%s0 + $0x648] sm:$0xff]
  %v219 = vld [vmem:[%s0 + $0x650] sm:$0xff]
  %v220 = vld [vmem:[%s0 + $0x658] sm:$0xff]
  %v221 = vld [vmem:[%s0 + $0x660] sm:$0xff]
  %v222 = vld [vmem:[%s0 + $0x668] sm:$0xff]
  %v223 = vld [vmem:[%s0 + $0x670] sm:$0xff]
  %v224 = vld [vmem:[%s0 + $0x678] sm:$0xff]
  %v225 = vld [vmem:[%s0 + $0x680] sm:$0xff]
  %v226 = vld [vmem:[%s0 + $0x688] sm:$0xff]
  %v227 = vld [vmem:[%s0 + $0x690] sm:$0xff]
  %v228 = vld [vmem:[%s0 + $0x698] sm:$0xff]
  %v229 = vld [vmem:[%s0 + $0x6a0] sm:$0xff]
  %v230 = vld [vmem:[%s0 + $0x6a8] sm:$0xff]
  %v231 = vld [vmem:[%s0 + $0x6b0] sm:$0xff]
  %v232 = vld [vmem:[%s0 + $0x6b8] sm:$0xff]
  %v233 = vld [vmem:[%s0 + $0x6c0] sm:$0xff]
  %v234 = vld [vmem:[%s0 + $0x6c8] sm:$0xff]
  %v235 = vld [vmem:[%s0 + $0x6d0] sm:$0xff]
  %v236 = vld [vmem:[%s0 + $0x6d8] sm:$0xff]
  %v237 = vld [vmem:[%s0 + $0x6e0] sm:$0xff]
  %v238 = vld [vmem:[%s0 + $0x6e8] sm:$0xff]
  %v239 = vld [vmem:[%s0 + $0x6f0] sm:$0xff]
  %v240 = vld [vmem:[%s0 + $0x6f8] sm:$0xff]
  %v241 = vld [vmem:[%s0 + $0x700] sm:$0xff]
  %v242 = vld [vmem:[%s0 + $0x708] sm:$0xff]
  %v243 = vld [vmem:[%s0 + $0x710] sm:$0xff]
  %v244 = vld [vmem:[%s0 + $0x718] sm:$0xff]
  %v245 = vld [vmem:[%s0 + $0x720] sm:$0xff]
  %v246 = vld [vmem:[%s0 + $0x728] sm:$0xff]
  %v247 = vld [vmem:[%s0 + $0x730] sm:$0xff]
  %v248 = vld [vmem:[%s0 + $0x738] sm:$0xff]
  %v249 = vld [vmem:[%s0 + $0x740] sm:$0xff]
  %v250 = vld [vmem:[%s0 + $0x748] sm:$0xff]
  %v251 = vld [vmem:[%s0 + $0x750] sm:$0xff]
  %v252 = vld [vmem:[%s0 + $0x758] sm:$0xff]
  %v253 = vld [vmem:[%s0 + $0x760] sm:$0xff]
  %v254 = vld [vmem:[%s0 + $0x768] sm:$0xff]
  %v255 = vld [vmem:[%s0 + $0x770] sm:$0xff]
  %v256 = vld [vmem:[%s0 + $0x778] sm:$0xff]
  %v257 = vld [vmem:[%s0 + $0x780] sm:$0xff]
  %v258 = vld [vmem:[%s0 + $0x788] sm:$0xff]
  %v259 = vld [vmem:[%s0 + $0x790] sm:$0xff]
  %v260 = vld [vmem:[%s0 + $0x798] sm:$0xff]
  %v261 = vld [vmem:[%s0 + $0x7a0] sm:$0xff]
  %v262 = vld [vmem:[%s0 + $0x7a8] sm:$0xff]
  %v263 = vld [vmem:[%s0 + $0x7b0] sm:$0xff]
  %v264 = vld [vmem:[%s0 + $0x7b8] sm:$0xff]
  %v265 = vld [vmem:[%s0 + $0x7c0] sm:$0xff]
  %v266 = vld [vmem:[%s0 + $0x7c8] sm:$0xff]
  %v267 = vld [vmem:[%s0 + $0x7d0] sm:$0xff]
  %v268 = vld [vmem:[%s0 + $0x7d8] sm:$0xff]
  %v269 = vld [vmem:[%s0 + $0x7e0] sm:$0xff]
  %v270 = vld [vmem:[%s0 + $0x7e8] sm:$0xff]
  %v271 = vld [vmem:[%s0 + $0x7f0] sm:$0xff]
  %v272 = vld [vmem:[%s0 + $0x7f8] sm:$0xff]
  %v273 = vld [vmem:[%s1] sm:$0xf]
  %v274 = vld [vmem:[%s1 + $0x4] sm:$0xf]
  %v275 = vld [vmem:[%s1 + $0x8] sm:$0xf]
  %v276 = vld [vmem:[%s1 + $0xc] sm:$0xf]
  %v277 = vld [vmem:[%s1 + $0x10] sm:$0xf]
  %v278 = vld [vmem:[%s1 + $0x14] sm:$0xf]
  %v279 = vld [vmem:[%s1 + $0x18] sm:$0xf]
  %v280 = vld [vmem:[%s1 + $0x1c] sm:$0xf]
  %v281 = vld [vmem:[%s1 + $0x20] sm:$0xf]
  %v282 = vld [vmem:[%s1 + $0x24] sm:$0xf]
  %v283 = vld [vmem:[%s1 + $0x28] sm:$0xf]
  %v284 = vld [vmem:[%s1 + $0x2c] sm:$0xf]
  %v285 = vld [vmem:[%s1 + $0x30] sm:$0xf]
  %v286 = vld [vmem:[%s1 + $0x34] sm:$0xf]
  %v287 = vld [vmem:[%s1 + $0x38] sm:$0xf]
  %v288 = vld [vmem:[%s1 + $0x3c] sm:$0xf]
  %v289 = vld [vmem:[%s1 + $0x40] sm:$0xf]
  %v290 = vld [vmem:[%s1 + $0x44] sm:$0xf]
  %v291 = vld [vmem:[%s1 + $0x48] sm:$0xf]
  %v292 = vld [vmem:[%s1 + $0x4c] sm:$0xf]
  %v293 = vld [vmem:[%s1 + $0x50] sm:$0xf]
  %v294 = vld [vmem:[%s1 + $0x54] sm:$0xf]
  %v295 = vld [vmem:[%s1 + $0x58] sm:$0xf]
  %v296 = vld [vmem:[%s1 + $0x5c] sm:$0xf]
  %v297 = vld [vmem:[%s1 + $0x60] sm:$0xf]
  %v298 = vld [vmem:[%s1 + $0x64] sm:$0xf]
  %v299 = vld [vmem:[%s1 + $0x68] sm:$0xf]
  %v300 = vld [vmem:[%s1 + $0x6c] sm:$0xf]
  %v301 = vld [vmem:[%s1 + $0x70] sm:$0xf]
  %v302 = vld [vmem:[%s1 + $0x74] sm:$0xf]
  %v303 = vld [vmem:[%s1 + $0x78] sm:$0xf]
  %v304 = vld [vmem:[%s1 + $0x7c] sm:$0xf]
  %v305 = vld [vmem:[%s1 + $0x80] sm:$0xf]
  %v306 = vld [vmem:[%s1 + $0x84] sm:$0xf]
  %v307 = vld [vmem:[%s1 + $0x88] sm:$0xf]
  %v308 = vld [vmem:[%s1 + $0x8c] sm:$0xf]
  %v309 = vld [vmem:[%s1 + $0x90] sm:$0xf]
  %v310 = vld [vmem:[%s1 + $0x94] sm:$0xf]
  %v311 = vld [vmem:[%s1 + $0x98] sm:$0xf]
  %v312 = vld [vmem:[%s1 + $0x9c] sm:$0xf]
  %v313 = vld [vmem:[%s1 + $0xa0] sm:$0xf]
  %v314 = vld [vmem:[%s1 + $0xa4] sm:$0xf]
  %v315 = vld [vmem:[%s1 + $0xa8] sm:$0xf]
  %v316 = vld [vmem:[%s1 + $0xac] sm:$0xf]
  %v317 = vld [vmem:[%s1 + $0xb0] sm:$0xf]
  %v318 = vld [vmem:[%s1 + $0xb4] sm:$0xf]
  %v319 = vld [vmem:[%s1 + $0xb8] sm:$0xf]
  %v320 = vld [vmem:[%s1 + $0xbc] sm:$0xf]
  %v321 = vld [vmem:[%s1 + $0xc0] sm:$0xf]
  %v322 = vld [vmem:[%s1 + $0xc4] sm:$0xf]
  %v323 = vld [vmem:[%s1 + $0xc8] sm:$0xf]
  %v324 = vld [vmem:[%s1 + $0xcc] sm:$0xf]
  %v325 = vld [vmem:[%s1 + $0xd0] sm:$0xf]
  %v326 = vld [vmem:[%s1 + $0xd4] sm:$0xf]
  %v327 = vld [vmem:[%s1 + $0xd8] sm:$0xf]
  %v328 = vld [vmem:[%s1 + $0xdc] sm:$0xf]
  %v329 = vld [vmem:[%s1 + $0xe0] sm:$0xf]
  %v330 = vld [vmem:[%s1 + $0xe4] sm:$0xf]
  %v331 = vld [vmem:[%s1 + $0xe8] sm:$0xf]
  %v332 = vld [vmem:[%s1 + $0xec] sm:$0xf]
  %v333 = vld [vmem:[%s1 + $0xf0] sm:$0xf]
  %v334 = vld [vmem:[%s1 + $0xf4] sm:$0xf]
  %v335 = vld [vmem:[%s1 + $0xf8] sm:$0xf]
  %v336 = vld [vmem:[%s1 + $0xfc] sm:$0xf]
  %v337 = vld [vmem:[%s1 + $0x100] sm:$0xf]
  %v338 = vld [vmem:[%s1 + $0x104] sm:$0xf]
  %v339 = vld [vmem:[%s1 + $0x108] sm:$0xf]
  %v340 = vld [vmem:[%s1 + $0x10c] sm:$0xf]
  %v341 = vld [vmem:[%s1 + $0x110] sm:$0xf]
  %v342 = vld [vmem:[%s1 + $0x114] sm:$0xf]
  %v343 = vld [vmem:[%s1 + $0x118] sm:$0xf]
  %v344 = vld [vmem:[%s1 + $0x11c] sm:$0xf]
  %v345 = vld [vmem:[%s1 + $0x120] sm:$0xf]
  %v346 = vld [vmem:[%s1 + $0x124] sm:$0xf]
  %v347 = vld [vmem:[%s1 + $0x128] sm:$0xf]
  %v348 = vld [vmem:[%s1 + $0x12c] sm:$0xf]
  %v349 = vld [vmem:[%s1 + $0x130] sm:$0xf]
  %v350 = vld [vmem:[%s1 + $0x134] sm:$0xf]
  %v351 = vld [vmem:[%s1 + $0x138] sm:$0xf]
  %v352 = vld [vmem:[%s1 + $0x13c] sm:$0xf]
  %v353 = vld [vmem:[%s1 + $0x140] sm:$0xf]
  %v354 = vld [vmem:[%s1 + $0x144] sm:$0xf]
  %v355 = vld [vmem:[%s1 + $0x148] sm:$0xf]
  %v356 = vld [vmem:[%s1 + $0x14c] sm:$0xf]
  %v357 = vld [vmem:[%s1 + $0x150] sm:$0xf]
  %v358 = vld [vmem:[%s1 + $0x154] sm:$0xf]
  %v359 = vld [vmem:[%s1 + $0x158] sm:$0xf]
  %v360 = vld [vmem:[%s1 + $0x15c] sm:$0xf]
  %v361 = vld [vmem:[%s1 + $0x160] sm:$0xf]
  %v362 = vld [vmem:[%s1 + $0x164] sm:$0xf]
  %v363 = vld [vmem:[%s1 + $0x168] sm:$0xf]
  %v364 = vld [vmem:[%s1 + $0x16c] sm:$0xf]
  %v365 = vld [vmem:[%s1 + $0x170] sm:$0xf]
  %v366 = vld [vmem:[%s1 + $0x174] sm:$0xf]
  %v367 = vld [vmem:[%s1 + $0x178] sm:$0xf]
  %v368 = vld [vmem:[%s1 + $0x17c] sm:$0xf]
  %v369 = vld [vmem:[%s1 + $0x180] sm:$0xf]
  %v370 = vld [vmem:[%s1 + $0x184] sm:$0xf]
  %v371 = vld [vmem:[%s1 + $0x188] sm:$0xf]
  %v372 = vld [vmem:[%s1 + $0x18c] sm:$0xf]
  %v373 = vld [vmem:[%s1 + $0x190] sm:$0xf]
  %v374 = vld [vmem:[%s1 + $0x194] sm:$0xf]
  %v375 = vld [vmem:[%s1 + $0x198] sm:$0xf]
  %v376 = vld [vmem:[%s1 + $0x19c] sm:$0xf]
  %v377 = vld [vmem:[%s1 + $0x1a0] sm:$0xf]
  %v378 = vld [vmem:[%s1 + $0x1a4] sm:$0xf]
  %v379 = vld [vmem:[%s1 + $0x1a8] sm:$0xf]
  %v380 = vld [vmem:[%s1 + $0x1ac] sm:$0xf]
  %v381 = vld [vmem:[%s1 + $0x1b0] sm:$0xf]
  %v382 = vld [vmem:[%s1 + $0x1b4] sm:$0xf]
  %v383 = vld [vmem:[%s1 + $0x1b8] sm:$0xf]
  %v384 = vld [vmem:[%s1 + $0x1bc] sm:$0xf]
  %v385 = vld [vmem:[%s1 + $0x1c0] sm:$0xf]
  %v386 = vld [vmem:[%s1 + $0x1c4] sm:$0xf]
  %v387 = vld [vmem:[%s1 + $0x1c8] sm:$0xf]
  %v388 = vld [vmem:[%s1 + $0x1cc] sm:$0xf]
  %v389 = vld [vmem:[%s1 + $0x1d0] sm:$0xf]
  %v390 = vld [vmem:[%s1 + $0x1d4] sm:$0xf]
  %v391 = vld [vmem:[%s1 + $0x1d8] sm:$0xf]
  %v392 = vld [vmem:[%s1 + $0x1dc] sm:$0xf]
  %v393 = vld [vmem:[%s1 + $0x1e0] sm:$0xf]
  %v394 = vld [vmem:[%s1 + $0x1e4] sm:$0xf]
  %v395 = vld [vmem:[%s1 + $0x1e8] sm:$0xf]
  %v396 = vld [vmem:[%s1 + $0x1ec] sm:$0xf]
  %v397 = vld [vmem:[%s1 + $0x1f0] sm:$0xf]
  %v398 = vld [vmem:[%s1 + $0x1f4] sm:$0xf]
  %v399 = vld [vmem:[%s1 + $0x1f8] sm:$0xf]
  %v400 = vld [vmem:[%s1 + $0x1fc] sm:$0xf]
  %v657 = vunpack.c.l.b16 %v17
  %v658 = vunpack.c.h.b16 %v17
  %v659 = vunpack.c.l.b16 %v18
  %v660 = vunpack.c.h.b16 %v18
  %v661 = vunpack.c.l.b16 %v19
  %v662 = vunpack.c.h.b16 %v19
  %v663 = vunpack.c.l.b16 %v20
  %v664 = vunpack.c.h.b16 %v20
  %v665 = vunpack.c.l.b16 %v21
  %v666 = vunpack.c.h.b16 %v21
  %v667 = vunpack.c.l.b16 %v22
  %v668 = vunpack.c.h.b16 %v22
  %v669 = vunpack.c.l.b16 %v23
  %v670 = vunpack.c.h.b16 %v23
  %v671 = vunpack.c.l.b16 %v24
  %v672 = vunpack.c.h.b16 %v24
  %v673 = vunpack.c.l.b16 %v25
  %v674 = vunpack.c.h.b16 %v25
  %v675 = vunpack.c.l.b16 %v26
  %v676 = vunpack.c.h.b16 %v26
  %v677 = vunpack.c.l.b16 %v27
  %v678 = vunpack.c.h.b16 %v27
  %v679 = vunpack.c.l.b16 %v28
  %v680 = vunpack.c.h.b16 %v28
  %v681 = vunpack.c.l.b16 %v29
  %v682 = vunpack.c.h.b16 %v29
  %v683 = vunpack.c.l.b16 %v30
  %v684 = vunpack.c.h.b16 %v30
  %v685 = vunpack.c.l.b16 %v31
  %v686 = vunpack.c.h.b16 %v31
  %v687 = vunpack.c.l.b16 %v32
  %v688 = vunpack.c.h.b16 %v32
  %v689 = vunpack.c.l.b16 %v33
  %v690 = vunpack.c.h.b16 %v33
  %v691 = vunpack.c.l.b16 %v34
  %v692 = vunpack.c.h.b16 %v34
  %v693 = vunpack.c.l.b16 %v35
  %v694 = vunpack.c.h.b16 %v35
  %v695 = vunpack.c.l.b16 %v36
  %v696 = vunpack.c.h.b16 %v36
  %v697 = vunpack.c.l.b16 %v37
  %v698 = vunpack.c.h.b16 %v37
  %v699 = vunpack.c.l.b16 %v38
  %v700 = vunpack.c.h.b16 %v38
  %v701 = vunpack.c.l.b16 %v39
  %v702 = vunpack.c.h.b16 %v39
  %v703 = vunpack.c.l.b16 %v40
  %v704 = vunpack.c.h.b16 %v40
  %v705 = vunpack.c.l.b16 %v41
  %v706 = vunpack.c.h.b16 %v41
  %v707 = vunpack.c.l.b16 %v42
  %v708 = vunpack.c.h.b16 %v42
  %v709 = vunpack.c.l.b16 %v43
  %v710 = vunpack.c.h.b16 %v43
  %v711 = vunpack.c.l.b16 %v44
  %v712 = vunpack.c.h.b16 %v44
  %v713 = vunpack.c.l.b16 %v45
  %v714 = vunpack.c.h.b16 %v45
  %v715 = vunpack.c.l.b16 %v46
  %v716 = vunpack.c.h.b16 %v46
  %v717 = vunpack.c.l.b16 %v47
  %v718 = vunpack.c.h.b16 %v47
  %v719 = vunpack.c.l.b16 %v48
  %v720 = vunpack.c.h.b16 %v48
  %v721 = vunpack.c.l.b16 %v49
  %v722 = vunpack.c.h.b16 %v49
  %v723 = vunpack.c.l.b16 %v50
  %v724 = vunpack.c.h.b16 %v50
  %v725 = vunpack.c.l.b16 %v51
  %v726 = vunpack.c.h.b16 %v51
  %v727 = vunpack.c.l.b16 %v52
  %v728 = vunpack.c.h.b16 %v52
  %v729 = vunpack.c.l.b16 %v53
  %v730 = vunpack.c.h.b16 %v53
  %v731 = vunpack.c.l.b16 %v54
  %v732 = vunpack.c.h.b16 %v54
  %v733 = vunpack.c.l.b16 %v55
  %v734 = vunpack.c.h.b16 %v55
  %v735 = vunpack.c.l.b16 %v56
  %v736 = vunpack.c.h.b16 %v56
  %v737 = vunpack.c.l.b16 %v57
  %v738 = vunpack.c.h.b16 %v57
  %v739 = vunpack.c.l.b16 %v58
  %v740 = vunpack.c.h.b16 %v58
  %v741 = vunpack.c.l.b16 %v59
  %v742 = vunpack.c.h.b16 %v59
  %v743 = vunpack.c.l.b16 %v60
  %v744 = vunpack.c.h.b16 %v60
  %v745 = vunpack.c.l.b16 %v61
  %v746 = vunpack.c.h.b16 %v61
  %v747 = vunpack.c.l.b16 %v62
  %v748 = vunpack.c.h.b16 %v62
  %v749 = vunpack.c.l.b16 %v63
  %v750 = vunpack.c.h.b16 %v63
  %v751 = vunpack.c.l.b16 %v64
  %v752 = vunpack.c.h.b16 %v64
  %v753 = vunpack.c.l.b16 %v65
  %v754 = vunpack.c.h.b16 %v65
  %v755 = vunpack.c.l.b16 %v66
  %v756 = vunpack.c.h.b16 %v66
  %v757 = vunpack.c.l.b16 %v67
  %v758 = vunpack.c.h.b16 %v67
  %v759 = vunpack.c.l.b16 %v68
  %v760 = vunpack.c.h.b16 %v68
  %v761 = vunpack.c.l.b16 %v69
  %v762 = vunpack.c.h.b16 %v69
  %v763 = vunpack.c.l.b16 %v70
  %v764 = vunpack.c.h.b16 %v70
  %v765 = vunpack.c.l.b16 %v71
  %v766 = vunpack.c.h.b16 %v71
  %v767 = vunpack.c.l.b16 %v72
  %v768 = vunpack.c.h.b16 %v72
  %v769 = vunpack.c.l.b16 %v73
  %v770 = vunpack.c.h.b16 %v73
  %v771 = vunpack.c.l.b16 %v74
  %v772 = vunpack.c.h.b16 %v74
  %v773 = vunpack.c.l.b16 %v75
  %v774 = vunpack.c.h.b16 %v75
  %v775 = vunpack.c.l.b16 %v76
  %v776 = vunpack.c.h.b16 %v76
  %v777 = vunpack.c.l.b16 %v77
  %v778 = vunpack.c.h.b16 %v77
  %v779 = vunpack.c.l.b16 %v78
  %v780 = vunpack.c.h.b16 %v78
  %v781 = vunpack.c.l.b16 %v79
  %v782 = vunpack.c.h.b16 %v79
  %v783 = vunpack.c.l.b16 %v80
  %v784 = vunpack.c.h.b16 %v80
  %v785 = vunpack.c.l.b16 %v81
  %v786 = vunpack.c.h.b16 %v81
  %v787 = vunpack.c.l.b16 %v82
  %v788 = vunpack.c.h.b16 %v82
  %v789 = vunpack.c.l.b16 %v83
  %v790 = vunpack.c.h.b16 %v83
  %v791 = vunpack.c.l.b16 %v84
  %v792 = vunpack.c.h.b16 %v84
  %v793 = vunpack.c.l.b16 %v85
  %v794 = vunpack.c.h.b16 %v85
  %v795 = vunpack.c.l.b16 %v86
  %v796 = vunpack.c.h.b16 %v86
  %v797 = vunpack.c.l.b16 %v87
  %v798 = vunpack.c.h.b16 %v87
  %v799 = vunpack.c.l.b16 %v88
  %v800 = vunpack.c.h.b16 %v88
  %v801 = vunpack.c.l.b16 %v89
  %v802 = vunpack.c.h.b16 %v89
  %v803 = vunpack.c.l.b16 %v90
  %v804 = vunpack.c.h.b16 %v90
  %v805 = vunpack.c.l.b16 %v91
  %v806 = vunpack.c.h.b16 %v91
  %v807 = vunpack.c.l.b16 %v92
  %v808 = vunpack.c.h.b16 %v92
  %v809 = vunpack.c.l.b16 %v93
  %v810 = vunpack.c.h.b16 %v93
  %v811 = vunpack.c.l.b16 %v94
  %v812 = vunpack.c.h.b16 %v94
  %v813 = vunpack.c.l.b16 %v95
  %v814 = vunpack.c.h.b16 %v95
  %v815 = vunpack.c.l.b16 %v96
  %v816 = vunpack.c.h.b16 %v96
  %v817 = vunpack.c.l.b16 %v97
  %v818 = vunpack.c.h.b16 %v97
  %v819 = vunpack.c.l.b16 %v98
  %v820 = vunpack.c.h.b16 %v98
  %v821 = vunpack.c.l.b16 %v99
  %v822 = vunpack.c.h.b16 %v99
  %v823 = vunpack.c.l.b16 %v100
  %v824 = vunpack.c.h.b16 %v100
  %v825 = vunpack.c.l.b16 %v101
  %v826 = vunpack.c.h.b16 %v101
  %v827 = vunpack.c.l.b16 %v102
  %v828 = vunpack.c.h.b16 %v102
  %v829 = vunpack.c.l.b16 %v103
  %v830 = vunpack.c.h.b16 %v103
  %v831 = vunpack.c.l.b16 %v104
  %v832 = vunpack.c.h.b16 %v104
  %v833 = vunpack.c.l.b16 %v105
  %v834 = vunpack.c.h.b16 %v105
  %v835 = vunpack.c.l.b16 %v106
  %v836 = vunpack.c.h.b16 %v106
  %v837 = vunpack.c.l.b16 %v107
  %v838 = vunpack.c.h.b16 %v107
  %v839 = vunpack.c.l.b16 %v108
  %v840 = vunpack.c.h.b16 %v108
  %v841 = vunpack.c.l.b16 %v109
  %v842 = vunpack.c.h.b16 %v109
  %v843 = vunpack.c.l.b16 %v110
  %v844 = vunpack.c.h.b16 %v110
  %v845 = vunpack.c.l.b16 %v111
  %v846 = vunpack.c.h.b16 %v111
  %v847 = vunpack.c.l.b16 %v112
  %v848 = vunpack.c.h.b16 %v112
  %v849 = vunpack.c.l.b16 %v113
  %v850 = vunpack.c.h.b16 %v113
  %v851 = vunpack.c.l.b16 %v114
  %v852 = vunpack.c.h.b16 %v114
  %v853 = vunpack.c.l.b16 %v115
  %v854 = vunpack.c.h.b16 %v115
  %v855 = vunpack.c.l.b16 %v116
  %v856 = vunpack.c.h.b16 %v116
  %v857 = vunpack.c.l.b16 %v117
  %v858 = vunpack.c.h.b16 %v117
  %v859 = vunpack.c.l.b16 %v118
  %v860 = vunpack.c.h.b16 %v118
  %v861 = vunpack.c.l.b16 %v119
  %v862 = vunpack.c.h.b16 %v119
  %v863 = vunpack.c.l.b16 %v120
  %v864 = vunpack.c.h.b16 %v120
  %v865 = vunpack.c.l.b16 %v121
  %v866 = vunpack.c.h.b16 %v121
  %v867 = vunpack.c.l.b16 %v122
  %v868 = vunpack.c.h.b16 %v122
  %v869 = vunpack.c.l.b16 %v123
  %v870 = vunpack.c.h.b16 %v123
  %v871 = vunpack.c.l.b16 %v124
  %v872 = vunpack.c.h.b16 %v124
  %v873 = vunpack.c.l.b16 %v125
  %v874 = vunpack.c.h.b16 %v125
  %v875 = vunpack.c.l.b16 %v126
  %v876 = vunpack.c.h.b16 %v126
  %v877 = vunpack.c.l.b16 %v127
  %v878 = vunpack.c.h.b16 %v127
  %v879 = vunpack.c.l.b16 %v128
  %v880 = vunpack.c.h.b16 %v128
  %v881 = vunpack.c.l.b16 %v129
  %v882 = vunpack.c.h.b16 %v129
  %v883 = vunpack.c.l.b16 %v130
  %v884 = vunpack.c.h.b16 %v130
  %v885 = vunpack.c.l.b16 %v131
  %v886 = vunpack.c.h.b16 %v131
  %v887 = vunpack.c.l.b16 %v132
  %v888 = vunpack.c.h.b16 %v132
  %v889 = vunpack.c.l.b16 %v133
  %v890 = vunpack.c.h.b16 %v133
  %v891 = vunpack.c.l.b16 %v134
  %v892 = vunpack.c.h.b16 %v134
  %v893 = vunpack.c.l.b16 %v135
  %v894 = vunpack.c.h.b16 %v135
  %v895 = vunpack.c.l.b16 %v136
  %v896 = vunpack.c.h.b16 %v136
  %v897 = vunpack.c.l.b16 %v137
  %v898 = vunpack.c.h.b16 %v137
  %v899 = vunpack.c.l.b16 %v138
  %v900 = vunpack.c.h.b16 %v138
  %v901 = vunpack.c.l.b16 %v139
  %v902 = vunpack.c.h.b16 %v139
  %v903 = vunpack.c.l.b16 %v140
  %v904 = vunpack.c.h.b16 %v140
  %v905 = vunpack.c.l.b16 %v141
  %v906 = vunpack.c.h.b16 %v141
  %v907 = vunpack.c.l.b16 %v142
  %v908 = vunpack.c.h.b16 %v142
  %v909 = vunpack.c.l.b16 %v143
  %v910 = vunpack.c.h.b16 %v143
  %v911 = vunpack.c.l.b16 %v144
  %v912 = vunpack.c.h.b16 %v144
  %v913 = vunpack.c.l.b16 %v145
  %v914 = vunpack.c.h.b16 %v145
  %v915 = vunpack.c.l.b16 %v146
  %v916 = vunpack.c.h.b16 %v146
  %v917 = vunpack.c.l.b16 %v147
  %v918 = vunpack.c.h.b16 %v147
  %v919 = vunpack.c.l.b16 %v148
  %v920 = vunpack.c.h.b16 %v148
  %v921 = vunpack.c.l.b16 %v149
  %v922 = vunpack.c.h.b16 %v149
  %v923 = vunpack.c.l.b16 %v150
  %v924 = vunpack.c.h.b16 %v150
  %v925 = vunpack.c.l.b16 %v151
  %v926 = vunpack.c.h.b16 %v151
  %v927 = vunpack.c.l.b16 %v152
  %v928 = vunpack.c.h.b16 %v152
  %v929 = vunpack.c.l.b16 %v153
  %v930 = vunpack.c.h.b16 %v153
  %v931 = vunpack.c.l.b16 %v154
  %v932 = vunpack.c.h.b16 %v154
  %v933 = vunpack.c.l.b16 %v155
  %v934 = vunpack.c.h.b16 %v155
  %v935 = vunpack.c.l.b16 %v156
  %v936 = vunpack.c.h.b16 %v156
  %v937 = vunpack.c.l.b16 %v157
  %v938 = vunpack.c.h.b16 %v157
  %v939 = vunpack.c.l.b16 %v158
  %v940 = vunpack.c.h.b16 %v158
  %v941 = vunpack.c.l.b16 %v159
  %v942 = vunpack.c.h.b16 %v159
  %v943 = vunpack.c.l.b16 %v160
  %v944 = vunpack.c.h.b16 %v160
  %v945 = vunpack.c.l.b16 %v161
  %v946 = vunpack.c.h.b16 %v161
  %v947 = vunpack.c.l.b16 %v162
  %v948 = vunpack.c.h.b16 %v162
  %v949 = vunpack.c.l.b16 %v163
  %v950 = vunpack.c.h.b16 %v163
  %v951 = vunpack.c.l.b16 %v164
  %v952 = vunpack.c.h.b16 %v164
  %v953 = vunpack.c.l.b16 %v165
  %v954 = vunpack.c.h.b16 %v165
  %v955 = vunpack.c.l.b16 %v166
  %v956 = vunpack.c.h.b16 %v166
  %v957 = vunpack.c.l.b16 %v167
  %v958 = vunpack.c.h.b16 %v167
  %v959 = vunpack.c.l.b16 %v168
  %v960 = vunpack.c.h.b16 %v168
  %v961 = vunpack.c.l.b16 %v169
  %v962 = vunpack.c.h.b16 %v169
  %v963 = vunpack.c.l.b16 %v170
  %v964 = vunpack.c.h.b16 %v170
  %v965 = vunpack.c.l.b16 %v171
  %v966 = vunpack.c.h.b16 %v171
  %v967 = vunpack.c.l.b16 %v172
  %v968 = vunpack.c.h.b16 %v172
  %v969 = vunpack.c.l.b16 %v173
  %v970 = vunpack.c.h.b16 %v173
  %v971 = vunpack.c.l.b16 %v174
  %v972 = vunpack.c.h.b16 %v174
  %v973 = vunpack.c.l.b16 %v175
  %v974 = vunpack.c.h.b16 %v175
  %v975 = vunpack.c.l.b16 %v176
  %v976 = vunpack.c.h.b16 %v176
  %v977 = vunpack.c.l.b16 %v177
  %v978 = vunpack.c.h.b16 %v177
  %v979 = vunpack.c.l.b16 %v178
  %v980 = vunpack.c.h.b16 %v178
  %v981 = vunpack.c.l.b16 %v179
  %v982 = vunpack.c.h.b16 %v179
  %v983 = vunpack.c.l.b16 %v180
  %v984 = vunpack.c.h.b16 %v180
  %v985 = vunpack.c.l.b16 %v181
  %v986 = vunpack.c.h.b16 %v181
  %v987 = vunpack.c.l.b16 %v182
  %v988 = vunpack.c.h.b16 %v182
  %v989 = vunpack.c.l.b16 %v183
  %v990 = vunpack.c.h.b16 %v183
  %v991 = vunpack.c.l.b16 %v184
  %v992 = vunpack.c.h.b16 %v184
  %v993 = vunpack.c.l.b16 %v185
  %v994 = vunpack.c.h.b16 %v185
  %v995 = vunpack.c.l.b16 %v186
  %v996 = vunpack.c.h.b16 %v186
  %v997 = vunpack.c.l.b16 %v187
  %v998 = vunpack.c.h.b16 %v187
  %v999 = vunpack.c.l.b16 %v188
  %v1000 = vunpack.c.h.b16 %v188
  %v1001 = vunpack.c.l.b16 %v189
  %v1002 = vunpack.c.h.b16 %v189
  %v1003 = vunpack.c.l.b16 %v190
  %v1004 = vunpack.c.h.b16 %v190
  %v1005 = vunpack.c.l.b16 %v191
  %v1006 = vunpack.c.h.b16 %v191
  %v1007 = vunpack.c.l.b16 %v192
  %v1008 = vunpack.c.h.b16 %v192
  %v1009 = vunpack.c.l.b16 %v193
  %v1010 = vunpack.c.h.b16 %v193
  %v1011 = vunpack.c.l.b16 %v194
  %v1012 = vunpack.c.h.b16 %v194
  %v1013 = vunpack.c.l.b16 %v195
  %v1014 = vunpack.c.h.b16 %v195
  %v1015 = vunpack.c.l.b16 %v196
  %v1016 = vunpack.c.h.b16 %v196
  %v1017 = vunpack.c.l.b16 %v197
  %v1018 = vunpack.c.h.b16 %v197
  %v1019 = vunpack.c.l.b16 %v198
  %v1020 = vunpack.c.h.b16 %v198
  %v1021 = vunpack.c.l.b16 %v199
  %v1022 = vunpack.c.h.b16 %v199
  %v1023 = vunpack.c.l.b16 %v200
  %v1024 = vunpack.c.h.b16 %v200
  %v1025 = vunpack.c.l.b16 %v201
  %v1026 = vunpack.c.h.b16 %v201
  %v1027 = vunpack.c.l.b16 %v202
  %v1028 = vunpack.c.h.b16 %v202
  %v1029 = vunpack.c.l.b16 %v203
  %v1030 = vunpack.c.h.b16 %v203
  %v1031 = vunpack.c.l.b16 %v204
  %v1032 = vunpack.c.h.b16 %v204
  %v1033 = vunpack.c.l.b16 %v205
  %v1034 = vunpack.c.h.b16 %v205
  %v1035 = vunpack.c.l.b16 %v206
  %v1036 = vunpack.c.h.b16 %v206
  %v1037 = vunpack.c.l.b16 %v207
  %v1038 = vunpack.c.h.b16 %v207
  %v1039 = vunpack.c.l.b16 %v208
  %v1040 = vunpack.c.h.b16 %v208
  %v1041 = vunpack.c.l.b16 %v209
  %v1042 = vunpack.c.h.b16 %v209
  %v1043 = vunpack.c.l.b16 %v210
  %v1044 = vunpack.c.h.b16 %v210
  %v1045 = vunpack.c.l.b16 %v211
  %v1046 = vunpack.c.h.b16 %v211
  %v1047 = vunpack.c.l.b16 %v212
  %v1048 = vunpack.c.h.b16 %v212
  %v1049 = vunpack.c.l.b16 %v213
  %v1050 = vunpack.c.h.b16 %v213
  %v1051 = vunpack.c.l.b16 %v214
  %v1052 = vunpack.c.h.b16 %v214
  %v1053 = vunpack.c.l.b16 %v215
  %v1054 = vunpack.c.h.b16 %v215
  %v1055 = vunpack.c.l.b16 %v216
  %v1056 = vunpack.c.h.b16 %v216
  %v1057 = vunpack.c.l.b16 %v217
  %v1058 = vunpack.c.h.b16 %v217
  %v1059 = vunpack.c.l.b16 %v218
  %v1060 = vunpack.c.h.b16 %v218
  %v1061 = vunpack.c.l.b16 %v219
  %v1062 = vunpack.c.h.b16 %v219
  %v1063 = vunpack.c.l.b16 %v220
  %v1064 = vunpack.c.h.b16 %v220
  %v1065 = vunpack.c.l.b16 %v221
  %v1066 = vunpack.c.h.b16 %v221
  %v1067 = vunpack.c.l.b16 %v222
  %v1068 = vunpack.c.h.b16 %v222
  %v1069 = vunpack.c.l.b16 %v223
  %v1070 = vunpack.c.h.b16 %v223
  %v1071 = vunpack.c.l.b16 %v224
  %v1072 = vunpack.c.h.b16 %v224
  %v1073 = vunpack.c.l.b16 %v225
  %v1074 = vunpack.c.h.b16 %v225
  %v1075 = vunpack.c.l.b16 %v226
  %v1076 = vunpack.c.h.b16 %v226
  %v1077 = vunpack.c.l.b16 %v227
  %v1078 = vunpack.c.h.b16 %v227
  %v1079 = vunpack.c.l.b16 %v228
  %v1080 = vunpack.c.h.b16 %v228
  %v1081 = vunpack.c.l.b16 %v229
  %v1082 = vunpack.c.h.b16 %v229
  %v1083 = vunpack.c.l.b16 %v230
  %v1084 = vunpack.c.h.b16 %v230
  %v1085 = vunpack.c.l.b16 %v231
  %v1086 = vunpack.c.h.b16 %v231
  %v1087 = vunpack.c.l.b16 %v232
  %v1088 = vunpack.c.h.b16 %v232
  %v1089 = vunpack.c.l.b16 %v233
  %v1090 = vunpack.c.h.b16 %v233
  %v1091 = vunpack.c.l.b16 %v234
  %v1092 = vunpack.c.h.b16 %v234
  %v1093 = vunpack.c.l.b16 %v235
  %v1094 = vunpack.c.h.b16 %v235
  %v1095 = vunpack.c.l.b16 %v236
  %v1096 = vunpack.c.h.b16 %v236
  %v1097 = vunpack.c.l.b16 %v237
  %v1098 = vunpack.c.h.b16 %v237
  %v1099 = vunpack.c.l.b16 %v238
  %v1100 = vunpack.c.h.b16 %v238
  %v1101 = vunpack.c.l.b16 %v239
  %v1102 = vunpack.c.h.b16 %v239
  %v1103 = vunpack.c.l.b16 %v240
  %v1104 = vunpack.c.h.b16 %v240
  %v1105 = vunpack.c.l.b16 %v241
  %v1106 = vunpack.c.h.b16 %v241
  %v1107 = vunpack.c.l.b16 %v242
  %v1108 = vunpack.c.h.b16 %v242
  %v1109 = vunpack.c.l.b16 %v243
  %v1110 = vunpack.c.h.b16 %v243
  %v1111 = vunpack.c.l.b16 %v244
  %v1112 = vunpack.c.h.b16 %v244
  %v1113 = vunpack.c.l.b16 %v245
  %v1114 = vunpack.c.h.b16 %v245
  %v1115 = vunpack.c.l.b16 %v246
  %v1116 = vunpack.c.h.b16 %v246
  %v1117 = vunpack.c.l.b16 %v247
  %v1118 = vunpack.c.h.b16 %v247
  %v1119 = vunpack.c.l.b16 %v248
  %v1120 = vunpack.c.h.b16 %v248
  %v1121 = vunpack.c.l.b16 %v249
  %v1122 = vunpack.c.h.b16 %v249
  %v1123 = vunpack.c.l.b16 %v250
  %v1124 = vunpack.c.h.b16 %v250
  %v1125 = vunpack.c.l.b16 %v251
  %v1126 = vunpack.c.h.b16 %v251
  %v1127 = vunpack.c.l.b16 %v252
  %v1128 = vunpack.c.h.b16 %v252
  %v1129 = vunpack.c.l.b16 %v253
  %v1130 = vunpack.c.h.b16 %v253
  %v1131 = vunpack.c.l.b16 %v254
  %v1132 = vunpack.c.h.b16 %v254
  %v1133 = vunpack.c.l.b16 %v255
  %v1134 = vunpack.c.h.b16 %v255
  %v1135 = vunpack.c.l.b16 %v256
  %v1136 = vunpack.c.h.b16 %v256
  %v1137 = vunpack.c.l.b16 %v257
  %v1138 = vunpack.c.h.b16 %v257
  %v1139 = vunpack.c.l.b16 %v258
  %v1140 = vunpack.c.h.b16 %v258
  %v1141 = vunpack.c.l.b16 %v259
  %v1142 = vunpack.c.h.b16 %v259
  %v1143 = vunpack.c.l.b16 %v260
  %v1144 = vunpack.c.h.b16 %v260
  %v1145 = vunpack.c.l.b16 %v261
  %v1146 = vunpack.c.h.b16 %v261
  %v1147 = vunpack.c.l.b16 %v262
  %v1148 = vunpack.c.h.b16 %v262
  %v1149 = vunpack.c.l.b16 %v263
  %v1150 = vunpack.c.h.b16 %v263
  %v1151 = vunpack.c.l.b16 %v264
  %v1152 = vunpack.c.h.b16 %v264
  %v1153 = vunpack.c.l.b16 %v265
  %v1154 = vunpack.c.h.b16 %v265
  %v1155 = vunpack.c.l.b16 %v266
  %v1156 = vunpack.c.h.b16 %v266
  %v1157 = vunpack.c.l.b16 %v267
  %v1158 = vunpack.c.h.b16 %v267
  %v1159 = vunpack.c.l.b16 %v268
  %v1160 = vunpack.c.h.b16 %v268
  %v1161 = vunpack.c.l.b16 %v269
  %v1162 = vunpack.c.h.b16 %v269
  %v1163 = vunpack.c.l.b16 %v270
  %v1164 = vunpack.c.h.b16 %v270
  %v1165 = vunpack.c.l.b16 %v271
  %v1166 = vunpack.c.h.b16 %v271
  %v1167 = vunpack.c.l.b16 %v272
  %v1168 = vunpack.c.h.b16 %v272
  %v1169 = vpack.c.b16 %v665, %v657
  %v1170 = vpack.c.b16 %v666, %v658
  %v1171 = vpack.c.b16 %v667, %v659
  %v1172 = vpack.c.b16 %v668, %v660
  %v1173 = vpack.c.b16 %v669, %v661
  %v1174 = vpack.c.b16 %v670, %v662
  %v1175 = vpack.c.b16 %v671, %v663
  %v1176 = vpack.c.b16 %v672, %v664
  %v1177 = vpack.c.b16 %v681, %v673
  %v1178 = vpack.c.b16 %v682, %v674
  %v1179 = vpack.c.b16 %v683, %v675
  %v1180 = vpack.c.b16 %v684, %v676
  %v1181 = vpack.c.b16 %v685, %v677
  %v1182 = vpack.c.b16 %v686, %v678
  %v1183 = vpack.c.b16 %v687, %v679
  %v1184 = vpack.c.b16 %v688, %v680
  %v1185 = vpack.c.b16 %v697, %v689
  %v1186 = vpack.c.b16 %v698, %v690
  %v1187 = vpack.c.b16 %v699, %v691
  %v1188 = vpack.c.b16 %v700, %v692
  %v1189 = vpack.c.b16 %v701, %v693
  %v1190 = vpack.c.b16 %v702, %v694
  %v1191 = vpack.c.b16 %v703, %v695
  %v1192 = vpack.c.b16 %v704, %v696
  %v1193 = vpack.c.b16 %v713, %v705
  %v1194 = vpack.c.b16 %v714, %v706
  %v1195 = vpack.c.b16 %v715, %v707
  %v1196 = vpack.c.b16 %v716, %v708
  %v1197 = vpack.c.b16 %v717, %v709
  %v1198 = vpack.c.b16 %v718, %v710
  %v1199 = vpack.c.b16 %v719, %v711
  %v1200 = vpack.c.b16 %v720, %v712
  %v1201 = vpack.c.b16 %v729, %v721
  %v1202 = vpack.c.b16 %v730, %v722
  %v1203 = vpack.c.b16 %v731, %v723
  %v1204 = vpack.c.b16 %v732, %v724
  %v1205 = vpack.c.b16 %v733, %v725
  %v1206 = vpack.c.b16 %v734, %v726
  %v1207 = vpack.c.b16 %v735, %v727
  %v1208 = vpack.c.b16 %v736, %v728
  %v1209 = vpack.c.b16 %v745, %v737
  %v1210 = vpack.c.b16 %v746, %v738
  %v1211 = vpack.c.b16 %v747, %v739
  %v1212 = vpack.c.b16 %v748, %v740
  %v1213 = vpack.c.b16 %v749, %v741
  %v1214 = vpack.c.b16 %v750, %v742
  %v1215 = vpack.c.b16 %v751, %v743
  %v1216 = vpack.c.b16 %v752, %v744
  %v1217 = vpack.c.b16 %v761, %v753
  %v1218 = vpack.c.b16 %v762, %v754
  %v1219 = vpack.c.b16 %v763, %v755
  %v1220 = vpack.c.b16 %v764, %v756
  %v1221 = vpack.c.b16 %v765, %v757
  %v1222 = vpack.c.b16 %v766, %v758
  %v1223 = vpack.c.b16 %v767, %v759
  %v1224 = vpack.c.b16 %v768, %v760
  %v1225 = vpack.c.b16 %v777, %v769
  %v1226 = vpack.c.b16 %v778, %v770
  %v1227 = vpack.c.b16 %v779, %v771
  %v1228 = vpack.c.b16 %v780, %v772
  %v1229 = vpack.c.b16 %v781, %v773
  %v1230 = vpack.c.b16 %v782, %v774
  %v1231 = vpack.c.b16 %v783, %v775
  %v1232 = vpack.c.b16 %v784, %v776
  %v1233 = vpack.c.b16 %v793, %v785
  %v1234 = vpack.c.b16 %v794, %v786
  %v1235 = vpack.c.b16 %v795, %v787
  %v1236 = vpack.c.b16 %v796, %v788
  %v1237 = vpack.c.b16 %v797, %v789
  %v1238 = vpack.c.b16 %v798, %v790
  %v1239 = vpack.c.b16 %v799, %v791
  %v1240 = vpack.c.b16 %v800, %v792
  %v1241 = vpack.c.b16 %v809, %v801
  %v1242 = vpack.c.b16 %v810, %v802
  %v1243 = vpack.c.b16 %v811, %v803
  %v1244 = vpack.c.b16 %v812, %v804
  %v1245 = vpack.c.b16 %v813, %v805
  %v1246 = vpack.c.b16 %v814, %v806
  %v1247 = vpack.c.b16 %v815, %v807
  %v1248 = vpack.c.b16 %v816, %v808
  %v1249 = vpack.c.b16 %v825, %v817
  %v1250 = vpack.c.b16 %v826, %v818
  %v1251 = vpack.c.b16 %v827, %v819
  %v1252 = vpack.c.b16 %v828, %v820
  %v1253 = vpack.c.b16 %v829, %v821
  %v1254 = vpack.c.b16 %v830, %v822
  %v1255 = vpack.c.b16 %v831, %v823
  %v1256 = vpack.c.b16 %v832, %v824
  %v1257 = vpack.c.b16 %v841, %v833
  %v1258 = vpack.c.b16 %v842, %v834
  %v1259 = vpack.c.b16 %v843, %v835
  %v1260 = vpack.c.b16 %v844, %v836
  %v1261 = vpack.c.b16 %v845, %v837
  %v1262 = vpack.c.b16 %v846, %v838
  %v1263 = vpack.c.b16 %v847, %v839
  %v1264 = vpack.c.b16 %v848, %v840
  %v1265 = vpack.c.b16 %v857, %v849
  %v1266 = vpack.c.b16 %v858, %v850
  %v1267 = vpack.c.b16 %v859, %v851
  %v1268 = vpack.c.b16 %v860, %v852
  %v1269 = vpack.c.b16 %v861, %v853
  %v1270 = vpack.c.b16 %v862, %v854
  %v1271 = vpack.c.b16 %v863, %v855
  %v1272 = vpack.c.b16 %v864, %v856
  %v1273 = vpack.c.b16 %v873, %v865
  %v1274 = vpack.c.b16 %v874, %v866
  %v1275 = vpack.c.b16 %v875, %v867
  %v1276 = vpack.c.b16 %v876, %v868
  %v1277 = vpack.c.b16 %v877, %v869
  %v1278 = vpack.c.b16 %v878, %v870
  %v1279 = vpack.c.b16 %v879, %v871
  %v1280 = vpack.c.b16 %v880, %v872
  %v1281 = vpack.c.b16 %v889, %v881
  %v1282 = vpack.c.b16 %v890, %v882
  %v1283 = vpack.c.b16 %v891, %v883
  %v1284 = vpack.c.b16 %v892, %v884
  %v1285 = vpack.c.b16 %v893, %v885
  %v1286 = vpack.c.b16 %v894, %v886
  %v1287 = vpack.c.b16 %v895, %v887
  %v1288 = vpack.c.b16 %v896, %v888
  %v1289 = vpack.c.b16 %v905, %v897
  %v1290 = vpack.c.b16 %v906, %v898
  %v1291 = vpack.c.b16 %v907, %v899
  %v1292 = vpack.c.b16 %v908, %v900
  %v1293 = vpack.c.b16 %v909, %v901
  %v1294 = vpack.c.b16 %v910, %v902
  %v1295 = vpack.c.b16 %v911, %v903
  %v1296 = vpack.c.b16 %v912, %v904
  %v1297 = vpack.c.b16 %v921, %v913
  %v1298 = vpack.c.b16 %v922, %v914
  %v1299 = vpack.c.b16 %v923, %v915
  %v1300 = vpack.c.b16 %v924, %v916
  %v1301 = vpack.c.b16 %v925, %v917
  %v1302 = vpack.c.b16 %v926, %v918
  %v1303 = vpack.c.b16 %v927, %v919
  %v1304 = vpack.c.b16 %v928, %v920
  %v1305 = vpack.c.b16 %v937, %v929
  %v1306 = vpack.c.b16 %v938, %v930
  %v1307 = vpack.c.b16 %v939, %v931
  %v1308 = vpack.c.b16 %v940, %v932
  %v1309 = vpack.c.b16 %v941, %v933
  %v1310 = vpack.c.b16 %v942, %v934
  %v1311 = vpack.c.b16 %v943, %v935
  %v1312 = vpack.c.b16 %v944, %v936
  %v1313 = vpack.c.b16 %v953, %v945
  %v1314 = vpack.c.b16 %v954, %v946
  %v1315 = vpack.c.b16 %v955, %v947
  %v1316 = vpack.c.b16 %v956, %v948
  %v1317 = vpack.c.b16 %v957, %v949
  %v1318 = vpack.c.b16 %v958, %v950
  %v1319 = vpack.c.b16 %v959, %v951
  %v1320 = vpack.c.b16 %v960, %v952
  %v1321 = vpack.c.b16 %v969, %v961
  %v1322 = vpack.c.b16 %v970, %v962
  %v1323 = vpack.c.b16 %v971, %v963
  %v1324 = vpack.c.b16 %v972, %v964
  %v1325 = vpack.c.b16 %v973, %v965
  %v1326 = vpack.c.b16 %v974, %v966
  %v1327 = vpack.c.b16 %v975, %v967
  %v1328 = vpack.c.b16 %v976, %v968
  %v1329 = vpack.c.b16 %v985, %v977
  %v1330 = vpack.c.b16 %v986, %v978
  %v1331 = vpack.c.b16 %v987, %v979
  %v1332 = vpack.c.b16 %v988, %v980
  %v1333 = vpack.c.b16 %v989, %v981
  %v1334 = vpack.c.b16 %v990, %v982
  %v1335 = vpack.c.b16 %v991, %v983
  %v1336 = vpack.c.b16 %v992, %v984
  %v1337 = vpack.c.b16 %v1001, %v993
  %v1338 = vpack.c.b16 %v1002, %v994
  %v1339 = vpack.c.b16 %v1003, %v995
  %v1340 = vpack.c.b16 %v1004, %v996
  %v1341 = vpack.c.b16 %v1005, %v997
  %v1342 = vpack.c.b16 %v1006, %v998
  %v1343 = vpack.c.b16 %v1007, %v999
  %v1344 = vpack.c.b16 %v1008, %v1000
  %v1345 = vpack.c.b16 %v1017, %v1009
  %v1346 = vpack.c.b16 %v1018, %v1010
  %v1347 = vpack.c.b16 %v1019, %v1011
  %v1348 = vpack.c.b16 %v1020, %v1012
  %v1349 = vpack.c.b16 %v1021, %v1013
  %v1350 = vpack.c.b16 %v1022, %v1014
  %v1351 = vpack.c.b16 %v1023, %v1015
  %v1352 = vpack.c.b16 %v1024, %v1016
  %v1353 = vpack.c.b16 %v1033, %v1025
  %v1354 = vpack.c.b16 %v1034, %v1026
  %v1355 = vpack.c.b16 %v1035, %v1027
  %v1356 = vpack.c.b16 %v1036, %v1028
  %v1357 = vpack.c.b16 %v1037, %v1029
  %v1358 = vpack.c.b16 %v1038, %v1030
  %v1359 = vpack.c.b16 %v1039, %v1031
  %v1360 = vpack.c.b16 %v1040, %v1032
  %v1361 = vpack.c.b16 %v1049, %v1041
  %v1362 = vpack.c.b16 %v1050, %v1042
  %v1363 = vpack.c.b16 %v1051, %v1043
  %v1364 = vpack.c.b16 %v1052, %v1044
  %v1365 = vpack.c.b16 %v1053, %v1045
  %v1366 = vpack.c.b16 %v1054, %v1046
  %v1367 = vpack.c.b16 %v1055, %v1047
  %v1368 = vpack.c.b16 %v1056, %v1048
  %v1369 = vpack.c.b16 %v1065, %v1057
  %v1370 = vpack.c.b16 %v1066, %v1058
  %v1371 = vpack.c.b16 %v1067, %v1059
  %v1372 = vpack.c.b16 %v1068, %v1060
  %v1373 = vpack.c.b16 %v1069, %v1061
  %v1374 = vpack.c.b16 %v1070, %v1062
  %v1375 = vpack.c.b16 %v1071, %v1063
  %v1376 = vpack.c.b16 %v1072, %v1064
  %v1377 = vpack.c.b16 %v1081, %v1073
  %v1378 = vpack.c.b16 %v1082, %v1074
  %v1379 = vpack.c.b16 %v1083, %v1075
  %v1380 = vpack.c.b16 %v1084, %v1076
  %v1381 = vpack.c.b16 %v1085, %v1077
  %v1382 = vpack.c.b16 %v1086, %v1078
  %v1383 = vpack.c.b16 %v1087, %v1079
  %v1384 = vpack.c.b16 %v1088, %v1080
  %v1385 = vpack.c.b16 %v1097, %v1089
  %v1386 = vpack.c.b16 %v1098, %v1090
  %v1387 = vpack.c.b16 %v1099, %v1091
  %v1388 = vpack.c.b16 %v1100, %v1092
  %v1389 = vpack.c.b16 %v1101, %v1093
  %v1390 = vpack.c.b16 %v1102, %v1094
  %v1391 = vpack.c.b16 %v1103, %v1095
  %v1392 = vpack.c.b16 %v1104, %v1096
  %v1393 = vpack.c.b16 %v1113, %v1105
  %v1394 = vpack.c.b16 %v1114, %v1106
  %v1395 = vpack.c.b16 %v1115, %v1107
  %v1396 = vpack.c.b16 %v1116, %v1108
  %v1397 = vpack.c.b16 %v1117, %v1109
  %v1398 = vpack.c.b16 %v1118, %v1110
  %v1399 = vpack.c.b16 %v1119, %v1111
  %v1400 = vpack.c.b16 %v1120, %v1112
  %v1401 = vpack.c.b16 %v1129, %v1121
  %v1402 = vpack.c.b16 %v1130, %v1122
  %v1403 = vpack.c.b16 %v1131, %v1123
  %v1404 = vpack.c.b16 %v1132, %v1124
  %v1405 = vpack.c.b16 %v1133, %v1125
  %v1406 = vpack.c.b16 %v1134, %v1126
  %v1407 = vpack.c.b16 %v1135, %v1127
  %v1408 = vpack.c.b16 %v1136, %v1128
  %v1409 = vpack.c.b16 %v1145, %v1137
  %v1410 = vpack.c.b16 %v1146, %v1138
  %v1411 = vpack.c.b16 %v1147, %v1139
  %v1412 = vpack.c.b16 %v1148, %v1140
  %v1413 = vpack.c.b16 %v1149, %v1141
  %v1414 = vpack.c.b16 %v1150, %v1142
  %v1415 = vpack.c.b16 %v1151, %v1143
  %v1416 = vpack.c.b16 %v1152, %v1144
  %v1417 = vpack.c.b16 %v1161, %v1153
  %v1418 = vpack.c.b16 %v1162, %v1154
  %v1419 = vpack.c.b16 %v1163, %v1155
  %v1420 = vpack.c.b16 %v1164, %v1156
  %v1421 = vpack.c.b16 %v1165, %v1157
  %v1422 = vpack.c.b16 %v1166, %v1158
  %v1423 = vpack.c.b16 %v1167, %v1159
  %v1424 = vpack.c.b16 %v1168, %v1160
  %v1809 = vunpack.c.l.b16 %v273
  %v1810 = vunpack.c.l.b16 %v274
  %v1811 = vunpack.c.l.b16 %v275
  %v1812 = vunpack.c.l.b16 %v276
  %v1813 = vunpack.c.l.b16 %v277
  %v1814 = vunpack.c.l.b16 %v278
  %v1815 = vunpack.c.l.b16 %v279
  %v1816 = vunpack.c.l.b16 %v280
  %v1817 = vunpack.c.l.b16 %v281
  %v1818 = vunpack.c.l.b16 %v282
  %v1819 = vunpack.c.l.b16 %v283
  %v1820 = vunpack.c.l.b16 %v284
  %v1821 = vunpack.c.l.b16 %v285
  %v1822 = vunpack.c.l.b16 %v286
  %v1823 = vunpack.c.l.b16 %v287
  %v1824 = vunpack.c.l.b16 %v288
  %v1825 = vunpack.c.l.b16 %v289
  %v1826 = vunpack.c.l.b16 %v290
  %v1827 = vunpack.c.l.b16 %v291
  %v1828 = vunpack.c.l.b16 %v292
  %v1829 = vunpack.c.l.b16 %v293
  %v1830 = vunpack.c.l.b16 %v294
  %v1831 = vunpack.c.l.b16 %v295
  %v1832 = vunpack.c.l.b16 %v296
  %v1833 = vunpack.c.l.b16 %v297
  %v1834 = vunpack.c.l.b16 %v298
  %v1835 = vunpack.c.l.b16 %v299
  %v1836 = vunpack.c.l.b16 %v300
  %v1837 = vunpack.c.l.b16 %v301
  %v1838 = vunpack.c.l.b16 %v302
  %v1839 = vunpack.c.l.b16 %v303
  %v1840 = vunpack.c.l.b16 %v304
  %v1841 = vunpack.c.l.b16 %v305
  %v1842 = vunpack.c.l.b16 %v306
  %v1843 = vunpack.c.l.b16 %v307
  %v1844 = vunpack.c.l.b16 %v308
  %v1845 = vunpack.c.l.b16 %v309
  %v1846 = vunpack.c.l.b16 %v310
  %v1847 = vunpack.c.l.b16 %v311
  %v1848 = vunpack.c.l.b16 %v312
  %v1849 = vunpack.c.l.b16 %v313
  %v1850 = vunpack.c.l.b16 %v314
  %v1851 = vunpack.c.l.b16 %v315
  %v1852 = vunpack.c.l.b16 %v316
  %v1853 = vunpack.c.l.b16 %v317
  %v1854 = vunpack.c.l.b16 %v318
  %v1855 = vunpack.c.l.b16 %v319
  %v1856 = vunpack.c.l.b16 %v320
  %v1857 = vunpack.c.l.b16 %v321
  %v1858 = vunpack.c.l.b16 %v322
  %v1859 = vunpack.c.l.b16 %v323
  %v1860 = vunpack.c.l.b16 %v324
  %v1861 = vunpack.c.l.b16 %v325
  %v1862 = vunpack.c.l.b16 %v326
  %v1863 = vunpack.c.l.b16 %v327
  %v1864 = vunpack.c.l.b16 %v328
  %v1865 = vunpack.c.l.b16 %v329
  %v1866 = vunpack.c.l.b16 %v330
  %v1867 = vunpack.c.l.b16 %v331
  %v1868 = vunpack.c.l.b16 %v332
  %v1869 = vunpack.c.l.b16 %v333
  %v1870 = vunpack.c.l.b16 %v334
  %v1871 = vunpack.c.l.b16 %v335
  %v1872 = vunpack.c.l.b16 %v336
  %v1873 = vunpack.c.l.b16 %v337
  %v1874 = vunpack.c.l.b16 %v338
  %v1875 = vunpack.c.l.b16 %v339
  %v1876 = vunpack.c.l.b16 %v340
  %v1877 = vunpack.c.l.b16 %v341
  %v1878 = vunpack.c.l.b16 %v342
  %v1879 = vunpack.c.l.b16 %v343
  %v1880 = vunpack.c.l.b16 %v344
  %v1881 = vunpack.c.l.b16 %v345
  %v1882 = vunpack.c.l.b16 %v346
  %v1883 = vunpack.c.l.b16 %v347
  %v1884 = vunpack.c.l.b16 %v348
  %v1885 = vunpack.c.l.b16 %v349
  %v1886 = vunpack.c.l.b16 %v350
  %v1887 = vunpack.c.l.b16 %v351
  %v1888 = vunpack.c.l.b16 %v352
  %v1889 = vunpack.c.l.b16 %v353
  %v1890 = vunpack.c.l.b16 %v354
  %v1891 = vunpack.c.l.b16 %v355
  %v1892 = vunpack.c.l.b16 %v356
  %v1893 = vunpack.c.l.b16 %v357
  %v1894 = vunpack.c.l.b16 %v358
  %v1895 = vunpack.c.l.b16 %v359
  %v1896 = vunpack.c.l.b16 %v360
  %v1897 = vunpack.c.l.b16 %v361
  %v1898 = vunpack.c.l.b16 %v362
  %v1899 = vunpack.c.l.b16 %v363
  %v1900 = vunpack.c.l.b16 %v364
  %v1901 = vunpack.c.l.b16 %v365
  %v1902 = vunpack.c.l.b16 %v366
  %v1903 = vunpack.c.l.b16 %v367
  %v1904 = vunpack.c.l.b16 %v368
  %v1905 = vunpack.c.l.b16 %v369
  %v1906 = vunpack.c.l.b16 %v370
  %v1907 = vunpack.c.l.b16 %v371
  %v1908 = vunpack.c.l.b16 %v372
  %v1909 = vunpack.c.l.b16 %v373
  %v1910 = vunpack.c.l.b16 %v374
  %v1911 = vunpack.c.l.b16 %v375
  %v1912 = vunpack.c.l.b16 %v376
  %v1913 = vunpack.c.l.b16 %v377
  %v1914 = vunpack.c.l.b16 %v378
  %v1915 = vunpack.c.l.b16 %v379
  %v1916 = vunpack.c.l.b16 %v380
  %v1917 = vunpack.c.l.b16 %v381
  %v1918 = vunpack.c.l.b16 %v382
  %v1919 = vunpack.c.l.b16 %v383
  %v1920 = vunpack.c.l.b16 %v384
  %v1921 = vunpack.c.l.b16 %v385
  %v1922 = vunpack.c.l.b16 %v386
  %v1923 = vunpack.c.l.b16 %v387
  %v1924 = vunpack.c.l.b16 %v388
  %v1925 = vunpack.c.l.b16 %v389
  %v1926 = vunpack.c.l.b16 %v390
  %v1927 = vunpack.c.l.b16 %v391
  %v1928 = vunpack.c.l.b16 %v392
  %v1929 = vunpack.c.l.b16 %v393
  %v1930 = vunpack.c.l.b16 %v394
  %v1931 = vunpack.c.l.b16 %v395
  %v1932 = vunpack.c.l.b16 %v396
  %v1933 = vunpack.c.l.b16 %v397
  %v1934 = vunpack.c.l.b16 %v398
  %v1935 = vunpack.c.l.b16 %v399
  %v1936 = vunpack.c.l.b16 %v400
  %v1937 = vpack.c.b16 %v1810, %v1809
  %v1938 = vpack.c.b16 %v1812, %v1811
  %v1939 = vpack.c.b16 %v1814, %v1813
  %v1940 = vpack.c.b16 %v1816, %v1815
  %v1941 = vpack.c.b16 %v1818, %v1817
  %v1942 = vpack.c.b16 %v1820, %v1819
  %v1943 = vpack.c.b16 %v1822, %v1821
  %v1944 = vpack.c.b16 %v1824, %v1823
  %v1945 = vpack.c.b16 %v1826, %v1825
  %v1946 = vpack.c.b16 %v1828, %v1827
  %v1947 = vpack.c.b16 %v1830, %v1829
  %v1948 = vpack.c.b16 %v1832, %v1831
  %v1949 = vpack.c.b16 %v1834, %v1833
  %v1950 = vpack.c.b16 %v1836, %v1835
  %v1951 = vpack.c.b16 %v1838, %v1837
  %v1952 = vpack.c.b16 %v1840, %v1839
  %v1953 = vpack.c.b16 %v1842, %v1841
  %v1954 = vpack.c.b16 %v1844, %v1843
  %v1955 = vpack.c.b16 %v1846, %v1845
  %v1956 = vpack.c.b16 %v1848, %v1847
  %v1957 = vpack.c.b16 %v1850, %v1849
  %v1958 = vpack.c.b16 %v1852, %v1851
  %v1959 = vpack.c.b16 %v1854, %v1853
  %v1960 = vpack.c.b16 %v1856, %v1855
  %v1961 = vpack.c.b16 %v1858, %v1857
  %v1962 = vpack.c.b16 %v1860, %v1859
  %v1963 = vpack.c.b16 %v1862, %v1861
  %v1964 = vpack.c.b16 %v1864, %v1863
  %v1965 = vpack.c.b16 %v1866, %v1865
  %v1966 = vpack.c.b16 %v1868, %v1867
  %v1967 = vpack.c.b16 %v1870, %v1869
  %v1968 = vpack.c.b16 %v1872, %v1871
  %v1969 = vpack.c.b16 %v1874, %v1873
  %v1970 = vpack.c.b16 %v1876, %v1875
  %v1971 = vpack.c.b16 %v1878, %v1877
  %v1972 = vpack.c.b16 %v1880, %v1879
  %v1973 = vpack.c.b16 %v1882, %v1881
  %v1974 = vpack.c.b16 %v1884, %v1883
  %v1975 = vpack.c.b16 %v1886, %v1885
  %v1976 = vpack.c.b16 %v1888, %v1887
  %v1977 = vpack.c.b16 %v1890, %v1889
  %v1978 = vpack.c.b16 %v1892, %v1891
  %v1979 = vpack.c.b16 %v1894, %v1893
  %v1980 = vpack.c.b16 %v1896, %v1895
  %v1981 = vpack.c.b16 %v1898, %v1897
  %v1982 = vpack.c.b16 %v1900, %v1899
  %v1983 = vpack.c.b16 %v1902, %v1901
  %v1984 = vpack.c.b16 %v1904, %v1903
  %v1985 = vpack.c.b16 %v1906, %v1905
  %v1986 = vpack.c.b16 %v1908, %v1907
  %v1987 = vpack.c.b16 %v1910, %v1909
  %v1988 = vpack.c.b16 %v1912, %v1911
  %v1989 = vpack.c.b16 %v1914, %v1913
  %v1990 = vpack.c.b16 %v1916, %v1915
  %v1991 = vpack.c.b16 %v1918, %v1917
  %v1992 = vpack.c.b16 %v1920, %v1919
  %v1993 = vpack.c.b16 %v1922, %v1921
  %v1994 = vpack.c.b16 %v1924, %v1923
  %v1995 = vpack.c.b16 %v1926, %v1925
  %v1996 = vpack.c.b16 %v1928, %v1927
  %v1997 = vpack.c.b16 %v1930, %v1929
  %v1998 = vpack.c.b16 %v1932, %v1931
  %v1999 = vpack.c.b16 %v1934, %v1933
  %v2000 = vpack.c.b16 %v1936, %v1935
  %2065 = vmatpush.bf16.msra.mxu0 %v1944
  %2066 = vmatpush.bf16.msra.mxu0 %v1943
  %2067 = vmatpush.bf16.msra.mxu0 %v1942
  %2068 = vmatpush.bf16.msra.mxu0 %v1941
  %2069 = vmatpush.bf16.msra.mxu0 %v1940
  %2070 = vmatpush.bf16.msra.mxu0 %v1939
  %2071 = vmatpush.bf16.msra.mxu0 %v1938
  %2072 = vmatpush.bf16.msra.mxu0 %v1937
  %2073 = vmatmul.bf16.gmra.mxu0 %v1169
  %v2074 = vpop.f32.mrf.mxu0
  %v2075 = vadd.f32 0.0, %v2074
  %v2076 = vpop.f32.mrf.mxu0
  %v2077 = vadd.f32 0.0, %v2076
  %2078 = vmatmul.bf16.gmra.mxu0 %v1177
  %v2079 = vpop.f32.mrf.mxu0
  %v2080 = vadd.f32 0.0, %v2079
  %v2081 = vpop.f32.mrf.mxu0
  %v2082 = vadd.f32 0.0, %v2081
  %2083 = vmatmul.bf16.gmra.mxu0 %v1185
  %v2084 = vpop.f32.mrf.mxu0
  %v2085 = vadd.f32 0.0, %v2084
  %v2086 = vpop.f32.mrf.mxu0
  %v2087 = vadd.f32 0.0, %v2086
  %2088 = vmatmul.bf16.gmra.mxu0 %v1193
  %v2089 = vpop.f32.mrf.mxu0
  %v2090 = vadd.f32 0.0, %v2089
  %v2091 = vpop.f32.mrf.mxu0
  %v2092 = vadd.f32 0.0, %v2091
  %2093 = vmatmul.bf16.gmra.mxu0 %v1201
  %v2094 = vpop.f32.mrf.mxu0
  %v2095 = vadd.f32 0.0, %v2094
  %v2096 = vpop.f32.mrf.mxu0
  %v2097 = vadd.f32 0.0, %v2096
  %2098 = vmatmul.bf16.gmra.mxu0 %v1209
  %v2099 = vpop.f32.mrf.mxu0
  %v2100 = vadd.f32 0.0, %v2099
  %v2101 = vpop.f32.mrf.mxu0
  %v2102 = vadd.f32 0.0, %v2101
  %2103 = vmatmul.bf16.gmra.mxu0 %v1217
  %v2104 = vpop.f32.mrf.mxu0
  %v2105 = vadd.f32 0.0, %v2104
  %v2106 = vpop.f32.mrf.mxu0
  %v2107 = vadd.f32 0.0, %v2106
  %2108 = vmatmul.bf16.gmra.mxu0 %v1225
  %v2109 = vpop.f32.mrf.mxu0
  %v2110 = vadd.f32 0.0, %v2109
  %v2111 = vpop.f32.mrf.mxu0
  %v2112 = vadd.f32 0.0, %v2111
  %2113 = vmatmul.bf16.gmra.mxu0 %v1233
  %v2114 = vpop.f32.mrf.mxu0
  %v2115 = vadd.f32 0.0, %v2114
  %v2116 = vpop.f32.mrf.mxu0
  %v2117 = vadd.f32 0.0, %v2116
  %2118 = vmatmul.bf16.gmra.mxu0 %v1241
  %v2119 = vpop.f32.mrf.mxu0
  %v2120 = vadd.f32 0.0, %v2119
  %v2121 = vpop.f32.mrf.mxu0
  %v2122 = vadd.f32 0.0, %v2121
  %2123 = vmatmul.bf16.gmra.mxu0 %v1249
  %v2124 = vpop.f32.mrf.mxu0
  %v2125 = vadd.f32 0.0, %v2124
  %v2126 = vpop.f32.mrf.mxu0
  %v2127 = vadd.f32 0.0, %v2126
  %2128 = vmatmul.bf16.gmra.mxu0 %v1257
  %v2129 = vpop.f32.mrf.mxu0
  %v2130 = vadd.f32 0.0, %v2129
  %v2131 = vpop.f32.mrf.mxu0
  %v2132 = vadd.f32 0.0, %v2131
  %2133 = vmatmul.bf16.gmra.mxu0 %v1265
  %v2134 = vpop.f32.mrf.mxu0
  %v2135 = vadd.f32 0.0, %v2134
  %v2136 = vpop.f32.mrf.mxu0
  %v2137 = vadd.f32 0.0, %v2136
  %2138 = vmatmul.bf16.gmra.mxu0 %v1273
  %v2139 = vpop.f32.mrf.mxu0
  %v2140 = vadd.f32 0.0, %v2139
  %v2141 = vpop.f32.mrf.mxu0
  %v2142 = vadd.f32 0.0, %v2141
  %2143 = vmatmul.bf16.gmra.mxu0 %v1281
  %v2144 = vpop.f32.mrf.mxu0
  %v2145 = vadd.f32 0.0, %v2144
  %v2146 = vpop.f32.mrf.mxu0
  %v2147 = vadd.f32 0.0, %v2146
  %2148 = vmatmul.bf16.gmra.mxu0 %v1289
  %v2149 = vpop.f32.mrf.mxu0
  %v2150 = vadd.f32 0.0, %v2149
  %v2151 = vpop.f32.mrf.mxu0
  %v2152 = vadd.f32 0.0, %v2151
  %2153 = vmatmul.bf16.gmra.mxu0 %v1297
  %v2154 = vpop.f32.mrf.mxu0
  %v2155 = vadd.f32 0.0, %v2154
  %v2156 = vpop.f32.mrf.mxu0
  %v2157 = vadd.f32 0.0, %v2156
  %2158 = vmatmul.bf16.gmra.mxu0 %v1305
  %v2159 = vpop.f32.mrf.mxu0
  %v2160 = vadd.f32 0.0, %v2159
  %v2161 = vpop.f32.mrf.mxu0
  %v2162 = vadd.f32 0.0, %v2161
  %2163 = vmatmul.bf16.gmra.mxu0 %v1313
  %v2164 = vpop.f32.mrf.mxu0
  %v2165 = vadd.f32 0.0, %v2164
  %v2166 = vpop.f32.mrf.mxu0
  %v2167 = vadd.f32 0.0, %v2166
  %2168 = vmatmul.bf16.gmra.mxu0 %v1321
  %v2169 = vpop.f32.mrf.mxu0
  %v2170 = vadd.f32 0.0, %v2169
  %v2171 = vpop.f32.mrf.mxu0
  %v2172 = vadd.f32 0.0, %v2171
  %2173 = vmatmul.bf16.gmra.mxu0 %v1329
  %v2174 = vpop.f32.mrf.mxu0
  %v2175 = vadd.f32 0.0, %v2174
  %v2176 = vpop.f32.mrf.mxu0
  %v2177 = vadd.f32 0.0, %v2176
  %2178 = vmatmul.bf16.gmra.mxu0 %v1337
  %v2179 = vpop.f32.mrf.mxu0
  %v2180 = vadd.f32 0.0, %v2179
  %v2181 = vpop.f32.mrf.mxu0
  %v2182 = vadd.f32 0.0, %v2181
  %2183 = vmatmul.bf16.gmra.mxu0 %v1345
  %v2184 = vpop.f32.mrf.mxu0
  %v2185 = vadd.f32 0.0, %v2184
  %v2186 = vpop.f32.mrf.mxu0
  %v2187 = vadd.f32 0.0, %v2186
  %2188 = vmatmul.bf16.gmra.mxu0 %v1353
  %v2189 = vpop.f32.mrf.mxu0
  %v2190 = vadd.f32 0.0, %v2189
  %v2191 = vpop.f32.mrf.mxu0
  %v2192 = vadd.f32 0.0, %v2191
  %2193 = vmatmul.bf16.gmra.mxu0 %v1361
  %v2194 = vpop.f32.mrf.mxu0
  %v2195 = vadd.f32 0.0, %v2194
  %v2196 = vpop.f32.mrf.mxu0
  %v2197 = vadd.f32 0.0, %v2196
  %2198 = vmatmul.bf16.gmra.mxu0 %v1369
  %v2199 = vpop.f32.mrf.mxu0
  %v2200 = vadd.f32 0.0, %v2199
  %v2201 = vpop.f32.mrf.mxu0
  %v2202 = vadd.f32 0.0, %v2201
  %2203 = vmatmul.bf16.gmra.mxu0 %v1377
  %v2204 = vpop.f32.mrf.mxu0
  %v2205 = vadd.f32 0.0, %v2204
  %v2206 = vpop.f32.mrf.mxu0
  %v2207 = vadd.f32 0.0, %v2206
  %2208 = vmatmul.bf16.gmra.mxu0 %v1385
  %v2209 = vpop.f32.mrf.mxu0
  %v2210 = vadd.f32 0.0, %v2209
  %v2211 = vpop.f32.mrf.mxu0
  %v2212 = vadd.f32 0.0, %v2211
  %2213 = vmatmul.bf16.gmra.mxu0 %v1393
  %v2214 = vpop.f32.mrf.mxu0
  %v2215 = vadd.f32 0.0, %v2214
  %v2216 = vpop.f32.mrf.mxu0
  %v2217 = vadd.f32 0.0, %v2216
  %2218 = vmatmul.bf16.gmra.mxu0 %v1401
  %v2219 = vpop.f32.mrf.mxu0
  %v2220 = vadd.f32 0.0, %v2219
  %v2221 = vpop.f32.mrf.mxu0
  %v2222 = vadd.f32 0.0, %v2221
  %2223 = vmatmul.bf16.gmra.mxu0 %v1409
  %v2224 = vpop.f32.mrf.mxu0
  %v2225 = vadd.f32 0.0, %v2224
  %v2226 = vpop.f32.mrf.mxu0
  %v2227 = vadd.f32 0.0, %v2226
  %2228 = vmatmul.bf16.gmra.mxu0 %v1417
  %v2229 = vpop.f32.mrf.mxu0
  %v2230 = vadd.f32 0.0, %v2229
  %v2231 = vpop.f32.mrf.mxu0
  %v2232 = vadd.f32 0.0, %v2231
  %2233 = vdwg.mxu0
  %2234 = vmatpush.bf16.msra.mxu0 %v1952
  %2235 = vmatpush.bf16.msra.mxu0 %v1951
  %2236 = vmatpush.bf16.msra.mxu0 %v1950
  %2237 = vmatpush.bf16.msra.mxu0 %v1949
  %2238 = vmatpush.bf16.msra.mxu0 %v1948
  %2239 = vmatpush.bf16.msra.mxu0 %v1947
  %2240 = vmatpush.bf16.msra.mxu0 %v1946
  %2241 = vmatpush.bf16.msra.mxu0 %v1945
  %2242 = vmatmul.bf16.gmra.mxu0 %v1170
  %v2243 = vpop.f32.mrf.mxu0
  %v2244 = vadd.f32 %v2075, %v2243
  %v2245 = vpop.f32.mrf.mxu0
  %v2246 = vadd.f32 %v2077, %v2245
  %2247 = vmatmul.bf16.gmra.mxu0 %v1178
  %v2248 = vpop.f32.mrf.mxu0
  %v2249 = vadd.f32 %v2080, %v2248
  %v2250 = vpop.f32.mrf.mxu0
  %v2251 = vadd.f32 %v2082, %v2250
  %2252 = vmatmul.bf16.gmra.mxu0 %v1186
  %v2253 = vpop.f32.mrf.mxu0
  %v2254 = vadd.f32 %v2085, %v2253
  %v2255 = vpop.f32.mrf.mxu0
  %v2256 = vadd.f32 %v2087, %v2255
  %2257 = vmatmul.bf16.gmra.mxu0 %v1194
  %v2258 = vpop.f32.mrf.mxu0
  %v2259 = vadd.f32 %v2090, %v2258
  %v2260 = vpop.f32.mrf.mxu0
  %v2261 = vadd.f32 %v2092, %v2260
  %2262 = vmatmul.bf16.gmra.mxu0 %v1202
  %v2263 = vpop.f32.mrf.mxu0
  %v2264 = vadd.f32 %v2095, %v2263
  %v2265 = vpop.f32.mrf.mxu0
  %v2266 = vadd.f32 %v2097, %v2265
  %2267 = vmatmul.bf16.gmra.mxu0 %v1210
  %v2268 = vpop.f32.mrf.mxu0
  %v2269 = vadd.f32 %v2100, %v2268
  %v2270 = vpop.f32.mrf.mxu0
  %v2271 = vadd.f32 %v2102, %v2270
  %2272 = vmatmul.bf16.gmra.mxu0 %v1218
  %v2273 = vpop.f32.mrf.mxu0
  %v2274 = vadd.f32 %v2105, %v2273
  %v2275 = vpop.f32.mrf.mxu0
  %v2276 = vadd.f32 %v2107, %v2275
  %2277 = vmatmul.bf16.gmra.mxu0 %v1226
  %v2278 = vpop.f32.mrf.mxu0
  %v2279 = vadd.f32 %v2110, %v2278
  %v2280 = vpop.f32.mrf.mxu0
  %v2281 = vadd.f32 %v2112, %v2280
  %2282 = vmatmul.bf16.gmra.mxu0 %v1234
  %v2283 = vpop.f32.mrf.mxu0
  %v2284 = vadd.f32 %v2115, %v2283
  %v2285 = vpop.f32.mrf.mxu0
  %v2286 = vadd.f32 %v2117, %v2285
  %2287 = vmatmul.bf16.gmra.mxu0 %v1242
  %v2288 = vpop.f32.mrf.mxu0
  %v2289 = vadd.f32 %v2120, %v2288
  %v2290 = vpop.f32.mrf.mxu0
  %v2291 = vadd.f32 %v2122, %v2290
  %2292 = vmatmul.bf16.gmra.mxu0 %v1250
  %v2293 = vpop.f32.mrf.mxu0
  %v2294 = vadd.f32 %v2125, %v2293
  %v2295 = vpop.f32.mrf.mxu0
  %v2296 = vadd.f32 %v2127, %v2295
  %2297 = vmatmul.bf16.gmra.mxu0 %v1258
  %v2298 = vpop.f32.mrf.mxu0
  %v2299 = vadd.f32 %v2130, %v2298
  %v2300 = vpop.f32.mrf.mxu0
  %v2301 = vadd.f32 %v2132, %v2300
  %2302 = vmatmul.bf16.gmra.mxu0 %v1266
  %v2303 = vpop.f32.mrf.mxu0
  %v2304 = vadd.f32 %v2135, %v2303
  %v2305 = vpop.f32.mrf.mxu0
  %v2306 = vadd.f32 %v2137, %v2305
  %2307 = vmatmul.bf16.gmra.mxu0 %v1274
  %v2308 = vpop.f32.mrf.mxu0
  %v2309 = vadd.f32 %v2140, %v2308
  %v2310 = vpop.f32.mrf.mxu0
  %v2311 = vadd.f32 %v2142, %v2310
  %2312 = vmatmul.bf16.gmra.mxu0 %v1282
  %v2313 = vpop.f32.mrf.mxu0
  %v2314 = vadd.f32 %v2145, %v2313
  %v2315 = vpop.f32.mrf.mxu0
  %v2316 = vadd.f32 %v2147, %v2315
  %2317 = vmatmul.bf16.gmra.mxu0 %v1290
  %v2318 = vpop.f32.mrf.mxu0
  %v2319 = vadd.f32 %v2150, %v2318
  %v2320 = vpop.f32.mrf.mxu0
  %v2321 = vadd.f32 %v2152, %v2320
  %2322 = vmatmul.bf16.gmra.mxu0 %v1298
  %v2323 = vpop.f32.mrf.mxu0
  %v2324 = vadd.f32 %v2155, %v2323
  %v2325 = vpop.f32.mrf.mxu0
  %v2326 = vadd.f32 %v2157, %v2325
  %2327 = vmatmul.bf16.gmra.mxu0 %v1306
  %v2328 = vpop.f32.mrf.mxu0
  %v2329 = vadd.f32 %v2160, %v2328
  %v2330 = vpop.f32.mrf.mxu0
  %v2331 = vadd.f32 %v2162, %v2330
  %2332 = vmatmul.bf16.gmra.mxu0 %v1314
  %v2333 = vpop.f32.mrf.mxu0
  %v2334 = vadd.f32 %v2165, %v2333
  %v2335 = vpop.f32.mrf.mxu0
  %v2336 = vadd.f32 %v2167, %v2335
  %2337 = vmatmul.bf16.gmra.mxu0 %v1322
  %v2338 = vpop.f32.mrf.mxu0
  %v2339 = vadd.f32 %v2170, %v2338
  %v2340 = vpop.f32.mrf.mxu0
  %v2341 = vadd.f32 %v2172, %v2340
  %2342 = vmatmul.bf16.gmra.mxu0 %v1330
  %v2343 = vpop.f32.mrf.mxu0
  %v2344 = vadd.f32 %v2175, %v2343
  %v2345 = vpop.f32.mrf.mxu0
  %v2346 = vadd.f32 %v2177, %v2345
  %2347 = vmatmul.bf16.gmra.mxu0 %v1338
  %v2348 = vpop.f32.mrf.mxu0
  %v2349 = vadd.f32 %v2180, %v2348
  %v2350 = vpop.f32.mrf.mxu0
  %v2351 = vadd.f32 %v2182, %v2350
  %2352 = vmatmul.bf16.gmra.mxu0 %v1346
  %v2353 = vpop.f32.mrf.mxu0
  %v2354 = vadd.f32 %v2185, %v2353
  %v2355 = vpop.f32.mrf.mxu0
  %v2356 = vadd.f32 %v2187, %v2355
  %2357 = vmatmul.bf16.gmra.mxu0 %v1354
  %v2358 = vpop.f32.mrf.mxu0
  %v2359 = vadd.f32 %v2190, %v2358
  %v2360 = vpop.f32.mrf.mxu0
  %v2361 = vadd.f32 %v2192, %v2360
  %2362 = vmatmul.bf16.gmra.mxu0 %v1362
  %v2363 = vpop.f32.mrf.mxu0
  %v2364 = vadd.f32 %v2195, %v2363
  %v2365 = vpop.f32.mrf.mxu0
  %v2366 = vadd.f32 %v2197, %v2365
  %2367 = vmatmul.bf16.gmra.mxu0 %v1370
  %v2368 = vpop.f32.mrf.mxu0
  %v2369 = vadd.f32 %v2200, %v2368
  %v2370 = vpop.f32.mrf.mxu0
  %v2371 = vadd.f32 %v2202, %v2370
  %2372 = vmatmul.bf16.gmra.mxu0 %v1378
  %v2373 = vpop.f32.mrf.mxu0
  %v2374 = vadd.f32 %v2205, %v2373
  %v2375 = vpop.f32.mrf.mxu0
  %v2376 = vadd.f32 %v2207, %v2375
  %2377 = vmatmul.bf16.gmra.mxu0 %v1386
  %v2378 = vpop.f32.mrf.mxu0
  %v2379 = vadd.f32 %v2210, %v2378
  %v2380 = vpop.f32.mrf.mxu0
  %v2381 = vadd.f32 %v2212, %v2380
  %2382 = vmatmul.bf16.gmra.mxu0 %v1394
  %v2383 = vpop.f32.mrf.mxu0
  %v2384 = vadd.f32 %v2215, %v2383
  %v2385 = vpop.f32.mrf.mxu0
  %v2386 = vadd.f32 %v2217, %v2385
  %2387 = vmatmul.bf16.gmra.mxu0 %v1402
  %v2388 = vpop.f32.mrf.mxu0
  %v2389 = vadd.f32 %v2220, %v2388
  %v2390 = vpop.f32.mrf.mxu0
  %v2391 = vadd.f32 %v2222, %v2390
  %2392 = vmatmul.bf16.gmra.mxu0 %v1410
  %v2393 = vpop.f32.mrf.mxu0
  %v2394 = vadd.f32 %v2225, %v2393
  %v2395 = vpop.f32.mrf.mxu0
  %v2396 = vadd.f32 %v2227, %v2395
  %2397 = vmatmul.bf16.gmra.mxu0 %v1418
  %v2398 = vpop.f32.mrf.mxu0
  %v2399 = vadd.f32 %v2230, %v2398
  %v2400 = vpop.f32.mrf.mxu0
  %v2401 = vadd.f32 %v2232, %v2400
  %2402 = vdwg.mxu0
  %2403 = vmatpush.bf16.msra.mxu0 %v1960
  %2404 = vmatpush.bf16.msra.mxu0 %v1959
  %2405 = vmatpush.bf16.msra.mxu0 %v1958
  %2406 = vmatpush.bf16.msra.mxu0 %v1957
  %2407 = vmatpush.bf16.msra.mxu0 %v1956
  %2408 = vmatpush.bf16.msra.mxu0 %v1955
  %2409 = vmatpush.bf16.msra.mxu0 %v1954
  %2410 = vmatpush.bf16.msra.mxu0 %v1953
  %2411 = vmatmul.bf16.gmra.mxu0 %v1171
  %v2412 = vpop.f32.mrf.mxu0
  %v2413 = vadd.f32 %v2244, %v2412
  %v2414 = vpop.f32.mrf.mxu0
  %v2415 = vadd.f32 %v2246, %v2414
  %2416 = vmatmul.bf16.gmra.mxu0 %v1179
  %v2417 = vpop.f32.mrf.mxu0
  %v2418 = vadd.f32 %v2249, %v2417
  %v2419 = vpop.f32.mrf.mxu0
  %v2420 = vadd.f32 %v2251, %v2419
  %2421 = vmatmul.bf16.gmra.mxu0 %v1187
  %v2422 = vpop.f32.mrf.mxu0
  %v2423 = vadd.f32 %v2254, %v2422
  %v2424 = vpop.f32.mrf.mxu0
  %v2425 = vadd.f32 %v2256, %v2424
  %2426 = vmatmul.bf16.gmra.mxu0 %v1195
  %v2427 = vpop.f32.mrf.mxu0
  %v2428 = vadd.f32 %v2259, %v2427
  %v2429 = vpop.f32.mrf.mxu0
  %v2430 = vadd.f32 %v2261, %v2429
  %2431 = vmatmul.bf16.gmra.mxu0 %v1203
  %v2432 = vpop.f32.mrf.mxu0
  %v2433 = vadd.f32 %v2264, %v2432
  %v2434 = vpop.f32.mrf.mxu0
  %v2435 = vadd.f32 %v2266, %v2434
  %2436 = vmatmul.bf16.gmra.mxu0 %v1211
  %v2437 = vpop.f32.mrf.mxu0
  %v2438 = vadd.f32 %v2269, %v2437
  %v2439 = vpop.f32.mrf.mxu0
  %v2440 = vadd.f32 %v2271, %v2439
  %2441 = vmatmul.bf16.gmra.mxu0 %v1219
  %v2442 = vpop.f32.mrf.mxu0
  %v2443 = vadd.f32 %v2274, %v2442
  %v2444 = vpop.f32.mrf.mxu0
  %v2445 = vadd.f32 %v2276, %v2444
  %2446 = vmatmul.bf16.gmra.mxu0 %v1227
  %v2447 = vpop.f32.mrf.mxu0
  %v2448 = vadd.f32 %v2279, %v2447
  %v2449 = vpop.f32.mrf.mxu0
  %v2450 = vadd.f32 %v2281, %v2449
  %2451 = vmatmul.bf16.gmra.mxu0 %v1235
  %v2452 = vpop.f32.mrf.mxu0
  %v2453 = vadd.f32 %v2284, %v2452
  %v2454 = vpop.f32.mrf.mxu0
  %v2455 = vadd.f32 %v2286, %v2454
  %2456 = vmatmul.bf16.gmra.mxu0 %v1243
  %v2457 = vpop.f32.mrf.mxu0
  %v2458 = vadd.f32 %v2289, %v2457
  %v2459 = vpop.f32.mrf.mxu0
  %v2460 = vadd.f32 %v2291, %v2459
  %2461 = vmatmul.bf16.gmra.mxu0 %v1251
  %v2462 = vpop.f32.mrf.mxu0
  %v2463 = vadd.f32 %v2294, %v2462
  %v2464 = vpop.f32.mrf.mxu0
  %v2465 = vadd.f32 %v2296, %v2464
  %2466 = vmatmul.bf16.gmra.mxu0 %v1259
  %v2467 = vpop.f32.mrf.mxu0
  %v2468 = vadd.f32 %v2299, %v2467
  %v2469 = vpop.f32.mrf.mxu0
  %v2470 = vadd.f32 %v2301, %v2469
  %2471 = vmatmul.bf16.gmra.mxu0 %v1267
  %v2472 = vpop.f32.mrf.mxu0
  %v2473 = vadd.f32 %v2304, %v2472
  %v2474 = vpop.f32.mrf.mxu0
  %v2475 = vadd.f32 %v2306, %v2474
  %2476 = vmatmul.bf16.gmra.mxu0 %v1275
  %v2477 = vpop.f32.mrf.mxu0
  %v2478 = vadd.f32 %v2309, %v2477
  %v2479 = vpop.f32.mrf.mxu0
  %v2480 = vadd.f32 %v2311, %v2479
  %2481 = vmatmul.bf16.gmra.mxu0 %v1283
  %v2482 = vpop.f32.mrf.mxu0
  %v2483 = vadd.f32 %v2314, %v2482
  %v2484 = vpop.f32.mrf.mxu0
  %v2485 = vadd.f32 %v2316, %v2484
  %2486 = vmatmul.bf16.gmra.mxu0 %v1291
  %v2487 = vpop.f32.mrf.mxu0
  %v2488 = vadd.f32 %v2319, %v2487
  %v2489 = vpop.f32.mrf.mxu0
  %v2490 = vadd.f32 %v2321, %v2489
  %2491 = vmatmul.bf16.gmra.mxu0 %v1299
  %v2492 = vpop.f32.mrf.mxu0
  %v2493 = vadd.f32 %v2324, %v2492
  %v2494 = vpop.f32.mrf.mxu0
  %v2495 = vadd.f32 %v2326, %v2494
  %2496 = vmatmul.bf16.gmra.mxu0 %v1307
  %v2497 = vpop.f32.mrf.mxu0
  %v2498 = vadd.f32 %v2329, %v2497
  %v2499 = vpop.f32.mrf.mxu0
  %v2500 = vadd.f32 %v2331, %v2499
  %2501 = vmatmul.bf16.gmra.mxu0 %v1315
  %v2502 = vpop.f32.mrf.mxu0
  %v2503 = vadd.f32 %v2334, %v2502
  %v2504 = vpop.f32.mrf.mxu0
  %v2505 = vadd.f32 %v2336, %v2504
  %2506 = vmatmul.bf16.gmra.mxu0 %v1323
  %v2507 = vpop.f32.mrf.mxu0
  %v2508 = vadd.f32 %v2339, %v2507
  %v2509 = vpop.f32.mrf.mxu0
  %v2510 = vadd.f32 %v2341, %v2509
  %2511 = vmatmul.bf16.gmra.mxu0 %v1331
  %v2512 = vpop.f32.mrf.mxu0
  %v2513 = vadd.f32 %v2344, %v2512
  %v2514 = vpop.f32.mrf.mxu0
  %v2515 = vadd.f32 %v2346, %v2514
  %2516 = vmatmul.bf16.gmra.mxu0 %v1339
  %v2517 = vpop.f32.mrf.mxu0
  %v2518 = vadd.f32 %v2349, %v2517
  %v2519 = vpop.f32.mrf.mxu0
  %v2520 = vadd.f32 %v2351, %v2519
  %2521 = vmatmul.bf16.gmra.mxu0 %v1347
  %v2522 = vpop.f32.mrf.mxu0
  %v2523 = vadd.f32 %v2354, %v2522
  %v2524 = vpop.f32.mrf.mxu0
  %v2525 = vadd.f32 %v2356, %v2524
  %2526 = vmatmul.bf16.gmra.mxu0 %v1355
  %v2527 = vpop.f32.mrf.mxu0
  %v2528 = vadd.f32 %v2359, %v2527
  %v2529 = vpop.f32.mrf.mxu0
  %v2530 = vadd.f32 %v2361, %v2529
  %2531 = vmatmul.bf16.gmra.mxu0 %v1363
  %v2532 = vpop.f32.mrf.mxu0
  %v2533 = vadd.f32 %v2364, %v2532
  %v2534 = vpop.f32.mrf.mxu0
  %v2535 = vadd.f32 %v2366, %v2534
  %2536 = vmatmul.bf16.gmra.mxu0 %v1371
  %v2537 = vpop.f32.mrf.mxu0
  %v2538 = vadd.f32 %v2369, %v2537
  %v2539 = vpop.f32.mrf.mxu0
  %v2540 = vadd.f32 %v2371, %v2539
  %2541 = vmatmul.bf16.gmra.mxu0 %v1379
  %v2542 = vpop.f32.mrf.mxu0
  %v2543 = vadd.f32 %v2374, %v2542
  %v2544 = vpop.f32.mrf.mxu0
  %v2545 = vadd.f32 %v2376, %v2544
  %2546 = vmatmul.bf16.gmra.mxu0 %v1387
  %v2547 = vpop.f32.mrf.mxu0
  %v2548 = vadd.f32 %v2379, %v2547
  %v2549 = vpop.f32.mrf.mxu0
  %v2550 = vadd.f32 %v2381, %v2549
  %2551 = vmatmul.bf16.gmra.mxu0 %v1395
  %v2552 = vpop.f32.mrf.mxu0
  %v2553 = vadd.f32 %v2384, %v2552
  %v2554 = vpop.f32.mrf.mxu0
  %v2555 = vadd.f32 %v2386, %v2554
  %2556 = vmatmul.bf16.gmra.mxu0 %v1403
  %v2557 = vpop.f32.mrf.mxu0
  %v2558 = vadd.f32 %v2389, %v2557
  %v2559 = vpop.f32.mrf.mxu0
  %v2560 = vadd.f32 %v2391, %v2559
  %2561 = vmatmul.bf16.gmra.mxu0 %v1411
  %v2562 = vpop.f32.mrf.mxu0
  %v2563 = vadd.f32 %v2394, %v2562
  %v2564 = vpop.f32.mrf.mxu0
  %v2565 = vadd.f32 %v2396, %v2564
  %2566 = vmatmul.bf16.gmra.mxu0 %v1419
  %v2567 = vpop.f32.mrf.mxu0
  %v2568 = vadd.f32 %v2399, %v2567
  %v2569 = vpop.f32.mrf.mxu0
  %v2570 = vadd.f32 %v2401, %v2569
  %2571 = vdwg.mxu0
  %2572 = vmatpush.bf16.msra.mxu0 %v1968
  %2573 = vmatpush.bf16.msra.mxu0 %v1967
  %2574 = vmatpush.bf16.msra.mxu0 %v1966
  %2575 = vmatpush.bf16.msra.mxu0 %v1965
  %2576 = vmatpush.bf16.msra.mxu0 %v1964
  %2577 = vmatpush.bf16.msra.mxu0 %v1963
  %2578 = vmatpush.bf16.msra.mxu0 %v1962
  %2579 = vmatpush.bf16.msra.mxu0 %v1961
  %2580 = vmatmul.bf16.gmra.mxu0 %v1172
  %v2581 = vpop.f32.mrf.mxu0
  %v2582 = vadd.f32 %v2413, %v2581
  %v2583 = vpop.f32.mrf.mxu0
  %v2584 = vadd.f32 %v2415, %v2583
  %2585 = vmatmul.bf16.gmra.mxu0 %v1180
  %v2586 = vpop.f32.mrf.mxu0
  %v2587 = vadd.f32 %v2418, %v2586
  %v2588 = vpop.f32.mrf.mxu0
  %v2589 = vadd.f32 %v2420, %v2588
  %2590 = vmatmul.bf16.gmra.mxu0 %v1188
  %v2591 = vpop.f32.mrf.mxu0
  %v2592 = vadd.f32 %v2423, %v2591
  %v2593 = vpop.f32.mrf.mxu0
  %v2594 = vadd.f32 %v2425, %v2593
  %2595 = vmatmul.bf16.gmra.mxu0 %v1196
  %v2596 = vpop.f32.mrf.mxu0
  %v2597 = vadd.f32 %v2428, %v2596
  %v2598 = vpop.f32.mrf.mxu0
  %v2599 = vadd.f32 %v2430, %v2598
  %2600 = vmatmul.bf16.gmra.mxu0 %v1204
  %v2601 = vpop.f32.mrf.mxu0
  %v2602 = vadd.f32 %v2433, %v2601
  %v2603 = vpop.f32.mrf.mxu0
  %v2604 = vadd.f32 %v2435, %v2603
  %2605 = vmatmul.bf16.gmra.mxu0 %v1212
  %v2606 = vpop.f32.mrf.mxu0
  %v2607 = vadd.f32 %v2438, %v2606
  %v2608 = vpop.f32.mrf.mxu0
  %v2609 = vadd.f32 %v2440, %v2608
  %2610 = vmatmul.bf16.gmra.mxu0 %v1220
  %v2611 = vpop.f32.mrf.mxu0
  %v2612 = vadd.f32 %v2443, %v2611
  %v2613 = vpop.f32.mrf.mxu0
  %v2614 = vadd.f32 %v2445, %v2613
  %2615 = vmatmul.bf16.gmra.mxu0 %v1228
  %v2616 = vpop.f32.mrf.mxu0
  %v2617 = vadd.f32 %v2448, %v2616
  %v2618 = vpop.f32.mrf.mxu0
  %v2619 = vadd.f32 %v2450, %v2618
  %2620 = vmatmul.bf16.gmra.mxu0 %v1236
  %v2621 = vpop.f32.mrf.mxu0
  %v2622 = vadd.f32 %v2453, %v2621
  %v2623 = vpop.f32.mrf.mxu0
  %v2624 = vadd.f32 %v2455, %v2623
  %2625 = vmatmul.bf16.gmra.mxu0 %v1244
  %v2626 = vpop.f32.mrf.mxu0
  %v2627 = vadd.f32 %v2458, %v2626
  %v2628 = vpop.f32.mrf.mxu0
  %v2629 = vadd.f32 %v2460, %v2628
  %2630 = vmatmul.bf16.gmra.mxu0 %v1252
  %v2631 = vpop.f32.mrf.mxu0
  %v2632 = vadd.f32 %v2463, %v2631
  %v2633 = vpop.f32.mrf.mxu0
  %v2634 = vadd.f32 %v2465, %v2633
  %2635 = vmatmul.bf16.gmra.mxu0 %v1260
  %v2636 = vpop.f32.mrf.mxu0
  %v2637 = vadd.f32 %v2468, %v2636
  %v2638 = vpop.f32.mrf.mxu0
  %v2639 = vadd.f32 %v2470, %v2638
  %2640 = vmatmul.bf16.gmra.mxu0 %v1268
  %v2641 = vpop.f32.mrf.mxu0
  %v2642 = vadd.f32 %v2473, %v2641
  %v2643 = vpop.f32.mrf.mxu0
  %v2644 = vadd.f32 %v2475, %v2643
  %2645 = vmatmul.bf16.gmra.mxu0 %v1276
  %v2646 = vpop.f32.mrf.mxu0
  %v2647 = vadd.f32 %v2478, %v2646
  %v2648 = vpop.f32.mrf.mxu0
  %v2649 = vadd.f32 %v2480, %v2648
  %2650 = vmatmul.bf16.gmra.mxu0 %v1284
  %v2651 = vpop.f32.mrf.mxu0
  %v2652 = vadd.f32 %v2483, %v2651
  %v2653 = vpop.f32.mrf.mxu0
  %v2654 = vadd.f32 %v2485, %v2653
  %2655 = vmatmul.bf16.gmra.mxu0 %v1292
  %v2656 = vpop.f32.mrf.mxu0
  %v2657 = vadd.f32 %v2488, %v2656
  %v2658 = vpop.f32.mrf.mxu0
  %v2659 = vadd.f32 %v2490, %v2658
  %2660 = vmatmul.bf16.gmra.mxu0 %v1300
  %v2661 = vpop.f32.mrf.mxu0
  %v2662 = vadd.f32 %v2493, %v2661
  %v2663 = vpop.f32.mrf.mxu0
  %v2664 = vadd.f32 %v2495, %v2663
  %2665 = vmatmul.bf16.gmra.mxu0 %v1308
  %v2666 = vpop.f32.mrf.mxu0
  %v2667 = vadd.f32 %v2498, %v2666
  %v2668 = vpop.f32.mrf.mxu0
  %v2669 = vadd.f32 %v2500, %v2668
  %2670 = vmatmul.bf16.gmra.mxu0 %v1316
  %v2671 = vpop.f32.mrf.mxu0
  %v2672 = vadd.f32 %v2503, %v2671
  %v2673 = vpop.f32.mrf.mxu0
  %v2674 = vadd.f32 %v2505, %v2673
  %2675 = vmatmul.bf16.gmra.mxu0 %v1324
  %v2676 = vpop.f32.mrf.mxu0
  %v2677 = vadd.f32 %v2508, %v2676
  %v2678 = vpop.f32.mrf.mxu0
  %v2679 = vadd.f32 %v2510, %v2678
  %2680 = vmatmul.bf16.gmra.mxu0 %v1332
  %v2681 = vpop.f32.mrf.mxu0
  %v2682 = vadd.f32 %v2513, %v2681
  %v2683 = vpop.f32.mrf.mxu0
  %v2684 = vadd.f32 %v2515, %v2683
  %2685 = vmatmul.bf16.gmra.mxu0 %v1340
  %v2686 = vpop.f32.mrf.mxu0
  %v2687 = vadd.f32 %v2518, %v2686
  %v2688 = vpop.f32.mrf.mxu0
  %v2689 = vadd.f32 %v2520, %v2688
  %2690 = vmatmul.bf16.gmra.mxu0 %v1348
  %v2691 = vpop.f32.mrf.mxu0
  %v2692 = vadd.f32 %v2523, %v2691
  %v2693 = vpop.f32.mrf.mxu0
  %v2694 = vadd.f32 %v2525, %v2693
  %2695 = vmatmul.bf16.gmra.mxu0 %v1356
  %v2696 = vpop.f32.mrf.mxu0
  %v2697 = vadd.f32 %v2528, %v2696
  %v2698 = vpop.f32.mrf.mxu0
  %v2699 = vadd.f32 %v2530, %v2698
  %2700 = vmatmul.bf16.gmra.mxu0 %v1364
  %v2701 = vpop.f32.mrf.mxu0
  %v2702 = vadd.f32 %v2533, %v2701
  %v2703 = vpop.f32.mrf.mxu0
  %v2704 = vadd.f32 %v2535, %v2703
  %2705 = vmatmul.bf16.gmra.mxu0 %v1372
  %v2706 = vpop.f32.mrf.mxu0
  %v2707 = vadd.f32 %v2538, %v2706
  %v2708 = vpop.f32.mrf.mxu0
  %v2709 = vadd.f32 %v2540, %v2708
  %2710 = vmatmul.bf16.gmra.mxu0 %v1380
  %v2711 = vpop.f32.mrf.mxu0
  %v2712 = vadd.f32 %v2543, %v2711
  %v2713 = vpop.f32.mrf.mxu0
  %v2714 = vadd.f32 %v2545, %v2713
  %2715 = vmatmul.bf16.gmra.mxu0 %v1388
  %v2716 = vpop.f32.mrf.mxu0
  %v2717 = vadd.f32 %v2548, %v2716
  %v2718 = vpop.f32.mrf.mxu0
  %v2719 = vadd.f32 %v2550, %v2718
  %2720 = vmatmul.bf16.gmra.mxu0 %v1396
  %v2721 = vpop.f32.mrf.mxu0
  %v2722 = vadd.f32 %v2553, %v2721
  %v2723 = vpop.f32.mrf.mxu0
  %v2724 = vadd.f32 %v2555, %v2723
  %2725 = vmatmul.bf16.gmra.mxu0 %v1404
  %v2726 = vpop.f32.mrf.mxu0
  %v2727 = vadd.f32 %v2558, %v2726
  %v2728 = vpop.f32.mrf.mxu0
  %v2729 = vadd.f32 %v2560, %v2728
  %2730 = vmatmul.bf16.gmra.mxu0 %v1412
  %v2731 = vpop.f32.mrf.mxu0
  %v2732 = vadd.f32 %v2563, %v2731
  %v2733 = vpop.f32.mrf.mxu0
  %v2734 = vadd.f32 %v2565, %v2733
  %2735 = vmatmul.bf16.gmra.mxu0 %v1420
  %v2736 = vpop.f32.mrf.mxu0
  %v2737 = vadd.f32 %v2568, %v2736
  %v2738 = vpop.f32.mrf.mxu0
  %v2739 = vadd.f32 %v2570, %v2738
  %2740 = vdwg.mxu0
  %2741 = vmatpush.bf16.msra.mxu0 %v1976
  %2742 = vmatpush.bf16.msra.mxu0 %v1975
  %2743 = vmatpush.bf16.msra.mxu0 %v1974
  %2744 = vmatpush.bf16.msra.mxu0 %v1973
  %2745 = vmatpush.bf16.msra.mxu0 %v1972
  %2746 = vmatpush.bf16.msra.mxu0 %v1971
  %2747 = vmatpush.bf16.msra.mxu0 %v1970
  %2748 = vmatpush.bf16.msra.mxu0 %v1969
  %2749 = vmatmul.bf16.gmra.mxu0 %v1173
  %v2750 = vpop.f32.mrf.mxu0
  %v2751 = vadd.f32 %v2582, %v2750
  %v2752 = vpop.f32.mrf.mxu0
  %v2753 = vadd.f32 %v2584, %v2752
  %2754 = vmatmul.bf16.gmra.mxu0 %v1181
  %v2755 = vpop.f32.mrf.mxu0
  %v2756 = vadd.f32 %v2587, %v2755
  %v2757 = vpop.f32.mrf.mxu0
  %v2758 = vadd.f32 %v2589, %v2757
  %2759 = vmatmul.bf16.gmra.mxu0 %v1189
  %v2760 = vpop.f32.mrf.mxu0
  %v2761 = vadd.f32 %v2592, %v2760
  %v2762 = vpop.f32.mrf.mxu0
  %v2763 = vadd.f32 %v2594, %v2762
  %2764 = vmatmul.bf16.gmra.mxu0 %v1197
  %v2765 = vpop.f32.mrf.mxu0
  %v2766 = vadd.f32 %v2597, %v2765
  %v2767 = vpop.f32.mrf.mxu0
  %v2768 = vadd.f32 %v2599, %v2767
  %2769 = vmatmul.bf16.gmra.mxu0 %v1205
  %v2770 = vpop.f32.mrf.mxu0
  %v2771 = vadd.f32 %v2602, %v2770
  %v2772 = vpop.f32.mrf.mxu0
  %v2773 = vadd.f32 %v2604, %v2772
  %2774 = vmatmul.bf16.gmra.mxu0 %v1213
  %v2775 = vpop.f32.mrf.mxu0
  %v2776 = vadd.f32 %v2607, %v2775
  %v2777 = vpop.f32.mrf.mxu0
  %v2778 = vadd.f32 %v2609, %v2777
  %2779 = vmatmul.bf16.gmra.mxu0 %v1221
  %v2780 = vpop.f32.mrf.mxu0
  %v2781 = vadd.f32 %v2612, %v2780
  %v2782 = vpop.f32.mrf.mxu0
  %v2783 = vadd.f32 %v2614, %v2782
  %2784 = vmatmul.bf16.gmra.mxu0 %v1229
  %v2785 = vpop.f32.mrf.mxu0
  %v2786 = vadd.f32 %v2617, %v2785
  %v2787 = vpop.f32.mrf.mxu0
  %v2788 = vadd.f32 %v2619, %v2787
  %2789 = vmatmul.bf16.gmra.mxu0 %v1237
  %v2790 = vpop.f32.mrf.mxu0
  %v2791 = vadd.f32 %v2622, %v2790
  %v2792 = vpop.f32.mrf.mxu0
  %v2793 = vadd.f32 %v2624, %v2792
  %2794 = vmatmul.bf16.gmra.mxu0 %v1245
  %v2795 = vpop.f32.mrf.mxu0
  %v2796 = vadd.f32 %v2627, %v2795
  %v2797 = vpop.f32.mrf.mxu0
  %v2798 = vadd.f32 %v2629, %v2797
  %2799 = vmatmul.bf16.gmra.mxu0 %v1253
  %v2800 = vpop.f32.mrf.mxu0
  %v2801 = vadd.f32 %v2632, %v2800
  %v2802 = vpop.f32.mrf.mxu0
  %v2803 = vadd.f32 %v2634, %v2802
  %2804 = vmatmul.bf16.gmra.mxu0 %v1261
  %v2805 = vpop.f32.mrf.mxu0
  %v2806 = vadd.f32 %v2637, %v2805
  %v2807 = vpop.f32.mrf.mxu0
  %v2808 = vadd.f32 %v2639, %v2807
  %2809 = vmatmul.bf16.gmra.mxu0 %v1269
  %v2810 = vpop.f32.mrf.mxu0
  %v2811 = vadd.f32 %v2642, %v2810
  %v2812 = vpop.f32.mrf.mxu0
  %v2813 = vadd.f32 %v2644, %v2812
  %2814 = vmatmul.bf16.gmra.mxu0 %v1277
  %v2815 = vpop.f32.mrf.mxu0
  %v2816 = vadd.f32 %v2647, %v2815
  %v2817 = vpop.f32.mrf.mxu0
  %v2818 = vadd.f32 %v2649, %v2817
  %2819 = vmatmul.bf16.gmra.mxu0 %v1285
  %v2820 = vpop.f32.mrf.mxu0
  %v2821 = vadd.f32 %v2652, %v2820
  %v2822 = vpop.f32.mrf.mxu0
  %v2823 = vadd.f32 %v2654, %v2822
  %2824 = vmatmul.bf16.gmra.mxu0 %v1293
  %v2825 = vpop.f32.mrf.mxu0
  %v2826 = vadd.f32 %v2657, %v2825
  %v2827 = vpop.f32.mrf.mxu0
  %v2828 = vadd.f32 %v2659, %v2827
  %2829 = vmatmul.bf16.gmra.mxu0 %v1301
  %v2830 = vpop.f32.mrf.mxu0
  %v2831 = vadd.f32 %v2662, %v2830
  %v2832 = vpop.f32.mrf.mxu0
  %v2833 = vadd.f32 %v2664, %v2832
  %2834 = vmatmul.bf16.gmra.mxu0 %v1309
  %v2835 = vpop.f32.mrf.mxu0
  %v2836 = vadd.f32 %v2667, %v2835
  %v2837 = vpop.f32.mrf.mxu0
  %v2838 = vadd.f32 %v2669, %v2837
  %2839 = vmatmul.bf16.gmra.mxu0 %v1317
  %v2840 = vpop.f32.mrf.mxu0
  %v2841 = vadd.f32 %v2672, %v2840
  %v2842 = vpop.f32.mrf.mxu0
  %v2843 = vadd.f32 %v2674, %v2842
  %2844 = vmatmul.bf16.gmra.mxu0 %v1325
  %v2845 = vpop.f32.mrf.mxu0
  %v2846 = vadd.f32 %v2677, %v2845
  %v2847 = vpop.f32.mrf.mxu0
  %v2848 = vadd.f32 %v2679, %v2847
  %2849 = vmatmul.bf16.gmra.mxu0 %v1333
  %v2850 = vpop.f32.mrf.mxu0
  %v2851 = vadd.f32 %v2682, %v2850
  %v2852 = vpop.f32.mrf.mxu0
  %v2853 = vadd.f32 %v2684, %v2852
  %2854 = vmatmul.bf16.gmra.mxu0 %v1341
  %v2855 = vpop.f32.mrf.mxu0
  %v2856 = vadd.f32 %v2687, %v2855
  %v2857 = vpop.f32.mrf.mxu0
  %v2858 = vadd.f32 %v2689, %v2857
  %2859 = vmatmul.bf16.gmra.mxu0 %v1349
  %v2860 = vpop.f32.mrf.mxu0
  %v2861 = vadd.f32 %v2692, %v2860
  %v2862 = vpop.f32.mrf.mxu0
  %v2863 = vadd.f32 %v2694, %v2862
  %2864 = vmatmul.bf16.gmra.mxu0 %v1357
  %v2865 = vpop.f32.mrf.mxu0
  %v2866 = vadd.f32 %v2697, %v2865
  %v2867 = vpop.f32.mrf.mxu0
  %v2868 = vadd.f32 %v2699, %v2867
  %2869 = vmatmul.bf16.gmra.mxu0 %v1365
  %v2870 = vpop.f32.mrf.mxu0
  %v2871 = vadd.f32 %v2702, %v2870
  %v2872 = vpop.f32.mrf.mxu0
  %v2873 = vadd.f32 %v2704, %v2872
  %2874 = vmatmul.bf16.gmra.mxu0 %v1373
  %v2875 = vpop.f32.mrf.mxu0
  %v2876 = vadd.f32 %v2707, %v2875
  %v2877 = vpop.f32.mrf.mxu0
  %v2878 = vadd.f32 %v2709, %v2877
  %2879 = vmatmul.bf16.gmra.mxu0 %v1381
  %v2880 = vpop.f32.mrf.mxu0
  %v2881 = vadd.f32 %v2712, %v2880
  %v2882 = vpop.f32.mrf.mxu0
  %v2883 = vadd.f32 %v2714, %v2882
  %2884 = vmatmul.bf16.gmra.mxu0 %v1389
  %v2885 = vpop.f32.mrf.mxu0
  %v2886 = vadd.f32 %v2717, %v2885
  %v2887 = vpop.f32.mrf.mxu0
  %v2888 = vadd.f32 %v2719, %v2887
  %2889 = vmatmul.bf16.gmra.mxu0 %v1397
  %v2890 = vpop.f32.mrf.mxu0
  %v2891 = vadd.f32 %v2722, %v2890
  %v2892 = vpop.f32.mrf.mxu0
  %v2893 = vadd.f32 %v2724, %v2892
  %2894 = vmatmul.bf16.gmra.mxu0 %v1405
  %v2895 = vpop.f32.mrf.mxu0
  %v2896 = vadd.f32 %v2727, %v2895
  %v2897 = vpop.f32.mrf.mxu0
  %v2898 = vadd.f32 %v2729, %v2897
  %2899 = vmatmul.bf16.gmra.mxu0 %v1413
  %v2900 = vpop.f32.mrf.mxu0
  %v2901 = vadd.f32 %v2732, %v2900
  %v2902 = vpop.f32.mrf.mxu0
  %v2903 = vadd.f32 %v2734, %v2902
  %2904 = vmatmul.bf16.gmra.mxu0 %v1421
  %v2905 = vpop.f32.mrf.mxu0
  %v2906 = vadd.f32 %v2737, %v2905
  %v2907 = vpop.f32.mrf.mxu0
  %v2908 = vadd.f32 %v2739, %v2907
  %2909 = vdwg.mxu0
  %2910 = vmatpush.bf16.msra.mxu0 %v1984
  %2911 = vmatpush.bf16.msra.mxu0 %v1983
  %2912 = vmatpush.bf16.msra.mxu0 %v1982
  %2913 = vmatpush.bf16.msra.mxu0 %v1981
  %2914 = vmatpush.bf16.msra.mxu0 %v1980
  %2915 = vmatpush.bf16.msra.mxu0 %v1979
  %2916 = vmatpush.bf16.msra.mxu0 %v1978
  %2917 = vmatpush.bf16.msra.mxu0 %v1977
  %2918 = vmatmul.bf16.gmra.mxu0 %v1174
  %v2919 = vpop.f32.mrf.mxu0
  %v2920 = vadd.f32 %v2751, %v2919
  %v2921 = vpop.f32.mrf.mxu0
  %v2922 = vadd.f32 %v2753, %v2921
  %2923 = vmatmul.bf16.gmra.mxu0 %v1182
  %v2924 = vpop.f32.mrf.mxu0
  %v2925 = vadd.f32 %v2756, %v2924
  %v2926 = vpop.f32.mrf.mxu0
  %v2927 = vadd.f32 %v2758, %v2926
  %2928 = vmatmul.bf16.gmra.mxu0 %v1190
  %v2929 = vpop.f32.mrf.mxu0
  %v2930 = vadd.f32 %v2761, %v2929
  %v2931 = vpop.f32.mrf.mxu0
  %v2932 = vadd.f32 %v2763, %v2931
  %2933 = vmatmul.bf16.gmra.mxu0 %v1198
  %v2934 = vpop.f32.mrf.mxu0
  %v2935 = vadd.f32 %v2766, %v2934
  %v2936 = vpop.f32.mrf.mxu0
  %v2937 = vadd.f32 %v2768, %v2936
  %2938 = vmatmul.bf16.gmra.mxu0 %v1206
  %v2939 = vpop.f32.mrf.mxu0
  %v2940 = vadd.f32 %v2771, %v2939
  %v2941 = vpop.f32.mrf.mxu0
  %v2942 = vadd.f32 %v2773, %v2941
  %2943 = vmatmul.bf16.gmra.mxu0 %v1214
  %v2944 = vpop.f32.mrf.mxu0
  %v2945 = vadd.f32 %v2776, %v2944
  %v2946 = vpop.f32.mrf.mxu0
  %v2947 = vadd.f32 %v2778, %v2946
  %2948 = vmatmul.bf16.gmra.mxu0 %v1222
  %v2949 = vpop.f32.mrf.mxu0
  %v2950 = vadd.f32 %v2781, %v2949
  %v2951 = vpop.f32.mrf.mxu0
  %v2952 = vadd.f32 %v2783, %v2951
  %2953 = vmatmul.bf16.gmra.mxu0 %v1230
  %v2954 = vpop.f32.mrf.mxu0
  %v2955 = vadd.f32 %v2786, %v2954
  %v2956 = vpop.f32.mrf.mxu0
  %v2957 = vadd.f32 %v2788, %v2956
  %2958 = vmatmul.bf16.gmra.mxu0 %v1238
  %v2959 = vpop.f32.mrf.mxu0
  %v2960 = vadd.f32 %v2791, %v2959
  %v2961 = vpop.f32.mrf.mxu0
  %v2962 = vadd.f32 %v2793, %v2961
  %2963 = vmatmul.bf16.gmra.mxu0 %v1246
  %v2964 = vpop.f32.mrf.mxu0
  %v2965 = vadd.f32 %v2796, %v2964
  %v2966 = vpop.f32.mrf.mxu0
  %v2967 = vadd.f32 %v2798, %v2966
  %2968 = vmatmul.bf16.gmra.mxu0 %v1254
  %v2969 = vpop.f32.mrf.mxu0
  %v2970 = vadd.f32 %v2801, %v2969
  %v2971 = vpop.f32.mrf.mxu0
  %v2972 = vadd.f32 %v2803, %v2971
  %2973 = vmatmul.bf16.gmra.mxu0 %v1262
  %v2974 = vpop.f32.mrf.mxu0
  %v2975 = vadd.f32 %v2806, %v2974
  %v2976 = vpop.f32.mrf.mxu0
  %v2977 = vadd.f32 %v2808, %v2976
  %2978 = vmatmul.bf16.gmra.mxu0 %v1270
  %v2979 = vpop.f32.mrf.mxu0
  %v2980 = vadd.f32 %v2811, %v2979
  %v2981 = vpop.f32.mrf.mxu0
  %v2982 = vadd.f32 %v2813, %v2981
  %2983 = vmatmul.bf16.gmra.mxu0 %v1278
  %v2984 = vpop.f32.mrf.mxu0
  %v2985 = vadd.f32 %v2816, %v2984
  %v2986 = vpop.f32.mrf.mxu0
  %v2987 = vadd.f32 %v2818, %v2986
  %2988 = vmatmul.bf16.gmra.mxu0 %v1286
  %v2989 = vpop.f32.mrf.mxu0
  %v2990 = vadd.f32 %v2821, %v2989
  %v2991 = vpop.f32.mrf.mxu0
  %v2992 = vadd.f32 %v2823, %v2991
  %2993 = vmatmul.bf16.gmra.mxu0 %v1294
  %v2994 = vpop.f32.mrf.mxu0
  %v2995 = vadd.f32 %v2826, %v2994
  %v2996 = vpop.f32.mrf.mxu0
  %v2997 = vadd.f32 %v2828, %v2996
  %2998 = vmatmul.bf16.gmra.mxu0 %v1302
  %v2999 = vpop.f32.mrf.mxu0
  %v3000 = vadd.f32 %v2831, %v2999
  %v3001 = vpop.f32.mrf.mxu0
  %v3002 = vadd.f32 %v2833, %v3001
  %3003 = vmatmul.bf16.gmra.mxu0 %v1310
  %v3004 = vpop.f32.mrf.mxu0
  %v3005 = vadd.f32 %v2836, %v3004
  %v3006 = vpop.f32.mrf.mxu0
  %v3007 = vadd.f32 %v2838, %v3006
  %3008 = vmatmul.bf16.gmra.mxu0 %v1318
  %v3009 = vpop.f32.mrf.mxu0
  %v3010 = vadd.f32 %v2841, %v3009
  %v3011 = vpop.f32.mrf.mxu0
  %v3012 = vadd.f32 %v2843, %v3011
  %3013 = vmatmul.bf16.gmra.mxu0 %v1326
  %v3014 = vpop.f32.mrf.mxu0
  %v3015 = vadd.f32 %v2846, %v3014
  %v3016 = vpop.f32.mrf.mxu0
  %v3017 = vadd.f32 %v2848, %v3016
  %3018 = vmatmul.bf16.gmra.mxu0 %v1334
  %v3019 = vpop.f32.mrf.mxu0
  %v3020 = vadd.f32 %v2851, %v3019
  %v3021 = vpop.f32.mrf.mxu0
  %v3022 = vadd.f32 %v2853, %v3021
  %3023 = vmatmul.bf16.gmra.mxu0 %v1342
  %v3024 = vpop.f32.mrf.mxu0
  %v3025 = vadd.f32 %v2856, %v3024
  %v3026 = vpop.f32.mrf.mxu0
  %v3027 = vadd.f32 %v2858, %v3026
  %3028 = vmatmul.bf16.gmra.mxu0 %v1350
  %v3029 = vpop.f32.mrf.mxu0
  %v3030 = vadd.f32 %v2861, %v3029
  %v3031 = vpop.f32.mrf.mxu0
  %v3032 = vadd.f32 %v2863, %v3031
  %3033 = vmatmul.bf16.gmra.mxu0 %v1358
  %v3034 = vpop.f32.mrf.mxu0
  %v3035 = vadd.f32 %v2866, %v3034
  %v3036 = vpop.f32.mrf.mxu0
  %v3037 = vadd.f32 %v2868, %v3036
  %3038 = vmatmul.bf16.gmra.mxu0 %v1366
  %v3039 = vpop.f32.mrf.mxu0
  %v3040 = vadd.f32 %v2871, %v3039
  %v3041 = vpop.f32.mrf.mxu0
  %v3042 = vadd.f32 %v2873, %v3041
  %3043 = vmatmul.bf16.gmra.mxu0 %v1374
  %v3044 = vpop.f32.mrf.mxu0
  %v3045 = vadd.f32 %v2876, %v3044
  %v3046 = vpop.f32.mrf.mxu0
  %v3047 = vadd.f32 %v2878, %v3046
  %3048 = vmatmul.bf16.gmra.mxu0 %v1382
  %v3049 = vpop.f32.mrf.mxu0
  %v3050 = vadd.f32 %v2881, %v3049
  %v3051 = vpop.f32.mrf.mxu0
  %v3052 = vadd.f32 %v2883, %v3051
  %3053 = vmatmul.bf16.gmra.mxu0 %v1390
  %v3054 = vpop.f32.mrf.mxu0
  %v3055 = vadd.f32 %v2886, %v3054
  %v3056 = vpop.f32.mrf.mxu0
  %v3057 = vadd.f32 %v2888, %v3056
  %3058 = vmatmul.bf16.gmra.mxu0 %v1398
  %v3059 = vpop.f32.mrf.mxu0
  %v3060 = vadd.f32 %v2891, %v3059
  %v3061 = vpop.f32.mrf.mxu0
  %v3062 = vadd.f32 %v2893, %v3061
  %3063 = vmatmul.bf16.gmra.mxu0 %v1406
  %v3064 = vpop.f32.mrf.mxu0
  %v3065 = vadd.f32 %v2896, %v3064
  %v3066 = vpop.f32.mrf.mxu0
  %v3067 = vadd.f32 %v2898, %v3066
  %3068 = vmatmul.bf16.gmra.mxu0 %v1414
  %v3069 = vpop.f32.mrf.mxu0
  %v3070 = vadd.f32 %v2901, %v3069
  %v3071 = vpop.f32.mrf.mxu0
  %v3072 = vadd.f32 %v2903, %v3071
  %3073 = vmatmul.bf16.gmra.mxu0 %v1422
  %v3074 = vpop.f32.mrf.mxu0
  %v3075 = vadd.f32 %v2906, %v3074
  %v3076 = vpop.f32.mrf.mxu0
  %v3077 = vadd.f32 %v2908, %v3076
  %3078 = vdwg.mxu0
  %3079 = vmatpush.bf16.msra.mxu0 %v1992
  %3080 = vmatpush.bf16.msra.mxu0 %v1991
  %3081 = vmatpush.bf16.msra.mxu0 %v1990
  %3082 = vmatpush.bf16.msra.mxu0 %v1989
  %3083 = vmatpush.bf16.msra.mxu0 %v1988
  %3084 = vmatpush.bf16.msra.mxu0 %v1987
  %3085 = vmatpush.bf16.msra.mxu0 %v1986
  %3086 = vmatpush.bf16.msra.mxu0 %v1985
  %3087 = vmatmul.bf16.gmra.mxu0 %v1175
  %v3088 = vpop.f32.mrf.mxu0
  %v3089 = vadd.f32 %v2920, %v3088
  %v3090 = vpop.f32.mrf.mxu0
  %v3091 = vadd.f32 %v2922, %v3090
  %3092 = vmatmul.bf16.gmra.mxu0 %v1183
  %v3093 = vpop.f32.mrf.mxu0
  %v3094 = vadd.f32 %v2925, %v3093
  %v3095 = vpop.f32.mrf.mxu0
  %v3096 = vadd.f32 %v2927, %v3095
  %3097 = vmatmul.bf16.gmra.mxu0 %v1191
  %v3098 = vpop.f32.mrf.mxu0
  %v3099 = vadd.f32 %v2930, %v3098
  %v3100 = vpop.f32.mrf.mxu0
  %v3101 = vadd.f32 %v2932, %v3100
  %3102 = vmatmul.bf16.gmra.mxu0 %v1199
  %v3103 = vpop.f32.mrf.mxu0
  %v3104 = vadd.f32 %v2935, %v3103
  %v3105 = vpop.f32.mrf.mxu0
  %v3106 = vadd.f32 %v2937, %v3105
  %3107 = vmatmul.bf16.gmra.mxu0 %v1207
  %v3108 = vpop.f32.mrf.mxu0
  %v3109 = vadd.f32 %v2940, %v3108
  %v3110 = vpop.f32.mrf.mxu0
  %v3111 = vadd.f32 %v2942, %v3110
  %3112 = vmatmul.bf16.gmra.mxu0 %v1215
  %v3113 = vpop.f32.mrf.mxu0
  %v3114 = vadd.f32 %v2945, %v3113
  %v3115 = vpop.f32.mrf.mxu0
  %v3116 = vadd.f32 %v2947, %v3115
  %3117 = vmatmul.bf16.gmra.mxu0 %v1223
  %v3118 = vpop.f32.mrf.mxu0
  %v3119 = vadd.f32 %v2950, %v3118
  %v3120 = vpop.f32.mrf.mxu0
  %v3121 = vadd.f32 %v2952, %v3120
  %3122 = vmatmul.bf16.gmra.mxu0 %v1231
  %v3123 = vpop.f32.mrf.mxu0
  %v3124 = vadd.f32 %v2955, %v3123
  %v3125 = vpop.f32.mrf.mxu0
  %v3126 = vadd.f32 %v2957, %v3125
  %3127 = vmatmul.bf16.gmra.mxu0 %v1239
  %v3128 = vpop.f32.mrf.mxu0
  %v3129 = vadd.f32 %v2960, %v3128
  %v3130 = vpop.f32.mrf.mxu0
  %v3131 = vadd.f32 %v2962, %v3130
  %3132 = vmatmul.bf16.gmra.mxu0 %v1247
  %v3133 = vpop.f32.mrf.mxu0
  %v3134 = vadd.f32 %v2965, %v3133
  %v3135 = vpop.f32.mrf.mxu0
  %v3136 = vadd.f32 %v2967, %v3135
  %3137 = vmatmul.bf16.gmra.mxu0 %v1255
  %v3138 = vpop.f32.mrf.mxu0
  %v3139 = vadd.f32 %v2970, %v3138
  %v3140 = vpop.f32.mrf.mxu0
  %v3141 = vadd.f32 %v2972, %v3140
  %3142 = vmatmul.bf16.gmra.mxu0 %v1263
  %v3143 = vpop.f32.mrf.mxu0
  %v3144 = vadd.f32 %v2975, %v3143
  %v3145 = vpop.f32.mrf.mxu0
  %v3146 = vadd.f32 %v2977, %v3145
  %3147 = vmatmul.bf16.gmra.mxu0 %v1271
  %v3148 = vpop.f32.mrf.mxu0
  %v3149 = vadd.f32 %v2980, %v3148
  %v3150 = vpop.f32.mrf.mxu0
  %v3151 = vadd.f32 %v2982, %v3150
  %3152 = vmatmul.bf16.gmra.mxu0 %v1279
  %v3153 = vpop.f32.mrf.mxu0
  %v3154 = vadd.f32 %v2985, %v3153
  %v3155 = vpop.f32.mrf.mxu0
  %v3156 = vadd.f32 %v2987, %v3155
  %3157 = vmatmul.bf16.gmra.mxu0 %v1287
  %v3158 = vpop.f32.mrf.mxu0
  %v3159 = vadd.f32 %v2990, %v3158
  %v3160 = vpop.f32.mrf.mxu0
  %v3161 = vadd.f32 %v2992, %v3160
  %3162 = vmatmul.bf16.gmra.mxu0 %v1295
  %v3163 = vpop.f32.mrf.mxu0
  %v3164 = vadd.f32 %v2995, %v3163
  %v3165 = vpop.f32.mrf.mxu0
  %v3166 = vadd.f32 %v2997, %v3165
  %3167 = vmatmul.bf16.gmra.mxu0 %v1303
  %v3168 = vpop.f32.mrf.mxu0
  %v3169 = vadd.f32 %v3000, %v3168
  %v3170 = vpop.f32.mrf.mxu0
  %v3171 = vadd.f32 %v3002, %v3170
  %3172 = vmatmul.bf16.gmra.mxu0 %v1311
  %v3173 = vpop.f32.mrf.mxu0
  %v3174 = vadd.f32 %v3005, %v3173
  %v3175 = vpop.f32.mrf.mxu0
  %v3176 = vadd.f32 %v3007, %v3175
  %3177 = vmatmul.bf16.gmra.mxu0 %v1319
  %v3178 = vpop.f32.mrf.mxu0
  %v3179 = vadd.f32 %v3010, %v3178
  %v3180 = vpop.f32.mrf.mxu0
  %v3181 = vadd.f32 %v3012, %v3180
  %3182 = vmatmul.bf16.gmra.mxu0 %v1327
  %v3183 = vpop.f32.mrf.mxu0
  %v3184 = vadd.f32 %v3015, %v3183
  %v3185 = vpop.f32.mrf.mxu0
  %v3186 = vadd.f32 %v3017, %v3185
  %3187 = vmatmul.bf16.gmra.mxu0 %v1335
  %v3188 = vpop.f32.mrf.mxu0
  %v3189 = vadd.f32 %v3020, %v3188
  %v3190 = vpop.f32.mrf.mxu0
  %v3191 = vadd.f32 %v3022, %v3190
  %3192 = vmatmul.bf16.gmra.mxu0 %v1343
  %v3193 = vpop.f32.mrf.mxu0
  %v3194 = vadd.f32 %v3025, %v3193
  %v3195 = vpop.f32.mrf.mxu0
  %v3196 = vadd.f32 %v3027, %v3195
  %3197 = vmatmul.bf16.gmra.mxu0 %v1351
  %v3198 = vpop.f32.mrf.mxu0
  %v3199 = vadd.f32 %v3030, %v3198
  %v3200 = vpop.f32.mrf.mxu0
  %v3201 = vadd.f32 %v3032, %v3200
  %3202 = vmatmul.bf16.gmra.mxu0 %v1359
  %v3203 = vpop.f32.mrf.mxu0
  %v3204 = vadd.f32 %v3035, %v3203
  %v3205 = vpop.f32.mrf.mxu0
  %v3206 = vadd.f32 %v3037, %v3205
  %3207 = vmatmul.bf16.gmra.mxu0 %v1367
  %v3208 = vpop.f32.mrf.mxu0
  %v3209 = vadd.f32 %v3040, %v3208
  %v3210 = vpop.f32.mrf.mxu0
  %v3211 = vadd.f32 %v3042, %v3210
  %3212 = vmatmul.bf16.gmra.mxu0 %v1375
  %v3213 = vpop.f32.mrf.mxu0
  %v3214 = vadd.f32 %v3045, %v3213
  %v3215 = vpop.f32.mrf.mxu0
  %v3216 = vadd.f32 %v3047, %v3215
  %3217 = vmatmul.bf16.gmra.mxu0 %v1383
  %v3218 = vpop.f32.mrf.mxu0
  %v3219 = vadd.f32 %v3050, %v3218
  %v3220 = vpop.f32.mrf.mxu0
  %v3221 = vadd.f32 %v3052, %v3220
  %3222 = vmatmul.bf16.gmra.mxu0 %v1391
  %v3223 = vpop.f32.mrf.mxu0
  %v3224 = vadd.f32 %v3055, %v3223
  %v3225 = vpop.f32.mrf.mxu0
  %v3226 = vadd.f32 %v3057, %v3225
  %3227 = vmatmul.bf16.gmra.mxu0 %v1399
  %v3228 = vpop.f32.mrf.mxu0
  %v3229 = vadd.f32 %v3060, %v3228
  %v3230 = vpop.f32.mrf.mxu0
  %v3231 = vadd.f32 %v3062, %v3230
  %3232 = vmatmul.bf16.gmra.mxu0 %v1407
  %v3233 = vpop.f32.mrf.mxu0
  %v3234 = vadd.f32 %v3065, %v3233
  %v3235 = vpop.f32.mrf.mxu0
  %v3236 = vadd.f32 %v3067, %v3235
  %3237 = vmatmul.bf16.gmra.mxu0 %v1415
  %v3238 = vpop.f32.mrf.mxu0
  %v3239 = vadd.f32 %v3070, %v3238
  %v3240 = vpop.f32.mrf.mxu0
  %v3241 = vadd.f32 %v3072, %v3240
  %3242 = vmatmul.bf16.gmra.mxu0 %v1423
  %v3243 = vpop.f32.mrf.mxu0
  %v3244 = vadd.f32 %v3075, %v3243
  %v3245 = vpop.f32.mrf.mxu0
  %v3246 = vadd.f32 %v3077, %v3245
  %3247 = vdwg.mxu0
  %3248 = vmatpush.bf16.msra.mxu0 %v2000
  %3249 = vmatpush.bf16.msra.mxu0 %v1999
  %3250 = vmatpush.bf16.msra.mxu0 %v1998
  %3251 = vmatpush.bf16.msra.mxu0 %v1997
  %3252 = vmatpush.bf16.msra.mxu0 %v1996
  %3253 = vmatpush.bf16.msra.mxu0 %v1995
  %3254 = vmatpush.bf16.msra.mxu0 %v1994
  %3255 = vmatpush.bf16.msra.mxu0 %v1993
  %3256 = vmatmul.bf16.gmra.mxu0 %v1176
  %v3257 = vpop.f32.mrf.mxu0
  %v3258 = vadd.f32 %v3089, %v3257
  %v3259 = vpop.f32.mrf.mxu0
  %v3260 = vadd.f32 %v3091, %v3259
  %3261 = vmatmul.bf16.gmra.mxu0 %v1184
  %v3262 = vpop.f32.mrf.mxu0
  %v3263 = vadd.f32 %v3094, %v3262
  %v3264 = vpop.f32.mrf.mxu0
  %v3265 = vadd.f32 %v3096, %v3264
  %3266 = vmatmul.bf16.gmra.mxu0 %v1192
  %v3267 = vpop.f32.mrf.mxu0
  %v3268 = vadd.f32 %v3099, %v3267
  %v3269 = vpop.f32.mrf.mxu0
  %v3270 = vadd.f32 %v3101, %v3269
  %3271 = vmatmul.bf16.gmra.mxu0 %v1200
  %v3272 = vpop.f32.mrf.mxu0
  %v3273 = vadd.f32 %v3104, %v3272
  %v3274 = vpop.f32.mrf.mxu0
  %v3275 = vadd.f32 %v3106, %v3274
  %3276 = vmatmul.bf16.gmra.mxu0 %v1208
  %v3277 = vpop.f32.mrf.mxu0
  %v3278 = vadd.f32 %v3109, %v3277
  %v3279 = vpop.f32.mrf.mxu0
  %v3280 = vadd.f32 %v3111, %v3279
  %3281 = vmatmul.bf16.gmra.mxu0 %v1216
  %v3282 = vpop.f32.mrf.mxu0
  %v3283 = vadd.f32 %v3114, %v3282
  %v3284 = vpop.f32.mrf.mxu0
  %v3285 = vadd.f32 %v3116, %v3284
  %3286 = vmatmul.bf16.gmra.mxu0 %v1224
  %v3287 = vpop.f32.mrf.mxu0
  %v3288 = vadd.f32 %v3119, %v3287
  %v3289 = vpop.f32.mrf.mxu0
  %v3290 = vadd.f32 %v3121, %v3289
  %3291 = vmatmul.bf16.gmra.mxu0 %v1232
  %v3292 = vpop.f32.mrf.mxu0
  %v3293 = vadd.f32 %v3124, %v3292
  %v3294 = vpop.f32.mrf.mxu0
  %v3295 = vadd.f32 %v3126, %v3294
  %3296 = vmatmul.bf16.gmra.mxu0 %v1240
  %v3297 = vpop.f32.mrf.mxu0
  %v3298 = vadd.f32 %v3129, %v3297
  %v3299 = vpop.f32.mrf.mxu0
  %v3300 = vadd.f32 %v3131, %v3299
  %3301 = vmatmul.bf16.gmra.mxu0 %v1248
  %v3302 = vpop.f32.mrf.mxu0
  %v3303 = vadd.f32 %v3134, %v3302
  %v3304 = vpop.f32.mrf.mxu0
  %v3305 = vadd.f32 %v3136, %v3304
  %3306 = vmatmul.bf16.gmra.mxu0 %v1256
  %v3307 = vpop.f32.mrf.mxu0
  %v3308 = vadd.f32 %v3139, %v3307
  %v3309 = vpop.f32.mrf.mxu0
  %v3310 = vadd.f32 %v3141, %v3309
  %3311 = vmatmul.bf16.gmra.mxu0 %v1264
  %v3312 = vpop.f32.mrf.mxu0
  %v3313 = vadd.f32 %v3144, %v3312
  %v3314 = vpop.f32.mrf.mxu0
  %v3315 = vadd.f32 %v3146, %v3314
  %3316 = vmatmul.bf16.gmra.mxu0 %v1272
  %v3317 = vpop.f32.mrf.mxu0
  %v3318 = vadd.f32 %v3149, %v3317
  %v3319 = vpop.f32.mrf.mxu0
  %v3320 = vadd.f32 %v3151, %v3319
  %3321 = vmatmul.bf16.gmra.mxu0 %v1280
  %v3322 = vpop.f32.mrf.mxu0
  %v3323 = vadd.f32 %v3154, %v3322
  %v3324 = vpop.f32.mrf.mxu0
  %v3325 = vadd.f32 %v3156, %v3324
  %3326 = vmatmul.bf16.gmra.mxu0 %v1288
  %v3327 = vpop.f32.mrf.mxu0
  %v3328 = vadd.f32 %v3159, %v3327
  %v3329 = vpop.f32.mrf.mxu0
  %v3330 = vadd.f32 %v3161, %v3329
  %3331 = vmatmul.bf16.gmra.mxu0 %v1296
  %v3332 = vpop.f32.mrf.mxu0
  %v3333 = vadd.f32 %v3164, %v3332
  %v3334 = vpop.f32.mrf.mxu0
  %v3335 = vadd.f32 %v3166, %v3334
  %3336 = vmatmul.bf16.gmra.mxu0 %v1304
  %v3337 = vpop.f32.mrf.mxu0
  %v3338 = vadd.f32 %v3169, %v3337
  %v3339 = vpop.f32.mrf.mxu0
  %v3340 = vadd.f32 %v3171, %v3339
  %3341 = vmatmul.bf16.gmra.mxu0 %v1312
  %v3342 = vpop.f32.mrf.mxu0
  %v3343 = vadd.f32 %v3174, %v3342
  %v3344 = vpop.f32.mrf.mxu0
  %v3345 = vadd.f32 %v3176, %v3344
  %3346 = vmatmul.bf16.gmra.mxu0 %v1320
  %v3347 = vpop.f32.mrf.mxu0
  %v3348 = vadd.f32 %v3179, %v3347
  %v3349 = vpop.f32.mrf.mxu0
  %v3350 = vadd.f32 %v3181, %v3349
  %3351 = vmatmul.bf16.gmra.mxu0 %v1328
  %v3352 = vpop.f32.mrf.mxu0
  %v3353 = vadd.f32 %v3184, %v3352
  %v3354 = vpop.f32.mrf.mxu0
  %v3355 = vadd.f32 %v3186, %v3354
  %3356 = vmatmul.bf16.gmra.mxu0 %v1336
  %v3357 = vpop.f32.mrf.mxu0
  %v3358 = vadd.f32 %v3189, %v3357
  %v3359 = vpop.f32.mrf.mxu0
  %v3360 = vadd.f32 %v3191, %v3359
  %3361 = vmatmul.bf16.gmra.mxu0 %v1344
  %v3362 = vpop.f32.mrf.mxu0
  %v3363 = vadd.f32 %v3194, %v3362
  %v3364 = vpop.f32.mrf.mxu0
  %v3365 = vadd.f32 %v3196, %v3364
  %3366 = vmatmul.bf16.gmra.mxu0 %v1352
  %v3367 = vpop.f32.mrf.mxu0
  %v3368 = vadd.f32 %v3199, %v3367
  %v3369 = vpop.f32.mrf.mxu0
  %v3370 = vadd.f32 %v3201, %v3369
  %3371 = vmatmul.bf16.gmra.mxu0 %v1360
  %v3372 = vpop.f32.mrf.mxu0
  %v3373 = vadd.f32 %v3204, %v3372
  %v3374 = vpop.f32.mrf.mxu0
  %v3375 = vadd.f32 %v3206, %v3374
  %3376 = vmatmul.bf16.gmra.mxu0 %v1368
  %v3377 = vpop.f32.mrf.mxu0
  %v3378 = vadd.f32 %v3209, %v3377
  %v3379 = vpop.f32.mrf.mxu0
  %v3380 = vadd.f32 %v3211, %v3379
  %3381 = vmatmul.bf16.gmra.mxu0 %v1376
  %v3382 = vpop.f32.mrf.mxu0
  %v3383 = vadd.f32 %v3214, %v3382
  %v3384 = vpop.f32.mrf.mxu0
  %v3385 = vadd.f32 %v3216, %v3384
  %3386 = vmatmul.bf16.gmra.mxu0 %v1384
  %v3387 = vpop.f32.mrf.mxu0
  %v3388 = vadd.f32 %v3219, %v3387
  %v3389 = vpop.f32.mrf.mxu0
  %v3390 = vadd.f32 %v3221, %v3389
  %3391 = vmatmul.bf16.gmra.mxu0 %v1392
  %v3392 = vpop.f32.mrf.mxu0
  %v3393 = vadd.f32 %v3224, %v3392
  %v3394 = vpop.f32.mrf.mxu0
  %v3395 = vadd.f32 %v3226, %v3394
  %3396 = vmatmul.bf16.gmra.mxu0 %v1400
  %v3397 = vpop.f32.mrf.mxu0
  %v3398 = vadd.f32 %v3229, %v3397
  %v3399 = vpop.f32.mrf.mxu0
  %v3400 = vadd.f32 %v3231, %v3399
  %3401 = vmatmul.bf16.gmra.mxu0 %v1408
  %v3402 = vpop.f32.mrf.mxu0
  %v3403 = vadd.f32 %v3234, %v3402
  %v3404 = vpop.f32.mrf.mxu0
  %v3405 = vadd.f32 %v3236, %v3404
  %3406 = vmatmul.bf16.gmra.mxu0 %v1416
  %v3407 = vpop.f32.mrf.mxu0
  %v3408 = vadd.f32 %v3239, %v3407
  %v3409 = vpop.f32.mrf.mxu0
  %v3410 = vadd.f32 %v3241, %v3409
  %3411 = vmatmul.bf16.gmra.mxu0 %v1424
  %v3412 = vpop.f32.mrf.mxu0
  %v3413 = vadd.f32 %v3244, %v3412
  %v3414 = vpop.f32.mrf.mxu0
  %v3415 = vadd.f32 %v3246, %v3414
  %3416 = vdwg.mxu0
  %v3417 = vadd.f32 %v3258, %v3260
  %v3418 = vadd.f32 %v3417, %v3263
  %v3419 = vadd.f32 %v3418, %v3265
  %v3420 = vadd.f32 %v3419, %v3268
  %v3421 = vadd.f32 %v3420, %v3270
  %v3422 = vadd.f32 %v3421, %v3273
  %v3423 = vadd.f32 %v3422, %v3275
  %v3424 = vadd.f32 %v3423, %v3278
  %v3425 = vadd.f32 %v3424, %v3280
  %v3426 = vadd.f32 %v3425, %v3283
  %v3427 = vadd.f32 %v3426, %v3285
  %v3428 = vadd.f32 %v3427, %v3288
  %v3429 = vadd.f32 %v3428, %v3290
  %v3430 = vadd.f32 %v3429, %v3293
  %v3431 = vadd.f32 %v3430, %v3295
  %v3432 = vadd.f32 %v3431, %v3298
  %v3433 = vadd.f32 %v3432, %v3300
  %v3434 = vadd.f32 %v3433, %v3303
  %v3435 = vadd.f32 %v3434, %v3305
  %v3436 = vadd.f32 %v3435, %v3308
  %v3437 = vadd.f32 %v3436, %v3310
  %v3438 = vadd.f32 %v3437, %v3313
  %v3439 = vadd.f32 %v3438, %v3315
  %v3440 = vadd.f32 %v3439, %v3318
  %v3441 = vadd.f32 %v3440, %v3320
  %v3442 = vadd.f32 %v3441, %v3323
  %v3443 = vadd.f32 %v3442, %v3325
  %v3444 = vadd.f32 %v3443, %v3328
  %v3445 = vadd.f32 %v3444, %v3330
  %v3446 = vadd.f32 %v3445, %v3333
  %v3447 = vadd.f32 %v3446, %v3335
  %v3448 = vadd.f32 %v3447, %v3338
  %v3449 = vadd.f32 %v3448, %v3340
  %v3450 = vadd.f32 %v3449, %v3343
  %v3451 = vadd.f32 %v3450, %v3345
  %v3452 = vadd.f32 %v3451, %v3348
  %v3453 = vadd.f32 %v3452, %v3350
  %v3454 = vadd.f32 %v3453, %v3353
  %v3455 = vadd.f32 %v3454, %v3355
  %v3456 = vadd.f32 %v3455, %v3358
  %v3457 = vadd.f32 %v3456, %v3360
  %v3458 = vadd.f32 %v3457, %v3363
  %v3459 = vadd.f32 %v3458, %v3365
  %v3460 = vadd.f32 %v3459, %v3368
  %v3461 = vadd.f32 %v3460, %v3370
  %v3462 = vadd.f32 %v3461, %v3373
  %v3463 = vadd.f32 %v3462, %v3375
  %v3464 = vadd.f32 %v3463, %v3378
  %v3465 = vadd.f32 %v3464, %v3380
  %v3466 = vadd.f32 %v3465, %v3383
  %v3467 = vadd.f32 %v3466, %v3385
  %v3468 = vadd.f32 %v3467, %v3388
  %v3469 = vadd.f32 %v3468, %v3390
  %v3470 = vadd.f32 %v3469, %v3393
  %v3471 = vadd.f32 %v3470, %v3395
  %v3472 = vadd.f32 %v3471, %v3398
  %v3473 = vadd.f32 %v3472, %v3400
  %v3474 = vadd.f32 %v3473, %v3403
  %v3475 = vadd.f32 %v3474, %v3405
  %v3476 = vadd.f32 %v3475, %v3408
  %v3477 = vadd.f32 %v3476, %v3410
  %v3478 = vadd.f32 %v3477, %v3413
  %v3479 = vadd.f32 %v3478, %v3415
  %v3480 = vrot.slane %v3479, 4
  %v3481 = vadd.f32 %v3479, %v3480
  %v3482 = vrot.slane %v3481, 2
  %v3483 = vadd.f32 %v3481, %v3482
  %v3484 = vrot.slane %v3483, 1
  %v3485 = vadd.f32 %v3483, %v3484
  %v3486 = vrcp.pop 512.0
  %v3487 = vmul.f32 512.0, %v3486
  %v3488 = vsub.f32 1.0, %v3487
  %v3489 = vmul.f32 %v3486, %v3488
  %v3490 = vadd.f32 %v3486, %v3489
  %vm3491 = vweird.f32 %v3486
  %v3492 = vsel %vm3491, %v3486, %v3490
  %v3493 = vmul.f32 %v3485, %v3492
  %v3494 = vsub.f32 %v3258, %v3493
  %v3495 = vsub.f32 %v3260, %v3493
  %v3496 = vsub.f32 %v3263, %v3493
  %v3497 = vsub.f32 %v3265, %v3493
  %v3498 = vsub.f32 %v3268, %v3493
  %v3499 = vsub.f32 %v3270, %v3493
  %v3500 = vsub.f32 %v3273, %v3493
  %v3501 = vsub.f32 %v3275, %v3493
  %v3502 = vsub.f32 %v3278, %v3493
  %v3503 = vsub.f32 %v3280, %v3493
  %v3504 = vsub.f32 %v3283, %v3493
  %v3505 = vsub.f32 %v3285, %v3493
  %v3506 = vsub.f32 %v3288, %v3493
  %v3507 = vsub.f32 %v3290, %v3493
  %v3508 = vsub.f32 %v3293, %v3493
  %v3509 = vsub.f32 %v3295, %v3493
  %v3510 = vsub.f32 %v3298, %v3493
  %v3511 = vsub.f32 %v3300, %v3493
  %v3512 = vsub.f32 %v3303, %v3493
  %v3513 = vsub.f32 %v3305, %v3493
  %v3514 = vsub.f32 %v3308, %v3493
  %v3515 = vsub.f32 %v3310, %v3493
  %v3516 = vsub.f32 %v3313, %v3493
  %v3517 = vsub.f32 %v3315, %v3493
  %v3518 = vsub.f32 %v3318, %v3493
  %v3519 = vsub.f32 %v3320, %v3493
  %v3520 = vsub.f32 %v3323, %v3493
  %v3521 = vsub.f32 %v3325, %v3493
  %v3522 = vsub.f32 %v3328, %v3493
  %v3523 = vsub.f32 %v3330, %v3493
  %v3524 = vsub.f32 %v3333, %v3493
  %v3525 = vsub.f32 %v3335, %v3493
  %v3526 = vsub.f32 %v3338, %v3493
  %v3527 = vsub.f32 %v3340, %v3493
  %v3528 = vsub.f32 %v3343, %v3493
  %v3529 = vsub.f32 %v3345, %v3493
  %v3530 = vsub.f32 %v3348, %v3493
  %v3531 = vsub.f32 %v3350, %v3493
  %v3532 = vsub.f32 %v3353, %v3493
  %v3533 = vsub.f32 %v3355, %v3493
  %v3534 = vsub.f32 %v3358, %v3493
  %v3535 = vsub.f32 %v3360, %v3493
  %v3536 = vsub.f32 %v3363, %v3493
  %v3537 = vsub.f32 %v3365, %v3493
  %v3538 = vsub.f32 %v3368, %v3493
  %v3539 = vsub.f32 %v3370, %v3493
  %v3540 = vsub.f32 %v3373, %v3493
  %v3541 = vsub.f32 %v3375, %v3493
  %v3542 = vsub.f32 %v3378, %v3493
  %v3543 = vsub.f32 %v3380, %v3493
  %v3544 = vsub.f32 %v3383, %v3493
  %v3545 = vsub.f32 %v3385, %v3493
  %v3546 = vsub.f32 %v3388, %v3493
  %v3547 = vsub.f32 %v3390, %v3493
  %v3548 = vsub.f32 %v3393, %v3493
  %v3549 = vsub.f32 %v3395, %v3493
  %v3550 = vsub.f32 %v3398, %v3493
  %v3551 = vsub.f32 %v3400, %v3493
  %v3552 = vsub.f32 %v3403, %v3493
  %v3553 = vsub.f32 %v3405, %v3493
  %v3554 = vsub.f32 %v3408, %v3493
  %v3555 = vsub.f32 %v3410, %v3493
  %v3556 = vsub.f32 %v3413, %v3493
  %v3557 = vsub.f32 %v3415, %v3493
  %v3558 = vmul.f32 %v3494, %v3494
  %v3559 = vmul.f32 %v3495, %v3495
  %v3560 = vmul.f32 %v3496, %v3496
  %v3561 = vmul.f32 %v3497, %v3497
  %v3562 = vmul.f32 %v3498, %v3498
  %v3563 = vmul.f32 %v3499, %v3499
  %v3564 = vmul.f32 %v3500, %v3500
  %v3565 = vmul.f32 %v3501, %v3501
  %v3566 = vmul.f32 %v3502, %v3502
  %v3567 = vmul.f32 %v3503, %v3503
  %v3568 = vmul.f32 %v3504, %v3504
  %v3569 = vmul.f32 %v3505, %v3505
  %v3570 = vmul.f32 %v3506, %v3506
  %v3571 = vmul.f32 %v3507, %v3507
  %v3572 = vmul.f32 %v3508, %v3508
  %v3573 = vmul.f32 %v3509, %v3509
  %v3574 = vmul.f32 %v3510, %v3510
  %v3575 = vmul.f32 %v3511, %v3511
  %v3576 = vmul.f32 %v3512, %v3512
  %v3577 = vmul.f32 %v3513, %v3513
  %v3578 = vmul.f32 %v3514, %v3514
  %v3579 = vmul.f32 %v3515, %v3515
  %v3580 = vmul.f32 %v3516, %v3516
  %v3581 = vmul.f32 %v3517, %v3517
  %v3582 = vmul.f32 %v3518, %v3518
  %v3583 = vmul.f32 %v3519, %v3519
  %v3584 = vmul.f32 %v3520, %v3520
  %v3585 = vmul.f32 %v3521, %v3521
  %v3586 = vmul.f32 %v3522, %v3522
  %v3587 = vmul.f32 %v3523, %v3523
  %v3588 = vmul.f32 %v3524, %v3524
  %v3589 = vmul.f32 %v3525, %v3525
  %v3590 = vmul.f32 %v3526, %v3526
  %v3591 = vmul.f32 %v3527, %v3527
  %v3592 = vmul.f32 %v3528, %v3528
  %v3593 = vmul.f32 %v3529, %v3529
  %v3594 = vmul.f32 %v3530, %v3530
  %v3595 = vmul.f32 %v3531, %v3531
  %v3596 = vmul.f32 %v3532, %v3532
  %v3597 = vmul.f32 %v3533, %v3533
  %v3598 = vmul.f32 %v3534, %v3534
  %v3599 = vmul.f32 %v3535, %v3535
  %v3600 = vmul.f32 %v3536, %v3536
  %v3601 = vmul.f32 %v3537, %v3537
  %v3602 = vmul.f32 %v3538, %v3538
  %v3603 = vmul.f32 %v3539, %v3539
  %v3604 = vmul.f32 %v3540, %v3540
  %v3605 = vmul.f32 %v3541, %v3541
  %v3606 = vmul.f32 %v3542, %v3542
  %v3607 = vmul.f32 %v3543, %v3543
  %v3608 = vmul.f32 %v3544, %v3544
  %v3609 = vmul.f32 %v3545, %v3545
  %v3610 = vmul.f32 %v3546, %v3546
  %v3611 = vmul.f32 %v3547, %v3547
  %v3612 = vmul.f32 %v3548, %v3548
  %v3613 = vmul.f32 %v3549, %v3549
  %v3614 = vmul.f32 %v3550, %v3550
  %v3615 = vmul.f32 %v3551, %v3551
  %v3616 = vmul.f32 %v3552, %v3552
  %v3617 = vmul.f32 %v3553, %v3553
  %v3618 = vmul.f32 %v3554, %v3554
  %v3619 = vmul.f32 %v3555, %v3555
  %v3620 = vmul.f32 %v3556, %v3556
  %v3621 = vmul.f32 %v3557, %v3557
  %v3622 = vadd.f32 %v3558, %v3559
  %v3623 = vadd.f32 %v3622, %v3560
  %v3624 = vadd.f32 %v3623, %v3561
  %v3625 = vadd.f32 %v3624, %v3562
  %v3626 = vadd.f32 %v3625, %v3563
  %v3627 = vadd.f32 %v3626, %v3564
  %v3628 = vadd.f32 %v3627, %v3565
  %v3629 = vadd.f32 %v3628, %v3566
  %v3630 = vadd.f32 %v3629, %v3567
  %v3631 = vadd.f32 %v3630, %v3568
  %v3632 = vadd.f32 %v3631, %v3569
  %v3633 = vadd.f32 %v3632, %v3570
  %v3634 = vadd.f32 %v3633, %v3571
  %v3635 = vadd.f32 %v3634, %v3572
  %v3636 = vadd.f32 %v3635, %v3573
  %v3637 = vadd.f32 %v3636, %v3574
  %v3638 = vadd.f32 %v3637, %v3575
  %v3639 = vadd.f32 %v3638, %v3576
  %v3640 = vadd.f32 %v3639, %v3577
  %v3641 = vadd.f32 %v3640, %v3578
  %v3642 = vadd.f32 %v3641, %v3579
  %v3643 = vadd.f32 %v3642, %v3580
  %v3644 = vadd.f32 %v3643, %v3581
  %v3645 = vadd.f32 %v3644, %v3582
  %v3646 = vadd.f32 %v3645, %v3583
  %v3647 = vadd.f32 %v3646, %v3584
  %v3648 = vadd.f32 %v3647, %v3585
  %v3649 = vadd.f32 %v3648, %v3586
  %v3650 = vadd.f32 %v3649, %v3587
  %v3651 = vadd.f32 %v3650, %v3588
  %v3652 = vadd.f32 %v3651, %v3589
  %v3653 = vadd.f32 %v3652, %v3590
  %v3654 = vadd.f32 %v3653, %v3591
  %v3655 = vadd.f32 %v3654, %v3592
  %v3656 = vadd.f32 %v3655, %v3593
  %v3657 = vadd.f32 %v3656, %v3594
  %v3658 = vadd.f32 %v3657, %v3595
  %v3659 = vadd.f32 %v3658, %v3596
  %v3660 = vadd.f32 %v3659, %v3597
  %v3661 = vadd.f32 %v3660, %v3598
  %v3662 = vadd.f32 %v3661, %v3599
  %v3663 = vadd.f32 %v3662, %v3600
  %v3664 = vadd.f32 %v3663, %v3601
  %v3665 = vadd.f32 %v3664, %v3602
  %v3666 = vadd.f32 %v3665, %v3603
  %v3667 = vadd.f32 %v3666, %v3604
  %v3668 = vadd.f32 %v3667, %v3605
  %v3669 = vadd.f32 %v3668, %v3606
  %v3670 = vadd.f32 %v3669, %v3607
  %v3671 = vadd.f32 %v3670, %v3608
  %v3672 = vadd.f32 %v3671, %v3609
  %v3673 = vadd.f32 %v3672, %v3610
  %v3674 = vadd.f32 %v3673, %v3611
  %v3675 = vadd.f32 %v3674, %v3612
  %v3676 = vadd.f32 %v3675, %v3613
  %v3677 = vadd.f32 %v3676, %v3614
  %v3678 = vadd.f32 %v3677, %v3615
  %v3679 = vadd.f32 %v3678, %v3616
  %v3680 = vadd.f32 %v3679, %v3617
  %v3681 = vadd.f32 %v3680, %v3618
  %v3682 = vadd.f32 %v3681, %v3619
  %v3683 = vadd.f32 %v3682, %v3620
  %v3684 = vadd.f32 %v3683, %v3621
  %v3685 = vrot.slane %v3684, 4
  %v3686 = vadd.f32 %v3684, %v3685
  %v3687 = vrot.slane %v3686, 2
  %v3688 = vadd.f32 %v3686, %v3687
  %v3689 = vrot.slane %v3688, 1
  %v3690 = vadd.f32 %v3688, %v3689
  %v3691 = vmul.f32 %v3690, %v3492
  %v3692 = vadd.f32 %v3691, 1e-05
  %v3693 = vrsqrt.pop %v3692
  %v3694 = vmul.f32 %v3693, %v3692
  %v3695 = vmul.f32 %v3694, %v3693
  %v3696 = vmul.f32 0.5, %v3695
  %v3697 = vsub.f32 1.5, %v3696
  %v3698 = vmul.f32 %v3693, %v3697
  %vm3699 = vweird.f32 %v3692
  %vm3700 = vweird.f32 %v3693
  %vm3701 = vmor %vm3699, %vm3700
  %v3702 = vsel %vm3701, %v3693, %v3698
  %v3703 = vmul.f32 %v3494, %v3702
  %v3704 = vmul.f32 %v3495, %v3702
  %v3705 = vmul.f32 %v3496, %v3702
  %v3706 = vmul.f32 %v3497, %v3702
  %v3707 = vmul.f32 %v3498, %v3702
  %v3708 = vmul.f32 %v3499, %v3702
  %v3709 = vmul.f32 %v3500, %v3702
  %v3710 = vmul.f32 %v3501, %v3702
  %v3711 = vmul.f32 %v3502, %v3702
  %v3712 = vmul.f32 %v3503, %v3702
  %v3713 = vmul.f32 %v3504, %v3702
  %v3714 = vmul.f32 %v3505, %v3702
  %v3715 = vmul.f32 %v3506, %v3702
  %v3716 = vmul.f32 %v3507, %v3702
  %v3717 = vmul.f32 %v3508, %v3702
  %v3718 = vmul.f32 %v3509, %v3702
  %v3719 = vmul.f32 %v3510, %v3702
  %v3720 = vmul.f32 %v3511, %v3702
  %v3721 = vmul.f32 %v3512, %v3702
  %v3722 = vmul.f32 %v3513, %v3702
  %v3723 = vmul.f32 %v3514, %v3702
  %v3724 = vmul.f32 %v3515, %v3702
  %v3725 = vmul.f32 %v3516, %v3702
  %v3726 = vmul.f32 %v3517, %v3702
  %v3727 = vmul.f32 %v3518, %v3702
  %v3728 = vmul.f32 %v3519, %v3702
  %v3729 = vmul.f32 %v3520, %v3702
  %v3730 = vmul.f32 %v3521, %v3702
  %v3731 = vmul.f32 %v3522, %v3702
  %v3732 = vmul.f32 %v3523, %v3702
  %v3733 = vmul.f32 %v3524, %v3702
  %v3734 = vmul.f32 %v3525, %v3702
  %v3735 = vmul.f32 %v3526, %v3702
  %v3736 = vmul.f32 %v3527, %v3702
  %v3737 = vmul.f32 %v3528, %v3702
  %v3738 = vmul.f32 %v3529, %v3702
  %v3739 = vmul.f32 %v3530, %v3702
  %v3740 = vmul.f32 %v3531, %v3702
  %v3741 = vmul.f32 %v3532, %v3702
  %v3742 = vmul.f32 %v3533, %v3702
  %v3743 = vmul.f32 %v3534, %v3702
  %v3744 = vmul.f32 %v3535, %v3702
  %v3745 = vmul.f32 %v3536, %v3702
  %v3746 = vmul.f32 %v3537, %v3702
  %v3747 = vmul.f32 %v3538, %v3702
  %v3748 = vmul.f32 %v3539, %v3702
  %v3749 = vmul.f32 %v3540, %v3702
  %v3750 = vmul.f32 %v3541, %v3702
  %v3751 = vmul.f32 %v3542, %v3702
  %v3752 = vmul.f32 %v3543, %v3702
  %v3753 = vmul.f32 %v3544, %v3702
  %v3754 = vmul.f32 %v3545, %v3702
  %v3755 = vmul.f32 %v3546, %v3702
  %v3756 = vmul.f32 %v3547, %v3702
  %v3757 = vmul.f32 %v3548, %v3702
  %v3758 = vmul.f32 %v3549, %v3702
  %v3759 = vmul.f32 %v3550, %v3702
  %v3760 = vmul.f32 %v3551, %v3702
  %v3761 = vmul.f32 %v3552, %v3702
  %v3762 = vmul.f32 %v3553, %v3702
  %v3763 = vmul.f32 %v3554, %v3702
  %v3764 = vmul.f32 %v3555, %v3702
  %v3765 = vmul.f32 %v3556, %v3702
  %v3766 = vmul.f32 %v3557, %v3702
  %v3767 = vld [vmem:[%s2] sm:$0x1]
  %v3769 = vperm.slane %v3767, 0
  %v3771 = vmul.f32 %v3703, %v3769
  %v3772 = vmul.f32 %v3704, %v3769
  %v3773 = vmul.f32 %v3705, %v3769
  %v3774 = vmul.f32 %v3706, %v3769
  %v3775 = vmul.f32 %v3707, %v3769
  %v3776 = vmul.f32 %v3708, %v3769
  %v3777 = vmul.f32 %v3709, %v3769
  %v3778 = vmul.f32 %v3710, %v3769
  %v3779 = vmul.f32 %v3711, %v3769
  %v3780 = vmul.f32 %v3712, %v3769
  %v3781 = vmul.f32 %v3713, %v3769
  %v3782 = vmul.f32 %v3714, %v3769
  %v3783 = vmul.f32 %v3715, %v3769
  %v3784 = vmul.f32 %v3716, %v3769
  %v3785 = vmul.f32 %v3717, %v3769
  %v3786 = vmul.f32 %v3718, %v3769
  %v3787 = vmul.f32 %v3719, %v3769
  %v3788 = vmul.f32 %v3720, %v3769
  %v3789 = vmul.f32 %v3721, %v3769
  %v3790 = vmul.f32 %v3722, %v3769
  %v3791 = vmul.f32 %v3723, %v3769
  %v3792 = vmul.f32 %v3724, %v3769
  %v3793 = vmul.f32 %v3725, %v3769
  %v3794 = vmul.f32 %v3726, %v3769
  %v3795 = vmul.f32 %v3727, %v3769
  %v3796 = vmul.f32 %v3728, %v3769
  %v3797 = vmul.f32 %v3729, %v3769
  %v3798 = vmul.f32 %v3730, %v3769
  %v3799 = vmul.f32 %v3731, %v3769
  %v3800 = vmul.f32 %v3732, %v3769
  %v3801 = vmul.f32 %v3733, %v3769
  %v3802 = vmul.f32 %v3734, %v3769
  %v3803 = vmul.f32 %v3735, %v3769
  %v3804 = vmul.f32 %v3736, %v3769
  %v3805 = vmul.f32 %v3737, %v3769
  %v3806 = vmul.f32 %v3738, %v3769
  %v3807 = vmul.f32 %v3739, %v3769
  %v3808 = vmul.f32 %v3740, %v3769
  %v3809 = vmul.f32 %v3741, %v3769
  %v3810 = vmul.f32 %v3742, %v3769
  %v3811 = vmul.f32 %v3743, %v3769
  %v3812 = vmul.f32 %v3744, %v3769
  %v3813 = vmul.f32 %v3745, %v3769
  %v3814 = vmul.f32 %v3746, %v3769
  %v3815 = vmul.f32 %v3747, %v3769
  %v3816 = vmul.f32 %v3748, %v3769
  %v3817 = vmul.f32 %v3749, %v3769
  %v3818 = vmul.f32 %v3750, %v3769
  %v3819 = vmul.f32 %v3751, %v3769
  %v3820 = vmul.f32 %v3752, %v3769
  %v3821 = vmul.f32 %v3753, %v3769
  %v3822 = vmul.f32 %v3754, %v3769
  %v3823 = vmul.f32 %v3755, %v3769
  %v3824 = vmul.f32 %v3756, %v3769
  %v3825 = vmul.f32 %v3757, %v3769
  %v3826 = vmul.f32 %v3758, %v3769
  %v3827 = vmul.f32 %v3759, %v3769
  %v3828 = vmul.f32 %v3760, %v3769
  %v3829 = vmul.f32 %v3761, %v3769
  %v3830 = vmul.f32 %v3762, %v3769
  %v3831 = vmul.f32 %v3763, %v3769
  %v3832 = vmul.f32 %v3764, %v3769
  %v3833 = vmul.f32 %v3765, %v3769
  %v3834 = vmul.f32 %v3766, %v3769
  %v3835 = vld [vmem:[%s3] sm:$0x1]
  %v3837 = vperm.slane %v3835, 0
  %v3839 = vadd.f32 %v3771, %v3837
  %v3840 = vadd.f32 %v3772, %v3837
  %v3841 = vadd.f32 %v3773, %v3837
  %v3842 = vadd.f32 %v3774, %v3837
  %v3843 = vadd.f32 %v3775, %v3837
  %v3844 = vadd.f32 %v3776, %v3837
  %v3845 = vadd.f32 %v3777, %v3837
  %v3846 = vadd.f32 %v3778, %v3837
  %v3847 = vadd.f32 %v3779, %v3837
  %v3848 = vadd.f32 %v3780, %v3837
  %v3849 = vadd.f32 %v3781, %v3837
  %v3850 = vadd.f32 %v3782, %v3837
  %v3851 = vadd.f32 %v3783, %v3837
  %v3852 = vadd.f32 %v3784, %v3837
  %v3853 = vadd.f32 %v3785, %v3837
  %v3854 = vadd.f32 %v3786, %v3837
  %v3855 = vadd.f32 %v3787, %v3837
  %v3856 = vadd.f32 %v3788, %v3837
  %v3857 = vadd.f32 %v3789, %v3837
  %v3858 = vadd.f32 %v3790, %v3837
  %v3859 = vadd.f32 %v3791, %v3837
  %v3860 = vadd.f32 %v3792, %v3837
  %v3861 = vadd.f32 %v3793, %v3837
  %v3862 = vadd.f32 %v3794, %v3837
  %v3863 = vadd.f32 %v3795, %v3837
  %v3864 = vadd.f32 %v3796, %v3837
  %v3865 = vadd.f32 %v3797, %v3837
  %v3866 = vadd.f32 %v3798, %v3837
  %v3867 = vadd.f32 %v3799, %v3837
  %v3868 = vadd.f32 %v3800, %v3837
  %v3869 = vadd.f32 %v3801, %v3837
  %v3870 = vadd.f32 %v3802, %v3837
  %v3871 = vadd.f32 %v3803, %v3837
  %v3872 = vadd.f32 %v3804, %v3837
  %v3873 = vadd.f32 %v3805, %v3837
  %v3874 = vadd.f32 %v3806, %v3837
  %v3875 = vadd.f32 %v3807, %v3837
  %v3876 = vadd.f32 %v3808, %v3837
  %v3877 = vadd.f32 %v3809, %v3837
  %v3878 = vadd.f32 %v3810, %v3837
  %v3879 = vadd.f32 %v3811, %v3837
  %v3880 = vadd.f32 %v3812, %v3837
  %v3881 = vadd.f32 %v3813, %v3837
  %v3882 = vadd.f32 %v3814, %v3837
  %v3883 = vadd.f32 %v3815, %v3837
  %v3884 = vadd.f32 %v3816, %v3837
  %v3885 = vadd.f32 %v3817, %v3837
  %v3886 = vadd.f32 %v3818, %v3837
  %v3887 = vadd.f32 %v3819, %v3837
  %v3888 = vadd.f32 %v3820, %v3837
  %v3889 = vadd.f32 %v3821, %v3837
  %v3890 = vadd.f32 %v3822, %v3837
  %v3891 = vadd.f32 %v3823, %v3837
  %v3892 = vadd.f32 %v3824, %v3837
  %v3893 = vadd.f32 %v3825, %v3837
  %v3894 = vadd.f32 %v3826, %v3837
  %v3895 = vadd.f32 %v3827, %v3837
  %v3896 = vadd.f32 %v3828, %v3837
  %v3897 = vadd.f32 %v3829, %v3837
  %v3898 = vadd.f32 %v3830, %v3837
  %v3899 = vadd.f32 %v3831, %v3837
  %v3900 = vadd.f32 %v3832, %v3837
  %v3901 = vadd.f32 %v3833, %v3837
  %v3902 = vadd.f32 %v3834, %v3837
  %v3903 = vmul.f32 %v3839, 0.1
  %v3904 = vmul.f32 %v3840, 0.1
  %v3905 = vmul.f32 %v3841, 0.1
  %v3906 = vmul.f32 %v3842, 0.1
  %v3907 = vmul.f32 %v3843, 0.1
  %v3908 = vmul.f32 %v3844, 0.1
  %v3909 = vmul.f32 %v3845, 0.1
  %v3910 = vmul.f32 %v3846, 0.1
  %v3911 = vmul.f32 %v3847, 0.1
  %v3912 = vmul.f32 %v3848, 0.1
  %v3913 = vmul.f32 %v3849, 0.1
  %v3914 = vmul.f32 %v3850, 0.1
  %v3915 = vmul.f32 %v3851, 0.1
  %v3916 = vmul.f32 %v3852, 0.1
  %v3917 = vmul.f32 %v3853, 0.1
  %v3918 = vmul.f32 %v3854, 0.1
  %v3919 = vmul.f32 %v3855, 0.1
  %v3920 = vmul.f32 %v3856, 0.1
  %v3921 = vmul.f32 %v3857, 0.1
  %v3922 = vmul.f32 %v3858, 0.1
  %v3923 = vmul.f32 %v3859, 0.1
  %v3924 = vmul.f32 %v3860, 0.1
  %v3925 = vmul.f32 %v3861, 0.1
  %v3926 = vmul.f32 %v3862, 0.1
  %v3927 = vmul.f32 %v3863, 0.1
  %v3928 = vmul.f32 %v3864, 0.1
  %v3929 = vmul.f32 %v3865, 0.1
  %v3930 = vmul.f32 %v3866, 0.1
  %v3931 = vmul.f32 %v3867, 0.1
  %v3932 = vmul.f32 %v3868, 0.1
  %v3933 = vmul.f32 %v3869, 0.1
  %v3934 = vmul.f32 %v3870, 0.1
  %v3935 = vmul.f32 %v3871, 0.1
  %v3936 = vmul.f32 %v3872, 0.1
  %v3937 = vmul.f32 %v3873, 0.1
  %v3938 = vmul.f32 %v3874, 0.1
  %v3939 = vmul.f32 %v3875, 0.1
  %v3940 = vmul.f32 %v3876, 0.1
  %v3941 = vmul.f32 %v3877, 0.1
  %v3942 = vmul.f32 %v3878, 0.1
  %v3943 = vmul.f32 %v3879, 0.1
  %v3944 = vmul.f32 %v3880, 0.1
  %v3945 = vmul.f32 %v3881, 0.1
  %v3946 = vmul.f32 %v3882, 0.1
  %v3947 = vmul.f32 %v3883, 0.1
  %v3948 = vmul.f32 %v3884, 0.1
  %v3949 = vmul.f32 %v3885, 0.1
  %v3950 = vmul.f32 %v3886, 0.1
  %v3951 = vmul.f32 %v3887, 0.1
  %v3952 = vmul.f32 %v3888, 0.1
  %v3953 = vmul.f32 %v3889, 0.1
  %v3954 = vmul.f32 %v3890, 0.1
  %v3955 = vmul.f32 %v3891, 0.1
  %v3956 = vmul.f32 %v3892, 0.1
  %v3957 = vmul.f32 %v3893, 0.1
  %v3958 = vmul.f32 %v3894, 0.1
  %v3959 = vmul.f32 %v3895, 0.1
  %v3960 = vmul.f32 %v3896, 0.1
  %v3961 = vmul.f32 %v3897, 0.1
  %v3962 = vmul.f32 %v3898, 0.1
  %v3963 = vmul.f32 %v3899, 0.1
  %v3964 = vmul.f32 %v3900, 0.1
  %v3965 = vmul.f32 %v3901, 0.1
  %v3966 = vmul.f32 %v3902, 0.1
  %v3967 = vmax.f32 %v3839, %v3903
  %v3968 = vmax.f32 %v3840, %v3904
  %v3969 = vmax.f32 %v3841, %v3905
  %v3970 = vmax.f32 %v3842, %v3906
  %v3971 = vmax.f32 %v3843, %v3907
  %v3972 = vmax.f32 %v3844, %v3908
  %v3973 = vmax.f32 %v3845, %v3909
  %v3974 = vmax.f32 %v3846, %v3910
  %v3975 = vmax.f32 %v3847, %v3911
  %v3976 = vmax.f32 %v3848, %v3912
  %v3977 = vmax.f32 %v3849, %v3913
  %v3978 = vmax.f32 %v3850, %v3914
  %v3979 = vmax.f32 %v3851, %v3915
  %v3980 = vmax.f32 %v3852, %v3916
  %v3981 = vmax.f32 %v3853, %v3917
  %v3982 = vmax.f32 %v3854, %v3918
  %v3983 = vmax.f32 %v3855, %v3919
  %v3984 = vmax.f32 %v3856, %v3920
  %v3985 = vmax.f32 %v3857, %v3921
  %v3986 = vmax.f32 %v3858, %v3922
  %v3987 = vmax.f32 %v3859, %v3923
  %v3988 = vmax.f32 %v3860, %v3924
  %v3989 = vmax.f32 %v3861, %v3925
  %v3990 = vmax.f32 %v3862, %v3926
  %v3991 = vmax.f32 %v3863, %v3927
  %v3992 = vmax.f32 %v3864, %v3928
  %v3993 = vmax.f32 %v3865, %v3929
  %v3994 = vmax.f32 %v3866, %v3930
  %v3995 = vmax.f32 %v3867, %v3931
  %v3996 = vmax.f32 %v3868, %v3932
  %v3997 = vmax.f32 %v3869, %v3933
  %v3998 = vmax.f32 %v3870, %v3934
  %v3999 = vmax.f32 %v3871, %v3935
  %v4000 = vmax.f32 %v3872, %v3936
  %v4001 = vmax.f32 %v3873, %v3937
  %v4002 = vmax.f32 %v3874, %v3938
  %v4003 = vmax.f32 %v3875, %v3939
  %v4004 = vmax.f32 %v3876, %v3940
  %v4005 = vmax.f32 %v3877, %v3941
  %v4006 = vmax.f32 %v3878, %v3942
  %v4007 = vmax.f32 %v3879, %v3943
  %v4008 = vmax.f32 %v3880, %v3944
  %v4009 = vmax.f32 %v3881, %v3945
  %v4010 = vmax.f32 %v3882, %v3946
  %v4011 = vmax.f32 %v3883, %v3947
  %v4012 = vmax.f32 %v3884, %v3948
  %v4013 = vmax.f32 %v3885, %v3949
  %v4014 = vmax.f32 %v3886, %v3950
  %v4015 = vmax.f32 %v3887, %v3951
  %v4016 = vmax.f32 %v3888, %v3952
  %v4017 = vmax.f32 %v3889, %v3953
  %v4018 = vmax.f32 %v3890, %v3954
  %v4019 = vmax.f32 %v3891, %v3955
  %v4020 = vmax.f32 %v3892, %v3956
  %v4021 = vmax.f32 %v3893, %v3957
  %v4022 = vmax.f32 %v3894, %v3958
  %v4023 = vmax.f32 %v3895, %v3959
  %v4024 = vmax.f32 %v3896, %v3960
  %v4025 = vmax.f32 %v3897, %v3961
  %v4026 = vmax.f32 %v3898, %v3962
  %v4027 = vmax.f32 %v3899, %v3963
  %v4028 = vmax.f32 %v3900, %v3964
  %v4029 = vmax.f32 %v3901, %v3965
  %v4030 = vmax.f32 %v3902, %v3966
  %4031 = vst [vmem:[%s4] sm:$0xff] %v3967
  %4032 = vst [vmem:[%s4 + $0x8] sm:$0xff] %v3968
  %4033 = vst [vmem:[%s4 + $0x10] sm:$0xff] %v3969
  %4034 = vst [vmem:[%s4 + $0x18] sm:$0xff] %v3970
  %4035 = vst [vmem:[%s4 + $0x20] sm:$0xff] %v3971
  %4036 = vst [vmem:[%s4 + $0x28] sm:$0xff] %v3972
  %4037 = vst [vmem:[%s4 + $0x30] sm:$0xff] %v3973
  %4038 = vst [vmem:[%s4 + $0x38] sm:$0xff] %v3974
  %4039 = vst [vmem:[%s4 + $0x40] sm:$0xff] %v3975
  %4040 = vst [vmem:[%s4 + $0x48] sm:$0xff] %v3976
  %4041 = vst [vmem:[%s4 + $0x50] sm:$0xff] %v3977
  %4042 = vst [vmem:[%s4 + $0x58] sm:$0xff] %v3978
  %4043 = vst [vmem:[%s4 + $0x60] sm:$0xff] %v3979
  %4044 = vst [vmem:[%s4 + $0x68] sm:$0xff] %v3980
  %4045 = vst [vmem:[%s4 + $0x70] sm:$0xff] %v3981
  %4046 = vst [vmem:[%s4 + $0x78] sm:$0xff] %v3982
  %4047 = vst [vmem:[%s4 + $0x80] sm:$0xff] %v3983
  %4048 = vst [vmem:[%s4 + $0x88] sm:$0xff] %v3984
  %4049 = vst [vmem:[%s4 + $0x90] sm:$0xff] %v3985
  %4050 = vst [vmem:[%s4 + $0x98] sm:$0xff] %v3986
  %4051 = vst [vmem:[%s4 + $0xa0] sm:$0xff] %v3987
  %4052 = vst [vmem:[%s4 + $0xa8] sm:$0xff] %v3988
  %4053 = vst [vmem:[%s4 + $0xb0] sm:$0xff] %v3989
  %4054 = vst [vmem:[%s4 + $0xb8] sm:$0xff] %v3990
  %4055 = vst [vmem:[%s4 + $0xc0] sm:$0xff] %v3991
  %4056 = vst [vmem:[%s4 + $0xc8] sm:$0xff] %v3992
  %4057 = vst [vmem:[%s4 + $0xd0] sm:$0xff] %v3993
  %4058 = vst [vmem:[%s4 + $0xd8] sm:$0xff] %v3994
  %4059 = vst [vmem:[%s4 + $0xe0] sm:$0xff] %v3995
  %4060 = vst [vmem:[%s4 + $0xe8] sm:$0xff] %v3996
  %4061 = vst [vmem:[%s4 + $0xf0] sm:$0xff] %v3997
  %4062 = vst [vmem:[%s4 + $0xf8] sm:$0xff] %v3998
  %4063 = vst [vmem:[%s4 + $0x100] sm:$0xff] %v3999
  %4064 = vst [vmem:[%s4 + $0x108] sm:$0xff] %v4000
  %4065 = vst [vmem:[%s4 + $0x110] sm:$0xff] %v4001
  %4066 = vst [vmem:[%s4 + $0x118] sm:$0xff] %v4002
  %4067 = vst [vmem:[%s4 + $0x120] sm:$0xff] %v4003
  %4068 = vst [vmem:[%s4 + $0x128] sm:$0xff] %v4004
  %4069 = vst [vmem:[%s4 + $0x130] sm:$0xff] %v4005
  %4070 = vst [vmem:[%s4 + $0x138] sm:$0xff] %v4006
  %4071 = vst [vmem:[%s4 + $0x140] sm:$0xff] %v4007
  %4072 = vst [vmem:[%s4 + $0x148] sm:$0xff] %v4008
  %4073 = vst [vmem:[%s4 + $0x150] sm:$0xff] %v4009
  %4074 = vst [vmem:[%s4 + $0x158] sm:$0xff] %v4010
  %4075 = vst [vmem:[%s4 + $0x160] sm:$0xff] %v4011
  %4076 = vst [vmem:[%s4 + $0x168] sm:$0xff] %v4012
  %4077 = vst [vmem:[%s4 + $0x170] sm:$0xff] %v4013
  %4078 = vst [vmem:[%s4 + $0x178] sm:$0xff] %v4014
  %4079 = vst [vmem:[%s4 + $0x180] sm:$0xff] %v4015
  %4080 = vst [vmem:[%s4 + $0x188] sm:$0xff] %v4016
  %4081 = vst [vmem:[%s4 + $0x190] sm:$0xff] %v4017
  %4082 = vst [vmem:[%s4 + $0x198] sm:$0xff] %v4018
  %4083 = vst [vmem:[%s4 + $0x1a0] sm:$0xff] %v4019
  %4084 = vst [vmem:[%s4 + $0x1a8] sm:$0xff] %v4020
  %4085 = vst [vmem:[%s4 + $0x1b0] sm:$0xff] %v4021
  %4086 = vst [vmem:[%s4 + $0x1b8] sm:$0xff] %v4022
  %4087 = vst [vmem:[%s4 + $0x1c0] sm:$0xff] %v4023
  %4088 = vst [vmem:[%s4 + $0x1c8] sm:$0xff] %v4024
  %4089 = vst [vmem:[%s4 + $0x1d0] sm:$0xff] %v4025
  %4090 = vst [vmem:[%s4 + $0x1d8] sm:$0xff] %v4026
  %4091 = vst [vmem:[%s4 + $0x1e0] sm:$0xff] %v4027
  %4092 = vst [vmem:[%s4 + $0x1e8] sm:$0xff] %v4028
  %4093 = vst [vmem:[%s4 + $0x1f0] sm:$0xff] %v4029
  %4094 = vst [vmem:[%s4 + $0x1f8] sm:$0xff] %v4030
  // Predicated region
  $region18: #{discriminator_forward.4} parent=0 // pred_check
    _
  $region19: #{discriminator_forward.4} parent=0 // pred_check_branch
    %4096 = sbr.rel (0) target = $region21
  $region20: #{discriminator_forward.4} parent=0 // pred_region
    _
  $region21: #{discriminator_forward.4} parent=0 // pred_fallthru
    _
  // Predicated region
  $region22: #{discriminator_forward.4} parent=0 // pred_check
    _
  $region23: #{discriminator_forward.4} parent=0 // pred_check_branch
    %4098 = sbr.rel (0) target = $region25
  $region24: #{discriminator_forward.4} parent=0 // pred_region
    _
  $region25: #{discriminator_forward.4} parent=0 // pred_fallthru
    _

// kernel: discriminator_forward.5
$region0: #{discriminator_forward.5}
  #allocation0 [shape = 'u32[]', space=smem, size = 0x4, offset = 0x4, fixed_abs, tag = 'smem constant byte address 0x4 - core index']
  #allocation1 [shape = 'u32[72,128]{1,0:T(1,128)}', space=vmem, size = 0x9000, scoped, tag = 'internal scratch']
  %s0 = inlined_call_operand.vmem [shape: bf16[128,2048], index: 0, kind: input, shape index: {}]
  %s1 = inlined_call_operand.vmem [shape: bf16[2048,256], index: 1, kind: input, shape index: {}]
  %s2 = inlined_call_operand.vmem [shape: f32[1,256], index: 2, kind: input, shape index: {}]
  %s3 = inlined_call_operand.vmem [shape: f32[1,256], index: 3, kind: input, shape index: {}]
  %s4 = inlined_call_operand.hbm [shape: f32[128,256], index: 4, kind: output, shape index: {}]
  %s5 = sld [smem:[#allocation0]]
  $region26: #{discriminator_forward.5} parent=0
    _
  %s7 = ssub.s32 1, %s5
  %s8 = scalar_select 0, %s7, %s5
  $region1: #{discriminator_forward.5} parent=0
    #allocation2 [shape = 'u8[131072]{0}', space=vmem, size = 0x20000, scoped, tag = 'output window, operand 0, single buffered']
    #allocation3 [shape = 's32[1]{0}', space=sflag, size = 0x4, scoped, tag = 'scoped memory for discriminator_forward.5']
    %9 = vsyncpa [#allocation3], 0
    // Predicated region
    $region2: #{discriminator_forward.5} parent=1 // pred_check
      _
    $region3: #{discriminator_forward.5} parent=1 // pred_check_branch
      %11 = sbr.rel (0) target = $region5
    $region4: #{discriminator_forward.5} parent=1 // pred_region
      _
    $region5: #{discriminator_forward.5} parent=1 // pred_fallthru
      _
    // Predicated region
    $region6: #{discriminator_forward.5} parent=1 // pred_check
      _
    $region7: #{discriminator_forward.5} parent=1 // pred_check_branch
      %13 = sbr.rel (0) target = $region9
    $region8: #{discriminator_forward.5} parent=1 // pred_region
      _
    $region9: #{discriminator_forward.5} parent=1 // pred_fallthru
      _
    // Predicated region
    $region10: #{discriminator_forward.5} parent=1 // pred_check
      _
    $region11: #{discriminator_forward.5} parent=1 // pred_check_branch
      %15 = sbr.rel (0) target = $region13
    $region12: #{discriminator_forward.5} parent=1 // pred_region
      _
    $region13: #{discriminator_forward.5} parent=1 // pred_fallthru
      _
    // Predicated region
    $region14: #{discriminator_forward.5} parent=1 // pred_check
      _
    $region15: #{discriminator_forward.5} parent=1 // pred_check_branch
      %17 = sbr.rel (0) target = $region17
    $region16: #{discriminator_forward.5} parent=1 // pred_region
      _
    $region17: #{discriminator_forward.5} parent=1 // pred_fallthru
      _
    %v18 = vld [vmem:[%s0] sm:$0xff]
    %v19 = vld [vmem:[%s0 + $0x8] sm:$0xff]
    %v20 = vld [vmem:[%s0 + $0x10] sm:$0xff]
    %v21 = vld [vmem:[%s0 + $0x18] sm:$0xff]
    %v22 = vld [vmem:[%s0 + $0x20] sm:$0xff]
    %v23 = vld [vmem:[%s0 + $0x28] sm:$0xff]
    %v24 = vld [vmem:[%s0 + $0x30] sm:$0xff]
    %v25 = vld [vmem:[%s0 + $0x38] sm:$0xff]
    %v26 = vld [vmem:[%s0 + $0x40] sm:$0xff]
    %v27 = vld [vmem:[%s0 + $0x48] sm:$0xff]
    %v28 = vld [vmem:[%s0 + $0x50] sm:$0xff]
    %v29 = vld [vmem:[%s0 + $0x58] sm:$0xff]
    %v30 = vld [vmem:[%s0 + $0x60] sm:$0xff]
    %v31 = vld [vmem:[%s0 + $0x68] sm:$0xff]
    %v32 = vld [vmem:[%s0 + $0x70] sm:$0xff]
    %v33 = vld [vmem:[%s0 + $0x78] sm:$0xff]
    %v34 = vld [vmem:[%s0 + $0x80] sm:$0xff]
    %v35 = vld [vmem:[%s0 + $0x88] sm:$0xff]
    %v36 = vld [vmem:[%s0 + $0x90] sm:$0xff]
    %v37 = vld [vmem:[%s0 + $0x98] sm:$0xff]
    %v38 = vld [vmem:[%s0 + $0xa0] sm:$0xff]
    %v39 = vld [vmem:[%s0 + $0xa8] sm:$0xff]
    %v40 = vld [vmem:[%s0 + $0xb0] sm:$0xff]
    %v41 = vld [vmem:[%s0 + $0xb8] sm:$0xff]
    %v42 = vld [vmem:[%s0 + $0xc0] sm:$0xff]
    %v43 = vld [vmem:[%s0 + $0xc8] sm:$0xff]
    %v44 = vld [vmem:[%s0 + $0xd0] sm:$0xff]
    %v45 = vld [vmem:[%s0 + $0xd8] sm:$0xff]
    %v46 = vld [vmem:[%s0 + $0xe0] sm:$0xff]
    %v47 = vld [vmem:[%s0 + $0xe8] sm:$0xff]
    %v48 = vld [vmem:[%s0 + $0xf0] sm:$0xff]
    %v49 = vld [vmem:[%s0 + $0xf8] sm:$0xff]
    %v50 = vld [vmem:[%s0 + $0x100] sm:$0xff]
    %v51 = vld [vmem:[%s0 + $0x108] sm:$0xff]
    %v52 = vld [vmem:[%s0 + $0x110] sm:$0xff]
    %v53 = vld [vmem:[%s0 + $0x118] sm:$0xff]
    %v54 = vld [vmem:[%s0 + $0x120] sm:$0xff]
    %v55 = vld [vmem:[%s0 + $0x128] sm:$0xff]
    %v56 = vld [vmem:[%s0 + $0x130] sm:$0xff]
    %v57 = vld [vmem:[%s0 + $0x138] sm:$0xff]
    %v58 = vld [vmem:[%s0 + $0x140] sm:$0xff]
    %v59 = vld [vmem:[%s0 + $0x148] sm:$0xff]
    %v60 = vld [vmem:[%s0 + $0x150] sm:$0xff]
    %v61 = vld [vmem:[%s0 + $0x158] sm:$0xff]
    %v62 = vld [vmem:[%s0 + $0x160] sm:$0xff]
    %v63 = vld [vmem:[%s0 + $0x168] sm:$0xff]
    %v64 = vld [vmem:[%s0 + $0x170] sm:$0xff]
    %v65 = vld [vmem:[%s0 + $0x178] sm:$0xff]
    %v66 = vld [vmem:[%s0 + $0x180] sm:$0xff]
    %v67 = vld [vmem:[%s0 + $0x188] sm:$0xff]
    %v68 = vld [vmem:[%s0 + $0x190] sm:$0xff]
    %v69 = vld [vmem:[%s0 + $0x198] sm:$0xff]
    %v70 = vld [vmem:[%s0 + $0x1a0] sm:$0xff]
    %v71 = vld [vmem:[%s0 + $0x1a8] sm:$0xff]
    %v72 = vld [vmem:[%s0 + $0x1b0] sm:$0xff]
    %v73 = vld [vmem:[%s0 + $0x1b8] sm:$0xff]
    %v74 = vld [vmem:[%s0 + $0x1c0] sm:$0xff]
    %v75 = vld [vmem:[%s0 + $0x1c8] sm:$0xff]
    %v76 = vld [vmem:[%s0 + $0x1d0] sm:$0xff]
    %v77 = vld [vmem:[%s0 + $0x1d8] sm:$0xff]
    %v78 = vld [vmem:[%s0 + $0x1e0] sm:$0xff]
    %v79 = vld [vmem:[%s0 + $0x1e8] sm:$0xff]
    %v80 = vld [vmem:[%s0 + $0x1f0] sm:$0xff]
    %v81 = vld [vmem:[%s0 + $0x1f8] sm:$0xff]
    %v82 = vld [vmem:[%s0 + $0x200] sm:$0xff]
    %v83 = vld [vmem:[%s0 + $0x208] sm:$0xff]
    %v84 = vld [vmem:[%s0 + $0x210] sm:$0xff]
    %v85 = vld [vmem:[%s0 + $0x218] sm:$0xff]
    %v86 = vld [vmem:[%s0 + $0x220] sm:$0xff]
    %v87 = vld [vmem:[%s0 + $0x228] sm:$0xff]
    %v88 = vld [vmem:[%s0 + $0x230] sm:$0xff]
    %v89 = vld [vmem:[%s0 + $0x238] sm:$0xff]
    %v90 = vld [vmem:[%s0 + $0x240] sm:$0xff]
    %v91 = vld [vmem:[%s0 + $0x248] sm:$0xff]
    %v92 = vld [vmem:[%s0 + $0x250] sm:$0xff]
    %v93 = vld [vmem:[%s0 + $0x258] sm:$0xff]
    %v94 = vld [vmem:[%s0 + $0x260] sm:$0xff]
    %v95 = vld [vmem:[%s0 + $0x268] sm:$0xff]
    %v96 = vld [vmem:[%s0 + $0x270] sm:$0xff]
    %v97 = vld [vmem:[%s0 + $0x278] sm:$0xff]
    %v98 = vld [vmem:[%s0 + $0x280] sm:$0xff]
    %v99 = vld [vmem:[%s0 + $0x288] sm:$0xff]
    %v100 = vld [vmem:[%s0 + $0x290] sm:$0xff]
    %v101 = vld [vmem:[%s0 + $0x298] sm:$0xff]
    %v102 = vld [vmem:[%s0 + $0x2a0] sm:$0xff]
    %v103 = vld [vmem:[%s0 + $0x2a8] sm:$0xff]
    %v104 = vld [vmem:[%s0 + $0x2b0] sm:$0xff]
    %v105 = vld [vmem:[%s0 + $0x2b8] sm:$0xff]
    %v106 = vld [vmem:[%s0 + $0x2c0] sm:$0xff]
    %v107 = vld [vmem:[%s0 + $0x2c8] sm:$0xff]
    %v108 = vld [vmem:[%s0 + $0x2d0] sm:$0xff]
    %v109 = vld [vmem:[%s0 + $0x2d8] sm:$0xff]
    %v110 = vld [vmem:[%s0 + $0x2e0] sm:$0xff]
    %v111 = vld [vmem:[%s0 + $0x2e8] sm:$0xff]
    %v112 = vld [vmem:[%s0 + $0x2f0] sm:$0xff]
    %v113 = vld [vmem:[%s0 + $0x2f8] sm:$0xff]
    %v114 = vld [vmem:[%s0 + $0x300] sm:$0xff]
    %v115 = vld [vmem:[%s0 + $0x308] sm:$0xff]
    %v116 = vld [vmem:[%s0 + $0x310] sm:$0xff]
    %v117 = vld [vmem:[%s0 + $0x318] sm:$0xff]
    %v118 = vld [vmem:[%s0 + $0x320] sm:$0xff]
    %v119 = vld [vmem:[%s0 + $0x328] sm:$0xff]
    %v120 = vld [vmem:[%s0 + $0x330] sm:$0xff]
    %v121 = vld [vmem:[%s0 + $0x338] sm:$0xff]
    %v122 = vld [vmem:[%s0 + $0x340] sm:$0xff]
    %v123 = vld [vmem:[%s0 + $0x348] sm:$0xff]
    %v124 = vld [vmem:[%s0 + $0x350] sm:$0xff]
    %v125 = vld [vmem:[%s0 + $0x358] sm:$0xff]
    %v126 = vld [vmem:[%s0 + $0x360] sm:$0xff]
    %v127 = vld [vmem:[%s0 + $0x368] sm:$0xff]
    %v128 = vld [vmem:[%s0 + $0x370] sm:$0xff]
    %v129 = vld [vmem:[%s0 + $0x378] sm:$0xff]
    %v130 = vld [vmem:[%s0 + $0x380] sm:$0xff]
    %v131 = vld [vmem:[%s0 + $0x388] sm:$0xff]
    %v132 = vld [vmem:[%s0 + $0x390] sm:$0xff]
    %v133 = vld [vmem:[%s0 + $0x398] sm:$0xff]
    %v134 = vld [vmem:[%s0 + $0x3a0] sm:$0xff]
    %v135 = vld [vmem:[%s0 + $0x3a8] sm:$0xff]
    %v136 = vld [vmem:[%s0 + $0x3b0] sm:$0xff]
    %v137 = vld [vmem:[%s0 + $0x3b8] sm:$0xff]
    %v138 = vld [vmem:[%s0 + $0x3c0] sm:$0xff]
    %v139 = vld [vmem:[%s0 + $0x3c8] sm:$0xff]
    %v140 = vld [vmem:[%s0 + $0x3d0] sm:$0xff]
    %v141 = vld [vmem:[%s0 + $0x3d8] sm:$0xff]
    %v142 = vld [vmem:[%s0 + $0x3e0] sm:$0xff]
    %v143 = vld [vmem:[%s0 + $0x3e8] sm:$0xff]
    %v144 = vld [vmem:[%s0 + $0x3f0] sm:$0xff]
    %v145 = vld [vmem:[%s0 + $0x3f8] sm:$0xff]
    %v146 = vld [vmem:[%s1] sm:$0xff]
    %v147 = vld [vmem:[%s1 + $0x8] sm:$0xff]
    %v148 = vld [vmem:[%s1 + $0x10] sm:$0xff]
    %v149 = vld [vmem:[%s1 + $0x18] sm:$0xff]
    %v150 = vld [vmem:[%s1 + $0x20] sm:$0xff]
    %v151 = vld [vmem:[%s1 + $0x28] sm:$0xff]
    %v152 = vld [vmem:[%s1 + $0x30] sm:$0xff]
    %v153 = vld [vmem:[%s1 + $0x38] sm:$0xff]
    %v154 = vld [vmem:[%s1 + $0x40] sm:$0xff]
    %v155 = vld [vmem:[%s1 + $0x48] sm:$0xff]
    %v156 = vld [vmem:[%s1 + $0x50] sm:$0xff]
    %v157 = vld [vmem:[%s1 + $0x58] sm:$0xff]
    %v158 = vld [vmem:[%s1 + $0x60] sm:$0xff]
    %v159 = vld [vmem:[%s1 + $0x68] sm:$0xff]
    %v160 = vld [vmem:[%s1 + $0x70] sm:$0xff]
    %v161 = vld [vmem:[%s1 + $0x78] sm:$0xff]
    %v162 = vld [vmem:[%s1 + $0x80] sm:$0xff]
    %v163 = vld [vmem:[%s1 + $0x88] sm:$0xff]
    %v164 = vld [vmem:[%s1 + $0x90] sm:$0xff]
    %v165 = vld [vmem:[%s1 + $0x98] sm:$0xff]
    %v166 = vld [vmem:[%s1 + $0xa0] sm:$0xff]
    %v167 = vld [vmem:[%s1 + $0xa8] sm:$0xff]
    %v168 = vld [vmem:[%s1 + $0xb0] sm:$0xff]
    %v169 = vld [vmem:[%s1 + $0xb8] sm:$0xff]
    %v170 = vld [vmem:[%s1 + $0xc0] sm:$0xff]
    %v171 = vld [vmem:[%s1 + $0xc8] sm:$0xff]
    %v172 = vld [vmem:[%s1 + $0xd0] sm:$0xff]
    %v173 = vld [vmem:[%s1 + $0xd8] sm:$0xff]
    %v174 = vld [vmem:[%s1 + $0xe0] sm:$0xff]
    %v175 = vld [vmem:[%s1 + $0xe8] sm:$0xff]
    %v176 = vld [vmem:[%s1 + $0xf0] sm:$0xff]
    %v177 = vld [vmem:[%s1 + $0xf8] sm:$0xff]
    %v178 = vld [vmem:[%s1 + $0x100] sm:$0xff]
    %v179 = vld [vmem:[%s1 + $0x108] sm:$0xff]
    %v180 = vld [vmem:[%s1 + $0x110] sm:$0xff]
    %v181 = vld [vmem:[%s1 + $0x118] sm:$0xff]
    %v182 = vld [vmem:[%s1 + $0x120] sm:$0xff]
    %v183 = vld [vmem:[%s1 + $0x128] sm:$0xff]
    %v184 = vld [vmem:[%s1 + $0x130] sm:$0xff]
    %v185 = vld [vmem:[%s1 + $0x138] sm:$0xff]
    %v186 = vld [vmem:[%s1 + $0x140] sm:$0xff]
    %v187 = vld [vmem:[%s1 + $0x148] sm:$0xff]
    %v188 = vld [vmem:[%s1 + $0x150] sm:$0xff]
    %v189 = vld [vmem:[%s1 + $0x158] sm:$0xff]
    %v190 = vld [vmem:[%s1 + $0x160] sm:$0xff]
    %v191 = vld [vmem:[%s1 + $0x168] sm:$0xff]
    %v192 = vld [vmem:[%s1 + $0x170] sm:$0xff]
    %v193 = vld [vmem:[%s1 + $0x178] sm:$0xff]
    %v194 = vld [vmem:[%s1 + $0x180] sm:$0xff]
    %v195 = vld [vmem:[%s1 + $0x188] sm:$0xff]
    %v196 = vld [vmem:[%s1 + $0x190] sm:$0xff]
    %v197 = vld [vmem:[%s1 + $0x198] sm:$0xff]
    %v198 = vld [vmem:[%s1 + $0x1a0] sm:$0xff]
    %v199 = vld [vmem:[%s1 + $0x1a8] sm:$0xff]
    %v200 = vld [vmem:[%s1 + $0x1b0] sm:$0xff]
    %v201 = vld [vmem:[%s1 + $0x1b8] sm:$0xff]
    %v202 = vld [vmem:[%s1 + $0x1c0] sm:$0xff]
    %v203 = vld [vmem:[%s1 + $0x1c8] sm:$0xff]
    %v204 = vld [vmem:[%s1 + $0x1d0] sm:$0xff]
    %v205 = vld [vmem:[%s1 + $0x1d8] sm:$0xff]
    %v206 = vld [vmem:[%s1 + $0x1e0] sm:$0xff]
    %v207 = vld [vmem:[%s1 + $0x1e8] sm:$0xff]
    %v208 = vld [vmem:[%s1 + $0x1f0] sm:$0xff]
    %v209 = vld [vmem:[%s1 + $0x1f8] sm:$0xff]
    %v210 = vld [vmem:[%s1 + $0x200] sm:$0xff]
    %v211 = vld [vmem:[%s1 + $0x208] sm:$0xff]
    %v212 = vld [vmem:[%s1 + $0x210] sm:$0xff]
    %v213 = vld [vmem:[%s1 + $0x218] sm:$0xff]
    %v214 = vld [vmem:[%s1 + $0x220] sm:$0xff]
    %v215 = vld [vmem:[%s1 + $0x228] sm:$0xff]
    %v216 = vld [vmem:[%s1 + $0x230] sm:$0xff]
    %v217 = vld [vmem:[%s1 + $0x238] sm:$0xff]
    %v218 = vld [vmem:[%s1 + $0x240] sm:$0xff]
    %v219 = vld [vmem:[%s1 + $0x248] sm:$0xff]
    %v220 = vld [vmem:[%s1 + $0x250] sm:$0xff]
    %v221 = vld [vmem:[%s1 + $0x258] sm:$0xff]
    %v222 = vld [vmem:[%s1 + $0x260] sm:$0xff]
    %v223 = vld [vmem:[%s1 + $0x268] sm:$0xff]
    %v224 = vld [vmem:[%s1 + $0x270] sm:$0xff]
    %v225 = vld [vmem:[%s1 + $0x278] sm:$0xff]
    %v226 = vld [vmem:[%s1 + $0x280] sm:$0xff]
    %v227 = vld [vmem:[%s1 + $0x288] sm:$0xff]
    %v228 = vld [vmem:[%s1 + $0x290] sm:$0xff]
    %v229 = vld [vmem:[%s1 + $0x298] sm:$0xff]
    %v230 = vld [vmem:[%s1 + $0x2a0] sm:$0xff]
    %v231 = vld [vmem:[%s1 + $0x2a8] sm:$0xff]
    %v232 = vld [vmem:[%s1 + $0x2b0] sm:$0xff]
    %v233 = vld [vmem:[%s1 + $0x2b8] sm:$0xff]
    %v234 = vld [vmem:[%s1 + $0x2c0] sm:$0xff]
    %v235 = vld [vmem:[%s1 + $0x2c8] sm:$0xff]
    %v236 = vld [vmem:[%s1 + $0x2d0] sm:$0xff]
    %v237 = vld [vmem:[%s1 + $0x2d8] sm:$0xff]
    %v238 = vld [vmem:[%s1 + $0x2e0] sm:$0xff]
    %v239 = vld [vmem:[%s1 + $0x2e8] sm:$0xff]
    %v240 = vld [vmem:[%s1 + $0x2f0] sm:$0xff]
    %v241 = vld [vmem:[%s1 + $0x2f8] sm:$0xff]
    %v242 = vld [vmem:[%s1 + $0x300] sm:$0xff]
    %v243 = vld [vmem:[%s1 + $0x308] sm:$0xff]
    %v244 = vld [vmem:[%s1 + $0x310] sm:$0xff]
    %v245 = vld [vmem:[%s1 + $0x318] sm:$0xff]
    %v246 = vld [vmem:[%s1 + $0x320] sm:$0xff]
    %v247 = vld [vmem:[%s1 + $0x328] sm:$0xff]
    %v248 = vld [vmem:[%s1 + $0x330] sm:$0xff]
    %v249 = vld [vmem:[%s1 + $0x338] sm:$0xff]
    %v250 = vld [vmem:[%s1 + $0x340] sm:$0xff]
    %v251 = vld [vmem:[%s1 + $0x348] sm:$0xff]
    %v252 = vld [vmem:[%s1 + $0x350] sm:$0xff]
    %v253 = vld [vmem:[%s1 + $0x358] sm:$0xff]
    %v254 = vld [vmem:[%s1 + $0x360] sm:$0xff]
    %v255 = vld [vmem:[%s1 + $0x368] sm:$0xff]
    %v256 = vld [vmem:[%s1 + $0x370] sm:$0xff]
    %v257 = vld [vmem:[%s1 + $0x378] sm:$0xff]
    %v258 = vld [vmem:[%s1 + $0x380] sm:$0xff]
    %v259 = vld [vmem:[%s1 + $0x388] sm:$0xff]
    %v260 = vld [vmem:[%s1 + $0x390] sm:$0xff]
    %v261 = vld [vmem:[%s1 + $0x398] sm:$0xff]
    %v262 = vld [vmem:[%s1 + $0x3a0] sm:$0xff]
    %v263 = vld [vmem:[%s1 + $0x3a8] sm:$0xff]
    %v264 = vld [vmem:[%s1 + $0x3b0] sm:$0xff]
    %v265 = vld [vmem:[%s1 + $0x3b8] sm:$0xff]
    %v266 = vld [vmem:[%s1 + $0x3c0] sm:$0xff]
    %v267 = vld [vmem:[%s1 + $0x3c8] sm:$0xff]
    %v268 = vld [vmem:[%s1 + $0x3d0] sm:$0xff]
    %v269 = vld [vmem:[%s1 + $0x3d8] sm:$0xff]
    %v270 = vld [vmem:[%s1 + $0x3e0] sm:$0xff]
    %v271 = vld [vmem:[%s1 + $0x3e8] sm:$0xff]
    %v272 = vld [vmem:[%s1 + $0x3f0] sm:$0xff]
    %v273 = vld [vmem:[%s1 + $0x3f8] sm:$0xff]
    %v274 = vld [vmem:[%s1 + $0x400] sm:$0xff]
    %v275 = vld [vmem:[%s1 + $0x408] sm:$0xff]
    %v276 = vld [vmem:[%s1 + $0x410] sm:$0xff]
    %v277 = vld [vmem:[%s1 + $0x418] sm:$0xff]
    %v278 = vld [vmem:[%s1 + $0x420] sm:$0xff]
    %v279 = vld [vmem:[%s1 + $0x428] sm:$0xff]
    %v280 = vld [vmem:[%s1 + $0x430] sm:$0xff]
    %v281 = vld [vmem:[%s1 + $0x438] sm:$0xff]
    %v282 = vld [vmem:[%s1 + $0x440] sm:$0xff]
    %v283 = vld [vmem:[%s1 + $0x448] sm:$0xff]
    %v284 = vld [vmem:[%s1 + $0x450] sm:$0xff]
    %v285 = vld [vmem:[%s1 + $0x458] sm:$0xff]
    %v286 = vld [vmem:[%s1 + $0x460] sm:$0xff]
    %v287 = vld [vmem:[%s1 + $0x468] sm:$0xff]
    %v288 = vld [vmem:[%s1 + $0x470] sm:$0xff]
    %v289 = vld [vmem:[%s1 + $0x478] sm:$0xff]
    %v290 = vld [vmem:[%s1 + $0x480] sm:$0xff]
    %v291 = vld [vmem:[%s1 + $0x488] sm:$0xff]
    %v292 = vld [vmem:[%s1 + $0x490] sm:$0xff]
    %v293 = vld [vmem:[%s1 + $0x498] sm:$0xff]
    %v294 = vld [vmem:[%s1 + $0x4a0] sm:$0xff]
    %v295 = vld [vmem:[%s1 + $0x4a8] sm:$0xff]
    %v296 = vld [vmem:[%s1 + $0x4b0] sm:$0xff]
    %v297 = vld [vmem:[%s1 + $0x4b8] sm:$0xff]
    %v298 = vld [vmem:[%s1 + $0x4c0] sm:$0xff]
    %v299 = vld [vmem:[%s1 + $0x4c8] sm:$0xff]
    %v300 = vld [vmem:[%s1 + $0x4d0] sm:$0xff]
    %v301 = vld [vmem:[%s1 + $0x4d8] sm:$0xff]
    %v302 = vld [vmem:[%s1 + $0x4e0] sm:$0xff]
    %v303 = vld [vmem:[%s1 + $0x4e8] sm:$0xff]
    %v304 = vld [vmem:[%s1 + $0x4f0] sm:$0xff]
    %v305 = vld [vmem:[%s1 + $0x4f8] sm:$0xff]
    %v306 = vld [vmem:[%s1 + $0x500] sm:$0xff]
    %v307 = vld [vmem:[%s1 + $0x508] sm:$0xff]
    %v308 = vld [vmem:[%s1 + $0x510] sm:$0xff]
    %v309 = vld [vmem:[%s1 + $0x518] sm:$0xff]
    %v310 = vld [vmem:[%s1 + $0x520] sm:$0xff]
    %v311 = vld [vmem:[%s1 + $0x528] sm:$0xff]
    %v312 = vld [vmem:[%s1 + $0x530] sm:$0xff]
    %v313 = vld [vmem:[%s1 + $0x538] sm:$0xff]
    %v314 = vld [vmem:[%s1 + $0x540] sm:$0xff]
    %v315 = vld [vmem:[%s1 + $0x548] sm:$0xff]
    %v316 = vld [vmem:[%s1 + $0x550] sm:$0xff]
    %v317 = vld [vmem:[%s1 + $0x558] sm:$0xff]
    %v318 = vld [vmem:[%s1 + $0x560] sm:$0xff]
    %v319 = vld [vmem:[%s1 + $0x568] sm:$0xff]
    %v320 = vld [vmem:[%s1 + $0x570] sm:$0xff]
    %v321 = vld [vmem:[%s1 + $0x578] sm:$0xff]
    %v322 = vld [vmem:[%s1 + $0x580] sm:$0xff]
    %v323 = vld [vmem:[%s1 + $0x588] sm:$0xff]
    %v324 = vld [vmem:[%s1 + $0x590] sm:$0xff]
    %v325 = vld [vmem:[%s1 + $0x598] sm:$0xff]
    %v326 = vld [vmem:[%s1 + $0x5a0] sm:$0xff]
    %v327 = vld [vmem:[%s1 + $0x5a8] sm:$0xff]
    %v328 = vld [vmem:[%s1 + $0x5b0] sm:$0xff]
    %v329 = vld [vmem:[%s1 + $0x5b8] sm:$0xff]
    %v330 = vld [vmem:[%s1 + $0x5c0] sm:$0xff]
    %v331 = vld [vmem:[%s1 + $0x5c8] sm:$0xff]
    %v332 = vld [vmem:[%s1 + $0x5d0] sm:$0xff]
    %v333 = vld [vmem:[%s1 + $0x5d8] sm:$0xff]
    %v334 = vld [vmem:[%s1 + $0x5e0] sm:$0xff]
    %v335 = vld [vmem:[%s1 + $0x5e8] sm:$0xff]
    %v336 = vld [vmem:[%s1 + $0x5f0] sm:$0xff]
    %v337 = vld [vmem:[%s1 + $0x5f8] sm:$0xff]
    %v338 = vld [vmem:[%s1 + $0x600] sm:$0xff]
    %v339 = vld [vmem:[%s1 + $0x608] sm:$0xff]
    %v340 = vld [vmem:[%s1 + $0x610] sm:$0xff]
    %v341 = vld [vmem:[%s1 + $0x618] sm:$0xff]
    %v342 = vld [vmem:[%s1 + $0x620] sm:$0xff]
    %v343 = vld [vmem:[%s1 + $0x628] sm:$0xff]
    %v344 = vld [vmem:[%s1 + $0x630] sm:$0xff]
    %v345 = vld [vmem:[%s1 + $0x638] sm:$0xff]
    %v346 = vld [vmem:[%s1 + $0x640] sm:$0xff]
    %v347 = vld [vmem:[%s1 + $0x648] sm:$0xff]
    %v348 = vld [vmem:[%s1 + $0x650] sm:$0xff]
    %v349 = vld [vmem:[%s1 + $0x658] sm:$0xff]
    %v350 = vld [vmem:[%s1 + $0x660] sm:$0xff]
    %v351 = vld [vmem:[%s1 + $0x668] sm:$0xff]
    %v352 = vld [vmem:[%s1 + $0x670] sm:$0xff]
    %v353 = vld [vmem:[%s1 + $0x678] sm:$0xff]
    %v354 = vld [vmem:[%s1 + $0x680] sm:$0xff]
    %v355 = vld [vmem:[%s1 + $0x688] sm:$0xff]
    %v356 = vld [vmem:[%s1 + $0x690] sm:$0xff]
    %v357 = vld [vmem:[%s1 + $0x698] sm:$0xff]
    %v358 = vld [vmem:[%s1 + $0x6a0] sm:$0xff]
    %v359 = vld [vmem:[%s1 + $0x6a8] sm:$0xff]
    %v360 = vld [vmem:[%s1 + $0x6b0] sm:$0xff]
    %v361 = vld [vmem:[%s1 + $0x6b8] sm:$0xff]
    %v362 = vld [vmem:[%s1 + $0x6c0] sm:$0xff]
    %v363 = vld [vmem:[%s1 + $0x6c8] sm:$0xff]
    %v364 = vld [vmem:[%s1 + $0x6d0] sm:$0xff]
    %v365 = vld [vmem:[%s1 + $0x6d8] sm:$0xff]
    %v366 = vld [vmem:[%s1 + $0x6e0] sm:$0xff]
    %v367 = vld [vmem:[%s1 + $0x6e8] sm:$0xff]
    %v368 = vld [vmem:[%s1 + $0x6f0] sm:$0xff]
    %v369 = vld [vmem:[%s1 + $0x6f8] sm:$0xff]
    %v370 = vld [vmem:[%s1 + $0x700] sm:$0xff]
    %v371 = vld [vmem:[%s1 + $0x708] sm:$0xff]
    %v372 = vld [vmem:[%s1 + $0x710] sm:$0xff]
    %v373 = vld [vmem:[%s1 + $0x718] sm:$0xff]
    %v374 = vld [vmem:[%s1 + $0x720] sm:$0xff]
    %v375 = vld [vmem:[%s1 + $0x728] sm:$0xff]
    %v376 = vld [vmem:[%s1 + $0x730] sm:$0xff]
    %v377 = vld [vmem:[%s1 + $0x738] sm:$0xff]
    %v378 = vld [vmem:[%s1 + $0x740] sm:$0xff]
    %v379 = vld [vmem:[%s1 + $0x748] sm:$0xff]
    %v380 = vld [vmem:[%s1 + $0x750] sm:$0xff]
    %v381 = vld [vmem:[%s1 + $0x758] sm:$0xff]
    %v382 = vld [vmem:[%s1 + $0x760] sm:$0xff]
    %v383 = vld [vmem:[%s1 + $0x768] sm:$0xff]
    %v384 = vld [vmem:[%s1 + $0x770] sm:$0xff]
    %v385 = vld [vmem:[%s1 + $0x778] sm:$0xff]
    %v386 = vld [vmem:[%s1 + $0x780] sm:$0xff]
    %v387 = vld [vmem:[%s1 + $0x788] sm:$0xff]
    %v388 = vld [vmem:[%s1 + $0x790] sm:$0xff]
    %v389 = vld [vmem:[%s1 + $0x798] sm:$0xff]
    %v390 = vld [vmem:[%s1 + $0x7a0] sm:$0xff]
    %v391 = vld [vmem:[%s1 + $0x7a8] sm:$0xff]
    %v392 = vld [vmem:[%s1 + $0x7b0] sm:$0xff]
    %v393 = vld [vmem:[%s1 + $0x7b8] sm:$0xff]
    %v394 = vld [vmem:[%s1 + $0x7c0] sm:$0xff]
    %v395 = vld [vmem:[%s1 + $0x7c8] sm:$0xff]
    %v396 = vld [vmem:[%s1 + $0x7d0] sm:$0xff]
    %v397 = vld [vmem:[%s1 + $0x7d8] sm:$0xff]
    %v398 = vld [vmem:[%s1 + $0x7e0] sm:$0xff]
    %v399 = vld [vmem:[%s1 + $0x7e8] sm:$0xff]
    %v400 = vld [vmem:[%s1 + $0x7f0] sm:$0xff]
    %v401 = vld [vmem:[%s1 + $0x7f8] sm:$0xff]
    %v530 = vunpack.c.l.b16 %v18
    %v531 = vunpack.c.h.b16 %v18
    %v532 = vunpack.c.l.b16 %v19
    %v533 = vunpack.c.h.b16 %v19
    %v534 = vunpack.c.l.b16 %v20
    %v535 = vunpack.c.h.b16 %v20
    %v536 = vunpack.c.l.b16 %v21
    %v537 = vunpack.c.h.b16 %v21
    %v538 = vunpack.c.l.b16 %v22
    %v539 = vunpack.c.h.b16 %v22
    %v540 = vunpack.c.l.b16 %v23
    %v541 = vunpack.c.h.b16 %v23
    %v542 = vunpack.c.l.b16 %v24
    %v543 = vunpack.c.h.b16 %v24
    %v544 = vunpack.c.l.b16 %v25
    %v545 = vunpack.c.h.b16 %v25
    %v546 = vunpack.c.l.b16 %v26
    %v547 = vunpack.c.h.b16 %v26
    %v548 = vunpack.c.l.b16 %v27
    %v549 = vunpack.c.h.b16 %v27
    %v550 = vunpack.c.l.b16 %v28
    %v551 = vunpack.c.h.b16 %v28
    %v552 = vunpack.c.l.b16 %v29
    %v553 = vunpack.c.h.b16 %v29
    %v554 = vunpack.c.l.b16 %v30
    %v555 = vunpack.c.h.b16 %v30
    %v556 = vunpack.c.l.b16 %v31
    %v557 = vunpack.c.h.b16 %v31
    %v558 = vunpack.c.l.b16 %v32
    %v559 = vunpack.c.h.b16 %v32
    %v560 = vunpack.c.l.b16 %v33
    %v561 = vunpack.c.h.b16 %v33
    %v562 = vunpack.c.l.b16 %v34
    %v563 = vunpack.c.h.b16 %v34
    %v564 = vunpack.c.l.b16 %v35
    %v565 = vunpack.c.h.b16 %v35
    %v566 = vunpack.c.l.b16 %v36
    %v567 = vunpack.c.h.b16 %v36
    %v568 = vunpack.c.l.b16 %v37
    %v569 = vunpack.c.h.b16 %v37
    %v570 = vunpack.c.l.b16 %v38
    %v571 = vunpack.c.h.b16 %v38
    %v572 = vunpack.c.l.b16 %v39
    %v573 = vunpack.c.h.b16 %v39
    %v574 = vunpack.c.l.b16 %v40
    %v575 = vunpack.c.h.b16 %v40
    %v576 = vunpack.c.l.b16 %v41
    %v577 = vunpack.c.h.b16 %v41
    %v578 = vunpack.c.l.b16 %v42
    %v579 = vunpack.c.h.b16 %v42
    %v580 = vunpack.c.l.b16 %v43
    %v581 = vunpack.c.h.b16 %v43
    %v582 = vunpack.c.l.b16 %v44
    %v583 = vunpack.c.h.b16 %v44
    %v584 = vunpack.c.l.b16 %v45
    %v585 = vunpack.c.h.b16 %v45
    %v586 = vunpack.c.l.b16 %v46
    %v587 = vunpack.c.h.b16 %v46
    %v588 = vunpack.c.l.b16 %v47
    %v589 = vunpack.c.h.b16 %v47
    %v590 = vunpack.c.l.b16 %v48
    %v591 = vunpack.c.h.b16 %v48
    %v592 = vunpack.c.l.b16 %v49
    %v593 = vunpack.c.h.b16 %v49
    %v594 = vunpack.c.l.b16 %v50
    %v595 = vunpack.c.h.b16 %v50
    %v596 = vunpack.c.l.b16 %v51
    %v597 = vunpack.c.h.b16 %v51
    %v598 = vunpack.c.l.b16 %v52
    %v599 = vunpack.c.h.b16 %v52
    %v600 = vunpack.c.l.b16 %v53
    %v601 = vunpack.c.h.b16 %v53
    %v602 = vunpack.c.l.b16 %v54
    %v603 = vunpack.c.h.b16 %v54
    %v604 = vunpack.c.l.b16 %v55
    %v605 = vunpack.c.h.b16 %v55
    %v606 = vunpack.c.l.b16 %v56
    %v607 = vunpack.c.h.b16 %v56
    %v608 = vunpack.c.l.b16 %v57
    %v609 = vunpack.c.h.b16 %v57
    %v610 = vunpack.c.l.b16 %v58
    %v611 = vunpack.c.h.b16 %v58
    %v612 = vunpack.c.l.b16 %v59
    %v613 = vunpack.c.h.b16 %v59
    %v614 = vunpack.c.l.b16 %v60
    %v615 = vunpack.c.h.b16 %v60
    %v616 = vunpack.c.l.b16 %v61
    %v617 = vunpack.c.h.b16 %v61
    %v618 = vunpack.c.l.b16 %v62
    %v619 = vunpack.c.h.b16 %v62
    %v620 = vunpack.c.l.b16 %v63
    %v621 = vunpack.c.h.b16 %v63
    %v622 = vunpack.c.l.b16 %v64
    %v623 = vunpack.c.h.b16 %v64
    %v624 = vunpack.c.l.b16 %v65
    %v625 = vunpack.c.h.b16 %v65
    %v626 = vunpack.c.l.b16 %v66
    %v627 = vunpack.c.h.b16 %v66
    %v628 = vunpack.c.l.b16 %v67
    %v629 = vunpack.c.h.b16 %v67
    %v630 = vunpack.c.l.b16 %v68
    %v631 = vunpack.c.h.b16 %v68
    %v632 = vunpack.c.l.b16 %v69
    %v633 = vunpack.c.h.b16 %v69
    %v634 = vunpack.c.l.b16 %v70
    %v635 = vunpack.c.h.b16 %v70
    %v636 = vunpack.c.l.b16 %v71
    %v637 = vunpack.c.h.b16 %v71
    %v638 = vunpack.c.l.b16 %v72
    %v639 = vunpack.c.h.b16 %v72
    %v640 = vunpack.c.l.b16 %v73
    %v641 = vunpack.c.h.b16 %v73
    %v642 = vunpack.c.l.b16 %v74
    %v643 = vunpack.c.h.b16 %v74
    %v644 = vunpack.c.l.b16 %v75
    %v645 = vunpack.c.h.b16 %v75
    %v646 = vunpack.c.l.b16 %v76
    %v647 = vunpack.c.h.b16 %v76
    %v648 = vunpack.c.l.b16 %v77
    %v649 = vunpack.c.h.b16 %v77
    %v650 = vunpack.c.l.b16 %v78
    %v651 = vunpack.c.h.b16 %v78
    %v652 = vunpack.c.l.b16 %v79
    %v653 = vunpack.c.h.b16 %v79
    %v654 = vunpack.c.l.b16 %v80
    %v655 = vunpack.c.h.b16 %v80
    %v656 = vunpack.c.l.b16 %v81
    %v657 = vunpack.c.h.b16 %v81
    %v658 = vunpack.c.l.b16 %v82
    %v659 = vunpack.c.h.b16 %v82
    %v660 = vunpack.c.l.b16 %v83
    %v661 = vunpack.c.h.b16 %v83
    %v662 = vunpack.c.l.b16 %v84
    %v663 = vunpack.c.h.b16 %v84
    %v664 = vunpack.c.l.b16 %v85
    %v665 = vunpack.c.h.b16 %v85
    %v666 = vunpack.c.l.b16 %v86
    %v667 = vunpack.c.h.b16 %v86
    %v668 = vunpack.c.l.b16 %v87
    %v669 = vunpack.c.h.b16 %v87
    %v670 = vunpack.c.l.b16 %v88
    %v671 = vunpack.c.h.b16 %v88
    %v672 = vunpack.c.l.b16 %v89
    %v673 = vunpack.c.h.b16 %v89
    %v674 = vunpack.c.l.b16 %v90
    %v675 = vunpack.c.h.b16 %v90
    %v676 = vunpack.c.l.b16 %v91
    %v677 = vunpack.c.h.b16 %v91
    %v678 = vunpack.c.l.b16 %v92
    %v679 = vunpack.c.h.b16 %v92
    %v680 = vunpack.c.l.b16 %v93
    %v681 = vunpack.c.h.b16 %v93
    %v682 = vunpack.c.l.b16 %v94
    %v683 = vunpack.c.h.b16 %v94
    %v684 = vunpack.c.l.b16 %v95
    %v685 = vunpack.c.h.b16 %v95
    %v686 = vunpack.c.l.b16 %v96
    %v687 = vunpack.c.h.b16 %v96
    %v688 = vunpack.c.l.b16 %v97
    %v689 = vunpack.c.h.b16 %v97
    %v690 = vunpack.c.l.b16 %v98
    %v691 = vunpack.c.h.b16 %v98
    %v692 = vunpack.c.l.b16 %v99
    %v693 = vunpack.c.h.b16 %v99
    %v694 = vunpack.c.l.b16 %v100
    %v695 = vunpack.c.h.b16 %v100
    %v696 = vunpack.c.l.b16 %v101
    %v697 = vunpack.c.h.b16 %v101
    %v698 = vunpack.c.l.b16 %v102
    %v699 = vunpack.c.h.b16 %v102
    %v700 = vunpack.c.l.b16 %v103
    %v701 = vunpack.c.h.b16 %v103
    %v702 = vunpack.c.l.b16 %v104
    %v703 = vunpack.c.h.b16 %v104
    %v704 = vunpack.c.l.b16 %v105
    %v705 = vunpack.c.h.b16 %v105
    %v706 = vunpack.c.l.b16 %v106
    %v707 = vunpack.c.h.b16 %v106
    %v708 = vunpack.c.l.b16 %v107
    %v709 = vunpack.c.h.b16 %v107
    %v710 = vunpack.c.l.b16 %v108
    %v711 = vunpack.c.h.b16 %v108
    %v712 = vunpack.c.l.b16 %v109
    %v713 = vunpack.c.h.b16 %v109
    %v714 = vunpack.c.l.b16 %v110
    %v715 = vunpack.c.h.b16 %v110
    %v716 = vunpack.c.l.b16 %v111
    %v717 = vunpack.c.h.b16 %v111
    %v718 = vunpack.c.l.b16 %v112
    %v719 = vunpack.c.h.b16 %v112
    %v720 = vunpack.c.l.b16 %v113
    %v721 = vunpack.c.h.b16 %v113
    %v722 = vunpack.c.l.b16 %v114
    %v723 = vunpack.c.h.b16 %v114
    %v724 = vunpack.c.l.b16 %v115
    %v725 = vunpack.c.h.b16 %v115
    %v726 = vunpack.c.l.b16 %v116
    %v727 = vunpack.c.h.b16 %v116
    %v728 = vunpack.c.l.b16 %v117
    %v729 = vunpack.c.h.b16 %v117
    %v730 = vunpack.c.l.b16 %v118
    %v731 = vunpack.c.h.b16 %v118
    %v732 = vunpack.c.l.b16 %v119
    %v733 = vunpack.c.h.b16 %v119
    %v734 = vunpack.c.l.b16 %v120
    %v735 = vunpack.c.h.b16 %v120
    %v736 = vunpack.c.l.b16 %v121
    %v737 = vunpack.c.h.b16 %v121
    %v738 = vunpack.c.l.b16 %v122
    %v739 = vunpack.c.h.b16 %v122
    %v740 = vunpack.c.l.b16 %v123
    %v741 = vunpack.c.h.b16 %v123
    %v742 = vunpack.c.l.b16 %v124
    %v743 = vunpack.c.h.b16 %v124
    %v744 = vunpack.c.l.b16 %v125
    %v745 = vunpack.c.h.b16 %v125
    %v746 = vunpack.c.l.b16 %v126
    %v747 = vunpack.c.h.b16 %v126
    %v748 = vunpack.c.l.b16 %v127
    %v749 = vunpack.c.h.b16 %v127
    %v750 = vunpack.c.l.b16 %v128
    %v751 = vunpack.c.h.b16 %v128
    %v752 = vunpack.c.l.b16 %v129
    %v753 = vunpack.c.h.b16 %v129
    %v754 = vunpack.c.l.b16 %v130
    %v755 = vunpack.c.h.b16 %v130
    %v756 = vunpack.c.l.b16 %v131
    %v757 = vunpack.c.h.b16 %v131
    %v758 = vunpack.c.l.b16 %v132
    %v759 = vunpack.c.h.b16 %v132
    %v760 = vunpack.c.l.b16 %v133
    %v761 = vunpack.c.h.b16 %v133
    %v762 = vunpack.c.l.b16 %v134
    %v763 = vunpack.c.h.b16 %v134
    %v764 = vunpack.c.l.b16 %v135
    %v765 = vunpack.c.h.b16 %v135
    %v766 = vunpack.c.l.b16 %v136
    %v767 = vunpack.c.h.b16 %v136
    %v768 = vunpack.c.l.b16 %v137
    %v769 = vunpack.c.h.b16 %v137
    %v770 = vunpack.c.l.b16 %v138
    %v771 = vunpack.c.h.b16 %v138
    %v772 = vunpack.c.l.b16 %v139
    %v773 = vunpack.c.h.b16 %v139
    %v774 = vunpack.c.l.b16 %v140
    %v775 = vunpack.c.h.b16 %v140
    %v776 = vunpack.c.l.b16 %v141
    %v777 = vunpack.c.h.b16 %v141
    %v778 = vunpack.c.l.b16 %v142
    %v779 = vunpack.c.h.b16 %v142
    %v780 = vunpack.c.l.b16 %v143
    %v781 = vunpack.c.h.b16 %v143
    %v782 = vunpack.c.l.b16 %v144
    %v783 = vunpack.c.h.b16 %v144
    %v784 = vunpack.c.l.b16 %v145
    %v785 = vunpack.c.h.b16 %v145
    %v786 = vpack.c.b16 %v546, %v530
    %v787 = vpack.c.b16 %v547, %v531
    %v788 = vpack.c.b16 %v548, %v532
    %v789 = vpack.c.b16 %v549, %v533
    %v790 = vpack.c.b16 %v550, %v534
    %v791 = vpack.c.b16 %v551, %v535
    %v792 = vpack.c.b16 %v552, %v536
    %v793 = vpack.c.b16 %v553, %v537
    %v794 = vpack.c.b16 %v554, %v538
    %v795 = vpack.c.b16 %v555, %v539
    %v796 = vpack.c.b16 %v556, %v540
    %v797 = vpack.c.b16 %v557, %v541
    %v798 = vpack.c.b16 %v558, %v542
    %v799 = vpack.c.b16 %v559, %v543
    %v800 = vpack.c.b16 %v560, %v544
    %v801 = vpack.c.b16 %v561, %v545
    %v802 = vpack.c.b16 %v578, %v562
    %v803 = vpack.c.b16 %v579, %v563
    %v804 = vpack.c.b16 %v580, %v564
    %v805 = vpack.c.b16 %v581, %v565
    %v806 = vpack.c.b16 %v582, %v566
    %v807 = vpack.c.b16 %v583, %v567
    %v808 = vpack.c.b16 %v584, %v568
    %v809 = vpack.c.b16 %v585, %v569
    %v810 = vpack.c.b16 %v586, %v570
    %v811 = vpack.c.b16 %v587, %v571
    %v812 = vpack.c.b16 %v588, %v572
    %v813 = vpack.c.b16 %v589, %v573
    %v814 = vpack.c.b16 %v590, %v574
    %v815 = vpack.c.b16 %v591, %v575
    %v816 = vpack.c.b16 %v592, %v576
    %v817 = vpack.c.b16 %v593, %v577
    %v818 = vpack.c.b16 %v610, %v594
    %v819 = vpack.c.b16 %v611, %v595
    %v820 = vpack.c.b16 %v612, %v596
    %v821 = vpack.c.b16 %v613, %v597
    %v822 = vpack.c.b16 %v614, %v598
    %v823 = vpack.c.b16 %v615, %v599
    %v824 = vpack.c.b16 %v616, %v600
    %v825 = vpack.c.b16 %v617, %v601
    %v826 = vpack.c.b16 %v618, %v602
    %v827 = vpack.c.b16 %v619, %v603
    %v828 = vpack.c.b16 %v620, %v604
    %v829 = vpack.c.b16 %v621, %v605
    %v830 = vpack.c.b16 %v622, %v606
    %v831 = vpack.c.b16 %v623, %v607
    %v832 = vpack.c.b16 %v624, %v608
    %v833 = vpack.c.b16 %v625, %v609
    %v834 = vpack.c.b16 %v642, %v626
    %v835 = vpack.c.b16 %v643, %v627
    %v836 = vpack.c.b16 %v644, %v628
    %v837 = vpack.c.b16 %v645, %v629
    %v838 = vpack.c.b16 %v646, %v630
    %v839 = vpack.c.b16 %v647, %v631
    %v840 = vpack.c.b16 %v648, %v632
    %v841 = vpack.c.b16 %v649, %v633
    %v842 = vpack.c.b16 %v650, %v634
    %v843 = vpack.c.b16 %v651, %v635
    %v844 = vpack.c.b16 %v652, %v636
    %v845 = vpack.c.b16 %v653, %v637
    %v846 = vpack.c.b16 %v654, %v638
    %v847 = vpack.c.b16 %v655, %v639
    %v848 = vpack.c.b16 %v656, %v640
    %v849 = vpack.c.b16 %v657, %v641
    %v850 = vpack.c.b16 %v674, %v658
    %v851 = vpack.c.b16 %v675, %v659
    %v852 = vpack.c.b16 %v676, %v660
    %v853 = vpack.c.b16 %v677, %v661
    %v854 = vpack.c.b16 %v678, %v662
    %v855 = vpack.c.b16 %v679, %v663
    %v856 = vpack.c.b16 %v680, %v664
    %v857 = vpack.c.b16 %v681, %v665
    %v858 = vpack.c.b16 %v682, %v666
    %v859 = vpack.c.b16 %v683, %v667
    %v860 = vpack.c.b16 %v684, %v668
    %v861 = vpack.c.b16 %v685, %v669
    %v862 = vpack.c.b16 %v686, %v670
    %v863 = vpack.c.b16 %v687, %v671
    %v864 = vpack.c.b16 %v688, %v672
    %v865 = vpack.c.b16 %v689, %v673
    %v866 = vpack.c.b16 %v706, %v690
    %v867 = vpack.c.b16 %v707, %v691
    %v868 = vpack.c.b16 %v708, %v692
    %v869 = vpack.c.b16 %v709, %v693
    %v870 = vpack.c.b16 %v710, %v694
    %v871 = vpack.c.b16 %v711, %v695
    %v872 = vpack.c.b16 %v712, %v696
    %v873 = vpack.c.b16 %v713, %v697
    %v874 = vpack.c.b16 %v714, %v698
    %v875 = vpack.c.b16 %v715, %v699
    %v876 = vpack.c.b16 %v716, %v700
    %v877 = vpack.c.b16 %v717, %v701
    %v878 = vpack.c.b16 %v718, %v702
    %v879 = vpack.c.b16 %v719, %v703
    %v880 = vpack.c.b16 %v720, %v704
    %v881 = vpack.c.b16 %v721, %v705
    %v882 = vpack.c.b16 %v738, %v722
    %v883 = vpack.c.b16 %v739, %v723
    %v884 = vpack.c.b16 %v740, %v724
    %v885 = vpack.c.b16 %v741, %v725
    %v886 = vpack.c.b16 %v742, %v726
    %v887 = vpack.c.b16 %v743, %v727
    %v888 = vpack.c.b16 %v744, %v728
    %v889 = vpack.c.b16 %v745, %v729
    %v890 = vpack.c.b16 %v746, %v730
    %v891 = vpack.c.b16 %v747, %v731
    %v892 = vpack.c.b16 %v748, %v732
    %v893 = vpack.c.b16 %v749, %v733
    %v894 = vpack.c.b16 %v750, %v734
    %v895 = vpack.c.b16 %v751, %v735
    %v896 = vpack.c.b16 %v752, %v736
    %v897 = vpack.c.b16 %v753, %v737
    %v898 = vpack.c.b16 %v770, %v754
    %v899 = vpack.c.b16 %v771, %v755
    %v900 = vpack.c.b16 %v772, %v756
    %v901 = vpack.c.b16 %v773, %v757
    %v902 = vpack.c.b16 %v774, %v758
    %v903 = vpack.c.b16 %v775, %v759
    %v904 = vpack.c.b16 %v776, %v760
    %v905 = vpack.c.b16 %v777, %v761
    %v906 = vpack.c.b16 %v778, %v762
    %v907 = vpack.c.b16 %v779, %v763
    %v908 = vpack.c.b16 %v780, %v764
    %v909 = vpack.c.b16 %v781, %v765
    %v910 = vpack.c.b16 %v782, %v766
    %v911 = vpack.c.b16 %v783, %v767
    %v912 = vpack.c.b16 %v784, %v768
    %v913 = vpack.c.b16 %v785, %v769
    %v1298 = vunpack.c.l.b16 %v146
    %v1299 = vunpack.c.h.b16 %v146
    %v1300 = vunpack.c.l.b16 %v147
    %v1301 = vunpack.c.h.b16 %v147
    %v1302 = vunpack.c.l.b16 %v148
    %v1303 = vunpack.c.h.b16 %v148
    %v1304 = vunpack.c.l.b16 %v149
    %v1305 = vunpack.c.h.b16 %v149
    %v1306 = vunpack.c.l.b16 %v150
    %v1307 = vunpack.c.h.b16 %v150
    %v1308 = vunpack.c.l.b16 %v151
    %v1309 = vunpack.c.h.b16 %v151
    %v1310 = vunpack.c.l.b16 %v152
    %v1311 = vunpack.c.h.b16 %v152
    %v1312 = vunpack.c.l.b16 %v153
    %v1313 = vunpack.c.h.b16 %v153
    %v1314 = vunpack.c.l.b16 %v154
    %v1315 = vunpack.c.h.b16 %v154
    %v1316 = vunpack.c.l.b16 %v155
    %v1317 = vunpack.c.h.b16 %v155
    %v1318 = vunpack.c.l.b16 %v156
    %v1319 = vunpack.c.h.b16 %v156
    %v1320 = vunpack.c.l.b16 %v157
    %v1321 = vunpack.c.h.b16 %v157
    %v1322 = vunpack.c.l.b16 %v158
    %v1323 = vunpack.c.h.b16 %v158
    %v1324 = vunpack.c.l.b16 %v159
    %v1325 = vunpack.c.h.b16 %v159
    %v1326 = vunpack.c.l.b16 %v160
    %v1327 = vunpack.c.h.b16 %v160
    %v1328 = vunpack.c.l.b16 %v161
    %v1329 = vunpack.c.h.b16 %v161
    %v1330 = vunpack.c.l.b16 %v162
    %v1331 = vunpack.c.h.b16 %v162
    %v1332 = vunpack.c.l.b16 %v163
    %v1333 = vunpack.c.h.b16 %v163
    %v1334 = vunpack.c.l.b16 %v164
    %v1335 = vunpack.c.h.b16 %v164
    %v1336 = vunpack.c.l.b16 %v165
    %v1337 = vunpack.c.h.b16 %v165
    %v1338 = vunpack.c.l.b16 %v166
    %v1339 = vunpack.c.h.b16 %v166
    %v1340 = vunpack.c.l.b16 %v167
    %v1341 = vunpack.c.h.b16 %v167
    %v1342 = vunpack.c.l.b16 %v168
    %v1343 = vunpack.c.h.b16 %v168
    %v1344 = vunpack.c.l.b16 %v169
    %v1345 = vunpack.c.h.b16 %v169
    %v1346 = vunpack.c.l.b16 %v170
    %v1347 = vunpack.c.h.b16 %v170
    %v1348 = vunpack.c.l.b16 %v171
    %v1349 = vunpack.c.h.b16 %v171
    %v1350 = vunpack.c.l.b16 %v172
    %v1351 = vunpack.c.h.b16 %v172
    %v1352 = vunpack.c.l.b16 %v173
    %v1353 = vunpack.c.h.b16 %v173
    %v1354 = vunpack.c.l.b16 %v174
    %v1355 = vunpack.c.h.b16 %v174
    %v1356 = vunpack.c.l.b16 %v175
    %v1357 = vunpack.c.h.b16 %v175
    %v1358 = vunpack.c.l.b16 %v176
    %v1359 = vunpack.c.h.b16 %v176
    %v1360 = vunpack.c.l.b16 %v177
    %v1361 = vunpack.c.h.b16 %v177
    %v1362 = vunpack.c.l.b16 %v178
    %v1363 = vunpack.c.h.b16 %v178
    %v1364 = vunpack.c.l.b16 %v179
    %v1365 = vunpack.c.h.b16 %v179
    %v1366 = vunpack.c.l.b16 %v180
    %v1367 = vunpack.c.h.b16 %v180
    %v1368 = vunpack.c.l.b16 %v181
    %v1369 = vunpack.c.h.b16 %v181
    %v1370 = vunpack.c.l.b16 %v182
    %v1371 = vunpack.c.h.b16 %v182
    %v1372 = vunpack.c.l.b16 %v183
    %v1373 = vunpack.c.h.b16 %v183
    %v1374 = vunpack.c.l.b16 %v184
    %v1375 = vunpack.c.h.b16 %v184
    %v1376 = vunpack.c.l.b16 %v185
    %v1377 = vunpack.c.h.b16 %v185
    %v1378 = vunpack.c.l.b16 %v186
    %v1379 = vunpack.c.h.b16 %v186
    %v1380 = vunpack.c.l.b16 %v187
    %v1381 = vunpack.c.h.b16 %v187
    %v1382 = vunpack.c.l.b16 %v188
    %v1383 = vunpack.c.h.b16 %v188
    %v1384 = vunpack.c.l.b16 %v189
    %v1385 = vunpack.c.h.b16 %v189
    %v1386 = vunpack.c.l.b16 %v190
    %v1387 = vunpack.c.h.b16 %v190
    %v1388 = vunpack.c.l.b16 %v191
    %v1389 = vunpack.c.h.b16 %v191
    %v1390 = vunpack.c.l.b16 %v192
    %v1391 = vunpack.c.h.b16 %v192
    %v1392 = vunpack.c.l.b16 %v193
    %v1393 = vunpack.c.h.b16 %v193
    %v1394 = vunpack.c.l.b16 %v194
    %v1395 = vunpack.c.h.b16 %v194
    %v1396 = vunpack.c.l.b16 %v195
    %v1397 = vunpack.c.h.b16 %v195
    %v1398 = vunpack.c.l.b16 %v196
    %v1399 = vunpack.c.h.b16 %v196
    %v1400 = vunpack.c.l.b16 %v197
    %v1401 = vunpack.c.h.b16 %v197
    %v1402 = vunpack.c.l.b16 %v198
    %v1403 = vunpack.c.h.b16 %v198
    %v1404 = vunpack.c.l.b16 %v199
    %v1405 = vunpack.c.h.b16 %v199
    %v1406 = vunpack.c.l.b16 %v200
    %v1407 = vunpack.c.h.b16 %v200
    %v1408 = vunpack.c.l.b16 %v201
    %v1409 = vunpack.c.h.b16 %v201
    %v1410 = vunpack.c.l.b16 %v202
    %v1411 = vunpack.c.h.b16 %v202
    %v1412 = vunpack.c.l.b16 %v203
    %v1413 = vunpack.c.h.b16 %v203
    %v1414 = vunpack.c.l.b16 %v204
    %v1415 = vunpack.c.h.b16 %v204
    %v1416 = vunpack.c.l.b16 %v205
    %v1417 = vunpack.c.h.b16 %v205
    %v1418 = vunpack.c.l.b16 %v206
    %v1419 = vunpack.c.h.b16 %v206
    %v1420 = vunpack.c.l.b16 %v207
    %v1421 = vunpack.c.h.b16 %v207
    %v1422 = vunpack.c.l.b16 %v208
    %v1423 = vunpack.c.h.b16 %v208
    %v1424 = vunpack.c.l.b16 %v209
    %v1425 = vunpack.c.h.b16 %v209
    %v1426 = vunpack.c.l.b16 %v210
    %v1427 = vunpack.c.h.b16 %v210
    %v1428 = vunpack.c.l.b16 %v211
    %v1429 = vunpack.c.h.b16 %v211
    %v1430 = vunpack.c.l.b16 %v212
    %v1431 = vunpack.c.h.b16 %v212
    %v1432 = vunpack.c.l.b16 %v213
    %v1433 = vunpack.c.h.b16 %v213
    %v1434 = vunpack.c.l.b16 %v214
    %v1435 = vunpack.c.h.b16 %v214
    %v1436 = vunpack.c.l.b16 %v215
    %v1437 = vunpack.c.h.b16 %v215
    %v1438 = vunpack.c.l.b16 %v216
    %v1439 = vunpack.c.h.b16 %v216
    %v1440 = vunpack.c.l.b16 %v217
    %v1441 = vunpack.c.h.b16 %v217
    %v1442 = vunpack.c.l.b16 %v218
    %v1443 = vunpack.c.h.b16 %v218
    %v1444 = vunpack.c.l.b16 %v219
    %v1445 = vunpack.c.h.b16 %v219
    %v1446 = vunpack.c.l.b16 %v220
    %v1447 = vunpack.c.h.b16 %v220
    %v1448 = vunpack.c.l.b16 %v221
    %v1449 = vunpack.c.h.b16 %v221
    %v1450 = vunpack.c.l.b16 %v222
    %v1451 = vunpack.c.h.b16 %v222
    %v1452 = vunpack.c.l.b16 %v223
    %v1453 = vunpack.c.h.b16 %v223
    %v1454 = vunpack.c.l.b16 %v224
    %v1455 = vunpack.c.h.b16 %v224
    %v1456 = vunpack.c.l.b16 %v225
    %v1457 = vunpack.c.h.b16 %v225
    %v1458 = vunpack.c.l.b16 %v226
    %v1459 = vunpack.c.h.b16 %v226
    %v1460 = vunpack.c.l.b16 %v227
    %v1461 = vunpack.c.h.b16 %v227
    %v1462 = vunpack.c.l.b16 %v228
    %v1463 = vunpack.c.h.b16 %v228
    %v1464 = vunpack.c.l.b16 %v229
    %v1465 = vunpack.c.h.b16 %v229
    %v1466 = vunpack.c.l.b16 %v230
    %v1467 = vunpack.c.h.b16 %v230
    %v1468 = vunpack.c.l.b16 %v231
    %v1469 = vunpack.c.h.b16 %v231
    %v1470 = vunpack.c.l.b16 %v232
    %v1471 = vunpack.c.h.b16 %v232
    %v1472 = vunpack.c.l.b16 %v233
    %v1473 = vunpack.c.h.b16 %v233
    %v1474 = vunpack.c.l.b16 %v234
    %v1475 = vunpack.c.h.b16 %v234
    %v1476 = vunpack.c.l.b16 %v235
    %v1477 = vunpack.c.h.b16 %v235
    %v1478 = vunpack.c.l.b16 %v236
    %v1479 = vunpack.c.h.b16 %v236
    %v1480 = vunpack.c.l.b16 %v237
    %v1481 = vunpack.c.h.b16 %v237
    %v1482 = vunpack.c.l.b16 %v238
    %v1483 = vunpack.c.h.b16 %v238
    %v1484 = vunpack.c.l.b16 %v239
    %v1485 = vunpack.c.h.b16 %v239
    %v1486 = vunpack.c.l.b16 %v240
    %v1487 = vunpack.c.h.b16 %v240
    %v1488 = vunpack.c.l.b16 %v241
    %v1489 = vunpack.c.h.b16 %v241
    %v1490 = vunpack.c.l.b16 %v242
    %v1491 = vunpack.c.h.b16 %v242
    %v1492 = vunpack.c.l.b16 %v243
    %v1493 = vunpack.c.h.b16 %v243
    %v1494 = vunpack.c.l.b16 %v244
    %v1495 = vunpack.c.h.b16 %v244
    %v1496 = vunpack.c.l.b16 %v245
    %v1497 = vunpack.c.h.b16 %v245
    %v1498 = vunpack.c.l.b16 %v246
    %v1499 = vunpack.c.h.b16 %v246
    %v1500 = vunpack.c.l.b16 %v247
    %v1501 = vunpack.c.h.b16 %v247
    %v1502 = vunpack.c.l.b16 %v248
    %v1503 = vunpack.c.h.b16 %v248
    %v1504 = vunpack.c.l.b16 %v249
    %v1505 = vunpack.c.h.b16 %v249
    %v1506 = vunpack.c.l.b16 %v250
    %v1507 = vunpack.c.h.b16 %v250
    %v1508 = vunpack.c.l.b16 %v251
    %v1509 = vunpack.c.h.b16 %v251
    %v1510 = vunpack.c.l.b16 %v252
    %v1511 = vunpack.c.h.b16 %v252
    %v1512 = vunpack.c.l.b16 %v253
    %v1513 = vunpack.c.h.b16 %v253
    %v1514 = vunpack.c.l.b16 %v254
    %v1515 = vunpack.c.h.b16 %v254
    %v1516 = vunpack.c.l.b16 %v255
    %v1517 = vunpack.c.h.b16 %v255
    %v1518 = vunpack.c.l.b16 %v256
    %v1519 = vunpack.c.h.b16 %v256
    %v1520 = vunpack.c.l.b16 %v257
    %v1521 = vunpack.c.h.b16 %v257
    %v1522 = vunpack.c.l.b16 %v258
    %v1523 = vunpack.c.h.b16 %v258
    %v1524 = vunpack.c.l.b16 %v259
    %v1525 = vunpack.c.h.b16 %v259
    %v1526 = vunpack.c.l.b16 %v260
    %v1527 = vunpack.c.h.b16 %v260
    %v1528 = vunpack.c.l.b16 %v261
    %v1529 = vunpack.c.h.b16 %v261
    %v1530 = vunpack.c.l.b16 %v262
    %v1531 = vunpack.c.h.b16 %v262
    %v1532 = vunpack.c.l.b16 %v263
    %v1533 = vunpack.c.h.b16 %v263
    %v1534 = vunpack.c.l.b16 %v264
    %v1535 = vunpack.c.h.b16 %v264
    %v1536 = vunpack.c.l.b16 %v265
    %v1537 = vunpack.c.h.b16 %v265
    %v1538 = vunpack.c.l.b16 %v266
    %v1539 = vunpack.c.h.b16 %v266
    %v1540 = vunpack.c.l.b16 %v267
    %v1541 = vunpack.c.h.b16 %v267
    %v1542 = vunpack.c.l.b16 %v268
    %v1543 = vunpack.c.h.b16 %v268
    %v1544 = vunpack.c.l.b16 %v269
    %v1545 = vunpack.c.h.b16 %v269
    %v1546 = vunpack.c.l.b16 %v270
    %v1547 = vunpack.c.h.b16 %v270
    %v1548 = vunpack.c.l.b16 %v271
    %v1549 = vunpack.c.h.b16 %v271
    %v1550 = vunpack.c.l.b16 %v272
    %v1551 = vunpack.c.h.b16 %v272
    %v1552 = vunpack.c.l.b16 %v273
    %v1553 = vunpack.c.h.b16 %v273
    %v1554 = vunpack.c.l.b16 %v274
    %v1555 = vunpack.c.h.b16 %v274
    %v1556 = vunpack.c.l.b16 %v275
    %v1557 = vunpack.c.h.b16 %v275
    %v1558 = vunpack.c.l.b16 %v276
    %v1559 = vunpack.c.h.b16 %v276
    %v1560 = vunpack.c.l.b16 %v277
    %v1561 = vunpack.c.h.b16 %v277
    %v1562 = vunpack.c.l.b16 %v278
    %v1563 = vunpack.c.h.b16 %v278
    %v1564 = vunpack.c.l.b16 %v279
    %v1565 = vunpack.c.h.b16 %v279
    %v1566 = vunpack.c.l.b16 %v280
    %v1567 = vunpack.c.h.b16 %v280
    %v1568 = vunpack.c.l.b16 %v281
    %v1569 = vunpack.c.h.b16 %v281
    %v1570 = vunpack.c.l.b16 %v282
    %v1571 = vunpack.c.h.b16 %v282
    %v1572 = vunpack.c.l.b16 %v283
    %v1573 = vunpack.c.h.b16 %v283
    %v1574 = vunpack.c.l.b16 %v284
    %v1575 = vunpack.c.h.b16 %v284
    %v1576 = vunpack.c.l.b16 %v285
    %v1577 = vunpack.c.h.b16 %v285
    %v1578 = vunpack.c.l.b16 %v286
    %v1579 = vunpack.c.h.b16 %v286
    %v1580 = vunpack.c.l.b16 %v287
    %v1581 = vunpack.c.h.b16 %v287
    %v1582 = vunpack.c.l.b16 %v288
    %v1583 = vunpack.c.h.b16 %v288
    %v1584 = vunpack.c.l.b16 %v289
    %v1585 = vunpack.c.h.b16 %v289
    %v1586 = vunpack.c.l.b16 %v290
    %v1587 = vunpack.c.h.b16 %v290
    %v1588 = vunpack.c.l.b16 %v291
    %v1589 = vunpack.c.h.b16 %v291
    %v1590 = vunpack.c.l.b16 %v292
    %v1591 = vunpack.c.h.b16 %v292
    %v1592 = vunpack.c.l.b16 %v293
    %v1593 = vunpack.c.h.b16 %v293
    %v1594 = vunpack.c.l.b16 %v294
    %v1595 = vunpack.c.h.b16 %v294
    %v1596 = vunpack.c.l.b16 %v295
    %v1597 = vunpack.c.h.b16 %v295
    %v1598 = vunpack.c.l.b16 %v296
    %v1599 = vunpack.c.h.b16 %v296
    %v1600 = vunpack.c.l.b16 %v297
    %v1601 = vunpack.c.h.b16 %v297
    %v1602 = vunpack.c.l.b16 %v298
    %v1603 = vunpack.c.h.b16 %v298
    %v1604 = vunpack.c.l.b16 %v299
    %v1605 = vunpack.c.h.b16 %v299
    %v1606 = vunpack.c.l.b16 %v300
    %v1607 = vunpack.c.h.b16 %v300
    %v1608 = vunpack.c.l.b16 %v301
    %v1609 = vunpack.c.h.b16 %v301
    %v1610 = vunpack.c.l.b16 %v302
    %v1611 = vunpack.c.h.b16 %v302
    %v1612 = vunpack.c.l.b16 %v303
    %v1613 = vunpack.c.h.b16 %v303
    %v1614 = vunpack.c.l.b16 %v304
    %v1615 = vunpack.c.h.b16 %v304
    %v1616 = vunpack.c.l.b16 %v305
    %v1617 = vunpack.c.h.b16 %v305
    %v1618 = vunpack.c.l.b16 %v306
    %v1619 = vunpack.c.h.b16 %v306
    %v1620 = vunpack.c.l.b16 %v307
    %v1621 = vunpack.c.h.b16 %v307
    %v1622 = vunpack.c.l.b16 %v308
    %v1623 = vunpack.c.h.b16 %v308
    %v1624 = vunpack.c.l.b16 %v309
    %v1625 = vunpack.c.h.b16 %v309
    %v1626 = vunpack.c.l.b16 %v310
    %v1627 = vunpack.c.h.b16 %v310
    %v1628 = vunpack.c.l.b16 %v311
    %v1629 = vunpack.c.h.b16 %v311
    %v1630 = vunpack.c.l.b16 %v312
    %v1631 = vunpack.c.h.b16 %v312
    %v1632 = vunpack.c.l.b16 %v313
    %v1633 = vunpack.c.h.b16 %v313
    %v1634 = vunpack.c.l.b16 %v314
    %v1635 = vunpack.c.h.b16 %v314
    %v1636 = vunpack.c.l.b16 %v315
    %v1637 = vunpack.c.h.b16 %v315
    %v1638 = vunpack.c.l.b16 %v316
    %v1639 = vunpack.c.h.b16 %v316
    %v1640 = vunpack.c.l.b16 %v317
    %v1641 = vunpack.c.h.b16 %v317
    %v1642 = vunpack.c.l.b16 %v318
    %v1643 = vunpack.c.h.b16 %v318
    %v1644 = vunpack.c.l.b16 %v319
    %v1645 = vunpack.c.h.b16 %v319
    %v1646 = vunpack.c.l.b16 %v320
    %v1647 = vunpack.c.h.b16 %v320
    %v1648 = vunpack.c.l.b16 %v321
    %v1649 = vunpack.c.h.b16 %v321
    %v1650 = vunpack.c.l.b16 %v322
    %v1651 = vunpack.c.h.b16 %v322
    %v1652 = vunpack.c.l.b16 %v323
    %v1653 = vunpack.c.h.b16 %v323
    %v1654 = vunpack.c.l.b16 %v324
    %v1655 = vunpack.c.h.b16 %v324
    %v1656 = vunpack.c.l.b16 %v325
    %v1657 = vunpack.c.h.b16 %v325
    %v1658 = vunpack.c.l.b16 %v326
    %v1659 = vunpack.c.h.b16 %v326
    %v1660 = vunpack.c.l.b16 %v327
    %v1661 = vunpack.c.h.b16 %v327
    %v1662 = vunpack.c.l.b16 %v328
    %v1663 = vunpack.c.h.b16 %v328
    %v1664 = vunpack.c.l.b16 %v329
    %v1665 = vunpack.c.h.b16 %v329
    %v1666 = vunpack.c.l.b16 %v330
    %v1667 = vunpack.c.h.b16 %v330
    %v1668 = vunpack.c.l.b16 %v331
    %v1669 = vunpack.c.h.b16 %v331
    %v1670 = vunpack.c.l.b16 %v332
    %v1671 = vunpack.c.h.b16 %v332
    %v1672 = vunpack.c.l.b16 %v333
    %v1673 = vunpack.c.h.b16 %v333
    %v1674 = vunpack.c.l.b16 %v334
    %v1675 = vunpack.c.h.b16 %v334
    %v1676 = vunpack.c.l.b16 %v335
    %v1677 = vunpack.c.h.b16 %v335
    %v1678 = vunpack.c.l.b16 %v336
    %v1679 = vunpack.c.h.b16 %v336
    %v1680 = vunpack.c.l.b16 %v337
    %v1681 = vunpack.c.h.b16 %v337
    %v1682 = vunpack.c.l.b16 %v338
    %v1683 = vunpack.c.h.b16 %v338
    %v1684 = vunpack.c.l.b16 %v339
    %v1685 = vunpack.c.h.b16 %v339
    %v1686 = vunpack.c.l.b16 %v340
    %v1687 = vunpack.c.h.b16 %v340
    %v1688 = vunpack.c.l.b16 %v341
    %v1689 = vunpack.c.h.b16 %v341
    %v1690 = vunpack.c.l.b16 %v342
    %v1691 = vunpack.c.h.b16 %v342
    %v1692 = vunpack.c.l.b16 %v343
    %v1693 = vunpack.c.h.b16 %v343
    %v1694 = vunpack.c.l.b16 %v344
    %v1695 = vunpack.c.h.b16 %v344
    %v1696 = vunpack.c.l.b16 %v345
    %v1697 = vunpack.c.h.b16 %v345
    %v1698 = vunpack.c.l.b16 %v346
    %v1699 = vunpack.c.h.b16 %v346
    %v1700 = vunpack.c.l.b16 %v347
    %v1701 = vunpack.c.h.b16 %v347
    %v1702 = vunpack.c.l.b16 %v348
    %v1703 = vunpack.c.h.b16 %v348
    %v1704 = vunpack.c.l.b16 %v349
    %v1705 = vunpack.c.h.b16 %v349
    %v1706 = vunpack.c.l.b16 %v350
    %v1707 = vunpack.c.h.b16 %v350
    %v1708 = vunpack.c.l.b16 %v351
    %v1709 = vunpack.c.h.b16 %v351
    %v1710 = vunpack.c.l.b16 %v352
    %v1711 = vunpack.c.h.b16 %v352
    %v1712 = vunpack.c.l.b16 %v353
    %v1713 = vunpack.c.h.b16 %v353
    %v1714 = vunpack.c.l.b16 %v354
    %v1715 = vunpack.c.h.b16 %v354
    %v1716 = vunpack.c.l.b16 %v355
    %v1717 = vunpack.c.h.b16 %v355
    %v1718 = vunpack.c.l.b16 %v356
    %v1719 = vunpack.c.h.b16 %v356
    %v1720 = vunpack.c.l.b16 %v357
    %v1721 = vunpack.c.h.b16 %v357
    %v1722 = vunpack.c.l.b16 %v358
    %v1723 = vunpack.c.h.b16 %v358
    %v1724 = vunpack.c.l.b16 %v359
    %v1725 = vunpack.c.h.b16 %v359
    %v1726 = vunpack.c.l.b16 %v360
    %v1727 = vunpack.c.h.b16 %v360
    %v1728 = vunpack.c.l.b16 %v361
    %v1729 = vunpack.c.h.b16 %v361
    %v1730 = vunpack.c.l.b16 %v362
    %v1731 = vunpack.c.h.b16 %v362
    %v1732 = vunpack.c.l.b16 %v363
    %v1733 = vunpack.c.h.b16 %v363
    %v1734 = vunpack.c.l.b16 %v364
    %v1735 = vunpack.c.h.b16 %v364
    %v1736 = vunpack.c.l.b16 %v365
    %v1737 = vunpack.c.h.b16 %v365
    %v1738 = vunpack.c.l.b16 %v366
    %v1739 = vunpack.c.h.b16 %v366
    %v1740 = vunpack.c.l.b16 %v367
    %v1741 = vunpack.c.h.b16 %v367
    %v1742 = vunpack.c.l.b16 %v368
    %v1743 = vunpack.c.h.b16 %v368
    %v1744 = vunpack.c.l.b16 %v369
    %v1745 = vunpack.c.h.b16 %v369
    %v1746 = vunpack.c.l.b16 %v370
    %v1747 = vunpack.c.h.b16 %v370
    %v1748 = vunpack.c.l.b16 %v371
    %v1749 = vunpack.c.h.b16 %v371
    %v1750 = vunpack.c.l.b16 %v372
    %v1751 = vunpack.c.h.b16 %v372
    %v1752 = vunpack.c.l.b16 %v373
    %v1753 = vunpack.c.h.b16 %v373
    %v1754 = vunpack.c.l.b16 %v374
    %v1755 = vunpack.c.h.b16 %v374
    %v1756 = vunpack.c.l.b16 %v375
    %v1757 = vunpack.c.h.b16 %v375
    %v1758 = vunpack.c.l.b16 %v376
    %v1759 = vunpack.c.h.b16 %v376
    %v1760 = vunpack.c.l.b16 %v377
    %v1761 = vunpack.c.h.b16 %v377
    %v1762 = vunpack.c.l.b16 %v378
    %v1763 = vunpack.c.h.b16 %v378
    %v1764 = vunpack.c.l.b16 %v379
    %v1765 = vunpack.c.h.b16 %v379
    %v1766 = vunpack.c.l.b16 %v380
    %v1767 = vunpack.c.h.b16 %v380
    %v1768 = vunpack.c.l.b16 %v381
    %v1769 = vunpack.c.h.b16 %v381
    %v1770 = vunpack.c.l.b16 %v382
    %v1771 = vunpack.c.h.b16 %v382
    %v1772 = vunpack.c.l.b16 %v383
    %v1773 = vunpack.c.h.b16 %v383
    %v1774 = vunpack.c.l.b16 %v384
    %v1775 = vunpack.c.h.b16 %v384
    %v1776 = vunpack.c.l.b16 %v385
    %v1777 = vunpack.c.h.b16 %v385
    %v1778 = vunpack.c.l.b16 %v386
    %v1779 = vunpack.c.h.b16 %v386
    %v1780 = vunpack.c.l.b16 %v387
    %v1781 = vunpack.c.h.b16 %v387
    %v1782 = vunpack.c.l.b16 %v388
    %v1783 = vunpack.c.h.b16 %v388
    %v1784 = vunpack.c.l.b16 %v389
    %v1785 = vunpack.c.h.b16 %v389
    %v1786 = vunpack.c.l.b16 %v390
    %v1787 = vunpack.c.h.b16 %v390
    %v1788 = vunpack.c.l.b16 %v391
    %v1789 = vunpack.c.h.b16 %v391
    %v1790 = vunpack.c.l.b16 %v392
    %v1791 = vunpack.c.h.b16 %v392
    %v1792 = vunpack.c.l.b16 %v393
    %v1793 = vunpack.c.h.b16 %v393
    %v1794 = vunpack.c.l.b16 %v394
    %v1795 = vunpack.c.h.b16 %v394
    %v1796 = vunpack.c.l.b16 %v395
    %v1797 = vunpack.c.h.b16 %v395
    %v1798 = vunpack.c.l.b16 %v396
    %v1799 = vunpack.c.h.b16 %v396
    %v1800 = vunpack.c.l.b16 %v397
    %v1801 = vunpack.c.h.b16 %v397
    %v1802 = vunpack.c.l.b16 %v398
    %v1803 = vunpack.c.h.b16 %v398
    %v1804 = vunpack.c.l.b16 %v399
    %v1805 = vunpack.c.h.b16 %v399
    %v1806 = vunpack.c.l.b16 %v400
    %v1807 = vunpack.c.h.b16 %v400
    %v1808 = vunpack.c.l.b16 %v401
    %v1809 = vunpack.c.h.b16 %v401
    %v1810 = vpack.c.b16 %v1300, %v1298
    %v1811 = vpack.c.b16 %v1301, %v1299
    %v1812 = vpack.c.b16 %v1304, %v1302
    %v1813 = vpack.c.b16 %v1305, %v1303
    %v1814 = vpack.c.b16 %v1308, %v1306
    %v1815 = vpack.c.b16 %v1309, %v1307
    %v1816 = vpack.c.b16 %v1312, %v1310
    %v1817 = vpack.c.b16 %v1313, %v1311
    %v1818 = vpack.c.b16 %v1316, %v1314
    %v1819 = vpack.c.b16 %v1317, %v1315
    %v1820 = vpack.c.b16 %v1320, %v1318
    %v1821 = vpack.c.b16 %v1321, %v1319
    %v1822 = vpack.c.b16 %v1324, %v1322
    %v1823 = vpack.c.b16 %v1325, %v1323
    %v1824 = vpack.c.b16 %v1328, %v1326
    %v1825 = vpack.c.b16 %v1329, %v1327
    %v1826 = vpack.c.b16 %v1332, %v1330
    %v1827 = vpack.c.b16 %v1333, %v1331
    %v1828 = vpack.c.b16 %v1336, %v1334
    %v1829 = vpack.c.b16 %v1337, %v1335
    %v1830 = vpack.c.b16 %v1340, %v1338
    %v1831 = vpack.c.b16 %v1341, %v1339
    %v1832 = vpack.c.b16 %v1344, %v1342
    %v1833 = vpack.c.b16 %v1345, %v1343
    %v1834 = vpack.c.b16 %v1348, %v1346
    %v1835 = vpack.c.b16 %v1349, %v1347
    %v1836 = vpack.c.b16 %v1352, %v1350
    %v1837 = vpack.c.b16 %v1353, %v1351
    %v1838 = vpack.c.b16 %v1356, %v1354
    %v1839 = vpack.c.b16 %v1357, %v1355
    %v1840 = vpack.c.b16 %v1360, %v1358
    %v1841 = vpack.c.b16 %v1361, %v1359
    %v1842 = vpack.c.b16 %v1364, %v1362
    %v1843 = vpack.c.b16 %v1365, %v1363
    %v1844 = vpack.c.b16 %v1368, %v1366
    %v1845 = vpack.c.b16 %v1369, %v1367
    %v1846 = vpack.c.b16 %v1372, %v1370
    %v1847 = vpack.c.b16 %v1373, %v1371
    %v1848 = vpack.c.b16 %v1376, %v1374
    %v1849 = vpack.c.b16 %v1377, %v1375
    %v1850 = vpack.c.b16 %v1380, %v1378
    %v1851 = vpack.c.b16 %v1381, %v1379
    %v1852 = vpack.c.b16 %v1384, %v1382
    %v1853 = vpack.c.b16 %v1385, %v1383
    %v1854 = vpack.c.b16 %v1388, %v1386
    %v1855 = vpack.c.b16 %v1389, %v1387
    %v1856 = vpack.c.b16 %v1392, %v1390
    %v1857 = vpack.c.b16 %v1393, %v1391
    %v1858 = vpack.c.b16 %v1396, %v1394
    %v1859 = vpack.c.b16 %v1397, %v1395
    %v1860 = vpack.c.b16 %v1400, %v1398
    %v1861 = vpack.c.b16 %v1401, %v1399
    %v1862 = vpack.c.b16 %v1404, %v1402
    %v1863 = vpack.c.b16 %v1405, %v1403
    %v1864 = vpack.c.b16 %v1408, %v1406
    %v1865 = vpack.c.b16 %v1409, %v1407
    %v1866 = vpack.c.b16 %v1412, %v1410
    %v1867 = vpack.c.b16 %v1413, %v1411
    %v1868 = vpack.c.b16 %v1416, %v1414
    %v1869 = vpack.c.b16 %v1417, %v1415
    %v1870 = vpack.c.b16 %v1420, %v1418
    %v1871 = vpack.c.b16 %v1421, %v1419
    %v1872 = vpack.c.b16 %v1424, %v1422
    %v1873 = vpack.c.b16 %v1425, %v1423
    %v1874 = vpack.c.b16 %v1428, %v1426
    %v1875 = vpack.c.b16 %v1429, %v1427
    %v1876 = vpack.c.b16 %v1432, %v1430
    %v1877 = vpack.c.b16 %v1433, %v1431
    %v1878 = vpack.c.b16 %v1436, %v1434
    %v1879 = vpack.c.b16 %v1437, %v1435
    %v1880 = vpack.c.b16 %v1440, %v1438
    %v1881 = vpack.c.b16 %v1441, %v1439
    %v1882 = vpack.c.b16 %v1444, %v1442
    %v1883 = vpack.c.b16 %v1445, %v1443
    %v1884 = vpack.c.b16 %v1448, %v1446
    %v1885 = vpack.c.b16 %v1449, %v1447
    %v1886 = vpack.c.b16 %v1452, %v1450
    %v1887 = vpack.c.b16 %v1453, %v1451
    %v1888 = vpack.c.b16 %v1456, %v1454
    %v1889 = vpack.c.b16 %v1457, %v1455
    %v1890 = vpack.c.b16 %v1460, %v1458
    %v1891 = vpack.c.b16 %v1461, %v1459
    %v1892 = vpack.c.b16 %v1464, %v1462
    %v1893 = vpack.c.b16 %v1465, %v1463
    %v1894 = vpack.c.b16 %v1468, %v1466
    %v1895 = vpack.c.b16 %v1469, %v1467
    %v1896 = vpack.c.b16 %v1472, %v1470
    %v1897 = vpack.c.b16 %v1473, %v1471
    %v1898 = vpack.c.b16 %v1476, %v1474
    %v1899 = vpack.c.b16 %v1477, %v1475
    %v1900 = vpack.c.b16 %v1480, %v1478
    %v1901 = vpack.c.b16 %v1481, %v1479
    %v1902 = vpack.c.b16 %v1484, %v1482
    %v1903 = vpack.c.b16 %v1485, %v1483
    %v1904 = vpack.c.b16 %v1488, %v1486
    %v1905 = vpack.c.b16 %v1489, %v1487
    %v1906 = vpack.c.b16 %v1492, %v1490
    %v1907 = vpack.c.b16 %v1493, %v1491
    %v1908 = vpack.c.b16 %v1496, %v1494
    %v1909 = vpack.c.b16 %v1497, %v1495
    %v1910 = vpack.c.b16 %v1500, %v1498
    %v1911 = vpack.c.b16 %v1501, %v1499
    %v1912 = vpack.c.b16 %v1504, %v1502
    %v1913 = vpack.c.b16 %v1505, %v1503
    %v1914 = vpack.c.b16 %v1508, %v1506
    %v1915 = vpack.c.b16 %v1509, %v1507
    %v1916 = vpack.c.b16 %v1512, %v1510
    %v1917 = vpack.c.b16 %v1513, %v1511
    %v1918 = vpack.c.b16 %v1516, %v1514
    %v1919 = vpack.c.b16 %v1517, %v1515
    %v1920 = vpack.c.b16 %v1520, %v1518
    %v1921 = vpack.c.b16 %v1521, %v1519
    %v1922 = vpack.c.b16 %v1524, %v1522
    %v1923 = vpack.c.b16 %v1525, %v1523
    %v1924 = vpack.c.b16 %v1528, %v1526
    %v1925 = vpack.c.b16 %v1529, %v1527
    %v1926 = vpack.c.b16 %v1532, %v1530
    %v1927 = vpack.c.b16 %v1533, %v1531
    %v1928 = vpack.c.b16 %v1536, %v1534
    %v1929 = vpack.c.b16 %v1537, %v1535
    %v1930 = vpack.c.b16 %v1540, %v1538
    %v1931 = vpack.c.b16 %v1541, %v1539
    %v1932 = vpack.c.b16 %v1544, %v1542
    %v1933 = vpack.c.b16 %v1545, %v1543
    %v1934 = vpack.c.b16 %v1548, %v1546
    %v1935 = vpack.c.b16 %v1549, %v1547
    %v1936 = vpack.c.b16 %v1552, %v1550
    %v1937 = vpack.c.b16 %v1553, %v1551
    %v1938 = vpack.c.b16 %v1556, %v1554
    %v1939 = vpack.c.b16 %v1557, %v1555
    %v1940 = vpack.c.b16 %v1560, %v1558
    %v1941 = vpack.c.b16 %v1561, %v1559
    %v1942 = vpack.c.b16 %v1564, %v1562
    %v1943 = vpack.c.b16 %v1565, %v1563
    %v1944 = vpack.c.b16 %v1568, %v1566
    %v1945 = vpack.c.b16 %v1569, %v1567
    %v1946 = vpack.c.b16 %v1572, %v1570
    %v1947 = vpack.c.b16 %v1573, %v1571
    %v1948 = vpack.c.b16 %v1576, %v1574
    %v1949 = vpack.c.b16 %v1577, %v1575
    %v1950 = vpack.c.b16 %v1580, %v1578
    %v1951 = vpack.c.b16 %v1581, %v1579
    %v1952 = vpack.c.b16 %v1584, %v1582
    %v1953 = vpack.c.b16 %v1585, %v1583
    %v1954 = vpack.c.b16 %v1588, %v1586
    %v1955 = vpack.c.b16 %v1589, %v1587
    %v1956 = vpack.c.b16 %v1592, %v1590
    %v1957 = vpack.c.b16 %v1593, %v1591
    %v1958 = vpack.c.b16 %v1596, %v1594
    %v1959 = vpack.c.b16 %v1597, %v1595
    %v1960 = vpack.c.b16 %v1600, %v1598
    %v1961 = vpack.c.b16 %v1601, %v1599
    %v1962 = vpack.c.b16 %v1604, %v1602
    %v1963 = vpack.c.b16 %v1605, %v1603
    %v1964 = vpack.c.b16 %v1608, %v1606
    %v1965 = vpack.c.b16 %v1609, %v1607
    %v1966 = vpack.c.b16 %v1612, %v1610
    %v1967 = vpack.c.b16 %v1613, %v1611
    %v1968 = vpack.c.b16 %v1616, %v1614
    %v1969 = vpack.c.b16 %v1617, %v1615
    %v1970 = vpack.c.b16 %v1620, %v1618
    %v1971 = vpack.c.b16 %v1621, %v1619
    %v1972 = vpack.c.b16 %v1624, %v1622
    %v1973 = vpack.c.b16 %v1625, %v1623
    %v1974 = vpack.c.b16 %v1628, %v1626
    %v1975 = vpack.c.b16 %v1629, %v1627
    %v1976 = vpack.c.b16 %v1632, %v1630
    %v1977 = vpack.c.b16 %v1633, %v1631
    %v1978 = vpack.c.b16 %v1636, %v1634
    %v1979 = vpack.c.b16 %v1637, %v1635
    %v1980 = vpack.c.b16 %v1640, %v1638
    %v1981 = vpack.c.b16 %v1641, %v1639
    %v1982 = vpack.c.b16 %v1644, %v1642
    %v1983 = vpack.c.b16 %v1645, %v1643
    %v1984 = vpack.c.b16 %v1648, %v1646
    %v1985 = vpack.c.b16 %v1649, %v1647
    %v1986 = vpack.c.b16 %v1652, %v1650
    %v1987 = vpack.c.b16 %v1653, %v1651
    %v1988 = vpack.c.b16 %v1656, %v1654
    %v1989 = vpack.c.b16 %v1657, %v1655
    %v1990 = vpack.c.b16 %v1660, %v1658
    %v1991 = vpack.c.b16 %v1661, %v1659
    %v1992 = vpack.c.b16 %v1664, %v1662
    %v1993 = vpack.c.b16 %v1665, %v1663
    %v1994 = vpack.c.b16 %v1668, %v1666
    %v1995 = vpack.c.b16 %v1669, %v1667
    %v1996 = vpack.c.b16 %v1672, %v1670
    %v1997 = vpack.c.b16 %v1673, %v1671
    %v1998 = vpack.c.b16 %v1676, %v1674
    %v1999 = vpack.c.b16 %v1677, %v1675
    %v2000 = vpack.c.b16 %v1680, %v1678
    %v2001 = vpack.c.b16 %v1681, %v1679
    %v2002 = vpack.c.b16 %v1684, %v1682
    %v2003 = vpack.c.b16 %v1685, %v1683
    %v2004 = vpack.c.b16 %v1688, %v1686
    %v2005 = vpack.c.b16 %v1689, %v1687
    %v2006 = vpack.c.b16 %v1692, %v1690
    %v2007 = vpack.c.b16 %v1693, %v1691
    %v2008 = vpack.c.b16 %v1696, %v1694
    %v2009 = vpack.c.b16 %v1697, %v1695
    %v2010 = vpack.c.b16 %v1700, %v1698
    %v2011 = vpack.c.b16 %v1701, %v1699
    %v2012 = vpack.c.b16 %v1704, %v1702
    %v2013 = vpack.c.b16 %v1705, %v1703
    %v2014 = vpack.c.b16 %v1708, %v1706
    %v2015 = vpack.c.b16 %v1709, %v1707
    %v2016 = vpack.c.b16 %v1712, %v1710
    %v2017 = vpack.c.b16 %v1713, %v1711
    %v2018 = vpack.c.b16 %v1716, %v1714
    %v2019 = vpack.c.b16 %v1717, %v1715
    %v2020 = vpack.c.b16 %v1720, %v1718
    %v2021 = vpack.c.b16 %v1721, %v1719
    %v2022 = vpack.c.b16 %v1724, %v1722
    %v2023 = vpack.c.b16 %v1725, %v1723
    %v2024 = vpack.c.b16 %v1728, %v1726
    %v2025 = vpack.c.b16 %v1729, %v1727
    %v2026 = vpack.c.b16 %v1732, %v1730
    %v2027 = vpack.c.b16 %v1733, %v1731
    %v2028 = vpack.c.b16 %v1736, %v1734
    %v2029 = vpack.c.b16 %v1737, %v1735
    %v2030 = vpack.c.b16 %v1740, %v1738
    %v2031 = vpack.c.b16 %v1741, %v1739
    %v2032 = vpack.c.b16 %v1744, %v1742
    %v2033 = vpack.c.b16 %v1745, %v1743
    %v2034 = vpack.c.b16 %v1748, %v1746
    %v2035 = vpack.c.b16 %v1749, %v1747
    %v2036 = vpack.c.b16 %v1752, %v1750
    %v2037 = vpack.c.b16 %v1753, %v1751
    %v2038 = vpack.c.b16 %v1756, %v1754
    %v2039 = vpack.c.b16 %v1757, %v1755
    %v2040 = vpack.c.b16 %v1760, %v1758
    %v2041 = vpack.c.b16 %v1761, %v1759
    %v2042 = vpack.c.b16 %v1764, %v1762
    %v2043 = vpack.c.b16 %v1765, %v1763
    %v2044 = vpack.c.b16 %v1768, %v1766
    %v2045 = vpack.c.b16 %v1769, %v1767
    %v2046 = vpack.c.b16 %v1772, %v1770
    %v2047 = vpack.c.b16 %v1773, %v1771
    %v2048 = vpack.c.b16 %v1776, %v1774
    %v2049 = vpack.c.b16 %v1777, %v1775
    %v2050 = vpack.c.b16 %v1780, %v1778
    %v2051 = vpack.c.b16 %v1781, %v1779
    %v2052 = vpack.c.b16 %v1784, %v1782
    %v2053 = vpack.c.b16 %v1785, %v1783
    %v2054 = vpack.c.b16 %v1788, %v1786
    %v2055 = vpack.c.b16 %v1789, %v1787
    %v2056 = vpack.c.b16 %v1792, %v1790
    %v2057 = vpack.c.b16 %v1793, %v1791
    %v2058 = vpack.c.b16 %v1796, %v1794
    %v2059 = vpack.c.b16 %v1797, %v1795
    %v2060 = vpack.c.b16 %v1800, %v1798
    %v2061 = vpack.c.b16 %v1801, %v1799
    %v2062 = vpack.c.b16 %v1804, %v1802
    %v2063 = vpack.c.b16 %v1805, %v1803
    %v2064 = vpack.c.b16 %v1808, %v1806
    %v2065 = vpack.c.b16 %v1809, %v1807
    %2322 = vmatpush.bf16.msra.mxu0 %v1824
    %2323 = vmatpush.bf16.msra.mxu0 %v1822
    %2324 = vmatpush.bf16.msra.mxu0 %v1820
    %2325 = vmatpush.bf16.msra.mxu0 %v1818
    %2326 = vmatpush.bf16.msra.mxu0 %v1816
    %2327 = vmatpush.bf16.msra.mxu0 %v1814
    %2328 = vmatpush.bf16.msra.mxu0 %v1812
    %2329 = vmatpush.bf16.msra.mxu0 %v1810
    %2330 = vmatmul.bf16.gmra.mxu0 %v786
    %v2331 = vpop.f32.mrf.mxu0
    %v2332 = vadd.f32 0.0, %v2331
    %v2333 = vpop.f32.mrf.mxu0
    %v2334 = vadd.f32 0.0, %v2333
    %2335 = vmatmul.bf16.gmra.mxu0 %v802
    %v2336 = vpop.f32.mrf.mxu0
    %v2337 = vadd.f32 0.0, %v2336
    %v2338 = vpop.f32.mrf.mxu0
    %v2339 = vadd.f32 0.0, %v2338
    %2340 = vmatmul.bf16.gmra.mxu0 %v818
    %v2341 = vpop.f32.mrf.mxu0
    %v2342 = vadd.f32 0.0, %v2341
    %v2343 = vpop.f32.mrf.mxu0
    %v2344 = vadd.f32 0.0, %v2343
    %2345 = vmatmul.bf16.gmra.mxu0 %v834
    %v2346 = vpop.f32.mrf.mxu0
    %v2347 = vadd.f32 0.0, %v2346
    %v2348 = vpop.f32.mrf.mxu0
    %v2349 = vadd.f32 0.0, %v2348
    %2350 = vmatmul.bf16.gmra.mxu0 %v850
    %v2351 = vpop.f32.mrf.mxu0
    %v2352 = vadd.f32 0.0, %v2351
    %v2353 = vpop.f32.mrf.mxu0
    %v2354 = vadd.f32 0.0, %v2353
    %2355 = vmatmul.bf16.gmra.mxu0 %v866
    %v2356 = vpop.f32.mrf.mxu0
    %v2357 = vadd.f32 0.0, %v2356
    %v2358 = vpop.f32.mrf.mxu0
    %v2359 = vadd.f32 0.0, %v2358
    %2360 = vmatmul.bf16.gmra.mxu0 %v882
    %v2361 = vpop.f32.mrf.mxu0
    %v2362 = vadd.f32 0.0, %v2361
    %v2363 = vpop.f32.mrf.mxu0
    %v2364 = vadd.f32 0.0, %v2363
    %2365 = vmatmul.bf16.gmra.mxu0 %v898
    %v2366 = vpop.f32.mrf.mxu0
    %v2367 = vadd.f32 0.0, %v2366
    %v2368 = vpop.f32.mrf.mxu0
    %v2369 = vadd.f32 0.0, %v2368
    %2370 = vdwg.mxu0
    %2371 = vmatpush.bf16.msra.mxu0 %v1840
    %2372 = vmatpush.bf16.msra.mxu0 %v1838
    %2373 = vmatpush.bf16.msra.mxu0 %v1836
    %2374 = vmatpush.bf16.msra.mxu0 %v1834
    %2375 = vmatpush.bf16.msra.mxu0 %v1832
    %2376 = vmatpush.bf16.msra.mxu0 %v1830
    %2377 = vmatpush.bf16.msra.mxu0 %v1828
    %2378 = vmatpush.bf16.msra.mxu0 %v1826
    %2379 = vmatmul.bf16.gmra.mxu0 %v787
    %v2380 = vpop.f32.mrf.mxu0
    %v2381 = vadd.f32 %v2332, %v2380
    %v2382 = vpop.f32.mrf.mxu0
    %v2383 = vadd.f32 %v2334, %v2382
    %2384 = vmatmul.bf16.gmra.mxu0 %v803
    %v2385 = vpop.f32.mrf.mxu0
    %v2386 = vadd.f32 %v2337, %v2385
    %v2387 = vpop.f32.mrf.mxu0
    %v2388 = vadd.f32 %v2339, %v2387
    %2389 = vmatmul.bf16.gmra.mxu0 %v819
    %v2390 = vpop.f32.mrf.mxu0
    %v2391 = vadd.f32 %v2342, %v2390
    %v2392 = vpop.f32.mrf.mxu0
    %v2393 = vadd.f32 %v2344, %v2392
    %2394 = vmatmul.bf16.gmra.mxu0 %v835
    %v2395 = vpop.f32.mrf.mxu0
    %v2396 = vadd.f32 %v2347, %v2395
    %v2397 = vpop.f32.mrf.mxu0
    %v2398 = vadd.f32 %v2349, %v2397
    %2399 = vmatmul.bf16.gmra.mxu0 %v851
    %v2400 = vpop.f32.mrf.mxu0
    %v2401 = vadd.f32 %v2352, %v2400
    %v2402 = vpop.f32.mrf.mxu0
    %v2403 = vadd.f32 %v2354, %v2402
    %2404 = vmatmul.bf16.gmra.mxu0 %v867
    %v2405 = vpop.f32.mrf.mxu0
    %v2406 = vadd.f32 %v2357, %v2405
    %v2407 = vpop.f32.mrf.mxu0
    %v2408 = vadd.f32 %v2359, %v2407
    %2409 = vmatmul.bf16.gmra.mxu0 %v883
    %v2410 = vpop.f32.mrf.mxu0
    %v2411 = vadd.f32 %v2362, %v2410
    %v2412 = vpop.f32.mrf.mxu0
    %v2413 = vadd.f32 %v2364, %v2412
    %2414 = vmatmul.bf16.gmra.mxu0 %v899
    %v2415 = vpop.f32.mrf.mxu0
    %v2416 = vadd.f32 %v2367, %v2415
    %v2417 = vpop.f32.mrf.mxu0
    %v2418 = vadd.f32 %v2369, %v2417
    %2419 = vdwg.mxu0
    %2420 = vmatpush.bf16.msra.mxu0 %v1856
    %2421 = vmatpush.bf16.msra.mxu0 %v1854
    %2422 = vmatpush.bf16.msra.mxu0 %v1852
    %2423 = vmatpush.bf16.msra.mxu0 %v1850
    %2424 = vmatpush.bf16.msra.mxu0 %v1848
    %2425 = vmatpush.bf16.msra.mxu0 %v1846
    %2426 = vmatpush.bf16.msra.mxu0 %v1844
    %2427 = vmatpush.bf16.msra.mxu0 %v1842
    %2428 = vmatmul.bf16.gmra.mxu0 %v788
    %v2429 = vpop.f32.mrf.mxu0
    %v2430 = vadd.f32 %v2381, %v2429
    %v2431 = vpop.f32.mrf.mxu0
    %v2432 = vadd.f32 %v2383, %v2431
    %2433 = vmatmul.bf16.gmra.mxu0 %v804
    %v2434 = vpop.f32.mrf.mxu0
    %v2435 = vadd.f32 %v2386, %v2434
    %v2436 = vpop.f32.mrf.mxu0
    %v2437 = vadd.f32 %v2388, %v2436
    %2438 = vmatmul.bf16.gmra.mxu0 %v820
    %v2439 = vpop.f32.mrf.mxu0
    %v2440 = vadd.f32 %v2391, %v2439
    %v2441 = vpop.f32.mrf.mxu0
    %v2442 = vadd.f32 %v2393, %v2441
    %2443 = vmatmul.bf16.gmra.mxu0 %v836
    %v2444 = vpop.f32.mrf.mxu0
    %v2445 = vadd.f32 %v2396, %v2444
    %v2446 = vpop.f32.mrf.mxu0
    %v2447 = vadd.f32 %v2398, %v2446
    %2448 = vmatmul.bf16.gmra.mxu0 %v852
    %v2449 = vpop.f32.mrf.mxu0
    %v2450 = vadd.f32 %v2401, %v2449
    %v2451 = vpop.f32.mrf.mxu0
    %v2452 = vadd.f32 %v2403, %v2451
    %2453 = vmatmul.bf16.gmra.mxu0 %v868
    %v2454 = vpop.f32.mrf.mxu0
    %v2455 = vadd.f32 %v2406, %v2454
    %v2456 = vpop.f32.mrf.mxu0
    %v2457 = vadd.f32 %v2408, %v2456
    %2458 = vmatmul.bf16.gmra.mxu0 %v884
    %v2459 = vpop.f32.mrf.mxu0
    %v2460 = vadd.f32 %v2411, %v2459
    %v2461 = vpop.f32.mrf.mxu0
    %v2462 = vadd.f32 %v2413, %v2461
    %2463 = vmatmul.bf16.gmra.mxu0 %v900
    %v2464 = vpop.f32.mrf.mxu0
    %v2465 = vadd.f32 %v2416, %v2464
    %v2466 = vpop.f32.mrf.mxu0
    %v2467 = vadd.f32 %v2418, %v2466
    %2468 = vdwg.mxu0
    %2469 = vmatpush.bf16.msra.mxu0 %v1872
    %2470 = vmatpush.bf16.msra.mxu0 %v1870
    %2471 = vmatpush.bf16.msra.mxu0 %v1868
    %2472 = vmatpush.bf16.msra.mxu0 %v1866
    %2473 = vmatpush.bf16.msra.mxu0 %v1864
    %2474 = vmatpush.bf16.msra.mxu0 %v1862
    %2475 = vmatpush.bf16.msra.mxu0 %v1860
    %2476 = vmatpush.bf16.msra.mxu0 %v1858
    %2477 = vmatmul.bf16.gmra.mxu0 %v789
    %v2478 = vpop.f32.mrf.mxu0
    %v2479 = vadd.f32 %v2430, %v2478
    %v2480 = vpop.f32.mrf.mxu0
    %v2481 = vadd.f32 %v2432, %v2480
    %2482 = vmatmul.bf16.gmra.mxu0 %v805
    %v2483 = vpop.f32.mrf.mxu0
    %v2484 = vadd.f32 %v2435, %v2483
    %v2485 = vpop.f32.mrf.mxu0
    %v2486 = vadd.f32 %v2437, %v2485
    %2487 = vmatmul.bf16.gmra.mxu0 %v821
    %v2488 = vpop.f32.mrf.mxu0
    %v2489 = vadd.f32 %v2440, %v2488
    %v2490 = vpop.f32.mrf.mxu0
    %v2491 = vadd.f32 %v2442, %v2490
    %2492 = vmatmul.bf16.gmra.mxu0 %v837
    %v2493 = vpop.f32.mrf.mxu0
    %v2494 = vadd.f32 %v2445, %v2493
    %v2495 = vpop.f32.mrf.mxu0
    %v2496 = vadd.f32 %v2447, %v2495
    %2497 = vmatmul.bf16.gmra.mxu0 %v853
    %v2498 = vpop.f32.mrf.mxu0
    %v2499 = vadd.f32 %v2450, %v2498
    %v2500 = vpop.f32.mrf.mxu0
    %v2501 = vadd.f32 %v2452, %v2500
    %2502 = vmatmul.bf16.gmra.mxu0 %v869
    %v2503 = vpop.f32.mrf.mxu0
    %v2504 = vadd.f32 %v2455, %v2503
    %v2505 = vpop.f32.mrf.mxu0
    %v2506 = vadd.f32 %v2457, %v2505
    %2507 = vmatmul.bf16.gmra.mxu0 %v885
    %v2508 = vpop.f32.mrf.mxu0
    %v2509 = vadd.f32 %v2460, %v2508
    %v2510 = vpop.f32.mrf.mxu0
    %v2511 = vadd.f32 %v2462, %v2510
    %2512 = vmatmul.bf16.gmra.mxu0 %v901
    %v2513 = vpop.f32.mrf.mxu0
    %v2514 = vadd.f32 %v2465, %v2513
    %v2515 = vpop.f32.mrf.mxu0
    %v2516 = vadd.f32 %v2467, %v2515
    %2517 = vdwg.mxu0
    %2518 = vmatpush.bf16.msra.mxu0 %v1888
    %2519 = vmatpush.bf16.msra.mxu0 %v1886
    %2520 = vmatpush.bf16.msra.mxu0 %v1884
    %2521 = vmatpush.bf16.msra.mxu0 %v1882
    %2522 = vmatpush.bf16.msra.mxu0 %v1880
    %2523 = vmatpush.bf16.msra.mxu0 %v1878
    %2524 = vmatpush.bf16.msra.mxu0 %v1876
    %2525 = vmatpush.bf16.msra.mxu0 %v1874
    %2526 = vmatmul.bf16.gmra.mxu0 %v790
    %v2527 = vpop.f32.mrf.mxu0
    %v2528 = vadd.f32 %v2479, %v2527
    %v2529 = vpop.f32.mrf.mxu0
    %v2530 = vadd.f32 %v2481, %v2529
    %2531 = vmatmul.bf16.gmra.mxu0 %v806
    %v2532 = vpop.f32.mrf.mxu0
    %v2533 = vadd.f32 %v2484, %v2532
    %v2534 = vpop.f32.mrf.mxu0
    %v2535 = vadd.f32 %v2486, %v2534
    %2536 = vmatmul.bf16.gmra.mxu0 %v822
    %v2537 = vpop.f32.mrf.mxu0
    %v2538 = vadd.f32 %v2489, %v2537
    %v2539 = vpop.f32.mrf.mxu0
    %v2540 = vadd.f32 %v2491, %v2539
    %2541 = vmatmul.bf16.gmra.mxu0 %v838
    %v2542 = vpop.f32.mrf.mxu0
    %v2543 = vadd.f32 %v2494, %v2542
    %v2544 = vpop.f32.mrf.mxu0
    %v2545 = vadd.f32 %v2496, %v2544
    %2546 = vmatmul.bf16.gmra.mxu0 %v854
    %v2547 = vpop.f32.mrf.mxu0
    %v2548 = vadd.f32 %v2499, %v2547
    %v2549 = vpop.f32.mrf.mxu0
    %v2550 = vadd.f32 %v2501, %v2549
    %2551 = vmatmul.bf16.gmra.mxu0 %v870
    %v2552 = vpop.f32.mrf.mxu0
    %v2553 = vadd.f32 %v2504, %v2552
    %v2554 = vpop.f32.mrf.mxu0
    %v2555 = vadd.f32 %v2506, %v2554
    %2556 = vmatmul.bf16.gmra.mxu0 %v886
    %v2557 = vpop.f32.mrf.mxu0
    %v2558 = vadd.f32 %v2509, %v2557
    %v2559 = vpop.f32.mrf.mxu0
    %v2560 = vadd.f32 %v2511, %v2559
    %2561 = vmatmul.bf16.gmra.mxu0 %v902
    %v2562 = vpop.f32.mrf.mxu0
    %v2563 = vadd.f32 %v2514, %v2562
    %v2564 = vpop.f32.mrf.mxu0
    %v2565 = vadd.f32 %v2516, %v2564
    %2566 = vdwg.mxu0
    %2567 = vmatpush.bf16.msra.mxu0 %v1904
    %2568 = vmatpush.bf16.msra.mxu0 %v1902
    %2569 = vmatpush.bf16.msra.mxu0 %v1900
    %2570 = vmatpush.bf16.msra.mxu0 %v1898
    %2571 = vmatpush.bf16.msra.mxu0 %v1896
    %2572 = vmatpush.bf16.msra.mxu0 %v1894
    %2573 = vmatpush.bf16.msra.mxu0 %v1892
    %2574 = vmatpush.bf16.msra.mxu0 %v1890
    %2575 = vmatmul.bf16.gmra.mxu0 %v791
    %v2576 = vpop.f32.mrf.mxu0
    %v2577 = vadd.f32 %v2528, %v2576
    %v2578 = vpop.f32.mrf.mxu0
    %v2579 = vadd.f32 %v2530, %v2578
    %2580 = vmatmul.bf16.gmra.mxu0 %v807
    %v2581 = vpop.f32.mrf.mxu0
    %v2582 = vadd.f32 %v2533, %v2581
    %v2583 = vpop.f32.mrf.mxu0
    %v2584 = vadd.f32 %v2535, %v2583
    %2585 = vmatmul.bf16.gmra.mxu0 %v823
    %v2586 = vpop.f32.mrf.mxu0
    %v2587 = vadd.f32 %v2538, %v2586
    %v2588 = vpop.f32.mrf.mxu0
    %v2589 = vadd.f32 %v2540, %v2588
    %2590 = vmatmul.bf16.gmra.mxu0 %v839
    %v2591 = vpop.f32.mrf.mxu0
    %v2592 = vadd.f32 %v2543, %v2591
    %v2593 = vpop.f32.mrf.mxu0
    %v2594 = vadd.f32 %v2545, %v2593
    %2595 = vmatmul.bf16.gmra.mxu0 %v855
    %v2596 = vpop.f32.mrf.mxu0
    %v2597 = vadd.f32 %v2548, %v2596
    %v2598 = vpop.f32.mrf.mxu0
    %v2599 = vadd.f32 %v2550, %v2598
    %2600 = vmatmul.bf16.gmra.mxu0 %v871
    %v2601 = vpop.f32.mrf.mxu0
    %v2602 = vadd.f32 %v2553, %v2601
    %v2603 = vpop.f32.mrf.mxu0
    %v2604 = vadd.f32 %v2555, %v2603
    %2605 = vmatmul.bf16.gmra.mxu0 %v887
    %v2606 = vpop.f32.mrf.mxu0
    %v2607 = vadd.f32 %v2558, %v2606
    %v2608 = vpop.f32.mrf.mxu0
    %v2609 = vadd.f32 %v2560, %v2608
    %2610 = vmatmul.bf16.gmra.mxu0 %v903
    %v2611 = vpop.f32.mrf.mxu0
    %v2612 = vadd.f32 %v2563, %v2611
    %v2613 = vpop.f32.mrf.mxu0
    %v2614 = vadd.f32 %v2565, %v2613
    %2615 = vdwg.mxu0
    %2616 = vmatpush.bf16.msra.mxu0 %v1920
    %2617 = vmatpush.bf16.msra.mxu0 %v1918
    %2618 = vmatpush.bf16.msra.mxu0 %v1916
    %2619 = vmatpush.bf16.msra.mxu0 %v1914
    %2620 = vmatpush.bf16.msra.mxu0 %v1912
    %2621 = vmatpush.bf16.msra.mxu0 %v1910
    %2622 = vmatpush.bf16.msra.mxu0 %v1908
    %2623 = vmatpush.bf16.msra.mxu0 %v1906
    %2624 = vmatmul.bf16.gmra.mxu0 %v792
    %v2625 = vpop.f32.mrf.mxu0
    %v2626 = vadd.f32 %v2577, %v2625
    %v2627 = vpop.f32.mrf.mxu0
    %v2628 = vadd.f32 %v2579, %v2627
    %2629 = vmatmul.bf16.gmra.mxu0 %v808
    %v2630 = vpop.f32.mrf.mxu0
    %v2631 = vadd.f32 %v2582, %v2630
    %v2632 = vpop.f32.mrf.mxu0
    %v2633 = vadd.f32 %v2584, %v2632
    %2634 = vmatmul.bf16.gmra.mxu0 %v824
    %v2635 = vpop.f32.mrf.mxu0
    %v2636 = vadd.f32 %v2587, %v2635
    %v2637 = vpop.f32.mrf.mxu0
    %v2638 = vadd.f32 %v2589, %v2637
    %2639 = vmatmul.bf16.gmra.mxu0 %v840
    %v2640 = vpop.f32.mrf.mxu0
    %v2641 = vadd.f32 %v2592, %v2640
    %v2642 = vpop.f32.mrf.mxu0
    %v2643 = vadd.f32 %v2594, %v2642
    %2644 = vmatmul.bf16.gmra.mxu0 %v856
    %v2645 = vpop.f32.mrf.mxu0
    %v2646 = vadd.f32 %v2597, %v2645
    %v2647 = vpop.f32.mrf.mxu0
    %v2648 = vadd.f32 %v2599, %v2647
    %2649 = vmatmul.bf16.gmra.mxu0 %v872
    %v2650 = vpop.f32.mrf.mxu0
    %v2651 = vadd.f32 %v2602, %v2650
    %v2652 = vpop.f32.mrf.mxu0
    %v2653 = vadd.f32 %v2604, %v2652
    %2654 = vmatmul.bf16.gmra.mxu0 %v888
    %v2655 = vpop.f32.mrf.mxu0
    %v2656 = vadd.f32 %v2607, %v2655
    %v2657 = vpop.f32.mrf.mxu0
    %v2658 = vadd.f32 %v2609, %v2657
    %2659 = vmatmul.bf16.gmra.mxu0 %v904
    %v2660 = vpop.f32.mrf.mxu0
    %v2661 = vadd.f32 %v2612, %v2660
    %v2662 = vpop.f32.mrf.mxu0
    %v2663 = vadd.f32 %v2614, %v2662
    %2664 = vdwg.mxu0
    %2665 = vmatpush.bf16.msra.mxu0 %v1936
    %2666 = vmatpush.bf16.msra.mxu0 %v1934
    %2667 = vmatpush.bf16.msra.mxu0 %v1932
    %2668 = vmatpush.bf16.msra.mxu0 %v1930
    %2669 = vmatpush.bf16.msra.mxu0 %v1928
    %2670 = vmatpush.bf16.msra.mxu0 %v1926
    %2671 = vmatpush.bf16.msra.mxu0 %v1924
    %2672 = vmatpush.bf16.msra.mxu0 %v1922
    %2673 = vmatmul.bf16.gmra.mxu0 %v793
    %v2674 = vpop.f32.mrf.mxu0
    %v2675 = vadd.f32 %v2626, %v2674
    %v2676 = vpop.f32.mrf.mxu0
    %v2677 = vadd.f32 %v2628, %v2676
    %2678 = vmatmul.bf16.gmra.mxu0 %v809
    %v2679 = vpop.f32.mrf.mxu0
    %v2680 = vadd.f32 %v2631, %v2679
    %v2681 = vpop.f32.mrf.mxu0
    %v2682 = vadd.f32 %v2633, %v2681
    %2683 = vmatmul.bf16.gmra.mxu0 %v825
    %v2684 = vpop.f32.mrf.mxu0
    %v2685 = vadd.f32 %v2636, %v2684
    %v2686 = vpop.f32.mrf.mxu0
    %v2687 = vadd.f32 %v2638, %v2686
    %2688 = vmatmul.bf16.gmra.mxu0 %v841
    %v2689 = vpop.f32.mrf.mxu0
    %v2690 = vadd.f32 %v2641, %v2689
    %v2691 = vpop.f32.mrf.mxu0
    %v2692 = vadd.f32 %v2643, %v2691
    %2693 = vmatmul.bf16.gmra.mxu0 %v857
    %v2694 = vpop.f32.mrf.mxu0
    %v2695 = vadd.f32 %v2646, %v2694
    %v2696 = vpop.f32.mrf.mxu0
    %v2697 = vadd.f32 %v2648, %v2696
    %2698 = vmatmul.bf16.gmra.mxu0 %v873
    %v2699 = vpop.f32.mrf.mxu0
    %v2700 = vadd.f32 %v2651, %v2699
    %v2701 = vpop.f32.mrf.mxu0
    %v2702 = vadd.f32 %v2653, %v2701
    %2703 = vmatmul.bf16.gmra.mxu0 %v889
    %v2704 = vpop.f32.mrf.mxu0
    %v2705 = vadd.f32 %v2656, %v2704
    %v2706 = vpop.f32.mrf.mxu0
    %v2707 = vadd.f32 %v2658, %v2706
    %2708 = vmatmul.bf16.gmra.mxu0 %v905
    %v2709 = vpop.f32.mrf.mxu0
    %v2710 = vadd.f32 %v2661, %v2709
    %v2711 = vpop.f32.mrf.mxu0
    %v2712 = vadd.f32 %v2663, %v2711
    %2713 = vdwg.mxu0
    %2714 = vmatpush.bf16.msra.mxu0 %v1952
    %2715 = vmatpush.bf16.msra.mxu0 %v1950
    %2716 = vmatpush.bf16.msra.mxu0 %v1948
    %2717 = vmatpush.bf16.msra.mxu0 %v1946
    %2718 = vmatpush.bf16.msra.mxu0 %v1944
    %2719 = vmatpush.bf16.msra.mxu0 %v1942
    %2720 = vmatpush.bf16.msra.mxu0 %v1940
    %2721 = vmatpush.bf16.msra.mxu0 %v1938
    %2722 = vmatmul.bf16.gmra.mxu0 %v794
    %v2723 = vpop.f32.mrf.mxu0
    %v2724 = vadd.f32 %v2675, %v2723
    %v2725 = vpop.f32.mrf.mxu0
    %v2726 = vadd.f32 %v2677, %v2725
    %2727 = vmatmul.bf16.gmra.mxu0 %v810
    %v2728 = vpop.f32.mrf.mxu0
    %v2729 = vadd.f32 %v2680, %v2728
    %v2730 = vpop.f32.mrf.mxu0
    %v2731 = vadd.f32 %v2682, %v2730
    %2732 = vmatmul.bf16.gmra.mxu0 %v826
    %v2733 = vpop.f32.mrf.mxu0
    %v2734 = vadd.f32 %v2685, %v2733
    %v2735 = vpop.f32.mrf.mxu0
    %v2736 = vadd.f32 %v2687, %v2735
    %2737 = vmatmul.bf16.gmra.mxu0 %v842
    %v2738 = vpop.f32.mrf.mxu0
    %v2739 = vadd.f32 %v2690, %v2738
    %v2740 = vpop.f32.mrf.mxu0
    %v2741 = vadd.f32 %v2692, %v2740
    %2742 = vmatmul.bf16.gmra.mxu0 %v858
    %v2743 = vpop.f32.mrf.mxu0
    %v2744 = vadd.f32 %v2695, %v2743
    %v2745 = vpop.f32.mrf.mxu0
    %v2746 = vadd.f32 %v2697, %v2745
    %2747 = vmatmul.bf16.gmra.mxu0 %v874
    %v2748 = vpop.f32.mrf.mxu0
    %v2749 = vadd.f32 %v2700, %v2748
    %v2750 = vpop.f32.mrf.mxu0
    %v2751 = vadd.f32 %v2702, %v2750
    %2752 = vmatmul.bf16.gmra.mxu0 %v890
    %v2753 = vpop.f32.mrf.mxu0
    %v2754 = vadd.f32 %v2705, %v2753
    %v2755 = vpop.f32.mrf.mxu0
    %v2756 = vadd.f32 %v2707, %v2755
    %2757 = vmatmul.bf16.gmra.mxu0 %v906
    %v2758 = vpop.f32.mrf.mxu0
    %v2759 = vadd.f32 %v2710, %v2758
    %v2760 = vpop.f32.mrf.mxu0
    %v2761 = vadd.f32 %v2712, %v2760
    %2762 = vdwg.mxu0
    %2763 = vmatpush.bf16.msra.mxu0 %v1968
    %2764 = vmatpush.bf16.msra.mxu0 %v1966
    %2765 = vmatpush.bf16.msra.mxu0 %v1964
    %2766 = vmatpush.bf16.msra.mxu0 %v1962
    %2767 = vmatpush.bf16.msra.mxu0 %v1960
    %2768 = vmatpush.bf16.msra.mxu0 %v1958
    %2769 = vmatpush.bf16.msra.mxu0 %v1956
    %2770 = vmatpush.bf16.msra.mxu0 %v1954
    %2771 = vmatmul.bf16.gmra.mxu0 %v795
    %v2772 = vpop.f32.mrf.mxu0
    %v2773 = vadd.f32 %v2724, %v2772
    %v2774 = vpop.f32.mrf.mxu0
    %v2775 = vadd.f32 %v2726, %v2774
    %2776 = vmatmul.bf16.gmra.mxu0 %v811
    %v2777 = vpop.f32.mrf.mxu0
    %v2778 = vadd.f32 %v2729, %v2777
    %v2779 = vpop.f32.mrf.mxu0
    %v2780 = vadd.f32 %v2731, %v2779
    %2781 = vmatmul.bf16.gmra.mxu0 %v827
    %v2782 = vpop.f32.mrf.mxu0
    %v2783 = vadd.f32 %v2734, %v2782
    %v2784 = vpop.f32.mrf.mxu0
    %v2785 = vadd.f32 %v2736, %v2784
    %2786 = vmatmul.bf16.gmra.mxu0 %v843
    %v2787 = vpop.f32.mrf.mxu0
    %v2788 = vadd.f32 %v2739, %v2787
    %v2789 = vpop.f32.mrf.mxu0
    %v2790 = vadd.f32 %v2741, %v2789
    %2791 = vmatmul.bf16.gmra.mxu0 %v859
    %v2792 = vpop.f32.mrf.mxu0
    %v2793 = vadd.f32 %v2744, %v2792
    %v2794 = vpop.f32.mrf.mxu0
    %v2795 = vadd.f32 %v2746, %v2794
    %2796 = vmatmul.bf16.gmra.mxu0 %v875
    %v2797 = vpop.f32.mrf.mxu0
    %v2798 = vadd.f32 %v2749, %v2797
    %v2799 = vpop.f32.mrf.mxu0
    %v2800 = vadd.f32 %v2751, %v2799
    %2801 = vmatmul.bf16.gmra.mxu0 %v891
    %v2802 = vpop.f32.mrf.mxu0
    %v2803 = vadd.f32 %v2754, %v2802
    %v2804 = vpop.f32.mrf.mxu0
    %v2805 = vadd.f32 %v2756, %v2804
    %2806 = vmatmul.bf16.gmra.mxu0 %v907
    %v2807 = vpop.f32.mrf.mxu0
    %v2808 = vadd.f32 %v2759, %v2807
    %v2809 = vpop.f32.mrf.mxu0
    %v2810 = vadd.f32 %v2761, %v2809
    %2811 = vdwg.mxu0
    %2812 = vmatpush.bf16.msra.mxu0 %v1984
    %2813 = vmatpush.bf16.msra.mxu0 %v1982
    %2814 = vmatpush.bf16.msra.mxu0 %v1980
    %2815 = vmatpush.bf16.msra.mxu0 %v1978
    %2816 = vmatpush.bf16.msra.mxu0 %v1976
    %2817 = vmatpush.bf16.msra.mxu0 %v1974
    %2818 = vmatpush.bf16.msra.mxu0 %v1972
    %2819 = vmatpush.bf16.msra.mxu0 %v1970
    %2820 = vmatmul.bf16.gmra.mxu0 %v796
    %v2821 = vpop.f32.mrf.mxu0
    %v2822 = vadd.f32 %v2773, %v2821
    %v2823 = vpop.f32.mrf.mxu0
    %v2824 = vadd.f32 %v2775, %v2823
    %2825 = vmatmul.bf16.gmra.mxu0 %v812
    %v2826 = vpop.f32.mrf.mxu0
    %v2827 = vadd.f32 %v2778, %v2826
    %v2828 = vpop.f32.mrf.mxu0
    %v2829 = vadd.f32 %v2780, %v2828
    %2830 = vmatmul.bf16.gmra.mxu0 %v828
    %v2831 = vpop.f32.mrf.mxu0
    %v2832 = vadd.f32 %v2783, %v2831
    %v2833 = vpop.f32.mrf.mxu0
    %v2834 = vadd.f32 %v2785, %v2833
    %2835 = vmatmul.bf16.gmra.mxu0 %v844
    %v2836 = vpop.f32.mrf.mxu0
    %v2837 = vadd.f32 %v2788, %v2836
    %v2838 = vpop.f32.mrf.mxu0
    %v2839 = vadd.f32 %v2790, %v2838
    %2840 = vmatmul.bf16.gmra.mxu0 %v860
    %v2841 = vpop.f32.mrf.mxu0
    %v2842 = vadd.f32 %v2793, %v2841
    %v2843 = vpop.f32.mrf.mxu0
    %v2844 = vadd.f32 %v2795, %v2843
    %2845 = vmatmul.bf16.gmra.mxu0 %v876
    %v2846 = vpop.f32.mrf.mxu0
    %v2847 = vadd.f32 %v2798, %v2846
    %v2848 = vpop.f32.mrf.mxu0
    %v2849 = vadd.f32 %v2800, %v2848
    %2850 = vmatmul.bf16.gmra.mxu0 %v892
    %v2851 = vpop.f32.mrf.mxu0
    %v2852 = vadd.f32 %v2803, %v2851
    %v2853 = vpop.f32.mrf.mxu0
    %v2854 = vadd.f32 %v2805, %v2853
    %2855 = vmatmul.bf16.gmra.mxu0 %v908
    %v2856 = vpop.f32.mrf.mxu0
    %v2857 = vadd.f32 %v2808, %v2856
    %v2858 = vpop.f32.mrf.mxu0
    %v2859 = vadd.f32 %v2810, %v2858
    %2860 = vdwg.mxu0
    %2861 = vmatpush.bf16.msra.mxu0 %v2000
    %2862 = vmatpush.bf16.msra.mxu0 %v1998
    %2863 = vmatpush.bf16.msra.mxu0 %v1996
    %2864 = vmatpush.bf16.msra.mxu0 %v1994
    %2865 = vmatpush.bf16.msra.mxu0 %v1992
    %2866 = vmatpush.bf16.msra.mxu0 %v1990
    %2867 = vmatpush.bf16.msra.mxu0 %v1988
    %2868 = vmatpush.bf16.msra.mxu0 %v1986
    %2869 = vmatmul.bf16.gmra.mxu0 %v797
    %v2870 = vpop.f32.mrf.mxu0
    %v2871 = vadd.f32 %v2822, %v2870
    %v2872 = vpop.f32.mrf.mxu0
    %v2873 = vadd.f32 %v2824, %v2872
    %2874 = vmatmul.bf16.gmra.mxu0 %v813
    %v2875 = vpop.f32.mrf.mxu0
    %v2876 = vadd.f32 %v2827, %v2875
    %v2877 = vpop.f32.mrf.mxu0
    %v2878 = vadd.f32 %v2829, %v2877
    %2879 = vmatmul.bf16.gmra.mxu0 %v829
    %v2880 = vpop.f32.mrf.mxu0
    %v2881 = vadd.f32 %v2832, %v2880
    %v2882 = vpop.f32.mrf.mxu0
    %v2883 = vadd.f32 %v2834, %v2882
    %2884 = vmatmul.bf16.gmra.mxu0 %v845
    %v2885 = vpop.f32.mrf.mxu0
    %v2886 = vadd.f32 %v2837, %v2885
    %v2887 = vpop.f32.mrf.mxu0
    %v2888 = vadd.f32 %v2839, %v2887
    %2889 = vmatmul.bf16.gmra.mxu0 %v861
    %v2890 = vpop.f32.mrf.mxu0
    %v2891 = vadd.f32 %v2842, %v2890
    %v2892 = vpop.f32.mrf.mxu0
    %v2893 = vadd.f32 %v2844, %v2892
    %2894 = vmatmul.bf16.gmra.mxu0 %v877
    %v2895 = vpop.f32.mrf.mxu0
    %v2896 = vadd.f32 %v2847, %v2895
    %v2897 = vpop.f32.mrf.mxu0
    %v2898 = vadd.f32 %v2849, %v2897
    %2899 = vmatmul.bf16.gmra.mxu0 %v893
    %v2900 = vpop.f32.mrf.mxu0
    %v2901 = vadd.f32 %v2852, %v2900
    %v2902 = vpop.f32.mrf.mxu0
    %v2903 = vadd.f32 %v2854, %v2902
    %2904 = vmatmul.bf16.gmra.mxu0 %v909
    %v2905 = vpop.f32.mrf.mxu0
    %v2906 = vadd.f32 %v2857, %v2905
    %v2907 = vpop.f32.mrf.mxu0
    %v2908 = vadd.f32 %v2859, %v2907
    %2909 = vdwg.mxu0
    %2910 = vmatpush.bf16.msra.mxu0 %v2016
    %2911 = vmatpush.bf16.msra.mxu0 %v2014
    %2912 = vmatpush.bf16.msra.mxu0 %v2012
    %2913 = vmatpush.bf16.msra.mxu0 %v2010
    %2914 = vmatpush.bf16.msra.mxu0 %v2008
    %2915 = vmatpush.bf16.msra.mxu0 %v2006
    %2916 = vmatpush.bf16.msra.mxu0 %v2004
    %2917 = vmatpush.bf16.msra.mxu0 %v2002
    %2918 = vmatmul.bf16.gmra.mxu0 %v798
    %v2919 = vpop.f32.mrf.mxu0
    %v2920 = vadd.f32 %v2871, %v2919
    %v2921 = vpop.f32.mrf.mxu0
    %v2922 = vadd.f32 %v2873, %v2921
    %2923 = vmatmul.bf16.gmra.mxu0 %v814
    %v2924 = vpop.f32.mrf.mxu0
    %v2925 = vadd.f32 %v2876, %v2924
    %v2926 = vpop.f32.mrf.mxu0
    %v2927 = vadd.f32 %v2878, %v2926
    %2928 = vmatmul.bf16.gmra.mxu0 %v830
    %v2929 = vpop.f32.mrf.mxu0
    %v2930 = vadd.f32 %v2881, %v2929
    %v2931 = vpop.f32.mrf.mxu0
    %v2932 = vadd.f32 %v2883, %v2931
    %2933 = vmatmul.bf16.gmra.mxu0 %v846
    %v2934 = vpop.f32.mrf.mxu0
    %v2935 = vadd.f32 %v2886, %v2934
    %v2936 = vpop.f32.mrf.mxu0
    %v2937 = vadd.f32 %v2888, %v2936
    %2938 = vmatmul.bf16.gmra.mxu0 %v862
    %v2939 = vpop.f32.mrf.mxu0
    %v2940 = vadd.f32 %v2891, %v2939
    %v2941 = vpop.f32.mrf.mxu0
    %v2942 = vadd.f32 %v2893, %v2941
    %2943 = vmatmul.bf16.gmra.mxu0 %v878
    %v2944 = vpop.f32.mrf.mxu0
    %v2945 = vadd.f32 %v2896, %v2944
    %v2946 = vpop.f32.mrf.mxu0
    %v2947 = vadd.f32 %v2898, %v2946
    %2948 = vmatmul.bf16.gmra.mxu0 %v894
    %v2949 = vpop.f32.mrf.mxu0
    %v2950 = vadd.f32 %v2901, %v2949
    %v2951 = vpop.f32.mrf.mxu0
    %v2952 = vadd.f32 %v2903, %v2951
    %2953 = vmatmul.bf16.gmra.mxu0 %v910
    %v2954 = vpop.f32.mrf.mxu0
    %v2955 = vadd.f32 %v2906, %v2954
    %v2956 = vpop.f32.mrf.mxu0
    %v2957 = vadd.f32 %v2908, %v2956
    %2958 = vdwg.mxu0
    %2959 = vmatpush.bf16.msra.mxu0 %v2032
    %2960 = vmatpush.bf16.msra.mxu0 %v2030
    %2961 = vmatpush.bf16.msra.mxu0 %v2028
    %2962 = vmatpush.bf16.msra.mxu0 %v2026
    %2963 = vmatpush.bf16.msra.mxu0 %v2024
    %2964 = vmatpush.bf16.msra.mxu0 %v2022
    %2965 = vmatpush.bf16.msra.mxu0 %v2020
    %2966 = vmatpush.bf16.msra.mxu0 %v2018
    %2967 = vmatmul.bf16.gmra.mxu0 %v799
    %v2968 = vpop.f32.mrf.mxu0
    %v2969 = vadd.f32 %v2920, %v2968
    %v2970 = vpop.f32.mrf.mxu0
    %v2971 = vadd.f32 %v2922, %v2970
    %2972 = vmatmul.bf16.gmra.mxu0 %v815
    %v2973 = vpop.f32.mrf.mxu0
    %v2974 = vadd.f32 %v2925, %v2973
    %v2975 = vpop.f32.mrf.mxu0
    %v2976 = vadd.f32 %v2927, %v2975
    %2977 = vmatmul.bf16.gmra.mxu0 %v831
    %v2978 = vpop.f32.mrf.mxu0
    %v2979 = vadd.f32 %v2930, %v2978
    %v2980 = vpop.f32.mrf.mxu0
    %v2981 = vadd.f32 %v2932, %v2980
    %2982 = vmatmul.bf16.gmra.mxu0 %v847
    %v2983 = vpop.f32.mrf.mxu0
    %v2984 = vadd.f32 %v2935, %v2983
    %v2985 = vpop.f32.mrf.mxu0
    %v2986 = vadd.f32 %v2937, %v2985
    %2987 = vmatmul.bf16.gmra.mxu0 %v863
    %v2988 = vpop.f32.mrf.mxu0
    %v2989 = vadd.f32 %v2940, %v2988
    %v2990 = vpop.f32.mrf.mxu0
    %v2991 = vadd.f32 %v2942, %v2990
    %2992 = vmatmul.bf16.gmra.mxu0 %v879
    %v2993 = vpop.f32.mrf.mxu0
    %v2994 = vadd.f32 %v2945, %v2993
    %v2995 = vpop.f32.mrf.mxu0
    %v2996 = vadd.f32 %v2947, %v2995
    %2997 = vmatmul.bf16.gmra.mxu0 %v895
    %v2998 = vpop.f32.mrf.mxu0
    %v2999 = vadd.f32 %v2950, %v2998
    %v3000 = vpop.f32.mrf.mxu0
    %v3001 = vadd.f32 %v2952, %v3000
    %3002 = vmatmul.bf16.gmra.mxu0 %v911
    %v3003 = vpop.f32.mrf.mxu0
    %v3004 = vadd.f32 %v2955, %v3003
    %v3005 = vpop.f32.mrf.mxu0
    %v3006 = vadd.f32 %v2957, %v3005
    %3007 = vdwg.mxu0
    %3008 = vmatpush.bf16.msra.mxu0 %v2048
    %3009 = vmatpush.bf16.msra.mxu0 %v2046
    %3010 = vmatpush.bf16.msra.mxu0 %v2044
    %3011 = vmatpush.bf16.msra.mxu0 %v2042
    %3012 = vmatpush.bf16.msra.mxu0 %v2040
    %3013 = vmatpush.bf16.msra.mxu0 %v2038
    %3014 = vmatpush.bf16.msra.mxu0 %v2036
    %3015 = vmatpush.bf16.msra.mxu0 %v2034
    %3016 = vmatmul.bf16.gmra.mxu0 %v800
    %v3017 = vpop.f32.mrf.mxu0
    %v3018 = vadd.f32 %v2969, %v3017
    %v3019 = vpop.f32.mrf.mxu0
    %v3020 = vadd.f32 %v2971, %v3019
    %3021 = vmatmul.bf16.gmra.mxu0 %v816
    %v3022 = vpop.f32.mrf.mxu0
    %v3023 = vadd.f32 %v2974, %v3022
    %v3024 = vpop.f32.mrf.mxu0
    %v3025 = vadd.f32 %v2976, %v3024
    %3026 = vmatmul.bf16.gmra.mxu0 %v832
    %v3027 = vpop.f32.mrf.mxu0
    %v3028 = vadd.f32 %v2979, %v3027
    %v3029 = vpop.f32.mrf.mxu0
    %v3030 = vadd.f32 %v2981, %v3029
    %3031 = vmatmul.bf16.gmra.mxu0 %v848
    %v3032 = vpop.f32.mrf.mxu0
    %v3033 = vadd.f32 %v2984, %v3032
    %v3034 = vpop.f32.mrf.mxu0
    %v3035 = vadd.f32 %v2986, %v3034
    %3036 = vmatmul.bf16.gmra.mxu0 %v864
    %v3037 = vpop.f32.mrf.mxu0
    %v3038 = vadd.f32 %v2989, %v3037
    %v3039 = vpop.f32.mrf.mxu0
    %v3040 = vadd.f32 %v2991, %v3039
    %3041 = vmatmul.bf16.gmra.mxu0 %v880
    %v3042 = vpop.f32.mrf.mxu0
    %v3043 = vadd.f32 %v2994, %v3042
    %v3044 = vpop.f32.mrf.mxu0
    %v3045 = vadd.f32 %v2996, %v3044
    %3046 = vmatmul.bf16.gmra.mxu0 %v896
    %v3047 = vpop.f32.mrf.mxu0
    %v3048 = vadd.f32 %v2999, %v3047
    %v3049 = vpop.f32.mrf.mxu0
    %v3050 = vadd.f32 %v3001, %v3049
    %3051 = vmatmul.bf16.gmra.mxu0 %v912
    %v3052 = vpop.f32.mrf.mxu0
    %v3053 = vadd.f32 %v3004, %v3052
    %v3054 = vpop.f32.mrf.mxu0
    %v3055 = vadd.f32 %v3006, %v3054
    %3056 = vdwg.mxu0
    %3057 = vmatpush.bf16.msra.mxu0 %v2064
    %3058 = vmatpush.bf16.msra.mxu0 %v2062
    %3059 = vmatpush.bf16.msra.mxu0 %v2060
    %3060 = vmatpush.bf16.msra.mxu0 %v2058
    %3061 = vmatpush.bf16.msra.mxu0 %v2056
    %3062 = vmatpush.bf16.msra.mxu0 %v2054
    %3063 = vmatpush.bf16.msra.mxu0 %v2052
    %3064 = vmatpush.bf16.msra.mxu0 %v2050
    %3065 = vmatmul.bf16.gmra.mxu0 %v801
    %v3066 = vpop.f32.mrf.mxu0
    %v3067 = vadd.f32 %v3018, %v3066
    %v3068 = vpop.f32.mrf.mxu0
    %v3069 = vadd.f32 %v3020, %v3068
    %3070 = vmatmul.bf16.gmra.mxu0 %v817
    %v3071 = vpop.f32.mrf.mxu0
    %v3072 = vadd.f32 %v3023, %v3071
    %v3073 = vpop.f32.mrf.mxu0
    %v3074 = vadd.f32 %v3025, %v3073
    %3075 = vmatmul.bf16.gmra.mxu0 %v833
    %v3076 = vpop.f32.mrf.mxu0
    %v3077 = vadd.f32 %v3028, %v3076
    %v3078 = vpop.f32.mrf.mxu0
    %v3079 = vadd.f32 %v3030, %v3078
    %3080 = vmatmul.bf16.gmra.mxu0 %v849
    %v3081 = vpop.f32.mrf.mxu0
    %v3082 = vadd.f32 %v3033, %v3081
    %v3083 = vpop.f32.mrf.mxu0
    %v3084 = vadd.f32 %v3035, %v3083
    %3085 = vmatmul.bf16.gmra.mxu0 %v865
    %v3086 = vpop.f32.mrf.mxu0
    %v3087 = vadd.f32 %v3038, %v3086
    %v3088 = vpop.f32.mrf.mxu0
    %v3089 = vadd.f32 %v3040, %v3088
    %3090 = vmatmul.bf16.gmra.mxu0 %v881
    %v3091 = vpop.f32.mrf.mxu0
    %v3092 = vadd.f32 %v3043, %v3091
    %v3093 = vpop.f32.mrf.mxu0
    %v3094 = vadd.f32 %v3045, %v3093
    %3095 = vmatmul.bf16.gmra.mxu0 %v897
    %v3096 = vpop.f32.mrf.mxu0
    %v3097 = vadd.f32 %v3048, %v3096
    %v3098 = vpop.f32.mrf.mxu0
    %v3099 = vadd.f32 %v3050, %v3098
    %3100 = vmatmul.bf16.gmra.mxu0 %v913
    %v3101 = vpop.f32.mrf.mxu0
    %v3102 = vadd.f32 %v3053, %v3101
    %v3103 = vpop.f32.mrf.mxu0
    %v3104 = vadd.f32 %v3055, %v3103
    %3105 = vdwg.mxu0
    %3106 = vmatpush.bf16.msra.mxu0 %v1825
    %3107 = vmatpush.bf16.msra.mxu0 %v1823
    %3108 = vmatpush.bf16.msra.mxu0 %v1821
    %3109 = vmatpush.bf16.msra.mxu0 %v1819
    %3110 = vmatpush.bf16.msra.mxu0 %v1817
    %3111 = vmatpush.bf16.msra.mxu0 %v1815
    %3112 = vmatpush.bf16.msra.mxu0 %v1813
    %3113 = vmatpush.bf16.msra.mxu0 %v1811
    %3114 = vmatmul.bf16.gmra.mxu0 %v786
    %v3115 = vpop.f32.mrf.mxu0
    %v3116 = vadd.f32 0.0, %v3115
    %v3117 = vpop.f32.mrf.mxu0
    %v3118 = vadd.f32 0.0, %v3117
    %3119 = vmatmul.bf16.gmra.mxu0 %v802
    %v3120 = vpop.f32.mrf.mxu0
    %v3121 = vadd.f32 0.0, %v3120
    %v3122 = vpop.f32.mrf.mxu0
    %v3123 = vadd.f32 0.0, %v3122
    %3124 = vmatmul.bf16.gmra.mxu0 %v818
    %v3125 = vpop.f32.mrf.mxu0
    %v3126 = vadd.f32 0.0, %v3125
    %v3127 = vpop.f32.mrf.mxu0
    %v3128 = vadd.f32 0.0, %v3127
    %3129 = vmatmul.bf16.gmra.mxu0 %v834
    %v3130 = vpop.f32.mrf.mxu0
    %v3131 = vadd.f32 0.0, %v3130
    %v3132 = vpop.f32.mrf.mxu0
    %v3133 = vadd.f32 0.0, %v3132
    %3134 = vmatmul.bf16.gmra.mxu0 %v850
    %v3135 = vpop.f32.mrf.mxu0
    %v3136 = vadd.f32 0.0, %v3135
    %v3137 = vpop.f32.mrf.mxu0
    %v3138 = vadd.f32 0.0, %v3137
    %3139 = vmatmul.bf16.gmra.mxu0 %v866
    %v3140 = vpop.f32.mrf.mxu0
    %v3141 = vadd.f32 0.0, %v3140
    %v3142 = vpop.f32.mrf.mxu0
    %v3143 = vadd.f32 0.0, %v3142
    %3144 = vmatmul.bf16.gmra.mxu0 %v882
    %v3145 = vpop.f32.mrf.mxu0
    %v3146 = vadd.f32 0.0, %v3145
    %v3147 = vpop.f32.mrf.mxu0
    %v3148 = vadd.f32 0.0, %v3147
    %3149 = vmatmul.bf16.gmra.mxu0 %v898
    %v3150 = vpop.f32.mrf.mxu0
    %v3151 = vadd.f32 0.0, %v3150
    %v3152 = vpop.f32.mrf.mxu0
    %v3153 = vadd.f32 0.0, %v3152
    %3154 = vdwg.mxu0
    %3155 = vmatpush.bf16.msra.mxu0 %v1841
    %3156 = vmatpush.bf16.msra.mxu0 %v1839
    %3157 = vmatpush.bf16.msra.mxu0 %v1837
    %3158 = vmatpush.bf16.msra.mxu0 %v1835
    %3159 = vmatpush.bf16.msra.mxu0 %v1833
    %3160 = vmatpush.bf16.msra.mxu0 %v1831
    %3161 = vmatpush.bf16.msra.mxu0 %v1829
    %3162 = vmatpush.bf16.msra.mxu0 %v1827
    %3163 = vmatmul.bf16.gmra.mxu0 %v787
    %v3164 = vpop.f32.mrf.mxu0
    %v3165 = vadd.f32 %v3116, %v3164
    %v3166 = vpop.f32.mrf.mxu0
    %v3167 = vadd.f32 %v3118, %v3166
    %3168 = vmatmul.bf16.gmra.mxu0 %v803
    %v3169 = vpop.f32.mrf.mxu0
    %v3170 = vadd.f32 %v3121, %v3169
    %v3171 = vpop.f32.mrf.mxu0
    %v3172 = vadd.f32 %v3123, %v3171
    %3173 = vmatmul.bf16.gmra.mxu0 %v819
    %v3174 = vpop.f32.mrf.mxu0
    %v3175 = vadd.f32 %v3126, %v3174
    %v3176 = vpop.f32.mrf.mxu0
    %v3177 = vadd.f32 %v3128, %v3176
    %3178 = vmatmul.bf16.gmra.mxu0 %v835
    %v3179 = vpop.f32.mrf.mxu0
    %v3180 = vadd.f32 %v3131, %v3179
    %v3181 = vpop.f32.mrf.mxu0
    %v3182 = vadd.f32 %v3133, %v3181
    %3183 = vmatmul.bf16.gmra.mxu0 %v851
    %v3184 = vpop.f32.mrf.mxu0
    %v3185 = vadd.f32 %v3136, %v3184
    %v3186 = vpop.f32.mrf.mxu0
    %v3187 = vadd.f32 %v3138, %v3186
    %3188 = vmatmul.bf16.gmra.mxu0 %v867
    %v3189 = vpop.f32.mrf.mxu0
    %v3190 = vadd.f32 %v3141, %v3189
    %v3191 = vpop.f32.mrf.mxu0
    %v3192 = vadd.f32 %v3143, %v3191
    %3193 = vmatmul.bf16.gmra.mxu0 %v883
    %v3194 = vpop.f32.mrf.mxu0
    %v3195 = vadd.f32 %v3146, %v3194
    %v3196 = vpop.f32.mrf.mxu0
    %v3197 = vadd.f32 %v3148, %v3196
    %3198 = vmatmul.bf16.gmra.mxu0 %v899
    %v3199 = vpop.f32.mrf.mxu0
    %v3200 = vadd.f32 %v3151, %v3199
    %v3201 = vpop.f32.mrf.mxu0
    %v3202 = vadd.f32 %v3153, %v3201
    %3203 = vdwg.mxu0
    %3204 = vmatpush.bf16.msra.mxu0 %v1857
    %3205 = vmatpush.bf16.msra.mxu0 %v1855
    %3206 = vmatpush.bf16.msra.mxu0 %v1853
    %3207 = vmatpush.bf16.msra.mxu0 %v1851
    %3208 = vmatpush.bf16.msra.mxu0 %v1849
    %3209 = vmatpush.bf16.msra.mxu0 %v1847
    %3210 = vmatpush.bf16.msra.mxu0 %v1845
    %3211 = vmatpush.bf16.msra.mxu0 %v1843
    %3212 = vmatmul.bf16.gmra.mxu0 %v788
    %v3213 = vpop.f32.mrf.mxu0
    %v3214 = vadd.f32 %v3165, %v3213
    %v3215 = vpop.f32.mrf.mxu0
    %v3216 = vadd.f32 %v3167, %v3215
    %3217 = vmatmul.bf16.gmra.mxu0 %v804
    %v3218 = vpop.f32.mrf.mxu0
    %v3219 = vadd.f32 %v3170, %v3218
    %v3220 = vpop.f32.mrf.mxu0
    %v3221 = vadd.f32 %v3172, %v3220
    %3222 = vmatmul.bf16.gmra.mxu0 %v820
    %v3223 = vpop.f32.mrf.mxu0
    %v3224 = vadd.f32 %v3175, %v3223
    %v3225 = vpop.f32.mrf.mxu0
    %v3226 = vadd.f32 %v3177, %v3225
    %3227 = vmatmul.bf16.gmra.mxu0 %v836
    %v3228 = vpop.f32.mrf.mxu0
    %v3229 = vadd.f32 %v3180, %v3228
    %v3230 = vpop.f32.mrf.mxu0
    %v3231 = vadd.f32 %v3182, %v3230
    %3232 = vmatmul.bf16.gmra.mxu0 %v852
    %v3233 = vpop.f32.mrf.mxu0
    %v3234 = vadd.f32 %v3185, %v3233
    %v3235 = vpop.f32.mrf.mxu0
    %v3236 = vadd.f32 %v3187, %v3235
    %3237 = vmatmul.bf16.gmra.mxu0 %v868
    %v3238 = vpop.f32.mrf.mxu0
    %v3239 = vadd.f32 %v3190, %v3238
    %v3240 = vpop.f32.mrf.mxu0
    %v3241 = vadd.f32 %v3192, %v3240
    %3242 = vmatmul.bf16.gmra.mxu0 %v884
    %v3243 = vpop.f32.mrf.mxu0
    %v3244 = vadd.f32 %v3195, %v3243
    %v3245 = vpop.f32.mrf.mxu0
    %v3246 = vadd.f32 %v3197, %v3245
    %3247 = vmatmul.bf16.gmra.mxu0 %v900
    %v3248 = vpop.f32.mrf.mxu0
    %v3249 = vadd.f32 %v3200, %v3248
    %v3250 = vpop.f32.mrf.mxu0
    %v3251 = vadd.f32 %v3202, %v3250
    %3252 = vdwg.mxu0
    %3253 = vmatpush.bf16.msra.mxu0 %v1873
    %3254 = vmatpush.bf16.msra.mxu0 %v1871
    %3255 = vmatpush.bf16.msra.mxu0 %v1869
    %3256 = vmatpush.bf16.msra.mxu0 %v1867
    %3257 = vmatpush.bf16.msra.mxu0 %v1865
    %3258 = vmatpush.bf16.msra.mxu0 %v1863
    %3259 = vmatpush.bf16.msra.mxu0 %v1861
    %3260 = vmatpush.bf16.msra.mxu0 %v1859
    %3261 = vmatmul.bf16.gmra.mxu0 %v789
    %v3262 = vpop.f32.mrf.mxu0
    %v3263 = vadd.f32 %v3214, %v3262
    %v3264 = vpop.f32.mrf.mxu0
    %v3265 = vadd.f32 %v3216, %v3264
    %3266 = vmatmul.bf16.gmra.mxu0 %v805
    %v3267 = vpop.f32.mrf.mxu0
    %v3268 = vadd.f32 %v3219, %v3267
    %v3269 = vpop.f32.mrf.mxu0
    %v3270 = vadd.f32 %v3221, %v3269
    %3271 = vmatmul.bf16.gmra.mxu0 %v821
    %v3272 = vpop.f32.mrf.mxu0
    %v3273 = vadd.f32 %v3224, %v3272
    %v3274 = vpop.f32.mrf.mxu0
    %v3275 = vadd.f32 %v3226, %v3274
    %3276 = vmatmul.bf16.gmra.mxu0 %v837
    %v3277 = vpop.f32.mrf.mxu0
    %v3278 = vadd.f32 %v3229, %v3277
    %v3279 = vpop.f32.mrf.mxu0
    %v3280 = vadd.f32 %v3231, %v3279
    %3281 = vmatmul.bf16.gmra.mxu0 %v853
    %v3282 = vpop.f32.mrf.mxu0
    %v3283 = vadd.f32 %v3234, %v3282
    %v3284 = vpop.f32.mrf.mxu0
    %v3285 = vadd.f32 %v3236, %v3284
    %3286 = vmatmul.bf16.gmra.mxu0 %v869
    %v3287 = vpop.f32.mrf.mxu0
    %v3288 = vadd.f32 %v3239, %v3287
    %v3289 = vpop.f32.mrf.mxu0
    %v3290 = vadd.f32 %v3241, %v3289
    %3291 = vmatmul.bf16.gmra.mxu0 %v885
    %v3292 = vpop.f32.mrf.mxu0
    %v3293 = vadd.f32 %v3244, %v3292
    %v3294 = vpop.f32.mrf.mxu0
    %v3295 = vadd.f32 %v3246, %v3294
    %3296 = vmatmul.bf16.gmra.mxu0 %v901
    %v3297 = vpop.f32.mrf.mxu0
    %v3298 = vadd.f32 %v3249, %v3297
    %v3299 = vpop.f32.mrf.mxu0
    %v3300 = vadd.f32 %v3251, %v3299
    %3301 = vdwg.mxu0
    %3302 = vmatpush.bf16.msra.mxu0 %v1889
    %3303 = vmatpush.bf16.msra.mxu0 %v1887
    %3304 = vmatpush.bf16.msra.mxu0 %v1885
    %3305 = vmatpush.bf16.msra.mxu0 %v1883
    %3306 = vmatpush.bf16.msra.mxu0 %v1881
    %3307 = vmatpush.bf16.msra.mxu0 %v1879
    %3308 = vmatpush.bf16.msra.mxu0 %v1877
    %3309 = vmatpush.bf16.msra.mxu0 %v1875
    %3310 = vmatmul.bf16.gmra.mxu0 %v790
    %v3311 = vpop.f32.mrf.mxu0
    %v3312 = vadd.f32 %v3263, %v3311
    %v3313 = vpop.f32.mrf.mxu0
    %v3314 = vadd.f32 %v3265, %v3313
    %3315 = vmatmul.bf16.gmra.mxu0 %v806
    %v3316 = vpop.f32.mrf.mxu0
    %v3317 = vadd.f32 %v3268, %v3316
    %v3318 = vpop.f32.mrf.mxu0
    %v3319 = vadd.f32 %v3270, %v3318
    %3320 = vmatmul.bf16.gmra.mxu0 %v822
    %v3321 = vpop.f32.mrf.mxu0
    %v3322 = vadd.f32 %v3273, %v3321
    %v3323 = vpop.f32.mrf.mxu0
    %v3324 = vadd.f32 %v3275, %v3323
    %3325 = vmatmul.bf16.gmra.mxu0 %v838
    %v3326 = vpop.f32.mrf.mxu0
    %v3327 = vadd.f32 %v3278, %v3326
    %v3328 = vpop.f32.mrf.mxu0
    %v3329 = vadd.f32 %v3280, %v3328
    %3330 = vmatmul.bf16.gmra.mxu0 %v854
    %v3331 = vpop.f32.mrf.mxu0
    %v3332 = vadd.f32 %v3283, %v3331
    %v3333 = vpop.f32.mrf.mxu0
    %v3334 = vadd.f32 %v3285, %v3333
    %3335 = vmatmul.bf16.gmra.mxu0 %v870
    %v3336 = vpop.f32.mrf.mxu0
    %v3337 = vadd.f32 %v3288, %v3336
    %v3338 = vpop.f32.mrf.mxu0
    %v3339 = vadd.f32 %v3290, %v3338
    %3340 = vmatmul.bf16.gmra.mxu0 %v886
    %v3341 = vpop.f32.mrf.mxu0
    %v3342 = vadd.f32 %v3293, %v3341
    %v3343 = vpop.f32.mrf.mxu0
    %v3344 = vadd.f32 %v3295, %v3343
    %3345 = vmatmul.bf16.gmra.mxu0 %v902
    %v3346 = vpop.f32.mrf.mxu0
    %v3347 = vadd.f32 %v3298, %v3346
    %v3348 = vpop.f32.mrf.mxu0
    %v3349 = vadd.f32 %v3300, %v3348
    %3350 = vdwg.mxu0
    %3351 = vmatpush.bf16.msra.mxu0 %v1905
    %3352 = vmatpush.bf16.msra.mxu0 %v1903
    %3353 = vmatpush.bf16.msra.mxu0 %v1901
    %3354 = vmatpush.bf16.msra.mxu0 %v1899
    %3355 = vmatpush.bf16.msra.mxu0 %v1897
    %3356 = vmatpush.bf16.msra.mxu0 %v1895
    %3357 = vmatpush.bf16.msra.mxu0 %v1893
    %3358 = vmatpush.bf16.msra.mxu0 %v1891
    %3359 = vmatmul.bf16.gmra.mxu0 %v791
    %v3360 = vpop.f32.mrf.mxu0
    %v3361 = vadd.f32 %v3312, %v3360
    %v3362 = vpop.f32.mrf.mxu0
    %v3363 = vadd.f32 %v3314, %v3362
    %3364 = vmatmul.bf16.gmra.mxu0 %v807
    %v3365 = vpop.f32.mrf.mxu0
    %v3366 = vadd.f32 %v3317, %v3365
    %v3367 = vpop.f32.mrf.mxu0
    %v3368 = vadd.f32 %v3319, %v3367
    %3369 = vmatmul.bf16.gmra.mxu0 %v823
    %v3370 = vpop.f32.mrf.mxu0
    %v3371 = vadd.f32 %v3322, %v3370
    %v3372 = vpop.f32.mrf.mxu0
    %v3373 = vadd.f32 %v3324, %v3372
    %3374 = vmatmul.bf16.gmra.mxu0 %v839
    %v3375 = vpop.f32.mrf.mxu0
    %v3376 = vadd.f32 %v3327, %v3375
    %v3377 = vpop.f32.mrf.mxu0
    %v3378 = vadd.f32 %v3329, %v3377
    %3379 = vmatmul.bf16.gmra.mxu0 %v855
    %v3380 = vpop.f32.mrf.mxu0
    %v3381 = vadd.f32 %v3332, %v3380
    %v3382 = vpop.f32.mrf.mxu0
    %v3383 = vadd.f32 %v3334, %v3382
    %3384 = vmatmul.bf16.gmra.mxu0 %v871
    %v3385 = vpop.f32.mrf.mxu0
    %v3386 = vadd.f32 %v3337, %v3385
    %v3387 = vpop.f32.mrf.mxu0
    %v3388 = vadd.f32 %v3339, %v3387
    %3389 = vmatmul.bf16.gmra.mxu0 %v887
    %v3390 = vpop.f32.mrf.mxu0
    %v3391 = vadd.f32 %v3342, %v3390
    %v3392 = vpop.f32.mrf.mxu0
    %v3393 = vadd.f32 %v3344, %v3392
    %3394 = vmatmul.bf16.gmra.mxu0 %v903
    %v3395 = vpop.f32.mrf.mxu0
    %v3396 = vadd.f32 %v3347, %v3395
    %v3397 = vpop.f32.mrf.mxu0
    %v3398 = vadd.f32 %v3349, %v3397
    %3399 = vdwg.mxu0
    %3400 = vmatpush.bf16.msra.mxu0 %v1921
    %3401 = vmatpush.bf16.msra.mxu0 %v1919
    %3402 = vmatpush.bf16.msra.mxu0 %v1917
    %3403 = vmatpush.bf16.msra.mxu0 %v1915
    %3404 = vmatpush.bf16.msra.mxu0 %v1913
    %3405 = vmatpush.bf16.msra.mxu0 %v1911
    %3406 = vmatpush.bf16.msra.mxu0 %v1909
    %3407 = vmatpush.bf16.msra.mxu0 %v1907
    %3408 = vmatmul.bf16.gmra.mxu0 %v792
    %v3409 = vpop.f32.mrf.mxu0
    %v3410 = vadd.f32 %v3361, %v3409
    %v3411 = vpop.f32.mrf.mxu0
    %v3412 = vadd.f32 %v3363, %v3411
    %3413 = vmatmul.bf16.gmra.mxu0 %v808
    %v3414 = vpop.f32.mrf.mxu0
    %v3415 = vadd.f32 %v3366, %v3414
    %v3416 = vpop.f32.mrf.mxu0
    %v3417 = vadd.f32 %v3368, %v3416
    %3418 = vmatmul.bf16.gmra.mxu0 %v824
    %v3419 = vpop.f32.mrf.mxu0
    %v3420 = vadd.f32 %v3371, %v3419
    %v3421 = vpop.f32.mrf.mxu0
    %v3422 = vadd.f32 %v3373, %v3421
    %3423 = vmatmul.bf16.gmra.mxu0 %v840
    %v3424 = vpop.f32.mrf.mxu0
    %v3425 = vadd.f32 %v3376, %v3424
    %v3426 = vpop.f32.mrf.mxu0
    %v3427 = vadd.f32 %v3378, %v3426
    %3428 = vmatmul.bf16.gmra.mxu0 %v856
    %v3429 = vpop.f32.mrf.mxu0
    %v3430 = vadd.f32 %v3381, %v3429
    %v3431 = vpop.f32.mrf.mxu0
    %v3432 = vadd.f32 %v3383, %v3431
    %3433 = vmatmul.bf16.gmra.mxu0 %v872
    %v3434 = vpop.f32.mrf.mxu0
    %v3435 = vadd.f32 %v3386, %v3434
    %v3436 = vpop.f32.mrf.mxu0
    %v3437 = vadd.f32 %v3388, %v3436
    %3438 = vmatmul.bf16.gmra.mxu0 %v888
    %v3439 = vpop.f32.mrf.mxu0
    %v3440 = vadd.f32 %v3391, %v3439
    %v3441 = vpop.f32.mrf.mxu0
    %v3442 = vadd.f32 %v3393, %v3441
    %3443 = vmatmul.bf16.gmra.mxu0 %v904
    %v3444 = vpop.f32.mrf.mxu0
    %v3445 = vadd.f32 %v3396, %v3444
    %v3446 = vpop.f32.mrf.mxu0
    %v3447 = vadd.f32 %v3398, %v3446
    %3448 = vdwg.mxu0
    %3449 = vmatpush.bf16.msra.mxu0 %v1937
    %3450 = vmatpush.bf16.msra.mxu0 %v1935
    %3451 = vmatpush.bf16.msra.mxu0 %v1933
    %3452 = vmatpush.bf16.msra.mxu0 %v1931
    %3453 = vmatpush.bf16.msra.mxu0 %v1929
    %3454 = vmatpush.bf16.msra.mxu0 %v1927
    %3455 = vmatpush.bf16.msra.mxu0 %v1925
    %3456 = vmatpush.bf16.msra.mxu0 %v1923
    %3457 = vmatmul.bf16.gmra.mxu0 %v793
    %v3458 = vpop.f32.mrf.mxu0
    %v3459 = vadd.f32 %v3410, %v3458
    %v3460 = vpop.f32.mrf.mxu0
    %v3461 = vadd.f32 %v3412, %v3460
    %3462 = vmatmul.bf16.gmra.mxu0 %v809
    %v3463 = vpop.f32.mrf.mxu0
    %v3464 = vadd.f32 %v3415, %v3463
    %v3465 = vpop.f32.mrf.mxu0
    %v3466 = vadd.f32 %v3417, %v3465
    %3467 = vmatmul.bf16.gmra.mxu0 %v825
    %v3468 = vpop.f32.mrf.mxu0
    %v3469 = vadd.f32 %v3420, %v3468
    %v3470 = vpop.f32.mrf.mxu0
    %v3471 = vadd.f32 %v3422, %v3470
    %3472 = vmatmul.bf16.gmra.mxu0 %v841
    %v3473 = vpop.f32.mrf.mxu0
    %v3474 = vadd.f32 %v3425, %v3473
    %v3475 = vpop.f32.mrf.mxu0
    %v3476 = vadd.f32 %v3427, %v3475
    %3477 = vmatmul.bf16.gmra.mxu0 %v857
    %v3478 = vpop.f32.mrf.mxu0
    %v3479 = vadd.f32 %v3430, %v3478
    %v3480 = vpop.f32.mrf.mxu0
    %v3481 = vadd.f32 %v3432, %v3480
    %3482 = vmatmul.bf16.gmra.mxu0 %v873
    %v3483 = vpop.f32.mrf.mxu0
    %v3484 = vadd.f32 %v3435, %v3483
    %v3485 = vpop.f32.mrf.mxu0
    %v3486 = vadd.f32 %v3437, %v3485
    %3487 = vmatmul.bf16.gmra.mxu0 %v889
    %v3488 = vpop.f32.mrf.mxu0
    %v3489 = vadd.f32 %v3440, %v3488
    %v3490 = vpop.f32.mrf.mxu0
    %v3491 = vadd.f32 %v3442, %v3490
    %3492 = vmatmul.bf16.gmra.mxu0 %v905
    %v3493 = vpop.f32.mrf.mxu0
    %v3494 = vadd.f32 %v3445, %v3493
    %v3495 = vpop.f32.mrf.mxu0
    %v3496 = vadd.f32 %v3447, %v3495
    %3497 = vdwg.mxu0
    %3498 = vmatpush.bf16.msra.mxu0 %v1953
    %3499 = vmatpush.bf16.msra.mxu0 %v1951
    %3500 = vmatpush.bf16.msra.mxu0 %v1949
    %3501 = vmatpush.bf16.msra.mxu0 %v1947
    %3502 = vmatpush.bf16.msra.mxu0 %v1945
    %3503 = vmatpush.bf16.msra.mxu0 %v1943
    %3504 = vmatpush.bf16.msra.mxu0 %v1941
    %3505 = vmatpush.bf16.msra.mxu0 %v1939
    %3506 = vmatmul.bf16.gmra.mxu0 %v794
    %v3507 = vpop.f32.mrf.mxu0
    %v3508 = vadd.f32 %v3459, %v3507
    %v3509 = vpop.f32.mrf.mxu0
    %v3510 = vadd.f32 %v3461, %v3509
    %3511 = vmatmul.bf16.gmra.mxu0 %v810
    %v3512 = vpop.f32.mrf.mxu0
    %v3513 = vadd.f32 %v3464, %v3512
    %v3514 = vpop.f32.mrf.mxu0
    %v3515 = vadd.f32 %v3466, %v3514
    %3516 = vmatmul.bf16.gmra.mxu0 %v826
    %v3517 = vpop.f32.mrf.mxu0
    %v3518 = vadd.f32 %v3469, %v3517
    %v3519 = vpop.f32.mrf.mxu0
    %v3520 = vadd.f32 %v3471, %v3519
    %3521 = vmatmul.bf16.gmra.mxu0 %v842
    %v3522 = vpop.f32.mrf.mxu0
    %v3523 = vadd.f32 %v3474, %v3522
    %v3524 = vpop.f32.mrf.mxu0
    %v3525 = vadd.f32 %v3476, %v3524
    %3526 = vmatmul.bf16.gmra.mxu0 %v858
    %v3527 = vpop.f32.mrf.mxu0
    %v3528 = vadd.f32 %v3479, %v3527
    %v3529 = vpop.f32.mrf.mxu0
    %v3530 = vadd.f32 %v3481, %v3529
    %3531 = vmatmul.bf16.gmra.mxu0 %v874
    %v3532 = vpop.f32.mrf.mxu0
    %v3533 = vadd.f32 %v3484, %v3532
    %v3534 = vpop.f32.mrf.mxu0
    %v3535 = vadd.f32 %v3486, %v3534
    %3536 = vmatmul.bf16.gmra.mxu0 %v890
    %v3537 = vpop.f32.mrf.mxu0
    %v3538 = vadd.f32 %v3489, %v3537
    %v3539 = vpop.f32.mrf.mxu0
    %v3540 = vadd.f32 %v3491, %v3539
    %3541 = vmatmul.bf16.gmra.mxu0 %v906
    %v3542 = vpop.f32.mrf.mxu0
    %v3543 = vadd.f32 %v3494, %v3542
    %v3544 = vpop.f32.mrf.mxu0
    %v3545 = vadd.f32 %v3496, %v3544
    %3546 = vdwg.mxu0
    %3547 = vmatpush.bf16.msra.mxu0 %v1969
    %3548 = vmatpush.bf16.msra.mxu0 %v1967
    %3549 = vmatpush.bf16.msra.mxu0 %v1965
    %3550 = vmatpush.bf16.msra.mxu0 %v1963
    %3551 = vmatpush.bf16.msra.mxu0 %v1961
    %3552 = vmatpush.bf16.msra.mxu0 %v1959
    %3553 = vmatpush.bf16.msra.mxu0 %v1957
    %3554 = vmatpush.bf16.msra.mxu0 %v1955
    %3555 = vmatmul.bf16.gmra.mxu0 %v795
    %v3556 = vpop.f32.mrf.mxu0
    %v3557 = vadd.f32 %v3508, %v3556
    %v3558 = vpop.f32.mrf.mxu0
    %v3559 = vadd.f32 %v3510, %v3558
    %3560 = vmatmul.bf16.gmra.mxu0 %v811
    %v3561 = vpop.f32.mrf.mxu0
    %v3562 = vadd.f32 %v3513, %v3561
    %v3563 = vpop.f32.mrf.mxu0
    %v3564 = vadd.f32 %v3515, %v3563
    %3565 = vmatmul.bf16.gmra.mxu0 %v827
    %v3566 = vpop.f32.mrf.mxu0
    %v3567 = vadd.f32 %v3518, %v3566
    %v3568 = vpop.f32.mrf.mxu0
    %v3569 = vadd.f32 %v3520, %v3568
    %3570 = vmatmul.bf16.gmra.mxu0 %v843
    %v3571 = vpop.f32.mrf.mxu0
    %v3572 = vadd.f32 %v3523, %v3571
    %v3573 = vpop.f32.mrf.mxu0
    %v3574 = vadd.f32 %v3525, %v3573
    %3575 = vmatmul.bf16.gmra.mxu0 %v859
    %v3576 = vpop.f32.mrf.mxu0
    %v3577 = vadd.f32 %v3528, %v3576
    %v3578 = vpop.f32.mrf.mxu0
    %v3579 = vadd.f32 %v3530, %v3578
    %3580 = vmatmul.bf16.gmra.mxu0 %v875
    %v3581 = vpop.f32.mrf.mxu0
    %v3582 = vadd.f32 %v3533, %v3581
    %v3583 = vpop.f32.mrf.mxu0
    %v3584 = vadd.f32 %v3535, %v3583
    %3585 = vmatmul.bf16.gmra.mxu0 %v891
    %v3586 = vpop.f32.mrf.mxu0
    %v3587 = vadd.f32 %v3538, %v3586
    %v3588 = vpop.f32.mrf.mxu0
    %v3589 = vadd.f32 %v3540, %v3588
    %3590 = vmatmul.bf16.gmra.mxu0 %v907
    %v3591 = vpop.f32.mrf.mxu0
    %v3592 = vadd.f32 %v3543, %v3591
    %v3593 = vpop.f32.mrf.mxu0
    %v3594 = vadd.f32 %v3545, %v3593
    %3595 = vdwg.mxu0
    %3596 = vmatpush.bf16.msra.mxu0 %v1985
    %3597 = vmatpush.bf16.msra.mxu0 %v1983
    %3598 = vmatpush.bf16.msra.mxu0 %v1981
    %3599 = vmatpush.bf16.msra.mxu0 %v1979
    %3600 = vmatpush.bf16.msra.mxu0 %v1977
    %3601 = vmatpush.bf16.msra.mxu0 %v1975
    %3602 = vmatpush.bf16.msra.mxu0 %v1973
    %3603 = vmatpush.bf16.msra.mxu0 %v1971
    %3604 = vmatmul.bf16.gmra.mxu0 %v796
    %v3605 = vpop.f32.mrf.mxu0
    %v3606 = vadd.f32 %v3557, %v3605
    %v3607 = vpop.f32.mrf.mxu0
    %v3608 = vadd.f32 %v3559, %v3607
    %3609 = vmatmul.bf16.gmra.mxu0 %v812
    %v3610 = vpop.f32.mrf.mxu0
    %v3611 = vadd.f32 %v3562, %v3610
    %v3612 = vpop.f32.mrf.mxu0
    %v3613 = vadd.f32 %v3564, %v3612
    %3614 = vmatmul.bf16.gmra.mxu0 %v828
    %v3615 = vpop.f32.mrf.mxu0
    %v3616 = vadd.f32 %v3567, %v3615
    %v3617 = vpop.f32.mrf.mxu0
    %v3618 = vadd.f32 %v3569, %v3617
    %3619 = vmatmul.bf16.gmra.mxu0 %v844
    %v3620 = vpop.f32.mrf.mxu0
    %v3621 = vadd.f32 %v3572, %v3620
    %v3622 = vpop.f32.mrf.mxu0
    %v3623 = vadd.f32 %v3574, %v3622
    %3624 = vmatmul.bf16.gmra.mxu0 %v860
    %v3625 = vpop.f32.mrf.mxu0
    %v3626 = vadd.f32 %v3577, %v3625
    %v3627 = vpop.f32.mrf.mxu0
    %v3628 = vadd.f32 %v3579, %v3627
    %3629 = vmatmul.bf16.gmra.mxu0 %v876
    %v3630 = vpop.f32.mrf.mxu0
    %v3631 = vadd.f32 %v3582, %v3630
    %v3632 = vpop.f32.mrf.mxu0
    %v3633 = vadd.f32 %v3584, %v3632
    %3634 = vmatmul.bf16.gmra.mxu0 %v892
    %v3635 = vpop.f32.mrf.mxu0
    %v3636 = vadd.f32 %v3587, %v3635
    %v3637 = vpop.f32.mrf.mxu0
    %v3638 = vadd.f32 %v3589, %v3637
    %3639 = vmatmul.bf16.gmra.mxu0 %v908
    %v3640 = vpop.f32.mrf.mxu0
    %v3641 = vadd.f32 %v3592, %v3640
    %v3642 = vpop.f32.mrf.mxu0
    %v3643 = vadd.f32 %v3594, %v3642
    %3644 = vdwg.mxu0
    %3645 = vmatpush.bf16.msra.mxu0 %v2001
    %3646 = vmatpush.bf16.msra.mxu0 %v1999
    %3647 = vmatpush.bf16.msra.mxu0 %v1997
    %3648 = vmatpush.bf16.msra.mxu0 %v1995
    %3649 = vmatpush.bf16.msra.mxu0 %v1993
    %3650 = vmatpush.bf16.msra.mxu0 %v1991
    %3651 = vmatpush.bf16.msra.mxu0 %v1989
    %3652 = vmatpush.bf16.msra.mxu0 %v1987
    %3653 = vmatmul.bf16.gmra.mxu0 %v797
    %v3654 = vpop.f32.mrf.mxu0
    %v3655 = vadd.f32 %v3606, %v3654
    %v3656 = vpop.f32.mrf.mxu0
    %v3657 = vadd.f32 %v3608, %v3656
    %3658 = vmatmul.bf16.gmra.mxu0 %v813
    %v3659 = vpop.f32.mrf.mxu0
    %v3660 = vadd.f32 %v3611, %v3659
    %v3661 = vpop.f32.mrf.mxu0
    %v3662 = vadd.f32 %v3613, %v3661
    %3663 = vmatmul.bf16.gmra.mxu0 %v829
    %v3664 = vpop.f32.mrf.mxu0
    %v3665 = vadd.f32 %v3616, %v3664
    %v3666 = vpop.f32.mrf.mxu0
    %v3667 = vadd.f32 %v3618, %v3666
    %3668 = vmatmul.bf16.gmra.mxu0 %v845
    %v3669 = vpop.f32.mrf.mxu0
    %v3670 = vadd.f32 %v3621, %v3669
    %v3671 = vpop.f32.mrf.mxu0
    %v3672 = vadd.f32 %v3623, %v3671
    %3673 = vmatmul.bf16.gmra.mxu0 %v861
    %v3674 = vpop.f32.mrf.mxu0
    %v3675 = vadd.f32 %v3626, %v3674
    %v3676 = vpop.f32.mrf.mxu0
    %v3677 = vadd.f32 %v3628, %v3676
    %3678 = vmatmul.bf16.gmra.mxu0 %v877
    %v3679 = vpop.f32.mrf.mxu0
    %v3680 = vadd.f32 %v3631, %v3679
    %v3681 = vpop.f32.mrf.mxu0
    %v3682 = vadd.f32 %v3633, %v3681
    %3683 = vmatmul.bf16.gmra.mxu0 %v893
    %v3684 = vpop.f32.mrf.mxu0
    %v3685 = vadd.f32 %v3636, %v3684
    %v3686 = vpop.f32.mrf.mxu0
    %v3687 = vadd.f32 %v3638, %v3686
    %3688 = vmatmul.bf16.gmra.mxu0 %v909
    %v3689 = vpop.f32.mrf.mxu0
    %v3690 = vadd.f32 %v3641, %v3689
    %v3691 = vpop.f32.mrf.mxu0
    %v3692 = vadd.f32 %v3643, %v3691
    %3693 = vdwg.mxu0
    %3694 = vmatpush.bf16.msra.mxu0 %v2017
    %3695 = vmatpush.bf16.msra.mxu0 %v2015
    %3696 = vmatpush.bf16.msra.mxu0 %v2013
    %3697 = vmatpush.bf16.msra.mxu0 %v2011
    %3698 = vmatpush.bf16.msra.mxu0 %v2009
    %3699 = vmatpush.bf16.msra.mxu0 %v2007
    %3700 = vmatpush.bf16.msra.mxu0 %v2005
    %3701 = vmatpush.bf16.msra.mxu0 %v2003
    %3702 = vmatmul.bf16.gmra.mxu0 %v798
    %v3703 = vpop.f32.mrf.mxu0
    %v3704 = vadd.f32 %v3655, %v3703
    %v3705 = vpop.f32.mrf.mxu0
    %v3706 = vadd.f32 %v3657, %v3705
    %3707 = vmatmul.bf16.gmra.mxu0 %v814
    %v3708 = vpop.f32.mrf.mxu0
    %v3709 = vadd.f32 %v3660, %v3708
    %v3710 = vpop.f32.mrf.mxu0
    %v3711 = vadd.f32 %v3662, %v3710
    %3712 = vmatmul.bf16.gmra.mxu0 %v830
    %v3713 = vpop.f32.mrf.mxu0
    %v3714 = vadd.f32 %v3665, %v3713
    %v3715 = vpop.f32.mrf.mxu0
    %v3716 = vadd.f32 %v3667, %v3715
    %3717 = vmatmul.bf16.gmra.mxu0 %v846
    %v3718 = vpop.f32.mrf.mxu0
    %v3719 = vadd.f32 %v3670, %v3718
    %v3720 = vpop.f32.mrf.mxu0
    %v3721 = vadd.f32 %v3672, %v3720
    %3722 = vmatmul.bf16.gmra.mxu0 %v862
    %v3723 = vpop.f32.mrf.mxu0
    %v3724 = vadd.f32 %v3675, %v3723
    %v3725 = vpop.f32.mrf.mxu0
    %v3726 = vadd.f32 %v3677, %v3725
    %3727 = vmatmul.bf16.gmra.mxu0 %v878
    %v3728 = vpop.f32.mrf.mxu0
    %v3729 = vadd.f32 %v3680, %v3728
    %v3730 = vpop.f32.mrf.mxu0
    %v3731 = vadd.f32 %v3682, %v3730
    %3732 = vmatmul.bf16.gmra.mxu0 %v894
    %v3733 = vpop.f32.mrf.mxu0
    %v3734 = vadd.f32 %v3685, %v3733
    %v3735 = vpop.f32.mrf.mxu0
    %v3736 = vadd.f32 %v3687, %v3735
    %3737 = vmatmul.bf16.gmra.mxu0 %v910
    %v3738 = vpop.f32.mrf.mxu0
    %v3739 = vadd.f32 %v3690, %v3738
    %v3740 = vpop.f32.mrf.mxu0
    %v3741 = vadd.f32 %v3692, %v3740
    %3742 = vdwg.mxu0
    %3743 = vmatpush.bf16.msra.mxu0 %v2033
    %3744 = vmatpush.bf16.msra.mxu0 %v2031
    %3745 = vmatpush.bf16.msra.mxu0 %v2029
    %3746 = vmatpush.bf16.msra.mxu0 %v2027
    %3747 = vmatpush.bf16.msra.mxu0 %v2025
    %3748 = vmatpush.bf16.msra.mxu0 %v2023
    %3749 = vmatpush.bf16.msra.mxu0 %v2021
    %3750 = vmatpush.bf16.msra.mxu0 %v2019
    %3751 = vmatmul.bf16.gmra.mxu0 %v799
    %v3752 = vpop.f32.mrf.mxu0
    %v3753 = vadd.f32 %v3704, %v3752
    %v3754 = vpop.f32.mrf.mxu0
    %v3755 = vadd.f32 %v3706, %v3754
    %3756 = vmatmul.bf16.gmra.mxu0 %v815
    %v3757 = vpop.f32.mrf.mxu0
    %v3758 = vadd.f32 %v3709, %v3757
    %v3759 = vpop.f32.mrf.mxu0
    %v3760 = vadd.f32 %v3711, %v3759
    %3761 = vmatmul.bf16.gmra.mxu0 %v831
    %v3762 = vpop.f32.mrf.mxu0
    %v3763 = vadd.f32 %v3714, %v3762
    %v3764 = vpop.f32.mrf.mxu0
    %v3765 = vadd.f32 %v3716, %v3764
    %3766 = vmatmul.bf16.gmra.mxu0 %v847
    %v3767 = vpop.f32.mrf.mxu0
    %v3768 = vadd.f32 %v3719, %v3767
    %v3769 = vpop.f32.mrf.mxu0
    %v3770 = vadd.f32 %v3721, %v3769
    %3771 = vmatmul.bf16.gmra.mxu0 %v863
    %v3772 = vpop.f32.mrf.mxu0
    %v3773 = vadd.f32 %v3724, %v3772
    %v3774 = vpop.f32.mrf.mxu0
    %v3775 = vadd.f32 %v3726, %v3774
    %3776 = vmatmul.bf16.gmra.mxu0 %v879
    %v3777 = vpop.f32.mrf.mxu0
    %v3778 = vadd.f32 %v3729, %v3777
    %v3779 = vpop.f32.mrf.mxu0
    %v3780 = vadd.f32 %v3731, %v3779
    %3781 = vmatmul.bf16.gmra.mxu0 %v895
    %v3782 = vpop.f32.mrf.mxu0
    %v3783 = vadd.f32 %v3734, %v3782
    %v3784 = vpop.f32.mrf.mxu0
    %v3785 = vadd.f32 %v3736, %v3784
    %3786 = vmatmul.bf16.gmra.mxu0 %v911
    %v3787 = vpop.f32.mrf.mxu0
    %v3788 = vadd.f32 %v3739, %v3787
    %v3789 = vpop.f32.mrf.mxu0
    %v3790 = vadd.f32 %v3741, %v3789
    %3791 = vdwg.mxu0
    %3792 = vmatpush.bf16.msra.mxu0 %v2049
    %3793 = vmatpush.bf16.msra.mxu0 %v2047
    %3794 = vmatpush.bf16.msra.mxu0 %v2045
    %3795 = vmatpush.bf16.msra.mxu0 %v2043
    %3796 = vmatpush.bf16.msra.mxu0 %v2041
    %3797 = vmatpush.bf16.msra.mxu0 %v2039
    %3798 = vmatpush.bf16.msra.mxu0 %v2037
    %3799 = vmatpush.bf16.msra.mxu0 %v2035
    %3800 = vmatmul.bf16.gmra.mxu0 %v800
    %v3801 = vpop.f32.mrf.mxu0
    %v3802 = vadd.f32 %v3753, %v3801
    %v3803 = vpop.f32.mrf.mxu0
    %v3804 = vadd.f32 %v3755, %v3803
    %3805 = vmatmul.bf16.gmra.mxu0 %v816
    %v3806 = vpop.f32.mrf.mxu0
    %v3807 = vadd.f32 %v3758, %v3806
    %v3808 = vpop.f32.mrf.mxu0
    %v3809 = vadd.f32 %v3760, %v3808
    %3810 = vmatmul.bf16.gmra.mxu0 %v832
    %v3811 = vpop.f32.mrf.mxu0
    %v3812 = vadd.f32 %v3763, %v3811
    %v3813 = vpop.f32.mrf.mxu0
    %v3814 = vadd.f32 %v3765, %v3813
    %3815 = vmatmul.bf16.gmra.mxu0 %v848
    %v3816 = vpop.f32.mrf.mxu0
    %v3817 = vadd.f32 %v3768, %v3816
    %v3818 = vpop.f32.mrf.mxu0
    %v3819 = vadd.f32 %v3770, %v3818
    %3820 = vmatmul.bf16.gmra.mxu0 %v864
    %v3821 = vpop.f32.mrf.mxu0
    %v3822 = vadd.f32 %v3773, %v3821
    %v3823 = vpop.f32.mrf.mxu0
    %v3824 = vadd.f32 %v3775, %v3823
    %3825 = vmatmul.bf16.gmra.mxu0 %v880
    %v3826 = vpop.f32.mrf.mxu0
    %v3827 = vadd.f32 %v3778, %v3826
    %v3828 = vpop.f32.mrf.mxu0
    %v3829 = vadd.f32 %v3780, %v3828
    %3830 = vmatmul.bf16.gmra.mxu0 %v896
    %v3831 = vpop.f32.mrf.mxu0
    %v3832 = vadd.f32 %v3783, %v3831
    %v3833 = vpop.f32.mrf.mxu0
    %v3834 = vadd.f32 %v3785, %v3833
    %3835 = vmatmul.bf16.gmra.mxu0 %v912
    %v3836 = vpop.f32.mrf.mxu0
    %v3837 = vadd.f32 %v3788, %v3836
    %v3838 = vpop.f32.mrf.mxu0
    %v3839 = vadd.f32 %v3790, %v3838
    %3840 = vdwg.mxu0
    %3841 = vmatpush.bf16.msra.mxu0 %v2065
    %3842 = vmatpush.bf16.msra.mxu0 %v2063
    %3843 = vmatpush.bf16.msra.mxu0 %v2061
    %3844 = vmatpush.bf16.msra.mxu0 %v2059
    %3845 = vmatpush.bf16.msra.mxu0 %v2057
    %3846 = vmatpush.bf16.msra.mxu0 %v2055
    %3847 = vmatpush.bf16.msra.mxu0 %v2053
    %3848 = vmatpush.bf16.msra.mxu0 %v2051
    %3849 = vmatmul.bf16.gmra.mxu0 %v801
    %v3850 = vpop.f32.mrf.mxu0
    %v3851 = vadd.f32 %v3802, %v3850
    %v3852 = vpop.f32.mrf.mxu0
    %v3853 = vadd.f32 %v3804, %v3852
    %3854 = vmatmul.bf16.gmra.mxu0 %v817
    %v3855 = vpop.f32.mrf.mxu0
    %v3856 = vadd.f32 %v3807, %v3855
    %v3857 = vpop.f32.mrf.mxu0
    %v3858 = vadd.f32 %v3809, %v3857
    %3859 = vmatmul.bf16.gmra.mxu0 %v833
    %v3860 = vpop.f32.mrf.mxu0
    %v3861 = vadd.f32 %v3812, %v3860
    %v3862 = vpop.f32.mrf.mxu0
    %v3863 = vadd.f32 %v3814, %v3862
    %3864 = vmatmul.bf16.gmra.mxu0 %v849
    %v3865 = vpop.f32.mrf.mxu0
    %v3866 = vadd.f32 %v3817, %v3865
    %v3867 = vpop.f32.mrf.mxu0
    %v3868 = vadd.f32 %v3819, %v3867
    %3869 = vmatmul.bf16.gmra.mxu0 %v865
    %v3870 = vpop.f32.mrf.mxu0
    %v3871 = vadd.f32 %v3822, %v3870
    %v3872 = vpop.f32.mrf.mxu0
    %v3873 = vadd.f32 %v3824, %v3872
    %3874 = vmatmul.bf16.gmra.mxu0 %v881
    %v3875 = vpop.f32.mrf.mxu0
    %v3876 = vadd.f32 %v3827, %v3875
    %v3877 = vpop.f32.mrf.mxu0
    %v3878 = vadd.f32 %v3829, %v3877
    %3879 = vmatmul.bf16.gmra.mxu0 %v897
    %v3880 = vpop.f32.mrf.mxu0
    %v3881 = vadd.f32 %v3832, %v3880
    %v3882 = vpop.f32.mrf.mxu0
    %v3883 = vadd.f32 %v3834, %v3882
    %3884 = vmatmul.bf16.gmra.mxu0 %v913
    %v3885 = vpop.f32.mrf.mxu0
    %v3886 = vadd.f32 %v3837, %v3885
    %v3887 = vpop.f32.mrf.mxu0
    %v3888 = vadd.f32 %v3839, %v3887
    %3889 = vdwg.mxu0
    %v3890 = vadd.f32 %v3067, %v3069
    %v3891 = vadd.f32 %v3890, %v3072
    %v3892 = vadd.f32 %v3891, %v3074
    %v3893 = vadd.f32 %v3892, %v3077
    %v3894 = vadd.f32 %v3893, %v3079
    %v3895 = vadd.f32 %v3894, %v3082
    %v3896 = vadd.f32 %v3895, %v3084
    %v3897 = vadd.f32 %v3896, %v3087
    %v3898 = vadd.f32 %v3897, %v3089
    %v3899 = vadd.f32 %v3898, %v3092
    %v3900 = vadd.f32 %v3899, %v3094
    %v3901 = vadd.f32 %v3900, %v3097
    %v3902 = vadd.f32 %v3901, %v3099
    %v3903 = vadd.f32 %v3902, %v3102
    %v3904 = vadd.f32 %v3903, %v3104
    %v3905 = vrot.slane %v3904, 4
    %v3906 = vadd.f32 %v3904, %v3905
    %v3907 = vrot.slane %v3906, 2
    %v3908 = vadd.f32 %v3906, %v3907
    %v3909 = vrot.slane %v3908, 1
    %v3910 = vadd.f32 %v3908, %v3909
    %v3911 = vadd.f32 %v3851, %v3853
    %v3912 = vadd.f32 %v3911, %v3856
    %v3913 = vadd.f32 %v3912, %v3858
    %v3914 = vadd.f32 %v3913, %v3861
    %v3915 = vadd.f32 %v3914, %v3863
    %v3916 = vadd.f32 %v3915, %v3866
    %v3917 = vadd.f32 %v3916, %v3868
    %v3918 = vadd.f32 %v3917, %v3871
    %v3919 = vadd.f32 %v3918, %v3873
    %v3920 = vadd.f32 %v3919, %v3876
    %v3921 = vadd.f32 %v3920, %v3878
    %v3922 = vadd.f32 %v3921, %v3881
    %v3923 = vadd.f32 %v3922, %v3883
    %v3924 = vadd.f32 %v3923, %v3886
    %v3925 = vadd.f32 %v3924, %v3888
    %v3926 = vrot.slane %v3925, 4
    %v3927 = vadd.f32 %v3925, %v3926
    %v3928 = vrot.slane %v3927, 2
    %v3929 = vadd.f32 %v3927, %v3928
    %v3930 = vrot.slane %v3929, 1
    %v3931 = vadd.f32 %v3929, %v3930
    %v3932 = vrcp.pop 128.0
    %v3933 = vmul.f32 128.0, %v3932
    %v3934 = vsub.f32 1.0, %v3933
    %v3935 = vmul.f32 %v3932, %v3934
    %v3936 = vadd.f32 %v3932, %v3935
    %vm3937 = vweird.f32 %v3932
    %v3938 = vsel %vm3937, %v3932, %v3936
    %v3939 = vmul.f32 %v3910, %v3938
    %v3940 = vmul.f32 %v3931, %v3938
    %v3941 = vsub.f32 %v3067, %v3939
    %v3942 = vsub.f32 %v3851, %v3940
    %v3943 = vsub.f32 %v3069, %v3939
    %v3944 = vsub.f32 %v3853, %v3940
    %v3945 = vsub.f32 %v3072, %v3939
    %v3946 = vsub.f32 %v3856, %v3940
    %v3947 = vsub.f32 %v3074, %v3939
    %v3948 = vsub.f32 %v3858, %v3940
    %v3949 = vsub.f32 %v3077, %v3939
    %v3950 = vsub.f32 %v3861, %v3940
    %v3951 = vsub.f32 %v3079, %v3939
    %v3952 = vsub.f32 %v3863, %v3940
    %v3953 = vsub.f32 %v3082, %v3939
    %v3954 = vsub.f32 %v3866, %v3940
    %v3955 = vsub.f32 %v3084, %v3939
    %v3956 = vsub.f32 %v3868, %v3940
    %v3957 = vsub.f32 %v3087, %v3939
    %v3958 = vsub.f32 %v3871, %v3940
    %v3959 = vsub.f32 %v3089, %v3939
    %v3960 = vsub.f32 %v3873, %v3940
    %v3961 = vsub.f32 %v3092, %v3939
    %v3962 = vsub.f32 %v3876, %v3940
    %v3963 = vsub.f32 %v3094, %v3939
    %v3964 = vsub.f32 %v3878, %v3940
    %v3965 = vsub.f32 %v3097, %v3939
    %v3966 = vsub.f32 %v3881, %v3940
    %v3967 = vsub.f32 %v3099, %v3939
    %v3968 = vsub.f32 %v3883, %v3940
    %v3969 = vsub.f32 %v3102, %v3939
    %v3970 = vsub.f32 %v3886, %v3940
    %v3971 = vsub.f32 %v3104, %v3939
    %v3972 = vsub.f32 %v3888, %v3940
    %v3973 = vmul.f32 %v3941, %v3941
    %v3974 = vmul.f32 %v3942, %v3942
    %v3975 = vmul.f32 %v3943, %v3943
    %v3976 = vmul.f32 %v3944, %v3944
    %v3977 = vmul.f32 %v3945, %v3945
    %v3978 = vmul.f32 %v3946, %v3946
    %v3979 = vmul.f32 %v3947, %v3947
    %v3980 = vmul.f32 %v3948, %v3948
    %v3981 = vmul.f32 %v3949, %v3949
    %v3982 = vmul.f32 %v3950, %v3950
    %v3983 = vmul.f32 %v3951, %v3951
    %v3984 = vmul.f32 %v3952, %v3952
    %v3985 = vmul.f32 %v3953, %v3953
    %v3986 = vmul.f32 %v3954, %v3954
    %v3987 = vmul.f32 %v3955, %v3955
    %v3988 = vmul.f32 %v3956, %v3956
    %v3989 = vmul.f32 %v3957, %v3957
    %v3990 = vmul.f32 %v3958, %v3958
    %v3991 = vmul.f32 %v3959, %v3959
    %v3992 = vmul.f32 %v3960, %v3960
    %v3993 = vmul.f32 %v3961, %v3961
    %v3994 = vmul.f32 %v3962, %v3962
    %v3995 = vmul.f32 %v3963, %v3963
    %v3996 = vmul.f32 %v3964, %v3964
    %v3997 = vmul.f32 %v3965, %v3965
    %v3998 = vmul.f32 %v3966, %v3966
    %v3999 = vmul.f32 %v3967, %v3967
    %v4000 = vmul.f32 %v3968, %v3968
    %v4001 = vmul.f32 %v3969, %v3969
    %v4002 = vmul.f32 %v3970, %v3970
    %v4003 = vmul.f32 %v3971, %v3971
    %v4004 = vmul.f32 %v3972, %v3972
    %v4005 = vadd.f32 %v3973, %v3975
    %v4006 = vadd.f32 %v4005, %v3977
    %v4007 = vadd.f32 %v4006, %v3979
    %v4008 = vadd.f32 %v4007, %v3981
    %v4009 = vadd.f32 %v4008, %v3983
    %v4010 = vadd.f32 %v4009, %v3985
    %v4011 = vadd.f32 %v4010, %v3987
    %v4012 = vadd.f32 %v4011, %v3989
    %v4013 = vadd.f32 %v4012, %v3991
    %v4014 = vadd.f32 %v4013, %v3993
    %v4015 = vadd.f32 %v4014, %v3995
    %v4016 = vadd.f32 %v4015, %v3997
    %v4017 = vadd.f32 %v4016, %v3999
    %v4018 = vadd.f32 %v4017, %v4001
    %v4019 = vadd.f32 %v4018, %v4003
    %v4020 = vrot.slane %v4019, 4
    %v4021 = vadd.f32 %v4019, %v4020
    %v4022 = vrot.slane %v4021, 2
    %v4023 = vadd.f32 %v4021, %v4022
    %v4024 = vrot.slane %v4023, 1
    %v4025 = vadd.f32 %v4023, %v4024
    %v4026 = vadd.f32 %v3974, %v3976
    %v4027 = vadd.f32 %v4026, %v3978
    %v4028 = vadd.f32 %v4027, %v3980
    %v4029 = vadd.f32 %v4028, %v3982
    %v4030 = vadd.f32 %v4029, %v3984
    %v4031 = vadd.f32 %v4030, %v3986
    %v4032 = vadd.f32 %v4031, %v3988
    %v4033 = vadd.f32 %v4032, %v3990
    %v4034 = vadd.f32 %v4033, %v3992
    %v4035 = vadd.f32 %v4034, %v3994
    %v4036 = vadd.f32 %v4035, %v3996
    %v4037 = vadd.f32 %v4036, %v3998
    %v4038 = vadd.f32 %v4037, %v4000
    %v4039 = vadd.f32 %v4038, %v4002
    %v4040 = vadd.f32 %v4039, %v4004
    %v4041 = vrot.slane %v4040, 4
    %v4042 = vadd.f32 %v4040, %v4041
    %v4043 = vrot.slane %v4042, 2
    %v4044 = vadd.f32 %v4042, %v4043
    %v4045 = vrot.slane %v4044, 1
    %v4046 = vadd.f32 %v4044, %v4045
    %v4047 = vmul.f32 %v4025, %v3938
    %v4048 = vmul.f32 %v4046, %v3938
    %v4049 = vadd.f32 %v4047, 1e-05
    %v4050 = vadd.f32 %v4048, 1e-05
    %v4051 = vrsqrt.pop %v4049
    %v4052 = vmul.f32 %v4051, %v4049
    %v4053 = vmul.f32 %v4052, %v4051
    %v4054 = vmul.f32 0.5, %v4053
    %v4055 = vsub.f32 1.5, %v4054
    %v4056 = vmul.f32 %v4051, %v4055
    %vm4057 = vweird.f32 %v4049
    %vm4058 = vweird.f32 %v4051
    %vm4059 = vmor %vm4057, %vm4058
    %v4060 = vsel %vm4059, %v4051, %v4056
    %v4061 = vrsqrt.pop %v4050
    %v4062 = vmul.f32 %v4061, %v4050
    %v4063 = vmul.f32 %v4062, %v4061
    %v4064 = vmul.f32 0.5, %v4063
    %v4065 = vsub.f32 1.5, %v4064
    %v4066 = vmul.f32 %v4061, %v4065
    %vm4067 = vweird.f32 %v4050
    %vm4068 = vweird.f32 %v4061
    %vm4069 = vmor %vm4067, %vm4068
    %v4070 = vsel %vm4069, %v4061, %v4066
    %v4071 = vmul.f32 %v3941, %v4060
    %v4072 = vmul.f32 %v3942, %v4070
    %v4073 = vmul.f32 %v3943, %v4060
    %v4074 = vmul.f32 %v3944, %v4070
    %v4075 = vmul.f32 %v3945, %v4060
    %v4076 = vmul.f32 %v3946, %v4070
    %v4077 = vmul.f32 %v3947, %v4060
    %v4078 = vmul.f32 %v3948, %v4070
    %v4079 = vmul.f32 %v3949, %v4060
    %v4080 = vmul.f32 %v3950, %v4070
    %v4081 = vmul.f32 %v3951, %v4060
    %v4082 = vmul.f32 %v3952, %v4070
    %v4083 = vmul.f32 %v3953, %v4060
    %v4084 = vmul.f32 %v3954, %v4070
    %v4085 = vmul.f32 %v3955, %v4060
    %v4086 = vmul.f32 %v3956, %v4070
    %v4087 = vmul.f32 %v3957, %v4060
    %v4088 = vmul.f32 %v3958, %v4070
    %v4089 = vmul.f32 %v3959, %v4060
    %v4090 = vmul.f32 %v3960, %v4070
    %v4091 = vmul.f32 %v3961, %v4060
    %v4092 = vmul.f32 %v3962, %v4070
    %v4093 = vmul.f32 %v3963, %v4060
    %v4094 = vmul.f32 %v3964, %v4070
    %v4095 = vmul.f32 %v3965, %v4060
    %v4096 = vmul.f32 %v3966, %v4070
    %v4097 = vmul.f32 %v3967, %v4060
    %v4098 = vmul.f32 %v3968, %v4070
    %v4099 = vmul.f32 %v3969, %v4060
    %v4100 = vmul.f32 %v3970, %v4070
    %v4101 = vmul.f32 %v3971, %v4060
    %v4102 = vmul.f32 %v3972, %v4070
    %v4103 = vld [vmem:[%s2] sm:$0x3]
    %v4105 = vperm.slane %v4103, 0
    %v4106 = vperm.slane %v4103, 1
    %v4109 = vmul.f32 %v4071, %v4105
    %v4110 = vmul.f32 %v4072, %v4106
    %v4111 = vmul.f32 %v4073, %v4105
    %v4112 = vmul.f32 %v4074, %v4106
    %v4113 = vmul.f32 %v4075, %v4105
    %v4114 = vmul.f32 %v4076, %v4106
    %v4115 = vmul.f32 %v4077, %v4105
    %v4116 = vmul.f32 %v4078, %v4106
    %v4117 = vmul.f32 %v4079, %v4105
    %v4118 = vmul.f32 %v4080, %v4106
    %v4119 = vmul.f32 %v4081, %v4105
    %v4120 = vmul.f32 %v4082, %v4106
    %v4121 = vmul.f32 %v4083, %v4105
    %v4122 = vmul.f32 %v4084, %v4106
    %v4123 = vmul.f32 %v4085, %v4105
    %v4124 = vmul.f32 %v4086, %v4106
    %v4125 = vmul.f32 %v4087, %v4105
    %v4126 = vmul.f32 %v4088, %v4106
    %v4127 = vmul.f32 %v4089, %v4105
    %v4128 = vmul.f32 %v4090, %v4106
    %v4129 = vmul.f32 %v4091, %v4105
    %v4130 = vmul.f32 %v4092, %v4106
    %v4131 = vmul.f32 %v4093, %v4105
    %v4132 = vmul.f32 %v4094, %v4106
    %v4133 = vmul.f32 %v4095, %v4105
    %v4134 = vmul.f32 %v4096, %v4106
    %v4135 = vmul.f32 %v4097, %v4105
    %v4136 = vmul.f32 %v4098, %v4106
    %v4137 = vmul.f32 %v4099, %v4105
    %v4138 = vmul.f32 %v4100, %v4106
    %v4139 = vmul.f32 %v4101, %v4105
    %v4140 = vmul.f32 %v4102, %v4106
    %v4141 = vld [vmem:[%s3] sm:$0x3]
    %v4143 = vperm.slane %v4141, 0
    %v4144 = vperm.slane %v4141, 1
    %v4147 = vadd.f32 %v4109, %v4143
    %v4148 = vadd.f32 %v4110, %v4144
    %v4149 = vadd.f32 %v4111, %v4143
    %v4150 = vadd.f32 %v4112, %v4144
    %v4151 = vadd.f32 %v4113, %v4143
    %v4152 = vadd.f32 %v4114, %v4144
    %v4153 = vadd.f32 %v4115, %v4143
    %v4154 = vadd.f32 %v4116, %v4144
    %v4155 = vadd.f32 %v4117, %v4143
    %v4156 = vadd.f32 %v4118, %v4144
    %v4157 = vadd.f32 %v4119, %v4143
    %v4158 = vadd.f32 %v4120, %v4144
    %v4159 = vadd.f32 %v4121, %v4143
    %v4160 = vadd.f32 %v4122, %v4144
    %v4161 = vadd.f32 %v4123, %v4143
    %v4162 = vadd.f32 %v4124, %v4144
    %v4163 = vadd.f32 %v4125, %v4143
    %v4164 = vadd.f32 %v4126, %v4144
    %v4165 = vadd.f32 %v4127, %v4143
    %v4166 = vadd.f32 %v4128, %v4144
    %v4167 = vadd.f32 %v4129, %v4143
    %v4168 = vadd.f32 %v4130, %v4144
    %v4169 = vadd.f32 %v4131, %v4143
    %v4170 = vadd.f32 %v4132, %v4144
    %v4171 = vadd.f32 %v4133, %v4143
    %v4172 = vadd.f32 %v4134, %v4144
    %v4173 = vadd.f32 %v4135, %v4143
    %v4174 = vadd.f32 %v4136, %v4144
    %v4175 = vadd.f32 %v4137, %v4143
    %v4176 = vadd.f32 %v4138, %v4144
    %v4177 = vadd.f32 %v4139, %v4143
    %v4178 = vadd.f32 %v4140, %v4144
    %v4179 = vmul.f32 %v4147, 0.1
    %v4180 = vmul.f32 %v4148, 0.1
    %v4181 = vmul.f32 %v4149, 0.1
    %v4182 = vmul.f32 %v4150, 0.1
    %v4183 = vmul.f32 %v4151, 0.1
    %v4184 = vmul.f32 %v4152, 0.1
    %v4185 = vmul.f32 %v4153, 0.1
    %v4186 = vmul.f32 %v4154, 0.1
    %v4187 = vmul.f32 %v4155, 0.1
    %v4188 = vmul.f32 %v4156, 0.1
    %v4189 = vmul.f32 %v4157, 0.1
    %v4190 = vmul.f32 %v4158, 0.1
    %v4191 = vmul.f32 %v4159, 0.1
    %v4192 = vmul.f32 %v4160, 0.1
    %v4193 = vmul.f32 %v4161, 0.1
    %v4194 = vmul.f32 %v4162, 0.1
    %v4195 = vmul.f32 %v4163, 0.1
    %v4196 = vmul.f32 %v4164, 0.1
    %v4197 = vmul.f32 %v4165, 0.1
    %v4198 = vmul.f32 %v4166, 0.1
    %v4199 = vmul.f32 %v4167, 0.1
    %v4200 = vmul.f32 %v4168, 0.1
    %v4201 = vmul.f32 %v4169, 0.1
    %v4202 = vmul.f32 %v4170, 0.1
    %v4203 = vmul.f32 %v4171, 0.1
    %v4204 = vmul.f32 %v4172, 0.1
    %v4205 = vmul.f32 %v4173, 0.1
    %v4206 = vmul.f32 %v4174, 0.1
    %v4207 = vmul.f32 %v4175, 0.1
    %v4208 = vmul.f32 %v4176, 0.1
    %v4209 = vmul.f32 %v4177, 0.1
    %v4210 = vmul.f32 %v4178, 0.1
    %v4211 = vmax.f32 %v4147, %v4179
    %v4212 = vmax.f32 %v4148, %v4180
    %v4213 = vmax.f32 %v4149, %v4181
    %v4214 = vmax.f32 %v4150, %v4182
    %v4215 = vmax.f32 %v4151, %v4183
    %v4216 = vmax.f32 %v4152, %v4184
    %v4217 = vmax.f32 %v4153, %v4185
    %v4218 = vmax.f32 %v4154, %v4186
    %v4219 = vmax.f32 %v4155, %v4187
    %v4220 = vmax.f32 %v4156, %v4188
    %v4221 = vmax.f32 %v4157, %v4189
    %v4222 = vmax.f32 %v4158, %v4190
    %v4223 = vmax.f32 %v4159, %v4191
    %v4224 = vmax.f32 %v4160, %v4192
    %v4225 = vmax.f32 %v4161, %v4193
    %v4226 = vmax.f32 %v4162, %v4194
    %v4227 = vmax.f32 %v4163, %v4195
    %v4228 = vmax.f32 %v4164, %v4196
    %v4229 = vmax.f32 %v4165, %v4197
    %v4230 = vmax.f32 %v4166, %v4198
    %v4231 = vmax.f32 %v4167, %v4199
    %v4232 = vmax.f32 %v4168, %v4200
    %v4233 = vmax.f32 %v4169, %v4201
    %v4234 = vmax.f32 %v4170, %v4202
    %v4235 = vmax.f32 %v4171, %v4203
    %v4236 = vmax.f32 %v4172, %v4204
    %v4237 = vmax.f32 %v4173, %v4205
    %v4238 = vmax.f32 %v4174, %v4206
    %v4239 = vmax.f32 %v4175, %v4207
    %v4240 = vmax.f32 %v4176, %v4208
    %v4241 = vmax.f32 %v4177, %v4209
    %v4242 = vmax.f32 %v4178, %v4210
    %4243 = vst [vmem:[#allocation2] sm:$0xff] %v4211
    %4244 = vst [vmem:[#allocation2 + $0x8] sm:$0xff] %v4212
    %4245 = vst [vmem:[#allocation2 + $0x10] sm:$0xff] %v4213
    %4246 = vst [vmem:[#allocation2 + $0x18] sm:$0xff] %v4214
    %4247 = vst [vmem:[#allocation2 + $0x20] sm:$0xff] %v4215
    %4248 = vst [vmem:[#allocation2 + $0x28] sm:$0xff] %v4216
    %4249 = vst [vmem:[#allocation2 + $0x30] sm:$0xff] %v4217
    %4250 = vst [vmem:[#allocation2 + $0x38] sm:$0xff] %v4218
    %4251 = vst [vmem:[#allocation2 + $0x40] sm:$0xff] %v4219
    %4252 = vst [vmem:[#allocation2 + $0x48] sm:$0xff] %v4220
    %4253 = vst [vmem:[#allocation2 + $0x50] sm:$0xff] %v4221
    %4254 = vst [vmem:[#allocation2 + $0x58] sm:$0xff] %v4222
    %4255 = vst [vmem:[#allocation2 + $0x60] sm:$0xff] %v4223
    %4256 = vst [vmem:[#allocation2 + $0x68] sm:$0xff] %v4224
    %4257 = vst [vmem:[#allocation2 + $0x70] sm:$0xff] %v4225
    %4258 = vst [vmem:[#allocation2 + $0x78] sm:$0xff] %v4226
    %4259 = vst [vmem:[#allocation2 + $0x80] sm:$0xff] %v4227
    %4260 = vst [vmem:[#allocation2 + $0x88] sm:$0xff] %v4228
    %4261 = vst [vmem:[#allocation2 + $0x90] sm:$0xff] %v4229
    %4262 = vst [vmem:[#allocation2 + $0x98] sm:$0xff] %v4230
    %4263 = vst [vmem:[#allocation2 + $0xa0] sm:$0xff] %v4231
    %4264 = vst [vmem:[#allocation2 + $0xa8] sm:$0xff] %v4232
    %4265 = vst [vmem:[#allocation2 + $0xb0] sm:$0xff] %v4233
    %4266 = vst [vmem:[#allocation2 + $0xb8] sm:$0xff] %v4234
    %4267 = vst [vmem:[#allocation2 + $0xc0] sm:$0xff] %v4235
    %4268 = vst [vmem:[#allocation2 + $0xc8] sm:$0xff] %v4236
    %4269 = vst [vmem:[#allocation2 + $0xd0] sm:$0xff] %v4237
    %4270 = vst [vmem:[#allocation2 + $0xd8] sm:$0xff] %v4238
    %4271 = vst [vmem:[#allocation2 + $0xe0] sm:$0xff] %v4239
    %4272 = vst [vmem:[#allocation2 + $0xe8] sm:$0xff] %v4240
    %4273 = vst [vmem:[#allocation2 + $0xf0] sm:$0xff] %v4241
    %4274 = vst [vmem:[#allocation2 + $0xf8] sm:$0xff] %v4242
    // Predicated region
    $region18: #{discriminator_forward.5} parent=1 // pred_check
      _
    $region19: #{discriminator_forward.5} parent=1 // pred_check_branch
      %4276 = sbr.rel (0) target = $region21
    $region20: #{discriminator_forward.5} parent=1 // pred_region
      %4278 = vsyncadd [#allocation3], 0
      %s4279 = sshll.u32 [#allocation2], 4
      %s4280 = int_to_ptr.vmem [resolvable:$true] %s4279
      %s4281 = sshll.u32 %s4, 4
      %s4282 = int_to_ptr.hbm [resolvable:$true] %s4281
      %4287 = dma.vmem_to_hbm [thread:$0]  %s4280, 4096, %s4282, [#allocation3], 256, 256, 16
    $region21: #{discriminator_forward.5} parent=1 // pred_fallthru
      _
    // Predicated region
    $region22: #{discriminator_forward.5} parent=1 // pred_check
      _
    $region23: #{discriminator_forward.5} parent=1 // pred_check_branch
      %4289 = sbr.rel (0) target = $region25
    $region24: #{discriminator_forward.5} parent=1 // pred_region
      %4291 = dma.done [#allocation3], 4096
    $region25: #{discriminator_forward.5} parent=1 // pred_fallthru
      _
    %4292 = vsyncpa [#allocation3], 1

</llo_original>
